<compile_context>
chip_gen: v5e
topology: v5e:2x2
jax: 0.10.0
libtpu: 0.0.40
codegen_flags: <defaults>
</compile_context>

<pallas_src>
import functools

import jax
import jax.numpy as jnp
from jax.experimental import pallas as pl
from jax.experimental.pallas import tpu as pltpu


def _sigmoid(x):
    # sigmoid(x) = 1 / (1 + exp(-x)); exp on the EUP, approx reciprocal keeps
    # the divide on the EUP slot instead of a Newton-refined VALU sequence.
    return pl.reciprocal(1.0 + jnp.exp(-x), approx=True)


def _mamba_block_kernel(
    x_ref,       # (R, C)   R = Bt*N rows of the pre-norm input (residual source)
    gamma_ref,   # (1, C)   layernorm weight (f32)
    beta_ref,    # (1, C)   layernorm bias   (f32)
    w_in_ref,    # (C, D)   in_proj                     (compute dtype)
    w_conv_ref,  # (K, D)   depthwise conv taps         (f32)
    w_x_ref,     # (D, 2S)  x_proj                      (compute dtype)
    w_dta_ref,   # (2S, 2D) block-diag [[w_dt,0],[0,w_a]] (compute dtype)
    b_dta_ref,   # (1, 2D)  [b_dt | b_a]                (f32)
    w_out_ref,   # (D, C)   out_proj                    (compute dtype)
    o_ref,       # (R, C)   output rows (aliased with the input buffer)
    *,
    seq_len: int,
    eps: float,
):
    K = w_conv_ref.shape[0]
    D = w_in_ref.shape[1]
    mm_dtype = w_in_ref.dtype                          # matmul operand dtype

    # ---- LayerNorm over channels (f32) ----
    x = x_ref[...].astype(jnp.float32)                 # (R, C)
    R = x.shape[0]
    mean = jnp.mean(x, axis=-1, keepdims=True)
    cent = x - mean
    var = jnp.mean(cent * cent, axis=-1, keepdims=True)
    xn_mm = ((cent * jax.lax.rsqrt(var + eps)) * gamma_ref[...]
             + beta_ref[...]).astype(mm_dtype)         # drop f32 xn immediately

    # ---- in_proj (MXU, f32 accumulation) ----
    h = jnp.dot(xn_mm, w_in_ref[...],
                preferred_element_type=jnp.float32)    # (R, D)

    # ---- causal depthwise conv1d (padding=K-1, cropped to N) ----
    # conv[n] = sum_{s=0}^{K-1} w[K-1-s] * h[n-s]   (h[n-s] = 0 for n < s)
    # Shifts via XLU roll on the flattened rows + per-sequence causal masks
    # (rows that would cross a sequence boundary are zeroed, so flattening
    # batch*sequence is safe).  Mask compares hoisted out of the tap loop.
    w_conv = w_conv_ref[...].astype(jnp.float32)       # (K, D)
    n_in_seq = jax.lax.broadcasted_iota(jnp.int32, (R, 1), 0) % seq_len
    masks = [n_in_seq >= s for s in range(1, K)]       # K-1 (R,1) bool masks
    conv = h * w_conv[K - 1:K, :]                      # s = 0 tap
    for s in range(1, K):                              # K is small & static
        shifted = pltpu.roll(h, shift=s, axis=0)       # shifted[r] = h[r - s]
        conv = conv + jnp.where(masks[s - 1], shifted, 0.0) * w_conv[K - 1 - s:K - s, :]

    # ---- SiLU (f32, EUP exp + approx recip) ----
    a = conv * _sigmoid(conv)                          # (R, D)

    # ---- low-rank x_proj -> fused (dt | A) second stage ----
    xdbl = jnp.dot(a.astype(mm_dtype), w_x_ref[...],
                   preferred_element_type=jnp.float32)           # (R, 2S)
    dtA = jnp.dot(xdbl.astype(mm_dtype), w_dta_ref[...],
                  preferred_element_type=jnp.float32) + b_dta_ref[...]  # (R, 2D)

    # ---- gate (before the A add, to shorten live ranges) + out_proj ----
    y = a * _sigmoid(dtA[:, :D])                       # (R, D); a, dt dead after
    y = y + dtA[:, D:]                                 # + A
    out = jnp.dot(y.astype(mm_dtype), w_out_ref[...],
                  preferred_element_type=jnp.float32)  # (R, C)

    # ---- residual add: re-read x_ref so x need not stay live across the body ----
    o_ref[...] = (x_ref[...].astype(jnp.float32) + out).astype(o_ref.dtype)


def _choose_block_b(B, N, target_rows=512):
    """Pick Bt (batch tile) so Bt*N is as close to target_rows as possible
    while keeping >= 2 grid steps; prefer an even step count (v7x megacore)."""
    divisors = [d for d in range(1, B + 1) if B % d == 0]
    ok = [d for d in divisors if (d * N) % 8 == 0 or d == B]
    if not ok:
        ok = [B]
    cands = [d for d in ok if d * N <= max(target_rows, N) and B // d >= 2]
    if not cands:
        cands = [d for d in ok if d * N <= max(target_rows, N)]
    if not cands:
        cands = [min(ok)]
    bt = max(cands)
    # Prefer an even number of grid steps when it costs at most a 2x smaller
    # tile (load balance across v7x's 2 TensorCores; no-op on v5e/v6e).
    if (B // bt) % 2 == 1 and B // bt > 1:
        even = [d for d in cands if (B // d) % 2 == 0]
        if even and 2 * max(even) >= bt:
            bt = max(even)
    return bt


def mamba_block_forward(x, params, *, eps=1e-5, compute_dtype=jnp.float32,
                        block_b=None, target_rows=512, out_dtype=None,
                        vmem_cap_bytes=48 * 1024 * 1024):
    """x: (B, N, C) float32.  Returns (B, N, C).

    compute_dtype: dtype of MXU operands (weights + activations fed to the
    matmuls).  bfloat16 is recommended on ALL generations (v5e/v6e/v7x) —
    only the MXU operands are narrowed; LayerNorm / SiLU / gating /
    accumulation stay f32.
    """
    B, N, C = x.shape
    S = params["w_dt"].shape[0]
    D = params["w_in"].shape[1]
    assert params["w_x"].shape[1] == 2 * S
    out_dtype = x.dtype if out_dtype is None else out_dtype

    # ---- weight prep (low-rank chain kept; dt/A fused into one block-diag) ----
    w_in = params["w_in"].astype(compute_dtype)                    # (C, D)
    w_out = params["w_out"].astype(compute_dtype)                  # (D, C)
    w_x = params["w_x"].astype(compute_dtype)                      # (D, 2S)
    w_dta = jnp.zeros((2 * S, 2 * D), jnp.float32)
    w_dta = w_dta.at[:S, :D].set(params["w_dt"])
    w_dta = w_dta.at[S:, D:].set(params["w_a"])
    w_dta = w_dta.astype(compute_dtype)                            # (2S, 2D)
    b_dta = jnp.concatenate([params["b_dt"], params["b_a"]]
                            ).reshape(1, 2 * D).astype(jnp.float32)
    w_conv = params["w_conv"].astype(jnp.float32)                  # (K, D)
    gamma = params["gamma"].reshape(1, C).astype(jnp.float32)
    beta = params["beta"].reshape(1, C).astype(jnp.float32)

    weight_arrays = (gamma, beta, w_in, w_conv, w_x, w_dta, b_dta, w_out)
    nbytes = lambda a: int(a.size) * a.dtype.itemsize
    weight_bytes = sum(nbytes(a) for a in weight_arrays)

    # ---- row tile derived from the VMEM budget (capped for v7x's 64 MiB/TC) ----
    per_row_bytes = ((2 * C + 6 * D + 2 * (2 * S)) * 4          # f32 intermediates
                     + 2 * 2 * C * x.dtype.itemsize)            # double-buffered I/O
    avail = max(vmem_cap_bytes - 2 * weight_bytes, 8 * 1024 * 1024)
    rows_budget = max(64, avail // (2 * per_row_bytes))         # 2x safety margin
    eff_target = int(min(target_rows, rows_budget))

    bt = block_b if block_b is not None else _choose_block_b(B, N, eff_target)
    assert B % bt == 0
    rows = bt * N
    grid = (B // bt,)

    x2 = x.reshape(B * N, C)     # flat row view; free metadata reshape

    kernel = functools.partial(_mamba_block_kernel, seq_len=N, eps=eps)

    act_bytes = rows * (2 * C + 6 * D + 2 * (2 * S)) * 4
    io_bytes = 2 * 2 * rows * C * x.dtype.itemsize
    vmem_limit = int(min(max(2 * weight_bytes + 2 * act_bytes + io_bytes,
                             16 * 1024 * 1024),
                         vmem_cap_bytes))

    def run(weight_buffer_count):
        def const_spec(arr):
            nd = arr.ndim
            idx = lambda b, _nd=nd: (0,) * _nd
            if weight_buffer_count is None:
                return pl.BlockSpec(arr.shape, idx)
            # Weights are fetched once (constant block index); single-buffer
            # them so they don't waste VMEM on a second copy.
            return pl.BlockSpec(arr.shape, idx,
                                pipeline_mode=pl.Buffered(weight_buffer_count))

        in_specs = [pl.BlockSpec((rows, C), lambda b: (b, 0))] \
                 + [const_spec(a) for a in weight_arrays]
        call = pl.pallas_call(
            kernel,
            out_shape=jax.ShapeDtypeStruct((B * N, C), out_dtype),
            grid_spec=pltpu.PrefetchScalarGridSpec(
                num_scalar_prefetch=0,
                grid=grid,
                in_specs=in_specs,
                out_specs=pl.BlockSpec((rows, C), lambda b: (b, 0)),
            ),
            compiler_params=pltpu.CompilerParams(
                dimension_semantics=("parallel",),
                vmem_limit_bytes=vmem_limit,
            ),
            # Residual output reuses the input buffer when dtypes match.
            input_output_aliases=({0: 0} if out_dtype == x.dtype else {}),
        )
        return call(x2, *weight_arrays)

    try:
        out2 = run(1)                 # single-buffered constant weights
    except Exception:                 # pragma: no cover - pipeline_mode unsupported
        out2 = run(None)              # fall back to default buffering

    return out2.reshape(B, N, C)


def make_params(key, dim, d_state=16, d_conv=4, expand=2):
    """Deterministic synthetic parameters (shapes match the PyTorch module,
    already transposed to y = x @ W orientation)."""
    D = dim * expand
    ks = jax.random.split(key, 8)
    scale = 0.1
    return {
        "gamma": jnp.ones((dim,), jnp.float32),
        "beta": jnp.zeros((dim,), jnp.float32),
        "w_in": scale * jax.random.normal(ks[0], (dim, D), jnp.float32),
        "w_conv": scale * jax.random.normal(ks[1], (d_conv, D), jnp.float32),
        "w_x": scale * jax.random.normal(ks[2], (D, 2 * d_state), jnp.float32),
        "w_dt": scale * jax.random.normal(ks[3], (d_state, D), jnp.float32),
        "b_dt": scale * jax.random.normal(ks[4], (D,), jnp.float32),
        "w_a": scale * jax.random.normal(ks[5], (d_state, D), jnp.float32),
        "b_a": scale * jax.random.normal(ks[6], (D,), jnp.float32),
        "w_out": scale * jax.random.normal(ks[7], (D, dim), jnp.float32),
    }


def reference_forward(x, p, *, eps=1e-5):
    """Pure-JAX reference matching the PyTorch forward (drop_path = identity)."""
    B, N, C = x.shape
    K = p["w_conv"].shape[0]
    S = p["w_dt"].shape[0]
    mean = x.mean(-1, keepdims=True)
    var = ((x - mean) ** 2).mean(-1, keepdims=True)
    xn = (x - mean) / jnp.sqrt(var + eps) * p["gamma"] + p["beta"]
    h = xn @ p["w_in"]                                         # (B, N, D)
    hp = jnp.pad(h, ((0, 0), (K - 1, 0), (0, 0)))
    conv = sum(hp[:, k:k + N, :] * p["w_conv"][k] for k in range(K))
    a = conv * jax.nn.sigmoid(conv)
    xdbl = a @ p["w_x"]
    dt = xdbl[..., :S] @ p["w_dt"] + p["b_dt"]
    A = xdbl[..., S:] @ p["w_a"] + p["b_a"]
    y = a * jax.nn.sigmoid(dt) + A
    return x + y @ p["w_out"]


if __name__ == "__main__":
    # Small but MXU-friendly demo shapes: C=128 keeps matmuls and stores
    # lane-dense; B=16/N=32 gives 512 total rows -> 2 parallel 256-row tiles.
    B, N, C = 16, 32, 128
    d_state, d_conv, expand = 16, 4, 2

    key = jax.random.PRNGKey(0)
    kx, kp = jax.random.split(key)
    x = jax.random.normal(kx, (B, N, C), jnp.float32)
    params = make_params(kp, C, d_state=d_state, d_conv=d_conv, expand=expand)

    ref = reference_forward(x, params)

    # f32 MXU-operand path (tolerance covers the approx-EUP sigmoid reciprocal).
    out = mamba_block_forward(x, params)
    out = jax.block_until_ready(out)
    assert out.shape == (B, N, C)
    err = float(jnp.max(jnp.abs(out - ref)))
    assert jnp.allclose(out, ref, atol=5e-3, rtol=5e-3), err

    # bf16 MXU-operand path (recommended on v5e/v6e/v7x); un-folded low-rank
    # chain keeps bf16 error small, so the tolerance is tighter than before.
    out_bf16 = mamba_block_forward(x, params, compute_dtype=jnp.bfloat16)
    out_bf16 = jax.block_until_ready(out_bf16)
    err_bf16 = float(jnp.max(jnp.abs(out_bf16 - ref)))
    assert jnp.allclose(out_bf16, ref, atol=5e-2, rtol=5e-2), err_bf16

    print("KERNEL_OK")
</pallas_src>

<mosaic_0001>
module attributes {stable_mosaic.version = 11 : i64} {
  func.func @_mamba_block_kernel(%arg0: i32, %arg1: memref<256x128xf32, #tpu.memory_space<vmem>>, %arg2: memref<1x128xf32, #tpu.memory_space<vmem>>, %arg3: memref<1x128xf32, #tpu.memory_space<vmem>>, %arg4: memref<128x256xf32, #tpu.memory_space<vmem>>, %arg5: memref<4x256xf32, #tpu.memory_space<vmem>>, %arg6: memref<256x32xf32, #tpu.memory_space<vmem>>, %arg7: memref<32x512xf32, #tpu.memory_space<vmem>>, %arg8: memref<1x512xf32, #tpu.memory_space<vmem>>, %arg9: memref<256x128xf32, #tpu.memory_space<vmem>>, %arg10: memref<256x128xf32, #tpu.memory_space<vmem>>) attributes {dimension_semantics = [#tpu.dimension_semantics<parallel>], iteration_bounds = array<i64: 2>, scalar_prefetch = 0 : i64, scratch_operands = 0 : i64, tpu.core_type = #tpu.core_type<tc>, window_params = [{transform_indices = @transform_0, window_bounds = array<i64: 256, 128>}, {pipeline_mode = #tpu.pipeline_mode<synchronous>, transform_indices = @transform_1, window_bounds = array<i64: 1, 128>}, {pipeline_mode = #tpu.pipeline_mode<synchronous>, transform_indices = @transform_2, window_bounds = array<i64: 1, 128>}, {pipeline_mode = #tpu.pipeline_mode<synchronous>, transform_indices = @transform_3, window_bounds = array<i64: 128, 256>}, {pipeline_mode = #tpu.pipeline_mode<synchronous>, transform_indices = @transform_4, window_bounds = array<i64: 4, 256>}, {pipeline_mode = #tpu.pipeline_mode<synchronous>, transform_indices = @transform_5, window_bounds = array<i64: 256, 32>}, {pipeline_mode = #tpu.pipeline_mode<synchronous>, transform_indices = @transform_6, window_bounds = array<i64: 32, 512>}, {pipeline_mode = #tpu.pipeline_mode<synchronous>, transform_indices = @transform_7, window_bounds = array<i64: 1, 512>}, {pipeline_mode = #tpu.pipeline_mode<synchronous>, transform_indices = @transform_8, window_bounds = array<i64: 256, 128>}, {transform_indices = @transform_9, window_bounds = array<i64: 256, 128>}]} {
    %c0 = arith.constant 0 : index
    %c0_0 = arith.constant 0 : index
    %0 = vector.load %arg1[%c0, %c0_0] : memref<256x128xf32, #tpu.memory_space<vmem>>, vector<256x128xf32>
    %cst = arith.constant dense<0.000000e+00> : vector<256xf32>
    %1 = vector.multi_reduction <add>, %0, %cst [1] : vector<256x128xf32> to vector<256xf32>
    %2 = vector.shape_cast %1 : vector<256xf32> to vector<256x1xf32>
    %cst_1 = arith.constant 1.280000e+02 : f32
    %3 = vector.broadcast %cst_1 : f32 to vector<256x1xf32>
    %4 = arith.divf %2, %3 : vector<256x1xf32>
    %5 = vector.broadcast %4 : vector<256x1xf32> to vector<256x128xf32>
    %6 = arith.subf %0, %5 : vector<256x128xf32>
    %7 = arith.mulf %6, %6 : vector<256x128xf32>
    %cst_2 = arith.constant dense<0.000000e+00> : vector<256xf32>
    %8 = vector.multi_reduction <add>, %7, %cst_2 [1] : vector<256x128xf32> to vector<256xf32>
    %9 = vector.shape_cast %8 : vector<256xf32> to vector<256x1xf32>
    %cst_3 = arith.constant 1.280000e+02 : f32
    %10 = vector.broadcast %cst_3 : f32 to vector<256x1xf32>
    %11 = arith.divf %9, %10 : vector<256x1xf32>
    %cst_4 = arith.constant 9.99999974E-6 : f32
    %12 = vector.broadcast %cst_4 : f32 to vector<256x1xf32>
    %13 = arith.addf %11, %12 : vector<256x1xf32>
    %14 = math.rsqrt %13 : vector<256x1xf32>
    %15 = vector.broadcast %14 : vector<256x1xf32> to vector<256x128xf32>
    %16 = arith.mulf %6, %15 : vector<256x128xf32>
    %c0_5 = arith.constant 0 : index
    %c0_6 = arith.constant 0 : index
    %17 = vector.load %arg2[%c0_5, %c0_6] : memref<1x128xf32, #tpu.memory_space<vmem>>, vector<1x128xf32>
    %18 = vector.broadcast %17 : vector<1x128xf32> to vector<256x128xf32>
    %19 = arith.mulf %16, %18 : vector<256x128xf32>
    %c0_7 = arith.constant 0 : index
    %c0_8 = arith.constant 0 : index
    %20 = vector.load %arg3[%c0_7, %c0_8] : memref<1x128xf32, #tpu.memory_space<vmem>>, vector<1x128xf32>
    %21 = vector.broadcast %20 : vector<1x128xf32> to vector<256x128xf32>
    %22 = arith.addf %19, %21 : vector<256x128xf32>
    %c0_9 = arith.constant 0 : index
    %c0_10 = arith.constant 0 : index
    %23 = vector.load %arg4[%c0_9, %c0_10] : memref<128x256xf32, #tpu.memory_space<vmem>>, vector<128x256xf32>
    %cst_11 = arith.constant dense<0.000000e+00> : vector<256x256xf32>
    %24 = tpu.matmul %22, %23, %cst_11 {dimension_numbers = #tpu.dot_dimension_numbers<[1], [0], [0], [1], [0, 0, 1, 1], [], []>} : vector<256x128xf32>, vector<128x256xf32>, vector<256x256xf32> -> vector<256x256xf32>
    %c0_12 = arith.constant 0 : index
    %c0_13 = arith.constant 0 : index
    %25 = vector.load %arg5[%c0_12, %c0_13] : memref<4x256xf32, #tpu.memory_space<vmem>>, vector<4x256xf32>
    %26 = tpu.iota {dimensions = array<i32: 0>} : vector<256x1xi32>
    %c32_i32 = arith.constant 32 : i32
    %c0_i32 = arith.constant 0 : i32
    %27 = arith.cmpi eq, %c32_i32, %c0_i32 : i32
    %c1_i32 = arith.constant 1 : i32
    %28 = arith.select %27, %c1_i32, %c32_i32 : i32
    %29 = vector.broadcast %28 : i32 to vector<256x1xi32>
    %30 = arith.remsi %26, %29 : vector<256x1xi32>
    %c0_i32_14 = arith.constant 0 : i32
    %31 = vector.broadcast %c0_i32_14 : i32 to vector<256x1xi32>
    %32 = arith.cmpi ne, %30, %31 : vector<256x1xi32>
    %c0_i32_15 = arith.constant 0 : i32
    %33 = vector.broadcast %c0_i32_15 : i32 to vector<256x1xi32>
    %34 = arith.cmpi slt, %30, %33 : vector<256x1xi32>
    %c0_i32_16 = arith.constant 0 : i32
    %35 = arith.cmpi slt, %28, %c0_i32_16 : i32
    %36 = vector.broadcast %35 : i1 to vector<256x1xi1>
    %37 = vector.broadcast %36 : vector<256x1xi1> to vector<256x1xi1>
    %38 = arith.xori %34, %37 : vector<256x1xi1>
    %39 = arith.andi %38, %32 : vector<256x1xi1>
    %40 = vector.broadcast %28 : i32 to vector<256x1xi32>
    %41 = arith.addi %30, %40 : vector<256x1xi32>
    %42 = arith.select %39, %41, %30 : vector<256x1xi1>, vector<256x1xi32>
    %c1_i32_17 = arith.constant 1 : i32
    %43 = vector.broadcast %c1_i32_17 : i32 to vector<256x1xi32>
    %44 = arith.cmpi sge, %42, %43 : vector<256x1xi32>
    %c2_i32 = arith.constant 2 : i32
    %45 = vector.broadcast %c2_i32 : i32 to vector<256x1xi32>
    %46 = arith.cmpi sge, %42, %45 : vector<256x1xi32>
    %c3_i32 = arith.constant 3 : i32
    %47 = vector.broadcast %c3_i32 : i32 to vector<256x1xi32>
    %48 = arith.cmpi sge, %42, %47 : vector<256x1xi32>
    %49 = vector.extract_strided_slice %25 {offsets = [3, 0], sizes = [1, 256], strides = [1, 1]} : vector<4x256xf32> to vector<1x256xf32>
    %50 = vector.broadcast %49 : vector<1x256xf32> to vector<256x256xf32>
    %51 = arith.mulf %24, %50 : vector<256x256xf32>
    %c1_i32_18 = arith.constant 1 : i32
    %52 = tpu.dynamic_rotate %24 by %c1_i32_18 dim 0 : vector<256x256xf32>, i32 -> vector<256x256xf32>
    %cst_19 = arith.constant 0.000000e+00 : f32
    %53 = vector.shape_cast %44 : vector<256x1xi1> to vector<256x1xi1>
    %54 = vector.broadcast %53 : vector<256x1xi1> to vector<256x256xi1>
    %55 = vector.broadcast %cst_19 : f32 to vector<256x256xf32>
    %56 = arith.select %54, %52, %55 : vector<256x256xi1>, vector<256x256xf32>
    %57 = vector.extract_strided_slice %25 {offsets = [2, 0], sizes = [1, 256], strides = [1, 1]} : vector<4x256xf32> to vector<1x256xf32>
    %58 = vector.broadcast %57 : vector<1x256xf32> to vector<256x256xf32>
    %59 = arith.mulf %56, %58 : vector<256x256xf32>
    %60 = arith.addf %51, %59 : vector<256x256xf32>
    %c2_i32_20 = arith.constant 2 : i32
    %61 = tpu.dynamic_rotate %24 by %c2_i32_20 dim 0 : vector<256x256xf32>, i32 -> vector<256x256xf32>
    %cst_21 = arith.constant 0.000000e+00 : f32
    %62 = vector.shape_cast %46 : vector<256x1xi1> to vector<256x1xi1>
    %63 = vector.broadcast %62 : vector<256x1xi1> to vector<256x256xi1>
    %64 = vector.broadcast %cst_21 : f32 to vector<256x256xf32>
    %65 = arith.select %63, %61, %64 : vector<256x256xi1>, vector<256x256xf32>
    %66 = vector.extract_strided_slice %25 {offsets = [1, 0], sizes = [1, 256], strides = [1, 1]} : vector<4x256xf32> to vector<1x256xf32>
    %67 = vector.broadcast %66 : vector<1x256xf32> to vector<256x256xf32>
    %68 = arith.mulf %65, %67 : vector<256x256xf32>
    %69 = arith.addf %60, %68 : vector<256x256xf32>
    %c3_i32_22 = arith.constant 3 : i32
    %70 = tpu.dynamic_rotate %24 by %c3_i32_22 dim 0 : vector<256x256xf32>, i32 -> vector<256x256xf32>
    %cst_23 = arith.constant 0.000000e+00 : f32
    %71 = vector.shape_cast %48 : vector<256x1xi1> to vector<256x1xi1>
    %72 = vector.broadcast %71 : vector<256x1xi1> to vector<256x256xi1>
    %73 = vector.broadcast %cst_23 : f32 to vector<256x256xf32>
    %74 = arith.select %72, %70, %73 : vector<256x256xi1>, vector<256x256xf32>
    %75 = vector.extract_strided_slice %25 {offsets = [0, 0], sizes = [1, 256], strides = [1, 1]} : vector<4x256xf32> to vector<1x256xf32>
    %76 = vector.broadcast %75 : vector<1x256xf32> to vector<256x256xf32>
    %77 = arith.mulf %74, %76 : vector<256x256xf32>
    %78 = arith.addf %69, %77 : vector<256x256xf32>
    %cst_24 = arith.constant 0.000000e+00 : f32
    %79 = vector.broadcast %cst_24 : f32 to vector<256x256xf32>
    %80 = arith.subf %79, %78 : vector<256x256xf32>
    %81 = math.exp %80 : vector<256x256xf32>
    %cst_25 = arith.constant 1.000000e+00 : f32
    %82 = vector.broadcast %cst_25 : f32 to vector<256x256xf32>
    %83 = arith.addf %82, %81 : vector<256x256xf32>
    %84 = tpu.reciprocal %83 {approx = true} : vector<256x256xf32> -> vector<256x256xf32>
    %85 = arith.mulf %78, %84 : vector<256x256xf32>
    %c0_26 = arith.constant 0 : index
    %c0_27 = arith.constant 0 : index
    %86 = vector.load %arg6[%c0_26, %c0_27] : memref<256x32xf32, #tpu.memory_space<vmem>>, vector<256x32xf32>
    %cst_28 = arith.constant dense<0.000000e+00> : vector<256x32xf32>
    %87 = tpu.matmul %85, %86, %cst_28 {dimension_numbers = #tpu.dot_dimension_numbers<[1], [0], [0], [1], [0, 0, 1, 1], [], []>} : vector<256x256xf32>, vector<256x32xf32>, vector<256x32xf32> -> vector<256x32xf32>
    %c0_29 = arith.constant 0 : index
    %c0_30 = arith.constant 0 : index
    %88 = vector.load %arg7[%c0_29, %c0_30] : memref<32x512xf32, #tpu.memory_space<vmem>>, vector<32x512xf32>
    %cst_31 = arith.constant dense<0.000000e+00> : vector<256x512xf32>
    %89 = tpu.matmul %87, %88, %cst_31 {dimension_numbers = #tpu.dot_dimension_numbers<[1], [0], [0], [1], [0, 0, 1, 1], [], []>} : vector<256x32xf32>, vector<32x512xf32>, vector<256x512xf32> -> vector<256x512xf32>
    %c0_32 = arith.constant 0 : index
    %c0_33 = arith.constant 0 : index
    %90 = vector.load %arg8[%c0_32, %c0_33] : memref<1x512xf32, #tpu.memory_space<vmem>>, vector<1x512xf32>
    %91 = vector.broadcast %90 : vector<1x512xf32> to vector<256x512xf32>
    %92 = arith.addf %89, %91 : vector<256x512xf32>
    %93 = vector.extract_strided_slice %92 {offsets = [0, 0], sizes = [256, 256], strides = [1, 1]} : vector<256x512xf32> to vector<256x256xf32>
    %cst_34 = arith.constant 0.000000e+00 : f32
    %94 = vector.broadcast %cst_34 : f32 to vector<256x256xf32>
    %95 = arith.subf %94, %93 : vector<256x256xf32>
    %96 = math.exp %95 : vector<256x256xf32>
    %cst_35 = arith.constant 1.000000e+00 : f32
    %97 = vector.broadcast %cst_35 : f32 to vector<256x256xf32>
    %98 = arith.addf %97, %96 : vector<256x256xf32>
    %99 = tpu.reciprocal %98 {approx = true} : vector<256x256xf32> -> vector<256x256xf32>
    %100 = arith.mulf %85, %99 : vector<256x256xf32>
    %101 = vector.extract_strided_slice %92 {offsets = [0, 256], sizes = [256, 256], strides = [1, 1]} : vector<256x512xf32> to vector<256x256xf32>
    %102 = arith.addf %100, %101 : vector<256x256xf32>
    %c0_36 = arith.constant 0 : index
    %c0_37 = arith.constant 0 : index
    %103 = vector.load %arg9[%c0_36, %c0_37] : memref<256x128xf32, #tpu.memory_space<vmem>>, vector<256x128xf32>
    %cst_38 = arith.constant dense<0.000000e+00> : vector<256x128xf32>
    %104 = tpu.matmul %102, %103, %cst_38 {dimension_numbers = #tpu.dot_dimension_numbers<[1], [0], [0], [1], [0, 0, 1, 1], [], []>} : vector<256x256xf32>, vector<256x128xf32>, vector<256x128xf32> -> vector<256x128xf32>
    %c0_39 = arith.constant 0 : index
    %c0_40 = arith.constant 0 : index
    %105 = vector.load %arg1[%c0_39, %c0_40] : memref<256x128xf32, #tpu.memory_space<vmem>>, vector<256x128xf32>
    %106 = arith.addf %105, %104 : vector<256x128xf32>
    %c0_41 = arith.constant 0 : index
    %c0_42 = arith.constant 0 : index
    %107 = vector.load %arg10[%c0_41, %c0_42] : memref<256x128xf32, #tpu.memory_space<vmem>>, vector<256x128xf32>
    tpu.vector_store %arg10[%c0_41, %c0_42], %106 {strides = array<i32>} : memref<256x128xf32, #tpu.memory_space<vmem>>, vector<256x128xf32>,
    return
  }
  func.func @transform_0(%arg0: i32) -> (i32, i32) {
    %c0_i32 = arith.constant 0 : i32
    %c0_i32_0 = arith.constant 0 : i32
    return %arg0, %c0_i32 : i32, i32
  }
  func.func @transform_1(%arg0: i32) -> (i32, i32) {
    %c0_i32 = arith.constant 0 : i32
    %c0_i32_0 = arith.constant 0 : i32
    %c0_i32_1 = arith.constant 0 : i32
    return %c0_i32, %c0_i32_0 : i32, i32
  }
  func.func @transform_2(%arg0: i32) -> (i32, i32) {
    %c0_i32 = arith.constant 0 : i32
    %c0_i32_0 = arith.constant 0 : i32
    %c0_i32_1 = arith.constant 0 : i32
    return %c0_i32, %c0_i32_0 : i32, i32
  }
  func.func @transform_3(%arg0: i32) -> (i32, i32) {
    %c0_i32 = arith.constant 0 : i32
    %c0_i32_0 = arith.constant 0 : i32
    %c0_i32_1 = arith.constant 0 : i32
    return %c0_i32, %c0_i32_0 : i32, i32
  }
  func.func @transform_4(%arg0: i32) -> (i32, i32) {
    %c0_i32 = arith.constant 0 : i32
    %c0_i32_0 = arith.constant 0 : i32
    %c0_i32_1 = arith.constant 0 : i32
    return %c0_i32, %c0_i32_0 : i32, i32
  }
  func.func @transform_5(%arg0: i32) -> (i32, i32) {
    %c0_i32 = arith.constant 0 : i32
    %c0_i32_0 = arith.constant 0 : i32
    %c0_i32_1 = arith.constant 0 : i32
    return %c0_i32, %c0_i32_0 : i32, i32
  }
  func.func @transform_6(%arg0: i32) -> (i32, i32) {
    %c0_i32 = arith.constant 0 : i32
    %c0_i32_0 = arith.constant 0 : i32
    %c0_i32_1 = arith.constant 0 : i32
    return %c0_i32, %c0_i32_0 : i32, i32
  }
  func.func @transform_7(%arg0: i32) -> (i32, i32) {
    %c0_i32 = arith.constant 0 : i32
    %c0_i32_0 = arith.constant 0 : i32
    %c0_i32_1 = arith.constant 0 : i32
    return %c0_i32, %c0_i32_0 : i32, i32
  }
  func.func @transform_8(%arg0: i32) -> (i32, i32) {
    %c0_i32 = arith.constant 0 : i32
    %c0_i32_0 = arith.constant 0 : i32
    %c0_i32_1 = arith.constant 0 : i32
    return %c0_i32, %c0_i32_0 : i32, i32
  }
  func.func @transform_9(%arg0: i32) -> (i32, i32) {
    %c0_i32 = arith.constant 0 : i32
    %c0_i32_0 = arith.constant 0 : i32
    return %arg0, %c0_i32 : i32, i32
  }
}

module attributes {stable_mosaic.version = 11 : i64} {
  func.func @_mamba_block_kernel(%arg0: i32, %arg1: memref<256x128xf32, #tpu.memory_space<vmem>>, %arg2: memref<1x128xf32, #tpu.memory_space<vmem>>, %arg3: memref<1x128xf32, #tpu.memory_space<vmem>>, %arg4: memref<128x256xf32, #tpu.memory_space<vmem>>, %arg5: memref<4x256xf32, #tpu.memory_space<vmem>>, %arg6: memref<256x32xf32, #tpu.memory_space<vmem>>, %arg7: memref<32x512xf32, #tpu.memory_space<vmem>>, %arg8: memref<1x512xf32, #tpu.memory_space<vmem>>, %arg9: memref<256x128xf32, #tpu.memory_space<vmem>>, %arg10: memref<256x128xf32, #tpu.memory_space<vmem>>) attributes {dimension_semantics = [#tpu.dimension_semantics<parallel>], iteration_bounds = array<i64: 2>, scalar_prefetch = 0 : i64, scratch_operands = 0 : i64, tpu.core_type = #tpu.core_type<tc>, window_params = [{transform_indices = @transform_0, window_bounds = array<i64: 256, 128>}, {pipeline_mode = #tpu.pipeline_mode<synchronous>, transform_indices = @transform_1, window_bounds = array<i64: 1, 128>}, {pipeline_mode = #tpu.pipeline_mode<synchronous>, transform_indices = @transform_2, window_bounds = array<i64: 1, 128>}, {pipeline_mode = #tpu.pipeline_mode<synchronous>, transform_indices = @transform_3, window_bounds = array<i64: 128, 256>}, {pipeline_mode = #tpu.pipeline_mode<synchronous>, transform_indices = @transform_4, window_bounds = array<i64: 4, 256>}, {pipeline_mode = #tpu.pipeline_mode<synchronous>, transform_indices = @transform_5, window_bounds = array<i64: 256, 32>}, {pipeline_mode = #tpu.pipeline_mode<synchronous>, transform_indices = @transform_6, window_bounds = array<i64: 32, 512>}, {pipeline_mode = #tpu.pipeline_mode<synchronous>, transform_indices = @transform_7, window_bounds = array<i64: 1, 512>}, {pipeline_mode = #tpu.pipeline_mode<synchronous>, transform_indices = @transform_8, window_bounds = array<i64: 256, 128>}, {transform_indices = @transform_9, window_bounds = array<i64: 256, 128>}]} {
    %c0 = arith.constant 0 : index
    %c0_0 = arith.constant 0 : index
    %0 = vector.load %arg1[%c0, %c0_0] : memref<256x128xf32, #tpu.memory_space<vmem>>, vector<256x128xf32>
    %cst = arith.constant dense<0.000000e+00> : vector<256xf32>
    %1 = vector.multi_reduction <add>, %0, %cst [1] : vector<256x128xf32> to vector<256xf32>
    %2 = vector.shape_cast %1 : vector<256xf32> to vector<256x1xf32>
    %cst_1 = arith.constant 1.280000e+02 : f32
    %3 = vector.broadcast %cst_1 : f32 to vector<256x1xf32>
    %4 = arith.divf %2, %3 : vector<256x1xf32>
    %5 = vector.broadcast %4 : vector<256x1xf32> to vector<256x128xf32>
    %6 = arith.subf %0, %5 : vector<256x128xf32>
    %7 = arith.mulf %6, %6 : vector<256x128xf32>
    %cst_2 = arith.constant dense<0.000000e+00> : vector<256xf32>
    %8 = vector.multi_reduction <add>, %7, %cst_2 [1] : vector<256x128xf32> to vector<256xf32>
    %9 = vector.shape_cast %8 : vector<256xf32> to vector<256x1xf32>
    %cst_3 = arith.constant 1.280000e+02 : f32
    %10 = vector.broadcast %cst_3 : f32 to vector<256x1xf32>
    %11 = arith.divf %9, %10 : vector<256x1xf32>
    %cst_4 = arith.constant 9.99999974E-6 : f32
    %12 = vector.broadcast %cst_4 : f32 to vector<256x1xf32>
    %13 = arith.addf %11, %12 : vector<256x1xf32>
    %14 = math.rsqrt %13 : vector<256x1xf32>
    %15 = vector.broadcast %14 : vector<256x1xf32> to vector<256x128xf32>
    %16 = arith.mulf %6, %15 : vector<256x128xf32>
    %c0_5 = arith.constant 0 : index
    %c0_6 = arith.constant 0 : index
    %17 = vector.load %arg2[%c0_5, %c0_6] : memref<1x128xf32, #tpu.memory_space<vmem>>, vector<1x128xf32>
    %18 = vector.broadcast %17 : vector<1x128xf32> to vector<256x128xf32>
    %19 = arith.mulf %16, %18 : vector<256x128xf32>
    %c0_7 = arith.constant 0 : index
    %c0_8 = arith.constant 0 : index
    %20 = vector.load %arg3[%c0_7, %c0_8] : memref<1x128xf32, #tpu.memory_space<vmem>>, vector<1x128xf32>
    %21 = vector.broadcast %20 : vector<1x128xf32> to vector<256x128xf32>
    %22 = arith.addf %19, %21 : vector<256x128xf32>
    %c0_9 = arith.constant 0 : index
    %c0_10 = arith.constant 0 : index
    %23 = vector.load %arg4[%c0_9, %c0_10] : memref<128x256xf32, #tpu.memory_space<vmem>>, vector<128x256xf32>
    %cst_11 = arith.constant dense<0.000000e+00> : vector<256x256xf32>
    %24 = tpu.matmul %22, %23, %cst_11 {dimension_numbers = #tpu.dot_dimension_numbers<[1], [0], [0], [1], [0, 0, 1, 1], [], []>} : vector<256x128xf32>, vector<128x256xf32>, vector<256x256xf32> -> vector<256x256xf32>
    %c0_12 = arith.constant 0 : index
    %c0_13 = arith.constant 0 : index
    %25 = vector.load %arg5[%c0_12, %c0_13] : memref<4x256xf32, #tpu.memory_space<vmem>>, vector<4x256xf32>
    %26 = tpu.iota {dimensions = array<i32: 0>} : vector<256x1xi32>
    %c32_i32 = arith.constant 32 : i32
    %c0_i32 = arith.constant 0 : i32
    %27 = arith.cmpi eq, %c32_i32, %c0_i32 : i32
    %c1_i32 = arith.constant 1 : i32
    %28 = arith.select %27, %c1_i32, %c32_i32 : i32
    %29 = vector.broadcast %28 : i32 to vector<256x1xi32>
    %30 = arith.remsi %26, %29 : vector<256x1xi32>
    %c0_i32_14 = arith.constant 0 : i32
    %31 = vector.broadcast %c0_i32_14 : i32 to vector<256x1xi32>
    %32 = arith.cmpi ne, %30, %31 : vector<256x1xi32>
    %c0_i32_15 = arith.constant 0 : i32
    %33 = vector.broadcast %c0_i32_15 : i32 to vector<256x1xi32>
    %34 = arith.cmpi slt, %30, %33 : vector<256x1xi32>
    %c0_i32_16 = arith.constant 0 : i32
    %35 = arith.cmpi slt, %28, %c0_i32_16 : i32
    %36 = vector.broadcast %35 : i1 to vector<256x1xi1>
    %37 = vector.broadcast %36 : vector<256x1xi1> to vector<256x1xi1>
    %38 = arith.xori %34, %37 : vector<256x1xi1>
    %39 = arith.andi %38, %32 : vector<256x1xi1>
    %40 = vector.broadcast %28 : i32 to vector<256x1xi32>
    %41 = arith.addi %30, %40 : vector<256x1xi32>
    %42 = arith.select %39, %41, %30 : vector<256x1xi1>, vector<256x1xi32>
    %c1_i32_17 = arith.constant 1 : i32
    %43 = vector.broadcast %c1_i32_17 : i32 to vector<256x1xi32>
    %44 = arith.cmpi sge, %42, %43 : vector<256x1xi32>
    %c2_i32 = arith.constant 2 : i32
    %45 = vector.broadcast %c2_i32 : i32 to vector<256x1xi32>
    %46 = arith.cmpi sge, %42, %45 : vector<256x1xi32>
    %c3_i32 = arith.constant 3 : i32
    %47 = vector.broadcast %c3_i32 : i32 to vector<256x1xi32>
    %48 = arith.cmpi sge, %42, %47 : vector<256x1xi32>
    %49 = vector.extract_strided_slice %25 {offsets = [3, 0], sizes = [1, 256], strides = [1, 1]} : vector<4x256xf32> to vector<1x256xf32>
    %50 = vector.broadcast %49 : vector<1x256xf32> to vector<256x256xf32>
    %51 = arith.mulf %24, %50 : vector<256x256xf32>
    %c1_i32_18 = arith.constant 1 : i32
    %52 = tpu.dynamic_rotate %24 by %c1_i32_18 dim 0 : vector<256x256xf32>, i32 -> vector<256x256xf32>
    %cst_19 = arith.constant 0.000000e+00 : f32
    %53 = vector.shape_cast %44 : vector<256x1xi1> to vector<256x1xi1>
    %54 = vector.broadcast %53 : vector<256x1xi1> to vector<256x256xi1>
    %55 = vector.broadcast %cst_19 : f32 to vector<256x256xf32>
    %56 = arith.select %54, %52, %55 : vector<256x256xi1>, vector<256x256xf32>
    %57 = vector.extract_strided_slice %25 {offsets = [2, 0], sizes = [1, 256], strides = [1, 1]} : vector<4x256xf32> to vector<1x256xf32>
    %58 = vector.broadcast %57 : vector<1x256xf32> to vector<256x256xf32>
    %59 = arith.mulf %56, %58 : vector<256x256xf32>
    %60 = arith.addf %51, %59 : vector<256x256xf32>
    %c2_i32_20 = arith.constant 2 : i32
    %61 = tpu.dynamic_rotate %24 by %c2_i32_20 dim 0 : vector<256x256xf32>, i32 -> vector<256x256xf32>
    %cst_21 = arith.constant 0.000000e+00 : f32
    %62 = vector.shape_cast %46 : vector<256x1xi1> to vector<256x1xi1>
    %63 = vector.broadcast %62 : vector<256x1xi1> to vector<256x256xi1>
    %64 = vector.broadcast %cst_21 : f32 to vector<256x256xf32>
    %65 = arith.select %63, %61, %64 : vector<256x256xi1>, vector<256x256xf32>
    %66 = vector.extract_strided_slice %25 {offsets = [1, 0], sizes = [1, 256], strides = [1, 1]} : vector<4x256xf32> to vector<1x256xf32>
    %67 = vector.broadcast %66 : vector<1x256xf32> to vector<256x256xf32>
    %68 = arith.mulf %65, %67 : vector<256x256xf32>
    %69 = arith.addf %60, %68 : vector<256x256xf32>
    %c3_i32_22 = arith.constant 3 : i32
    %70 = tpu.dynamic_rotate %24 by %c3_i32_22 dim 0 : vector<256x256xf32>, i32 -> vector<256x256xf32>
    %cst_23 = arith.constant 0.000000e+00 : f32
    %71 = vector.shape_cast %48 : vector<256x1xi1> to vector<256x1xi1>
    %72 = vector.broadcast %71 : vector<256x1xi1> to vector<256x256xi1>
    %73 = vector.broadcast %cst_23 : f32 to vector<256x256xf32>
    %74 = arith.select %72, %70, %73 : vector<256x256xi1>, vector<256x256xf32>
    %75 = vector.extract_strided_slice %25 {offsets = [0, 0], sizes = [1, 256], strides = [1, 1]} : vector<4x256xf32> to vector<1x256xf32>
    %76 = vector.broadcast %75 : vector<1x256xf32> to vector<256x256xf32>
    %77 = arith.mulf %74, %76 : vector<256x256xf32>
    %78 = arith.addf %69, %77 : vector<256x256xf32>
    %cst_24 = arith.constant 0.000000e+00 : f32
    %79 = vector.broadcast %cst_24 : f32 to vector<256x256xf32>
    %80 = arith.subf %79, %78 : vector<256x256xf32>
    %81 = math.exp %80 : vector<256x256xf32>
    %cst_25 = arith.constant 1.000000e+00 : f32
    %82 = vector.broadcast %cst_25 : f32 to vector<256x256xf32>
    %83 = arith.addf %82, %81 : vector<256x256xf32>
    %84 = tpu.reciprocal %83 {approx = true} : vector<256x256xf32> -> vector<256x256xf32>
    %85 = arith.mulf %78, %84 : vector<256x256xf32>
    %c0_26 = arith.constant 0 : index
    %c0_27 = arith.constant 0 : index
    %86 = vector.load %arg6[%c0_26, %c0_27] : memref<256x32xf32, #tpu.memory_space<vmem>>, vector<256x32xf32>
    %cst_28 = arith.constant dense<0.000000e+00> : vector<256x32xf32>
    %87 = tpu.matmul %85, %86, %cst_28 {dimension_numbers = #tpu.dot_dimension_numbers<[1], [0], [0], [1], [0, 0, 1, 1], [], []>} : vector<256x256xf32>, vector<256x32xf32>, vector<256x32xf32> -> vector<256x32xf32>
    %c0_29 = arith.constant 0 : index
    %c0_30 = arith.constant 0 : index
    %88 = vector.load %arg7[%c0_29, %c0_30] : memref<32x512xf32, #tpu.memory_space<vmem>>, vector<32x512xf32>
    %cst_31 = arith.constant dense<0.000000e+00> : vector<256x512xf32>
    %89 = tpu.matmul %87, %88, %cst_31 {dimension_numbers = #tpu.dot_dimension_numbers<[1], [0], [0], [1], [0, 0, 1, 1], [], []>} : vector<256x32xf32>, vector<32x512xf32>, vector<256x512xf32> -> vector<256x512xf32>
    %c0_32 = arith.constant 0 : index
    %c0_33 = arith.constant 0 : index
    %90 = vector.load %arg8[%c0_32, %c0_33] : memref<1x512xf32, #tpu.memory_space<vmem>>, vector<1x512xf32>
    %91 = vector.broadcast %90 : vector<1x512xf32> to vector<256x512xf32>
    %92 = arith.addf %89, %91 : vector<256x512xf32>
    %93 = vector.extract_strided_slice %92 {offsets = [0, 0], sizes = [256, 256], strides = [1, 1]} : vector<256x512xf32> to vector<256x256xf32>
    %cst_34 = arith.constant 0.000000e+00 : f32
    %94 = vector.broadcast %cst_34 : f32 to vector<256x256xf32>
    %95 = arith.subf %94, %93 : vector<256x256xf32>
    %96 = math.exp %95 : vector<256x256xf32>
    %cst_35 = arith.constant 1.000000e+00 : f32
    %97 = vector.broadcast %cst_35 : f32 to vector<256x256xf32>
    %98 = arith.addf %97, %96 : vector<256x256xf32>
    %99 = tpu.reciprocal %98 {approx = true} : vector<256x256xf32> -> vector<256x256xf32>
    %100 = arith.mulf %85, %99 : vector<256x256xf32>
    %101 = vector.extract_strided_slice %92 {offsets = [0, 256], sizes = [256, 256], strides = [1, 1]} : vector<256x512xf32> to vector<256x256xf32>
    %102 = arith.addf %100, %101 : vector<256x256xf32>
    %c0_36 = arith.constant 0 : index
    %c0_37 = arith.constant 0 : index
    %103 = vector.load %arg9[%c0_36, %c0_37] : memref<256x128xf32, #tpu.memory_space<vmem>>, vector<256x128xf32>
    %cst_38 = arith.constant dense<0.000000e+00> : vector<256x128xf32>
    %104 = tpu.matmul %102, %103, %cst_38 {dimension_numbers = #tpu.dot_dimension_numbers<[1], [0], [0], [1], [0, 0, 1, 1], [], []>} : vector<256x256xf32>, vector<256x128xf32>, vector<256x128xf32> -> vector<256x128xf32>
    %c0_39 = arith.constant 0 : index
    %c0_40 = arith.constant 0 : index
    %105 = vector.load %arg1[%c0_39, %c0_40] : memref<256x128xf32, #tpu.memory_space<vmem>>, vector<256x128xf32>
    %106 = arith.addf %105, %104 : vector<256x128xf32>
    %c0_41 = arith.constant 0 : index
    %c0_42 = arith.constant 0 : index
    %107 = vector.load %arg10[%c0_41, %c0_42] : memref<256x128xf32, #tpu.memory_space<vmem>>, vector<256x128xf32>
    tpu.vector_store %arg10[%c0_41, %c0_42], %106 {strides = array<i32>} : memref<256x128xf32, #tpu.memory_space<vmem>>, vector<256x128xf32>,
    return
  }
  func.func @transform_0(%arg0: i32) -> (i32, i32) {
    %c0_i32 = arith.constant 0 : i32
    %c0_i32_0 = arith.constant 0 : i32
    return %arg0, %c0_i32 : i32, i32
  }
  func.func @transform_1(%arg0: i32) -> (i32, i32) {
    %c0_i32 = arith.constant 0 : i32
    %c0_i32_0 = arith.constant 0 : i32
    %c0_i32_1 = arith.constant 0 : i32
    return %c0_i32, %c0_i32_0 : i32, i32
  }
  func.func @transform_2(%arg0: i32) -> (i32, i32) {
    %c0_i32 = arith.constant 0 : i32
    %c0_i32_0 = arith.constant 0 : i32
    %c0_i32_1 = arith.constant 0 : i32
    return %c0_i32, %c0_i32_0 : i32, i32
  }
  func.func @transform_3(%arg0: i32) -> (i32, i32) {
    %c0_i32 = arith.constant 0 : i32
    %c0_i32_0 = arith.constant 0 : i32
    %c0_i32_1 = arith.constant 0 : i32
    return %c0_i32, %c0_i32_0 : i32, i32
  }
  func.func @transform_4(%arg0: i32) -> (i32, i32) {
    %c0_i32 = arith.constant 0 : i32
    %c0_i32_0 = arith.constant 0 : i32
    %c0_i32_1 = arith.constant 0 : i32
    return %c0_i32, %c0_i32_0 : i32, i32
  }
  func.func @transform_5(%arg0: i32) -> (i32, i32) {
    %c0_i32 = arith.constant 0 : i32
    %c0_i32_0 = arith.constant 0 : i32
    %c0_i32_1 = arith.constant 0 : i32
    return %c0_i32, %c0_i32_0 : i32, i32
  }
  func.func @transform_6(%arg0: i32) -> (i32, i32) {
    %c0_i32 = arith.constant 0 : i32
    %c0_i32_0 = arith.constant 0 : i32
    %c0_i32_1 = arith.constant 0 : i32
    return %c0_i32, %c0_i32_0 : i32, i32
  }
  func.func @transform_7(%arg0: i32) -> (i32, i32) {
    %c0_i32 = arith.constant 0 : i32
    %c0_i32_0 = arith.constant 0 : i32
    %c0_i32_1 = arith.constant 0 : i32
    return %c0_i32, %c0_i32_0 : i32, i32
  }
  func.func @transform_8(%arg0: i32) -> (i32, i32) {
    %c0_i32 = arith.constant 0 : i32
    %c0_i32_0 = arith.constant 0 : i32
    %c0_i32_1 = arith.constant 0 : i32
    return %c0_i32, %c0_i32_0 : i32, i32
  }
  func.func @transform_9(%arg0: i32) -> (i32, i32) {
    %c0_i32 = arith.constant 0 : i32
    %c0_i32_0 = arith.constant 0 : i32
    return %arg0, %c0_i32 : i32, i32
  }
}

</mosaic_0001>

<llo_original>
// kernel: tpu_custom_call.1
$region0: #{tpu_custom_call.1}
  #allocation0 [shape = 'u32[]', space=smem, size = 0x4, offset = 0x4, fixed_abs, tag = 'smem constant byte address 0x4 - core index']
  #allocation1 [shape = 'u32[72,128]{1,0:T(1,128)}', space=vmem, size = 0x9000, scoped, tag = 'internal scratch']
  %s0 = inlined_call_operand.hbm [shape: f32[512,128], index: 0, kind: input, shape index: {}, may-alias: {0,9}]
  %s1 = inlined_call_operand.vmem [shape: f32[1,128], index: 1, kind: input, shape index: {}]
  %s2 = inlined_call_operand.vmem [shape: f32[1,128], index: 2, kind: input, shape index: {}]
  %s3 = inlined_call_operand.vmem [shape: f32[128,256], index: 3, kind: input, shape index: {}]
  %s4 = inlined_call_operand.vmem [shape: f32[4,256], index: 4, kind: input, shape index: {}]
  %s5 = inlined_call_operand.vmem [shape: f32[256,32], index: 5, kind: input, shape index: {}]
  %s6 = inlined_call_operand.vmem [shape: f32[32,512], index: 6, kind: input, shape index: {}]
  %s7 = inlined_call_operand.vmem [shape: f32[1,512], index: 7, kind: input, shape index: {}]
  %s8 = inlined_call_operand.vmem [shape: f32[256,128], index: 8, kind: input, shape index: {}]
  %s9 = inlined_call_operand.hbm [shape: f32[512,128], index: 9, kind: output, shape index: {}, may-alias: {0,9}]
  %s10 = sld [smem:[#allocation0]]
  $region73: #{tpu_custom_call.1} parent=0
    _
  %s12 = ssub.s32 1, %s10
  %s13 = scalar_select 0, %s12, %s10
  $region1: #{tpu_custom_call.1} parent=0
    #allocation2 [shape = 'u8[262144]{0}', space=vmem, size = 0x40000, scoped, tag = 'input window, operand 0']
    #allocation3 [shape = 's32[2]{0}', space=sflag, size = 0x8, scoped, tag = 'scoped memory for tpu_custom_call.1']
    #allocation4 [shape = 's32[2]{0}', space=sflag, size = 0x8, scoped, tag = 'scoped memory for tpu_custom_call.1']
    #allocation5 [shape = 'u8[262144]{0}', space=vmem, size = 0x40000, scoped, tag = 'output window, operand 0']
    %14 = vsyncpa [#allocation3], 0
    %s15 = scalar_lea.sflag [#allocation3], 1
    %16 = vsyncpa %s15, 0
    %17 = vsyncpa [#allocation4], 0
    %s18 = scalar_lea.sflag [#allocation4], 1
    %19 = vsyncpa %s18, 0
    loop: start=0, step=1, limit=4
    $region2: #{tpu_custom_call.1} parent=1 // loop_pre_header
      _
    $region3: #{tpu_custom_call.1} parent=1 // loop_header
      %s21 = sphi 0, %s25
      %p22 = scmp.ge.s32.totalorder %s21, 4
      %s31 = sphi 0, %s33
      %s34 = sphi 0, %s31
      %s35 = sphi 0, %s34
      %s51 = sphi 0, %s35
      %s55 = sphi 0, %s55
      %s57 = sphi 0, %s55
      %s58 = sphi 0, %s57
      %s72 = sphi 0, %s58
      %s76 = sphi 0, %s76
      %s78 = sphi 0, %s76
      %s79 = sphi 0, %s78
      %s93 = sphi 0, %s79
      %s97 = sphi 0, %s97
      %s99 = sphi 0, %s97
      %s100 = sphi 0, %s99
      %s114 = sphi 0, %s100
      %s118 = sphi 0, %s118
      %s120 = sphi 0, %s118
      %s121 = sphi 0, %s120
      %s135 = sphi 0, %s121
      %s139 = sphi 0, %s139
      %s141 = sphi 0, %s139
      %s142 = sphi 0, %s141
      %s156 = sphi 0, %s142
      %s160 = sphi 0, %s160
      %s162 = sphi 0, %s160
      %s163 = sphi 0, %s162
      %s177 = sphi 0, %s163
      %s181 = sphi 0, %s181
      %s183 = sphi 0, %s181
      %s184 = sphi 0, %s183
      %s198 = sphi 0, %s184
      %s202 = sphi 0, %s202
      %s204 = sphi 0, %s202
      %s205 = sphi 0, %s204
      %s219 = sphi 0, %s205
      %s225 = sphi 0, %s227
      %s228 = sphi 0, %s225
      %s229 = sphi 0, %s228
      %s245 = sphi 0, %s229
    $region4: #{tpu_custom_call.1} parent=1 // loop_header_branch
      %24 = sbr.rel (%p22) target = $region8
    $region5: #{tpu_custom_call.1} parent=1 // loop_body
      %s26 = ssub.s32 %s21, 1
      %s27 = ssub.s32 %s21, 2
      %s28 = sadd.s32 %s21, 1
      %s29 = ssub.s32 %s21, %s28
      %p30 = scmp.eq.s32.totalorder %s29, 0
      %s32 = sadd.s32 %s31, 1
      %s33 = scalar_select %p30, %s31, %s32
      %p36 = pneg %p30
      %p37 = scmp.eq.s32.totalorder %s21, 1
      %p38 = por %p36, %p37
      %p39 = scmp.ne.s32.totalorder %s31, %s34
      %p40 = scmp.eq.s32.totalorder %s21, 0
      %p41 = por %p39, %p40
      %p42 = scmp.ne.s32.totalorder %s31, %s34
      %p43 = scmp.eq.s32.totalorder %s26, 1
      %p44 = por %p42, %p43
      %p45 = scmp.ne.s32.totalorder %s34, %s35
      %p46 = scmp.eq.s32.totalorder %s26, 0
      %p47 = por %p45, %p46
      %p48 = scmp.ne.s32.totalorder %s34, %s35
      %p49 = scmp.eq.s32.totalorder %s27, 1
      %p50 = por %p48, %p49
      %p52 = scmp.ne.s32.totalorder %s35, %s51
      %p53 = scmp.eq.s32.totalorder %s27, 0
      %p54 = por %p52, %p53
      %s56 = sadd.s32 %s55, 1
      %p59 = scmp.eq.s32.totalorder %s21, 1
      %p60 = scmp.ne.s32.totalorder %s55, %s57
      %p61 = scmp.eq.s32.totalorder %s21, 0
      %p62 = por %p60, %p61
      %p63 = scmp.ne.s32.totalorder %s55, %s57
      %p64 = scmp.eq.s32.totalorder %s26, 1
      %p65 = por %p63, %p64
      %p66 = scmp.ne.s32.totalorder %s57, %s58
      %p67 = scmp.eq.s32.totalorder %s26, 0
      %p68 = por %p66, %p67
      %p69 = scmp.ne.s32.totalorder %s57, %s58
      %p70 = scmp.eq.s32.totalorder %s27, 1
      %p71 = por %p69, %p70
      %p73 = scmp.ne.s32.totalorder %s58, %s72
      %p74 = scmp.eq.s32.totalorder %s27, 0
      %p75 = por %p73, %p74
      %s77 = sadd.s32 %s76, 1
      %p80 = scmp.eq.s32.totalorder %s21, 1
      %p81 = scmp.ne.s32.totalorder %s76, %s78
      %p82 = scmp.eq.s32.totalorder %s21, 0
      %p83 = por %p81, %p82
      %p84 = scmp.ne.s32.totalorder %s76, %s78
      %p85 = scmp.eq.s32.totalorder %s26, 1
      %p86 = por %p84, %p85
      %p87 = scmp.ne.s32.totalorder %s78, %s79
      %p88 = scmp.eq.s32.totalorder %s26, 0
      %p89 = por %p87, %p88
      %p90 = scmp.ne.s32.totalorder %s78, %s79
      %p91 = scmp.eq.s32.totalorder %s27, 1
      %p92 = por %p90, %p91
      %p94 = scmp.ne.s32.totalorder %s79, %s93
      %p95 = scmp.eq.s32.totalorder %s27, 0
      %p96 = por %p94, %p95
      %s98 = sadd.s32 %s97, 1
      %p101 = scmp.eq.s32.totalorder %s21, 1
      %p102 = scmp.ne.s32.totalorder %s97, %s99
      %p103 = scmp.eq.s32.totalorder %s21, 0
      %p104 = por %p102, %p103
      %p105 = scmp.ne.s32.totalorder %s97, %s99
      %p106 = scmp.eq.s32.totalorder %s26, 1
      %p107 = por %p105, %p106
      %p108 = scmp.ne.s32.totalorder %s99, %s100
      %p109 = scmp.eq.s32.totalorder %s26, 0
      %p110 = por %p108, %p109
      %p111 = scmp.ne.s32.totalorder %s99, %s100
      %p112 = scmp.eq.s32.totalorder %s27, 1
      %p113 = por %p111, %p112
      %p115 = scmp.ne.s32.totalorder %s100, %s114
      %p116 = scmp.eq.s32.totalorder %s27, 0
      %p117 = por %p115, %p116
      %s119 = sadd.s32 %s118, 1
      %p122 = scmp.eq.s32.totalorder %s21, 1
      %p123 = scmp.ne.s32.totalorder %s118, %s120
      %p124 = scmp.eq.s32.totalorder %s21, 0
      %p125 = por %p123, %p124
      %p126 = scmp.ne.s32.totalorder %s118, %s120
      %p127 = scmp.eq.s32.totalorder %s26, 1
      %p128 = por %p126, %p127
      %p129 = scmp.ne.s32.totalorder %s120, %s121
      %p130 = scmp.eq.s32.totalorder %s26, 0
      %p131 = por %p129, %p130
      %p132 = scmp.ne.s32.totalorder %s120, %s121
      %p133 = scmp.eq.s32.totalorder %s27, 1
      %p134 = por %p132, %p133
      %p136 = scmp.ne.s32.totalorder %s121, %s135
      %p137 = scmp.eq.s32.totalorder %s27, 0
      %p138 = por %p136, %p137
      %s140 = sadd.s32 %s139, 1
      %p143 = scmp.eq.s32.totalorder %s21, 1
      %p144 = scmp.ne.s32.totalorder %s139, %s141
      %p145 = scmp.eq.s32.totalorder %s21, 0
      %p146 = por %p144, %p145
      %p147 = scmp.ne.s32.totalorder %s139, %s141
      %p148 = scmp.eq.s32.totalorder %s26, 1
      %p149 = por %p147, %p148
      %p150 = scmp.ne.s32.totalorder %s141, %s142
      %p151 = scmp.eq.s32.totalorder %s26, 0
      %p152 = por %p150, %p151
      %p153 = scmp.ne.s32.totalorder %s141, %s142
      %p154 = scmp.eq.s32.totalorder %s27, 1
      %p155 = por %p153, %p154
      %p157 = scmp.ne.s32.totalorder %s142, %s156
      %p158 = scmp.eq.s32.totalorder %s27, 0
      %p159 = por %p157, %p158
      %s161 = sadd.s32 %s160, 1
      %p164 = scmp.eq.s32.totalorder %s21, 1
      %p165 = scmp.ne.s32.totalorder %s160, %s162
      %p166 = scmp.eq.s32.totalorder %s21, 0
      %p167 = por %p165, %p166
      %p168 = scmp.ne.s32.totalorder %s160, %s162
      %p169 = scmp.eq.s32.totalorder %s26, 1
      %p170 = por %p168, %p169
      %p171 = scmp.ne.s32.totalorder %s162, %s163
      %p172 = scmp.eq.s32.totalorder %s26, 0
      %p173 = por %p171, %p172
      %p174 = scmp.ne.s32.totalorder %s162, %s163
      %p175 = scmp.eq.s32.totalorder %s27, 1
      %p176 = por %p174, %p175
      %p178 = scmp.ne.s32.totalorder %s163, %s177
      %p179 = scmp.eq.s32.totalorder %s27, 0
      %p180 = por %p178, %p179
      %s182 = sadd.s32 %s181, 1
      %p185 = scmp.eq.s32.totalorder %s21, 1
      %p186 = scmp.ne.s32.totalorder %s181, %s183
      %p187 = scmp.eq.s32.totalorder %s21, 0
      %p188 = por %p186, %p187
      %p189 = scmp.ne.s32.totalorder %s181, %s183
      %p190 = scmp.eq.s32.totalorder %s26, 1
      %p191 = por %p189, %p190
      %p192 = scmp.ne.s32.totalorder %s183, %s184
      %p193 = scmp.eq.s32.totalorder %s26, 0
      %p194 = por %p192, %p193
      %p195 = scmp.ne.s32.totalorder %s183, %s184
      %p196 = scmp.eq.s32.totalorder %s27, 1
      %p197 = por %p195, %p196
      %p199 = scmp.ne.s32.totalorder %s184, %s198
      %p200 = scmp.eq.s32.totalorder %s27, 0
      %p201 = por %p199, %p200
      %s203 = sadd.s32 %s202, 1
      %p206 = scmp.eq.s32.totalorder %s21, 1
      %p207 = scmp.ne.s32.totalorder %s202, %s204
      %p208 = scmp.eq.s32.totalorder %s21, 0
      %p209 = por %p207, %p208
      %p210 = scmp.ne.s32.totalorder %s202, %s204
      %p211 = scmp.eq.s32.totalorder %s26, 1
      %p212 = por %p210, %p211
      %p213 = scmp.ne.s32.totalorder %s204, %s205
      %p214 = scmp.eq.s32.totalorder %s26, 0
      %p215 = por %p213, %p214
      %p216 = scmp.ne.s32.totalorder %s204, %s205
      %p217 = scmp.eq.s32.totalorder %s27, 1
      %p218 = por %p216, %p217
      %p220 = scmp.ne.s32.totalorder %s205, %s219
      %p221 = scmp.eq.s32.totalorder %s27, 0
      %p222 = por %p220, %p221
      %s223 = ssub.s32 %s21, %s28
      %p224 = scmp.eq.s32.totalorder %s223, 0
      %s226 = sadd.s32 %s225, 1
      %s227 = scalar_select %p224, %s225, %s226
      %p230 = pneg %p224
      %p231 = scmp.eq.s32.totalorder %s21, 1
      %p232 = por %p230, %p231
      %p233 = scmp.ne.s32.totalorder %s225, %s228
      %p234 = scmp.eq.s32.totalorder %s21, 0
      %p235 = por %p233, %p234
      %p236 = scmp.ne.s32.totalorder %s225, %s228
      %p237 = scmp.eq.s32.totalorder %s26, 1
      %p238 = por %p236, %p237
      %p239 = scmp.ne.s32.totalorder %s228, %s229
      %p240 = scmp.eq.s32.totalorder %s26, 0
      %p241 = por %p239, %p240
      %p242 = scmp.ne.s32.totalorder %s228, %s229
      %p243 = scmp.eq.s32.totalorder %s27, 1
      %p244 = por %p242, %p243
      %p246 = scmp.ne.s32.totalorder %s229, %s245
      %p247 = scmp.eq.s32.totalorder %s27, 0
      %p248 = por %p246, %p247
      %p249 = scmp.le.s32.totalorder 1, %s21
      %p250 = scmp.lt.s32.totalorder %s21, 3
      %p251 = pnand %p249, %p250
      %p252 = pneg %p251
      // Predicated region
      $region9: #{tpu_custom_call.1} parent=5 // pred_check
        _
      $region10: #{tpu_custom_call.1} parent=5 // pred_check_branch
        %254 = sbr.rel (%p251) target = $region12
      $region11: #{tpu_custom_call.1} parent=5 // pred_region
        %s255 = ssub.s32 %s21, 1
        // Predicated region
        $region13: #{tpu_custom_call.1} parent=11 // pred_check
          %p256 = pneg %p68
        $region14: #{tpu_custom_call.1} parent=11 // pred_check_branch
          %258 = sbr.rel (%p256) target = $region16
        $region15: #{tpu_custom_call.1} parent=11 // pred_region
          _
        $region16: #{tpu_custom_call.1} parent=11 // pred_fallthru
          _
        // Predicated region
        $region17: #{tpu_custom_call.1} parent=11 // pred_check
          %p259 = pneg %p89
        $region18: #{tpu_custom_call.1} parent=11 // pred_check_branch
          %261 = sbr.rel (%p259) target = $region20
        $region19: #{tpu_custom_call.1} parent=11 // pred_region
          _
        $region20: #{tpu_custom_call.1} parent=11 // pred_fallthru
          _
        // Predicated region
        $region21: #{tpu_custom_call.1} parent=11 // pred_check
          %p262 = pneg %p110
        $region22: #{tpu_custom_call.1} parent=11 // pred_check_branch
          %264 = sbr.rel (%p262) target = $region24
        $region23: #{tpu_custom_call.1} parent=11 // pred_region
          _
        $region24: #{tpu_custom_call.1} parent=11 // pred_fallthru
          _
        // Predicated region
        $region25: #{tpu_custom_call.1} parent=11 // pred_check
          %p265 = pneg %p131
        $region26: #{tpu_custom_call.1} parent=11 // pred_check_branch
          %267 = sbr.rel (%p265) target = $region28
        $region27: #{tpu_custom_call.1} parent=11 // pred_region
          _
        $region28: #{tpu_custom_call.1} parent=11 // pred_fallthru
          _
        // Predicated region
        $region29: #{tpu_custom_call.1} parent=11 // pred_check
          %p268 = pneg %p152
        $region30: #{tpu_custom_call.1} parent=11 // pred_check_branch
          %270 = sbr.rel (%p268) target = $region32
        $region31: #{tpu_custom_call.1} parent=11 // pred_region
          _
        $region32: #{tpu_custom_call.1} parent=11 // pred_fallthru
          _
        // Predicated region
        $region33: #{tpu_custom_call.1} parent=11 // pred_check
          %p271 = pneg %p173
        $region34: #{tpu_custom_call.1} parent=11 // pred_check_branch
          %273 = sbr.rel (%p271) target = $region36
        $region35: #{tpu_custom_call.1} parent=11 // pred_region
          _
        $region36: #{tpu_custom_call.1} parent=11 // pred_fallthru
          _
        // Predicated region
        $region37: #{tpu_custom_call.1} parent=11 // pred_check
          %p274 = pneg %p194
        $region38: #{tpu_custom_call.1} parent=11 // pred_check_branch
          %276 = sbr.rel (%p274) target = $region40
        $region39: #{tpu_custom_call.1} parent=11 // pred_region
          _
        $region40: #{tpu_custom_call.1} parent=11 // pred_fallthru
          _
        // Predicated region
        $region41: #{tpu_custom_call.1} parent=11 // pred_check
          %p277 = pneg %p215
        $region42: #{tpu_custom_call.1} parent=11 // pred_check_branch
          %279 = sbr.rel (%p277) target = $region44
        $region43: #{tpu_custom_call.1} parent=11 // pred_region
          _
        $region44: #{tpu_custom_call.1} parent=11 // pred_fallthru
          _
      $region12: #{tpu_custom_call.1} parent=5 // pred_fallthru
        _
      %p280 = scmp.lt.s32.totalorder %s21, 2
      // Predicated region
      $region45: #{tpu_custom_call.1} parent=5 // pred_check
        %p281 = pneg %p280
      $region46: #{tpu_custom_call.1} parent=5 // pred_check_branch
        %283 = sbr.rel (%p281) target = $region48
      $region47: #{tpu_custom_call.1} parent=5 // pred_region
        // Predicated region
        $region49: #{tpu_custom_call.1} parent=47 // pred_check
          %p284 = pneg %p41
        $region50: #{tpu_custom_call.1} parent=47 // pred_check_branch
          %286 = sbr.rel (%p284) target = $region52
        $region51: #{tpu_custom_call.1} parent=47 // pred_region
          %s287 = sand.u32 %s31, 1
          %s288 = scalar_lea.sflag [#allocation3], %s287
          %s289 = sand.u32 %s31, 1
          %s290 = smul.addr %s289, 256
          %s291 = scalar_lea.vmem [#allocation2], %s290
          %s292 = smul.u32 32, %s21
          %294 = vsyncadd %s288, 0
          %s295 = smul.addr %s292, 8
          %s296 = scalar_lea.hbm %s0, %s295
          %s297 = sshll.u32 %s296, 4
          %s298 = int_to_ptr.hbm [resolvable:$true] %s297
          %s299 = sshll.u32 %s291, 4
          %s300 = int_to_ptr.vmem [resolvable:$true] %s299
          %305 = dma.hbm_to_vmem [thread:$0]  %s298, 4096, %s300, %s288, 128, 128, 8
        $region52: #{tpu_custom_call.1} parent=47 // pred_fallthru
          _
      $region48: #{tpu_custom_call.1} parent=5 // pred_fallthru
        _
      %p306 = scmp.le.s32.totalorder 1, %s21
      %p307 = scmp.lt.s32.totalorder %s21, 3
      %p308 = pnand %p306, %p307
      %p309 = pneg %p308
      // Predicated region
      $region53: #{tpu_custom_call.1} parent=5 // pred_check
        _
      $region54: #{tpu_custom_call.1} parent=5 // pred_check_branch
        %311 = sbr.rel (%p308) target = $region56
      $region55: #{tpu_custom_call.1} parent=5 // pred_region
        %s312 = ssub.s32 %s21, 1
        %s313 = sand.u32 %s34, 1
        %s314 = scalar_lea.sflag [#allocation3], %s313
        %s315 = sand.u32 %s34, 1
        %s316 = smul.addr %s315, 256
        %s317 = scalar_lea.vmem [#allocation2], %s316
        // Predicated region
        $region57: #{tpu_custom_call.1} parent=55 // pred_check
          %p318 = pneg %p47
        $region58: #{tpu_custom_call.1} parent=55 // pred_check_branch
          %320 = sbr.rel (%p318) target = $region60
        $region59: #{tpu_custom_call.1} parent=55 // pred_region
          %322 = dma.done %s314, 4096
        $region60: #{tpu_custom_call.1} parent=55 // pred_fallthru
          _
        %s323 = sand.u32 %s34, 1
        %s324 = scalar_lea.sflag [#allocation3], %s323
        %s325 = sand.u32 %s34, 1
        %s326 = smul.addr %s325, 256
        %s327 = scalar_lea.vmem [#allocation2], %s326
        %p328 = pneg %p47
        %p329 = pneg %p44
        %p330 = pneg %p68
        %p331 = pneg %p65
        %p332 = pneg %p89
        %p333 = pneg %p86
        %p334 = pneg %p110
        %p335 = pneg %p107
        %p336 = pneg %p131
        %p337 = pneg %p128
        %p338 = pneg %p152
        %p339 = pneg %p149
        %p340 = pneg %p173
        %p341 = pneg %p170
        %p342 = pneg %p194
        %p343 = pneg %p191
        %p344 = pneg %p215
        %p345 = pneg %p212
        %p346 = pneg %p241
        %p347 = pneg %p238
        %s348 = sand.u32 %s228, 1
        %s349 = scalar_lea.sflag [#allocation4], %s348
        %s350 = sand.u32 %s228, 1
        %s351 = smul.addr %s350, 256
        %s352 = scalar_lea.vmem [#allocation5], %s351
        %s353 = smul.u32 32, %s26
        %s354 = smul.u32 32, %s26
        %v355 = vld [vmem:[%s317] sm:$0xff]
        %v356 = vld [vmem:[%s317 + $0x8] sm:$0xff]
        %v357 = vld [vmem:[%s317 + $0x10] sm:$0xff]
        %v358 = vld [vmem:[%s317 + $0x18] sm:$0xff]
        %v359 = vld [vmem:[%s317 + $0x20] sm:$0xff]
        %v360 = vld [vmem:[%s317 + $0x28] sm:$0xff]
        %v361 = vld [vmem:[%s317 + $0x30] sm:$0xff]
        %v362 = vld [vmem:[%s317 + $0x38] sm:$0xff]
        %v363 = vld [vmem:[%s317 + $0x40] sm:$0xff]
        %v364 = vld [vmem:[%s317 + $0x48] sm:$0xff]
        %v365 = vld [vmem:[%s317 + $0x50] sm:$0xff]
        %v366 = vld [vmem:[%s317 + $0x58] sm:$0xff]
        %v367 = vld [vmem:[%s317 + $0x60] sm:$0xff]
        %v368 = vld [vmem:[%s317 + $0x68] sm:$0xff]
        %v369 = vld [vmem:[%s317 + $0x70] sm:$0xff]
        %v370 = vld [vmem:[%s317 + $0x78] sm:$0xff]
        %v371 = vld [vmem:[%s317 + $0x80] sm:$0xff]
        %v372 = vld [vmem:[%s317 + $0x88] sm:$0xff]
        %v373 = vld [vmem:[%s317 + $0x90] sm:$0xff]
        %v374 = vld [vmem:[%s317 + $0x98] sm:$0xff]
        %v375 = vld [vmem:[%s317 + $0xa0] sm:$0xff]
        %v376 = vld [vmem:[%s317 + $0xa8] sm:$0xff]
        %v377 = vld [vmem:[%s317 + $0xb0] sm:$0xff]
        %v378 = vld [vmem:[%s317 + $0xb8] sm:$0xff]
        %v379 = vld [vmem:[%s317 + $0xc0] sm:$0xff]
        %v380 = vld [vmem:[%s317 + $0xc8] sm:$0xff]
        %v381 = vld [vmem:[%s317 + $0xd0] sm:$0xff]
        %v382 = vld [vmem:[%s317 + $0xd8] sm:$0xff]
        %v383 = vld [vmem:[%s317 + $0xe0] sm:$0xff]
        %v384 = vld [vmem:[%s317 + $0xe8] sm:$0xff]
        %v385 = vld [vmem:[%s317 + $0xf0] sm:$0xff]
        %v386 = vld [vmem:[%s317 + $0xf8] sm:$0xff]
        %387 = vadd.xlane.f32.xlu0 %v355
        %v388 = vpop.xlane.xlu0 %387
        %389 = vadd.xlane.f32.xlu0 %v356
        %v390 = vpop.xlane.xlu0 %389
        %391 = vadd.xlane.f32.xlu0 %v357
        %v392 = vpop.xlane.xlu0 %391
        %393 = vadd.xlane.f32.xlu0 %v358
        %v394 = vpop.xlane.xlu0 %393
        %395 = vadd.xlane.f32.xlu0 %v359
        %v396 = vpop.xlane.xlu0 %395
        %397 = vadd.xlane.f32.xlu0 %v360
        %v398 = vpop.xlane.xlu0 %397
        %399 = vadd.xlane.f32.xlu0 %v361
        %v400 = vpop.xlane.xlu0 %399
        %401 = vadd.xlane.f32.xlu0 %v362
        %v402 = vpop.xlane.xlu0 %401
        %403 = vadd.xlane.f32.xlu0 %v363
        %v404 = vpop.xlane.xlu0 %403
        %405 = vadd.xlane.f32.xlu0 %v364
        %v406 = vpop.xlane.xlu0 %405
        %407 = vadd.xlane.f32.xlu0 %v365
        %v408 = vpop.xlane.xlu0 %407
        %409 = vadd.xlane.f32.xlu0 %v366
        %v410 = vpop.xlane.xlu0 %409
        %411 = vadd.xlane.f32.xlu0 %v367
        %v412 = vpop.xlane.xlu0 %411
        %413 = vadd.xlane.f32.xlu0 %v368
        %v414 = vpop.xlane.xlu0 %413
        %415 = vadd.xlane.f32.xlu0 %v369
        %v416 = vpop.xlane.xlu0 %415
        %417 = vadd.xlane.f32.xlu0 %v370
        %v418 = vpop.xlane.xlu0 %417
        %419 = vadd.xlane.f32.xlu0 %v371
        %v420 = vpop.xlane.xlu0 %419
        %421 = vadd.xlane.f32.xlu0 %v372
        %v422 = vpop.xlane.xlu0 %421
        %423 = vadd.xlane.f32.xlu0 %v373
        %v424 = vpop.xlane.xlu0 %423
        %425 = vadd.xlane.f32.xlu0 %v374
        %v426 = vpop.xlane.xlu0 %425
        %427 = vadd.xlane.f32.xlu0 %v375
        %v428 = vpop.xlane.xlu0 %427
        %429 = vadd.xlane.f32.xlu0 %v376
        %v430 = vpop.xlane.xlu0 %429
        %431 = vadd.xlane.f32.xlu0 %v377
        %v432 = vpop.xlane.xlu0 %431
        %433 = vadd.xlane.f32.xlu0 %v378
        %v434 = vpop.xlane.xlu0 %433
        %435 = vadd.xlane.f32.xlu0 %v379
        %v436 = vpop.xlane.xlu0 %435
        %437 = vadd.xlane.f32.xlu0 %v380
        %v438 = vpop.xlane.xlu0 %437
        %439 = vadd.xlane.f32.xlu0 %v381
        %v440 = vpop.xlane.xlu0 %439
        %441 = vadd.xlane.f32.xlu0 %v382
        %v442 = vpop.xlane.xlu0 %441
        %443 = vadd.xlane.f32.xlu0 %v383
        %v444 = vpop.xlane.xlu0 %443
        %445 = vadd.xlane.f32.xlu0 %v384
        %v446 = vpop.xlane.xlu0 %445
        %447 = vadd.xlane.f32.xlu0 %v385
        %v448 = vpop.xlane.xlu0 %447
        %449 = vadd.xlane.f32.xlu0 %v386
        %v450 = vpop.xlane.xlu0 %449
        %v451 = vrcp.pop 128.0
        %v452 = vmul.f32 128.0, %v451
        %v453 = vsub.f32 1.0, %v452
        %v454 = vmul.f32 %v451, %v453
        %v455 = vadd.f32 %v451, %v454
        %vm456 = vweird.f32 %v451
        %v457 = vsel %vm456, %v451, %v455
        %v458 = vmul.f32 %v388, %v457
        %v459 = vmul.f32 %v390, %v457
        %v460 = vmul.f32 %v392, %v457
        %v461 = vmul.f32 %v394, %v457
        %v462 = vmul.f32 %v396, %v457
        %v463 = vmul.f32 %v398, %v457
        %v464 = vmul.f32 %v400, %v457
        %v465 = vmul.f32 %v402, %v457
        %v466 = vmul.f32 %v404, %v457
        %v467 = vmul.f32 %v406, %v457
        %v468 = vmul.f32 %v408, %v457
        %v469 = vmul.f32 %v410, %v457
        %v470 = vmul.f32 %v412, %v457
        %v471 = vmul.f32 %v414, %v457
        %v472 = vmul.f32 %v416, %v457
        %v473 = vmul.f32 %v418, %v457
        %v474 = vmul.f32 %v420, %v457
        %v475 = vmul.f32 %v422, %v457
        %v476 = vmul.f32 %v424, %v457
        %v477 = vmul.f32 %v426, %v457
        %v478 = vmul.f32 %v428, %v457
        %v479 = vmul.f32 %v430, %v457
        %v480 = vmul.f32 %v432, %v457
        %v481 = vmul.f32 %v434, %v457
        %v482 = vmul.f32 %v436, %v457
        %v483 = vmul.f32 %v438, %v457
        %v484 = vmul.f32 %v440, %v457
        %v485 = vmul.f32 %v442, %v457
        %v486 = vmul.f32 %v444, %v457
        %v487 = vmul.f32 %v446, %v457
        %v488 = vmul.f32 %v448, %v457
        %v489 = vmul.f32 %v450, %v457
        %v490 = vsub.f32 %v355, %v458
        %v491 = vsub.f32 %v356, %v459
        %v492 = vsub.f32 %v357, %v460
        %v493 = vsub.f32 %v358, %v461
        %v494 = vsub.f32 %v359, %v462
        %v495 = vsub.f32 %v360, %v463
        %v496 = vsub.f32 %v361, %v464
        %v497 = vsub.f32 %v362, %v465
        %v498 = vsub.f32 %v363, %v466
        %v499 = vsub.f32 %v364, %v467
        %v500 = vsub.f32 %v365, %v468
        %v501 = vsub.f32 %v366, %v469
        %v502 = vsub.f32 %v367, %v470
        %v503 = vsub.f32 %v368, %v471
        %v504 = vsub.f32 %v369, %v472
        %v505 = vsub.f32 %v370, %v473
        %v506 = vsub.f32 %v371, %v474
        %v507 = vsub.f32 %v372, %v475
        %v508 = vsub.f32 %v373, %v476
        %v509 = vsub.f32 %v374, %v477
        %v510 = vsub.f32 %v375, %v478
        %v511 = vsub.f32 %v376, %v479
        %v512 = vsub.f32 %v377, %v480
        %v513 = vsub.f32 %v378, %v481
        %v514 = vsub.f32 %v379, %v482
        %v515 = vsub.f32 %v380, %v483
        %v516 = vsub.f32 %v381, %v484
        %v517 = vsub.f32 %v382, %v485
        %v518 = vsub.f32 %v383, %v486
        %v519 = vsub.f32 %v384, %v487
        %v520 = vsub.f32 %v385, %v488
        %v521 = vsub.f32 %v386, %v489
        %v522 = vmul.f32 %v490, %v490
        %v523 = vmul.f32 %v491, %v491
        %v524 = vmul.f32 %v492, %v492
        %v525 = vmul.f32 %v493, %v493
        %v526 = vmul.f32 %v494, %v494
        %v527 = vmul.f32 %v495, %v495
        %v528 = vmul.f32 %v496, %v496
        %v529 = vmul.f32 %v497, %v497
        %v530 = vmul.f32 %v498, %v498
        %v531 = vmul.f32 %v499, %v499
        %v532 = vmul.f32 %v500, %v500
        %v533 = vmul.f32 %v501, %v501
        %v534 = vmul.f32 %v502, %v502
        %v535 = vmul.f32 %v503, %v503
        %v536 = vmul.f32 %v504, %v504
        %v537 = vmul.f32 %v505, %v505
        %v538 = vmul.f32 %v506, %v506
        %v539 = vmul.f32 %v507, %v507
        %v540 = vmul.f32 %v508, %v508
        %v541 = vmul.f32 %v509, %v509
        %v542 = vmul.f32 %v510, %v510
        %v543 = vmul.f32 %v511, %v511
        %v544 = vmul.f32 %v512, %v512
        %v545 = vmul.f32 %v513, %v513
        %v546 = vmul.f32 %v514, %v514
        %v547 = vmul.f32 %v515, %v515
        %v548 = vmul.f32 %v516, %v516
        %v549 = vmul.f32 %v517, %v517
        %v550 = vmul.f32 %v518, %v518
        %v551 = vmul.f32 %v519, %v519
        %v552 = vmul.f32 %v520, %v520
        %v553 = vmul.f32 %v521, %v521
        %554 = vadd.xlane.f32.xlu0 %v522
        %v555 = vpop.xlane.xlu0 %554
        %556 = vadd.xlane.f32.xlu0 %v523
        %v557 = vpop.xlane.xlu0 %556
        %558 = vadd.xlane.f32.xlu0 %v524
        %v559 = vpop.xlane.xlu0 %558
        %560 = vadd.xlane.f32.xlu0 %v525
        %v561 = vpop.xlane.xlu0 %560
        %562 = vadd.xlane.f32.xlu0 %v526
        %v563 = vpop.xlane.xlu0 %562
        %564 = vadd.xlane.f32.xlu0 %v527
        %v565 = vpop.xlane.xlu0 %564
        %566 = vadd.xlane.f32.xlu0 %v528
        %v567 = vpop.xlane.xlu0 %566
        %568 = vadd.xlane.f32.xlu0 %v529
        %v569 = vpop.xlane.xlu0 %568
        %570 = vadd.xlane.f32.xlu0 %v530
        %v571 = vpop.xlane.xlu0 %570
        %572 = vadd.xlane.f32.xlu0 %v531
        %v573 = vpop.xlane.xlu0 %572
        %574 = vadd.xlane.f32.xlu0 %v532
        %v575 = vpop.xlane.xlu0 %574
        %576 = vadd.xlane.f32.xlu0 %v533
        %v577 = vpop.xlane.xlu0 %576
        %578 = vadd.xlane.f32.xlu0 %v534
        %v579 = vpop.xlane.xlu0 %578
        %580 = vadd.xlane.f32.xlu0 %v535
        %v581 = vpop.xlane.xlu0 %580
        %582 = vadd.xlane.f32.xlu0 %v536
        %v583 = vpop.xlane.xlu0 %582
        %584 = vadd.xlane.f32.xlu0 %v537
        %v585 = vpop.xlane.xlu0 %584
        %586 = vadd.xlane.f32.xlu0 %v538
        %v587 = vpop.xlane.xlu0 %586
        %588 = vadd.xlane.f32.xlu0 %v539
        %v589 = vpop.xlane.xlu0 %588
        %590 = vadd.xlane.f32.xlu0 %v540
        %v591 = vpop.xlane.xlu0 %590
        %592 = vadd.xlane.f32.xlu0 %v541
        %v593 = vpop.xlane.xlu0 %592
        %594 = vadd.xlane.f32.xlu0 %v542
        %v595 = vpop.xlane.xlu0 %594
        %596 = vadd.xlane.f32.xlu0 %v543
        %v597 = vpop.xlane.xlu0 %596
        %598 = vadd.xlane.f32.xlu0 %v544
        %v599 = vpop.xlane.xlu0 %598
        %600 = vadd.xlane.f32.xlu0 %v545
        %v601 = vpop.xlane.xlu0 %600
        %602 = vadd.xlane.f32.xlu0 %v546
        %v603 = vpop.xlane.xlu0 %602
        %604 = vadd.xlane.f32.xlu0 %v547
        %v605 = vpop.xlane.xlu0 %604
        %606 = vadd.xlane.f32.xlu0 %v548
        %v607 = vpop.xlane.xlu0 %606
        %608 = vadd.xlane.f32.xlu0 %v549
        %v609 = vpop.xlane.xlu0 %608
        %610 = vadd.xlane.f32.xlu0 %v550
        %v611 = vpop.xlane.xlu0 %610
        %612 = vadd.xlane.f32.xlu0 %v551
        %v613 = vpop.xlane.xlu0 %612
        %614 = vadd.xlane.f32.xlu0 %v552
        %v615 = vpop.xlane.xlu0 %614
        %616 = vadd.xlane.f32.xlu0 %v553
        %v617 = vpop.xlane.xlu0 %616
        %v618 = vmul.f32 %v555, %v457
        %v619 = vmul.f32 %v557, %v457
        %v620 = vmul.f32 %v559, %v457
        %v621 = vmul.f32 %v561, %v457
        %v622 = vmul.f32 %v563, %v457
        %v623 = vmul.f32 %v565, %v457
        %v624 = vmul.f32 %v567, %v457
        %v625 = vmul.f32 %v569, %v457
        %v626 = vmul.f32 %v571, %v457
        %v627 = vmul.f32 %v573, %v457
        %v628 = vmul.f32 %v575, %v457
        %v629 = vmul.f32 %v577, %v457
        %v630 = vmul.f32 %v579, %v457
        %v631 = vmul.f32 %v581, %v457
        %v632 = vmul.f32 %v583, %v457
        %v633 = vmul.f32 %v585, %v457
        %v634 = vmul.f32 %v587, %v457
        %v635 = vmul.f32 %v589, %v457
        %v636 = vmul.f32 %v591, %v457
        %v637 = vmul.f32 %v593, %v457
        %v638 = vmul.f32 %v595, %v457
        %v639 = vmul.f32 %v597, %v457
        %v640 = vmul.f32 %v599, %v457
        %v641 = vmul.f32 %v601, %v457
        %v642 = vmul.f32 %v603, %v457
        %v643 = vmul.f32 %v605, %v457
        %v644 = vmul.f32 %v607, %v457
        %v645 = vmul.f32 %v609, %v457
        %v646 = vmul.f32 %v611, %v457
        %v647 = vmul.f32 %v613, %v457
        %v648 = vmul.f32 %v615, %v457
        %v649 = vmul.f32 %v617, %v457
        %v650 = vadd.f32 %v618, 1e-05
        %v651 = vadd.f32 %v619, 1e-05
        %v652 = vadd.f32 %v620, 1e-05
        %v653 = vadd.f32 %v621, 1e-05
        %v654 = vadd.f32 %v622, 1e-05
        %v655 = vadd.f32 %v623, 1e-05
        %v656 = vadd.f32 %v624, 1e-05
        %v657 = vadd.f32 %v625, 1e-05
        %v658 = vadd.f32 %v626, 1e-05
        %v659 = vadd.f32 %v627, 1e-05
        %v660 = vadd.f32 %v628, 1e-05
        %v661 = vadd.f32 %v629, 1e-05
        %v662 = vadd.f32 %v630, 1e-05
        %v663 = vadd.f32 %v631, 1e-05
        %v664 = vadd.f32 %v632, 1e-05
        %v665 = vadd.f32 %v633, 1e-05
        %v666 = vadd.f32 %v634, 1e-05
        %v667 = vadd.f32 %v635, 1e-05
        %v668 = vadd.f32 %v636, 1e-05
        %v669 = vadd.f32 %v637, 1e-05
        %v670 = vadd.f32 %v638, 1e-05
        %v671 = vadd.f32 %v639, 1e-05
        %v672 = vadd.f32 %v640, 1e-05
        %v673 = vadd.f32 %v641, 1e-05
        %v674 = vadd.f32 %v642, 1e-05
        %v675 = vadd.f32 %v643, 1e-05
        %v676 = vadd.f32 %v644, 1e-05
        %v677 = vadd.f32 %v645, 1e-05
        %v678 = vadd.f32 %v646, 1e-05
        %v679 = vadd.f32 %v647, 1e-05
        %v680 = vadd.f32 %v648, 1e-05
        %v681 = vadd.f32 %v649, 1e-05
        %v682 = vrsqrt.pop %v650
        %v683 = vmul.f32 %v682, %v650
        %v684 = vmul.f32 %v683, %v682
        %v685 = vmul.f32 0.5, %v684
        %v686 = vsub.f32 1.5, %v685
        %v687 = vmul.f32 %v682, %v686
        %vm688 = vweird.f32 %v650
        %vm689 = vweird.f32 %v682
        %vm690 = vmor %vm688, %vm689
        %v691 = vsel %vm690, %v682, %v687
        %v692 = vrsqrt.pop %v651
        %v693 = vmul.f32 %v692, %v651
        %v694 = vmul.f32 %v693, %v692
        %v695 = vmul.f32 0.5, %v694
        %v696 = vsub.f32 1.5, %v695
        %v697 = vmul.f32 %v692, %v696
        %vm698 = vweird.f32 %v651
        %vm699 = vweird.f32 %v692
        %vm700 = vmor %vm698, %vm699
        %v701 = vsel %vm700, %v692, %v697
        %v702 = vrsqrt.pop %v652
        %v703 = vmul.f32 %v702, %v652
        %v704 = vmul.f32 %v703, %v702
        %v705 = vmul.f32 0.5, %v704
        %v706 = vsub.f32 1.5, %v705
        %v707 = vmul.f32 %v702, %v706
        %vm708 = vweird.f32 %v652
        %vm709 = vweird.f32 %v702
        %vm710 = vmor %vm708, %vm709
        %v711 = vsel %vm710, %v702, %v707
        %v712 = vrsqrt.pop %v653
        %v713 = vmul.f32 %v712, %v653
        %v714 = vmul.f32 %v713, %v712
        %v715 = vmul.f32 0.5, %v714
        %v716 = vsub.f32 1.5, %v715
        %v717 = vmul.f32 %v712, %v716
        %vm718 = vweird.f32 %v653
        %vm719 = vweird.f32 %v712
        %vm720 = vmor %vm718, %vm719
        %v721 = vsel %vm720, %v712, %v717
        %v722 = vrsqrt.pop %v654
        %v723 = vmul.f32 %v722, %v654
        %v724 = vmul.f32 %v723, %v722
        %v725 = vmul.f32 0.5, %v724
        %v726 = vsub.f32 1.5, %v725
        %v727 = vmul.f32 %v722, %v726
        %vm728 = vweird.f32 %v654
        %vm729 = vweird.f32 %v722
        %vm730 = vmor %vm728, %vm729
        %v731 = vsel %vm730, %v722, %v727
        %v732 = vrsqrt.pop %v655
        %v733 = vmul.f32 %v732, %v655
        %v734 = vmul.f32 %v733, %v732
        %v735 = vmul.f32 0.5, %v734
        %v736 = vsub.f32 1.5, %v735
        %v737 = vmul.f32 %v732, %v736
        %vm738 = vweird.f32 %v655
        %vm739 = vweird.f32 %v732
        %vm740 = vmor %vm738, %vm739
        %v741 = vsel %vm740, %v732, %v737
        %v742 = vrsqrt.pop %v656
        %v743 = vmul.f32 %v742, %v656
        %v744 = vmul.f32 %v743, %v742
        %v745 = vmul.f32 0.5, %v744
        %v746 = vsub.f32 1.5, %v745
        %v747 = vmul.f32 %v742, %v746
        %vm748 = vweird.f32 %v656
        %vm749 = vweird.f32 %v742
        %vm750 = vmor %vm748, %vm749
        %v751 = vsel %vm750, %v742, %v747
        %v752 = vrsqrt.pop %v657
        %v753 = vmul.f32 %v752, %v657
        %v754 = vmul.f32 %v753, %v752
        %v755 = vmul.f32 0.5, %v754
        %v756 = vsub.f32 1.5, %v755
        %v757 = vmul.f32 %v752, %v756
        %vm758 = vweird.f32 %v657
        %vm759 = vweird.f32 %v752
        %vm760 = vmor %vm758, %vm759
        %v761 = vsel %vm760, %v752, %v757
        %v762 = vrsqrt.pop %v658
        %v763 = vmul.f32 %v762, %v658
        %v764 = vmul.f32 %v763, %v762
        %v765 = vmul.f32 0.5, %v764
        %v766 = vsub.f32 1.5, %v765
        %v767 = vmul.f32 %v762, %v766
        %vm768 = vweird.f32 %v658
        %vm769 = vweird.f32 %v762
        %vm770 = vmor %vm768, %vm769
        %v771 = vsel %vm770, %v762, %v767
        %v772 = vrsqrt.pop %v659
        %v773 = vmul.f32 %v772, %v659
        %v774 = vmul.f32 %v773, %v772
        %v775 = vmul.f32 0.5, %v774
        %v776 = vsub.f32 1.5, %v775
        %v777 = vmul.f32 %v772, %v776
        %vm778 = vweird.f32 %v659
        %vm779 = vweird.f32 %v772
        %vm780 = vmor %vm778, %vm779
        %v781 = vsel %vm780, %v772, %v777
        %v782 = vrsqrt.pop %v660
        %v783 = vmul.f32 %v782, %v660
        %v784 = vmul.f32 %v783, %v782
        %v785 = vmul.f32 0.5, %v784
        %v786 = vsub.f32 1.5, %v785
        %v787 = vmul.f32 %v782, %v786
        %vm788 = vweird.f32 %v660
        %vm789 = vweird.f32 %v782
        %vm790 = vmor %vm788, %vm789
        %v791 = vsel %vm790, %v782, %v787
        %v792 = vrsqrt.pop %v661
        %v793 = vmul.f32 %v792, %v661
        %v794 = vmul.f32 %v793, %v792
        %v795 = vmul.f32 0.5, %v794
        %v796 = vsub.f32 1.5, %v795
        %v797 = vmul.f32 %v792, %v796
        %vm798 = vweird.f32 %v661
        %vm799 = vweird.f32 %v792
        %vm800 = vmor %vm798, %vm799
        %v801 = vsel %vm800, %v792, %v797
        %v802 = vrsqrt.pop %v662
        %v803 = vmul.f32 %v802, %v662
        %v804 = vmul.f32 %v803, %v802
        %v805 = vmul.f32 0.5, %v804
        %v806 = vsub.f32 1.5, %v805
        %v807 = vmul.f32 %v802, %v806
        %vm808 = vweird.f32 %v662
        %vm809 = vweird.f32 %v802
        %vm810 = vmor %vm808, %vm809
        %v811 = vsel %vm810, %v802, %v807
        %v812 = vrsqrt.pop %v663
        %v813 = vmul.f32 %v812, %v663
        %v814 = vmul.f32 %v813, %v812
        %v815 = vmul.f32 0.5, %v814
        %v816 = vsub.f32 1.5, %v815
        %v817 = vmul.f32 %v812, %v816
        %vm818 = vweird.f32 %v663
        %vm819 = vweird.f32 %v812
        %vm820 = vmor %vm818, %vm819
        %v821 = vsel %vm820, %v812, %v817
        %v822 = vrsqrt.pop %v664
        %v823 = vmul.f32 %v822, %v664
        %v824 = vmul.f32 %v823, %v822
        %v825 = vmul.f32 0.5, %v824
        %v826 = vsub.f32 1.5, %v825
        %v827 = vmul.f32 %v822, %v826
        %vm828 = vweird.f32 %v664
        %vm829 = vweird.f32 %v822
        %vm830 = vmor %vm828, %vm829
        %v831 = vsel %vm830, %v822, %v827
        %v832 = vrsqrt.pop %v665
        %v833 = vmul.f32 %v832, %v665
        %v834 = vmul.f32 %v833, %v832
        %v835 = vmul.f32 0.5, %v834
        %v836 = vsub.f32 1.5, %v835
        %v837 = vmul.f32 %v832, %v836
        %vm838 = vweird.f32 %v665
        %vm839 = vweird.f32 %v832
        %vm840 = vmor %vm838, %vm839
        %v841 = vsel %vm840, %v832, %v837
        %v842 = vrsqrt.pop %v666
        %v843 = vmul.f32 %v842, %v666
        %v844 = vmul.f32 %v843, %v842
        %v845 = vmul.f32 0.5, %v844
        %v846 = vsub.f32 1.5, %v845
        %v847 = vmul.f32 %v842, %v846
        %vm848 = vweird.f32 %v666
        %vm849 = vweird.f32 %v842
        %vm850 = vmor %vm848, %vm849
        %v851 = vsel %vm850, %v842, %v847
        %v852 = vrsqrt.pop %v667
        %v853 = vmul.f32 %v852, %v667
        %v854 = vmul.f32 %v853, %v852
        %v855 = vmul.f32 0.5, %v854
        %v856 = vsub.f32 1.5, %v855
        %v857 = vmul.f32 %v852, %v856
        %vm858 = vweird.f32 %v667
        %vm859 = vweird.f32 %v852
        %vm860 = vmor %vm858, %vm859
        %v861 = vsel %vm860, %v852, %v857
        %v862 = vrsqrt.pop %v668
        %v863 = vmul.f32 %v862, %v668
        %v864 = vmul.f32 %v863, %v862
        %v865 = vmul.f32 0.5, %v864
        %v866 = vsub.f32 1.5, %v865
        %v867 = vmul.f32 %v862, %v866
        %vm868 = vweird.f32 %v668
        %vm869 = vweird.f32 %v862
        %vm870 = vmor %vm868, %vm869
        %v871 = vsel %vm870, %v862, %v867
        %v872 = vrsqrt.pop %v669
        %v873 = vmul.f32 %v872, %v669
        %v874 = vmul.f32 %v873, %v872
        %v875 = vmul.f32 0.5, %v874
        %v876 = vsub.f32 1.5, %v875
        %v877 = vmul.f32 %v872, %v876
        %vm878 = vweird.f32 %v669
        %vm879 = vweird.f32 %v872
        %vm880 = vmor %vm878, %vm879
        %v881 = vsel %vm880, %v872, %v877
        %v882 = vrsqrt.pop %v670
        %v883 = vmul.f32 %v882, %v670
        %v884 = vmul.f32 %v883, %v882
        %v885 = vmul.f32 0.5, %v884
        %v886 = vsub.f32 1.5, %v885
        %v887 = vmul.f32 %v882, %v886
        %vm888 = vweird.f32 %v670
        %vm889 = vweird.f32 %v882
        %vm890 = vmor %vm888, %vm889
        %v891 = vsel %vm890, %v882, %v887
        %v892 = vrsqrt.pop %v671
        %v893 = vmul.f32 %v892, %v671
        %v894 = vmul.f32 %v893, %v892
        %v895 = vmul.f32 0.5, %v894
        %v896 = vsub.f32 1.5, %v895
        %v897 = vmul.f32 %v892, %v896
        %vm898 = vweird.f32 %v671
        %vm899 = vweird.f32 %v892
        %vm900 = vmor %vm898, %vm899
        %v901 = vsel %vm900, %v892, %v897
        %v902 = vrsqrt.pop %v672
        %v903 = vmul.f32 %v902, %v672
        %v904 = vmul.f32 %v903, %v902
        %v905 = vmul.f32 0.5, %v904
        %v906 = vsub.f32 1.5, %v905
        %v907 = vmul.f32 %v902, %v906
        %vm908 = vweird.f32 %v672
        %vm909 = vweird.f32 %v902
        %vm910 = vmor %vm908, %vm909
        %v911 = vsel %vm910, %v902, %v907
        %v912 = vrsqrt.pop %v673
        %v913 = vmul.f32 %v912, %v673
        %v914 = vmul.f32 %v913, %v912
        %v915 = vmul.f32 0.5, %v914
        %v916 = vsub.f32 1.5, %v915
        %v917 = vmul.f32 %v912, %v916
        %vm918 = vweird.f32 %v673
        %vm919 = vweird.f32 %v912
        %vm920 = vmor %vm918, %vm919
        %v921 = vsel %vm920, %v912, %v917
        %v922 = vrsqrt.pop %v674
        %v923 = vmul.f32 %v922, %v674
        %v924 = vmul.f32 %v923, %v922
        %v925 = vmul.f32 0.5, %v924
        %v926 = vsub.f32 1.5, %v925
        %v927 = vmul.f32 %v922, %v926
        %vm928 = vweird.f32 %v674
        %vm929 = vweird.f32 %v922
        %vm930 = vmor %vm928, %vm929
        %v931 = vsel %vm930, %v922, %v927
        %v932 = vrsqrt.pop %v675
        %v933 = vmul.f32 %v932, %v675
        %v934 = vmul.f32 %v933, %v932
        %v935 = vmul.f32 0.5, %v934
        %v936 = vsub.f32 1.5, %v935
        %v937 = vmul.f32 %v932, %v936
        %vm938 = vweird.f32 %v675
        %vm939 = vweird.f32 %v932
        %vm940 = vmor %vm938, %vm939
        %v941 = vsel %vm940, %v932, %v937
        %v942 = vrsqrt.pop %v676
        %v943 = vmul.f32 %v942, %v676
        %v944 = vmul.f32 %v943, %v942
        %v945 = vmul.f32 0.5, %v944
        %v946 = vsub.f32 1.5, %v945
        %v947 = vmul.f32 %v942, %v946
        %vm948 = vweird.f32 %v676
        %vm949 = vweird.f32 %v942
        %vm950 = vmor %vm948, %vm949
        %v951 = vsel %vm950, %v942, %v947
        %v952 = vrsqrt.pop %v677
        %v953 = vmul.f32 %v952, %v677
        %v954 = vmul.f32 %v953, %v952
        %v955 = vmul.f32 0.5, %v954
        %v956 = vsub.f32 1.5, %v955
        %v957 = vmul.f32 %v952, %v956
        %vm958 = vweird.f32 %v677
        %vm959 = vweird.f32 %v952
        %vm960 = vmor %vm958, %vm959
        %v961 = vsel %vm960, %v952, %v957
        %v962 = vrsqrt.pop %v678
        %v963 = vmul.f32 %v962, %v678
        %v964 = vmul.f32 %v963, %v962
        %v965 = vmul.f32 0.5, %v964
        %v966 = vsub.f32 1.5, %v965
        %v967 = vmul.f32 %v962, %v966
        %vm968 = vweird.f32 %v678
        %vm969 = vweird.f32 %v962
        %vm970 = vmor %vm968, %vm969
        %v971 = vsel %vm970, %v962, %v967
        %v972 = vrsqrt.pop %v679
        %v973 = vmul.f32 %v972, %v679
        %v974 = vmul.f32 %v973, %v972
        %v975 = vmul.f32 0.5, %v974
        %v976 = vsub.f32 1.5, %v975
        %v977 = vmul.f32 %v972, %v976
        %vm978 = vweird.f32 %v679
        %vm979 = vweird.f32 %v972
        %vm980 = vmor %vm978, %vm979
        %v981 = vsel %vm980, %v972, %v977
        %v982 = vrsqrt.pop %v680
        %v983 = vmul.f32 %v982, %v680
        %v984 = vmul.f32 %v983, %v982
        %v985 = vmul.f32 0.5, %v984
        %v986 = vsub.f32 1.5, %v985
        %v987 = vmul.f32 %v982, %v986
        %vm988 = vweird.f32 %v680
        %vm989 = vweird.f32 %v982
        %vm990 = vmor %vm988, %vm989
        %v991 = vsel %vm990, %v982, %v987
        %v992 = vrsqrt.pop %v681
        %v993 = vmul.f32 %v992, %v681
        %v994 = vmul.f32 %v993, %v992
        %v995 = vmul.f32 0.5, %v994
        %v996 = vsub.f32 1.5, %v995
        %v997 = vmul.f32 %v992, %v996
        %vm998 = vweird.f32 %v681
        %vm999 = vweird.f32 %v992
        %vm1000 = vmor %vm998, %vm999
        %v1001 = vsel %vm1000, %v992, %v997
        %v1002 = vmul.f32 %v490, %v691
        %v1003 = vmul.f32 %v491, %v701
        %v1004 = vmul.f32 %v492, %v711
        %v1005 = vmul.f32 %v493, %v721
        %v1006 = vmul.f32 %v494, %v731
        %v1007 = vmul.f32 %v495, %v741
        %v1008 = vmul.f32 %v496, %v751
        %v1009 = vmul.f32 %v497, %v761
        %v1010 = vmul.f32 %v498, %v771
        %v1011 = vmul.f32 %v499, %v781
        %v1012 = vmul.f32 %v500, %v791
        %v1013 = vmul.f32 %v501, %v801
        %v1014 = vmul.f32 %v502, %v811
        %v1015 = vmul.f32 %v503, %v821
        %v1016 = vmul.f32 %v504, %v831
        %v1017 = vmul.f32 %v505, %v841
        %v1018 = vmul.f32 %v506, %v851
        %v1019 = vmul.f32 %v507, %v861
        %v1020 = vmul.f32 %v508, %v871
        %v1021 = vmul.f32 %v509, %v881
        %v1022 = vmul.f32 %v510, %v891
        %v1023 = vmul.f32 %v511, %v901
        %v1024 = vmul.f32 %v512, %v911
        %v1025 = vmul.f32 %v513, %v921
        %v1026 = vmul.f32 %v514, %v931
        %v1027 = vmul.f32 %v515, %v941
        %v1028 = vmul.f32 %v516, %v951
        %v1029 = vmul.f32 %v517, %v961
        %v1030 = vmul.f32 %v518, %v971
        %v1031 = vmul.f32 %v519, %v981
        %v1032 = vmul.f32 %v520, %v991
        %v1033 = vmul.f32 %v521, %v1001
        %v1034 = vld [vmem:[%s1] sm:$0x1]
        %v1036 = vperm.slane %v1034, 0
        %v1038 = vmul.f32 %v1002, %v1036
        %v1039 = vmul.f32 %v1003, %v1036
        %v1040 = vmul.f32 %v1004, %v1036
        %v1041 = vmul.f32 %v1005, %v1036
        %v1042 = vmul.f32 %v1006, %v1036
        %v1043 = vmul.f32 %v1007, %v1036
        %v1044 = vmul.f32 %v1008, %v1036
        %v1045 = vmul.f32 %v1009, %v1036
        %v1046 = vmul.f32 %v1010, %v1036
        %v1047 = vmul.f32 %v1011, %v1036
        %v1048 = vmul.f32 %v1012, %v1036
        %v1049 = vmul.f32 %v1013, %v1036
        %v1050 = vmul.f32 %v1014, %v1036
        %v1051 = vmul.f32 %v1015, %v1036
        %v1052 = vmul.f32 %v1016, %v1036
        %v1053 = vmul.f32 %v1017, %v1036
        %v1054 = vmul.f32 %v1018, %v1036
        %v1055 = vmul.f32 %v1019, %v1036
        %v1056 = vmul.f32 %v1020, %v1036
        %v1057 = vmul.f32 %v1021, %v1036
        %v1058 = vmul.f32 %v1022, %v1036
        %v1059 = vmul.f32 %v1023, %v1036
        %v1060 = vmul.f32 %v1024, %v1036
        %v1061 = vmul.f32 %v1025, %v1036
        %v1062 = vmul.f32 %v1026, %v1036
        %v1063 = vmul.f32 %v1027, %v1036
        %v1064 = vmul.f32 %v1028, %v1036
        %v1065 = vmul.f32 %v1029, %v1036
        %v1066 = vmul.f32 %v1030, %v1036
        %v1067 = vmul.f32 %v1031, %v1036
        %v1068 = vmul.f32 %v1032, %v1036
        %v1069 = vmul.f32 %v1033, %v1036
        %v1070 = vld [vmem:[%s2] sm:$0x1]
        %v1072 = vperm.slane %v1070, 0
        %v1074 = vadd.f32 %v1038, %v1072
        %v1075 = vadd.f32 %v1039, %v1072
        %v1076 = vadd.f32 %v1040, %v1072
        %v1077 = vadd.f32 %v1041, %v1072
        %v1078 = vadd.f32 %v1042, %v1072
        %v1079 = vadd.f32 %v1043, %v1072
        %v1080 = vadd.f32 %v1044, %v1072
        %v1081 = vadd.f32 %v1045, %v1072
        %v1082 = vadd.f32 %v1046, %v1072
        %v1083 = vadd.f32 %v1047, %v1072
        %v1084 = vadd.f32 %v1048, %v1072
        %v1085 = vadd.f32 %v1049, %v1072
        %v1086 = vadd.f32 %v1050, %v1072
        %v1087 = vadd.f32 %v1051, %v1072
        %v1088 = vadd.f32 %v1052, %v1072
        %v1089 = vadd.f32 %v1053, %v1072
        %v1090 = vadd.f32 %v1054, %v1072
        %v1091 = vadd.f32 %v1055, %v1072
        %v1092 = vadd.f32 %v1056, %v1072
        %v1093 = vadd.f32 %v1057, %v1072
        %v1094 = vadd.f32 %v1058, %v1072
        %v1095 = vadd.f32 %v1059, %v1072
        %v1096 = vadd.f32 %v1060, %v1072
        %v1097 = vadd.f32 %v1061, %v1072
        %v1098 = vadd.f32 %v1062, %v1072
        %v1099 = vadd.f32 %v1063, %v1072
        %v1100 = vadd.f32 %v1064, %v1072
        %v1101 = vadd.f32 %v1065, %v1072
        %v1102 = vadd.f32 %v1066, %v1072
        %v1103 = vadd.f32 %v1067, %v1072
        %v1104 = vadd.f32 %v1068, %v1072
        %v1105 = vadd.f32 %v1069, %v1072
        %v1106 = vld [vmem:[%s3] sm:$0xff]
        %v1107 = vld [vmem:[%s3 + $0x8] sm:$0xff]
        %v1108 = vld [vmem:[%s3 + $0x10] sm:$0xff]
        %v1109 = vld [vmem:[%s3 + $0x18] sm:$0xff]
        %v1110 = vld [vmem:[%s3 + $0x20] sm:$0xff]
        %v1111 = vld [vmem:[%s3 + $0x28] sm:$0xff]
        %v1112 = vld [vmem:[%s3 + $0x30] sm:$0xff]
        %v1113 = vld [vmem:[%s3 + $0x38] sm:$0xff]
        %v1114 = vld [vmem:[%s3 + $0x40] sm:$0xff]
        %v1115 = vld [vmem:[%s3 + $0x48] sm:$0xff]
        %v1116 = vld [vmem:[%s3 + $0x50] sm:$0xff]
        %v1117 = vld [vmem:[%s3 + $0x58] sm:$0xff]
        %v1118 = vld [vmem:[%s3 + $0x60] sm:$0xff]
        %v1119 = vld [vmem:[%s3 + $0x68] sm:$0xff]
        %v1120 = vld [vmem:[%s3 + $0x70] sm:$0xff]
        %v1121 = vld [vmem:[%s3 + $0x78] sm:$0xff]
        %v1122 = vld [vmem:[%s3 + $0x80] sm:$0xff]
        %v1123 = vld [vmem:[%s3 + $0x88] sm:$0xff]
        %v1124 = vld [vmem:[%s3 + $0x90] sm:$0xff]
        %v1125 = vld [vmem:[%s3 + $0x98] sm:$0xff]
        %v1126 = vld [vmem:[%s3 + $0xa0] sm:$0xff]
        %v1127 = vld [vmem:[%s3 + $0xa8] sm:$0xff]
        %v1128 = vld [vmem:[%s3 + $0xb0] sm:$0xff]
        %v1129 = vld [vmem:[%s3 + $0xb8] sm:$0xff]
        %v1130 = vld [vmem:[%s3 + $0xc0] sm:$0xff]
        %v1131 = vld [vmem:[%s3 + $0xc8] sm:$0xff]
        %v1132 = vld [vmem:[%s3 + $0xd0] sm:$0xff]
        %v1133 = vld [vmem:[%s3 + $0xd8] sm:$0xff]
        %v1134 = vld [vmem:[%s3 + $0xe0] sm:$0xff]
        %v1135 = vld [vmem:[%s3 + $0xe8] sm:$0xff]
        %v1136 = vld [vmem:[%s3 + $0xf0] sm:$0xff]
        %v1137 = vld [vmem:[%s3 + $0xf8] sm:$0xff]
        %1138 = vmatpush.msra.mxu0 %v1136
        %1139 = vmatpush.msra.mxu0 %v1134
        %1140 = vmatpush.msra.mxu0 %v1132
        %1141 = vmatpush.msra.mxu0 %v1130
        %1142 = vmatpush.msra.mxu0 %v1128
        %1143 = vmatpush.msra.mxu0 %v1126
        %1144 = vmatpush.msra.mxu0 %v1124
        %1145 = vmatpush.msra.mxu0 %v1122
        %1146 = vmatpush.msra.mxu0 %v1120
        %1147 = vmatpush.msra.mxu0 %v1118
        %1148 = vmatpush.msra.mxu0 %v1116
        %1149 = vmatpush.msra.mxu0 %v1114
        %1150 = vmatpush.msra.mxu0 %v1112
        %1151 = vmatpush.msra.mxu0 %v1110
        %1152 = vmatpush.msra.mxu0 %v1108
        %1153 = vmatpush.msra.mxu0 %v1106
        %1154 = vmatmul.f32.gmra.mxu0 %v1074
        %v1155 = vpop.f32.mrf.mxu0
        %v1156 = vadd.f32 0.0, %v1155
        %1157 = vmatmul.f32.gmra.mxu0 %v1075
        %v1158 = vpop.f32.mrf.mxu0
        %v1159 = vadd.f32 0.0, %v1158
        %1160 = vmatmul.f32.gmra.mxu0 %v1076
        %v1161 = vpop.f32.mrf.mxu0
        %v1162 = vadd.f32 0.0, %v1161
        %1163 = vmatmul.f32.gmra.mxu0 %v1077
        %v1164 = vpop.f32.mrf.mxu0
        %v1165 = vadd.f32 0.0, %v1164
        %1166 = vmatmul.f32.gmra.mxu0 %v1078
        %v1167 = vpop.f32.mrf.mxu0
        %v1168 = vadd.f32 0.0, %v1167
        %1169 = vmatmul.f32.gmra.mxu0 %v1079
        %v1170 = vpop.f32.mrf.mxu0
        %v1171 = vadd.f32 0.0, %v1170
        %1172 = vmatmul.f32.gmra.mxu0 %v1080
        %v1173 = vpop.f32.mrf.mxu0
        %v1174 = vadd.f32 0.0, %v1173
        %1175 = vmatmul.f32.gmra.mxu0 %v1081
        %v1176 = vpop.f32.mrf.mxu0
        %v1177 = vadd.f32 0.0, %v1176
        %1178 = vmatmul.f32.gmra.mxu0 %v1082
        %v1179 = vpop.f32.mrf.mxu0
        %v1180 = vadd.f32 0.0, %v1179
        %1181 = vmatmul.f32.gmra.mxu0 %v1083
        %v1182 = vpop.f32.mrf.mxu0
        %v1183 = vadd.f32 0.0, %v1182
        %1184 = vmatmul.f32.gmra.mxu0 %v1084
        %v1185 = vpop.f32.mrf.mxu0
        %v1186 = vadd.f32 0.0, %v1185
        %1187 = vmatmul.f32.gmra.mxu0 %v1085
        %v1188 = vpop.f32.mrf.mxu0
        %v1189 = vadd.f32 0.0, %v1188
        %1190 = vmatmul.f32.gmra.mxu0 %v1086
        %v1191 = vpop.f32.mrf.mxu0
        %v1192 = vadd.f32 0.0, %v1191
        %1193 = vmatmul.f32.gmra.mxu0 %v1087
        %v1194 = vpop.f32.mrf.mxu0
        %v1195 = vadd.f32 0.0, %v1194
        %1196 = vmatmul.f32.gmra.mxu0 %v1088
        %v1197 = vpop.f32.mrf.mxu0
        %v1198 = vadd.f32 0.0, %v1197
        %1199 = vmatmul.f32.gmra.mxu0 %v1089
        %v1200 = vpop.f32.mrf.mxu0
        %v1201 = vadd.f32 0.0, %v1200
        %1202 = vmatmul.f32.gmra.mxu0 %v1090
        %v1203 = vpop.f32.mrf.mxu0
        %v1204 = vadd.f32 0.0, %v1203
        %1205 = vmatmul.f32.gmra.mxu0 %v1091
        %v1206 = vpop.f32.mrf.mxu0
        %v1207 = vadd.f32 0.0, %v1206
        %1208 = vmatmul.f32.gmra.mxu0 %v1092
        %v1209 = vpop.f32.mrf.mxu0
        %v1210 = vadd.f32 0.0, %v1209
        %1211 = vmatmul.f32.gmra.mxu0 %v1093
        %v1212 = vpop.f32.mrf.mxu0
        %v1213 = vadd.f32 0.0, %v1212
        %1214 = vmatmul.f32.gmra.mxu0 %v1094
        %v1215 = vpop.f32.mrf.mxu0
        %v1216 = vadd.f32 0.0, %v1215
        %1217 = vmatmul.f32.gmra.mxu0 %v1095
        %v1218 = vpop.f32.mrf.mxu0
        %v1219 = vadd.f32 0.0, %v1218
        %1220 = vmatmul.f32.gmra.mxu0 %v1096
        %v1221 = vpop.f32.mrf.mxu0
        %v1222 = vadd.f32 0.0, %v1221
        %1223 = vmatmul.f32.gmra.mxu0 %v1097
        %v1224 = vpop.f32.mrf.mxu0
        %v1225 = vadd.f32 0.0, %v1224
        %1226 = vmatmul.f32.gmra.mxu0 %v1098
        %v1227 = vpop.f32.mrf.mxu0
        %v1228 = vadd.f32 0.0, %v1227
        %1229 = vmatmul.f32.gmra.mxu0 %v1099
        %v1230 = vpop.f32.mrf.mxu0
        %v1231 = vadd.f32 0.0, %v1230
        %1232 = vmatmul.f32.gmra.mxu0 %v1100
        %v1233 = vpop.f32.mrf.mxu0
        %v1234 = vadd.f32 0.0, %v1233
        %1235 = vmatmul.f32.gmra.mxu0 %v1101
        %v1236 = vpop.f32.mrf.mxu0
        %v1237 = vadd.f32 0.0, %v1236
        %1238 = vmatmul.f32.gmra.mxu0 %v1102
        %v1239 = vpop.f32.mrf.mxu0
        %v1240 = vadd.f32 0.0, %v1239
        %1241 = vmatmul.f32.gmra.mxu0 %v1103
        %v1242 = vpop.f32.mrf.mxu0
        %v1243 = vadd.f32 0.0, %v1242
        %1244 = vmatmul.f32.gmra.mxu0 %v1104
        %v1245 = vpop.f32.mrf.mxu0
        %v1246 = vadd.f32 0.0, %v1245
        %1247 = vmatmul.f32.gmra.mxu0 %v1105
        %v1248 = vpop.f32.mrf.mxu0
        %v1249 = vadd.f32 0.0, %v1248
        %1250 = vdwg.mxu0
        %1251 = vmatpush.msra.mxu0 %v1137
        %1252 = vmatpush.msra.mxu0 %v1135
        %1253 = vmatpush.msra.mxu0 %v1133
        %1254 = vmatpush.msra.mxu0 %v1131
        %1255 = vmatpush.msra.mxu0 %v1129
        %1256 = vmatpush.msra.mxu0 %v1127
        %1257 = vmatpush.msra.mxu0 %v1125
        %1258 = vmatpush.msra.mxu0 %v1123
        %1259 = vmatpush.msra.mxu0 %v1121
        %1260 = vmatpush.msra.mxu0 %v1119
        %1261 = vmatpush.msra.mxu0 %v1117
        %1262 = vmatpush.msra.mxu0 %v1115
        %1263 = vmatpush.msra.mxu0 %v1113
        %1264 = vmatpush.msra.mxu0 %v1111
        %1265 = vmatpush.msra.mxu0 %v1109
        %1266 = vmatpush.msra.mxu0 %v1107
        %1267 = vmatmul.f32.gmra.mxu0 %v1074
        %v1268 = vpop.f32.mrf.mxu0
        %v1269 = vadd.f32 0.0, %v1268
        %1270 = vmatmul.f32.gmra.mxu0 %v1075
        %v1271 = vpop.f32.mrf.mxu0
        %v1272 = vadd.f32 0.0, %v1271
        %1273 = vmatmul.f32.gmra.mxu0 %v1076
        %v1274 = vpop.f32.mrf.mxu0
        %v1275 = vadd.f32 0.0, %v1274
        %1276 = vmatmul.f32.gmra.mxu0 %v1077
        %v1277 = vpop.f32.mrf.mxu0
        %v1278 = vadd.f32 0.0, %v1277
        %1279 = vmatmul.f32.gmra.mxu0 %v1078
        %v1280 = vpop.f32.mrf.mxu0
        %v1281 = vadd.f32 0.0, %v1280
        %1282 = vmatmul.f32.gmra.mxu0 %v1079
        %v1283 = vpop.f32.mrf.mxu0
        %v1284 = vadd.f32 0.0, %v1283
        %1285 = vmatmul.f32.gmra.mxu0 %v1080
        %v1286 = vpop.f32.mrf.mxu0
        %v1287 = vadd.f32 0.0, %v1286
        %1288 = vmatmul.f32.gmra.mxu0 %v1081
        %v1289 = vpop.f32.mrf.mxu0
        %v1290 = vadd.f32 0.0, %v1289
        %1291 = vmatmul.f32.gmra.mxu0 %v1082
        %v1292 = vpop.f32.mrf.mxu0
        %v1293 = vadd.f32 0.0, %v1292
        %1294 = vmatmul.f32.gmra.mxu0 %v1083
        %v1295 = vpop.f32.mrf.mxu0
        %v1296 = vadd.f32 0.0, %v1295
        %1297 = vmatmul.f32.gmra.mxu0 %v1084
        %v1298 = vpop.f32.mrf.mxu0
        %v1299 = vadd.f32 0.0, %v1298
        %1300 = vmatmul.f32.gmra.mxu0 %v1085
        %v1301 = vpop.f32.mrf.mxu0
        %v1302 = vadd.f32 0.0, %v1301
        %1303 = vmatmul.f32.gmra.mxu0 %v1086
        %v1304 = vpop.f32.mrf.mxu0
        %v1305 = vadd.f32 0.0, %v1304
        %1306 = vmatmul.f32.gmra.mxu0 %v1087
        %v1307 = vpop.f32.mrf.mxu0
        %v1308 = vadd.f32 0.0, %v1307
        %1309 = vmatmul.f32.gmra.mxu0 %v1088
        %v1310 = vpop.f32.mrf.mxu0
        %v1311 = vadd.f32 0.0, %v1310
        %1312 = vmatmul.f32.gmra.mxu0 %v1089
        %v1313 = vpop.f32.mrf.mxu0
        %v1314 = vadd.f32 0.0, %v1313
        %1315 = vmatmul.f32.gmra.mxu0 %v1090
        %v1316 = vpop.f32.mrf.mxu0
        %v1317 = vadd.f32 0.0, %v1316
        %1318 = vmatmul.f32.gmra.mxu0 %v1091
        %v1319 = vpop.f32.mrf.mxu0
        %v1320 = vadd.f32 0.0, %v1319
        %1321 = vmatmul.f32.gmra.mxu0 %v1092
        %v1322 = vpop.f32.mrf.mxu0
        %v1323 = vadd.f32 0.0, %v1322
        %1324 = vmatmul.f32.gmra.mxu0 %v1093
        %v1325 = vpop.f32.mrf.mxu0
        %v1326 = vadd.f32 0.0, %v1325
        %1327 = vmatmul.f32.gmra.mxu0 %v1094
        %v1328 = vpop.f32.mrf.mxu0
        %v1329 = vadd.f32 0.0, %v1328
        %1330 = vmatmul.f32.gmra.mxu0 %v1095
        %v1331 = vpop.f32.mrf.mxu0
        %v1332 = vadd.f32 0.0, %v1331
        %1333 = vmatmul.f32.gmra.mxu0 %v1096
        %v1334 = vpop.f32.mrf.mxu0
        %v1335 = vadd.f32 0.0, %v1334
        %1336 = vmatmul.f32.gmra.mxu0 %v1097
        %v1337 = vpop.f32.mrf.mxu0
        %v1338 = vadd.f32 0.0, %v1337
        %1339 = vmatmul.f32.gmra.mxu0 %v1098
        %v1340 = vpop.f32.mrf.mxu0
        %v1341 = vadd.f32 0.0, %v1340
        %1342 = vmatmul.f32.gmra.mxu0 %v1099
        %v1343 = vpop.f32.mrf.mxu0
        %v1344 = vadd.f32 0.0, %v1343
        %1345 = vmatmul.f32.gmra.mxu0 %v1100
        %v1346 = vpop.f32.mrf.mxu0
        %v1347 = vadd.f32 0.0, %v1346
        %1348 = vmatmul.f32.gmra.mxu0 %v1101
        %v1349 = vpop.f32.mrf.mxu0
        %v1350 = vadd.f32 0.0, %v1349
        %1351 = vmatmul.f32.gmra.mxu0 %v1102
        %v1352 = vpop.f32.mrf.mxu0
        %v1353 = vadd.f32 0.0, %v1352
        %1354 = vmatmul.f32.gmra.mxu0 %v1103
        %v1355 = vpop.f32.mrf.mxu0
        %v1356 = vadd.f32 0.0, %v1355
        %1357 = vmatmul.f32.gmra.mxu0 %v1104
        %v1358 = vpop.f32.mrf.mxu0
        %v1359 = vadd.f32 0.0, %v1358
        %1360 = vmatmul.f32.gmra.mxu0 %v1105
        %v1361 = vpop.f32.mrf.mxu0
        %v1362 = vadd.f32 0.0, %v1361
        %1363 = vdwg.mxu0
        %v1364 = vld [vmem:[%s4] sm:$0xff]
        %v1365 = vlaneseq
        %v1366 = vshrl.u32 %v1365, 7
        %v1367 = vadd.s32 %v1366, 8
        %v1368 = vadd.s32 %v1366, 16
        %v1369 = vadd.s32 %v1366, 24
        %v1370 = vadd.s32 %v1366, 32
        %v1371 = vadd.s32 %v1366, 40
        %v1372 = vadd.s32 %v1366, 48
        %v1373 = vadd.s32 %v1366, 56
        %v1374 = vadd.s32 %v1366, 64
        %v1375 = vadd.s32 %v1366, 72
        %v1376 = vadd.s32 %v1366, 80
        %v1377 = vadd.s32 %v1366, 88
        %v1378 = vadd.s32 %v1366, 96
        %v1379 = vadd.s32 %v1366, 104
        %v1380 = vadd.s32 %v1366, 112
        %v1381 = vadd.s32 %v1366, 120
        %v1382 = vadd.s32 %v1366, 128
        %v1383 = vadd.s32 %v1366, 136
        %v1384 = vadd.s32 %v1366, 144
        %v1385 = vadd.s32 %v1366, 152
        %v1386 = vadd.s32 %v1366, 160
        %v1387 = vadd.s32 %v1366, 168
        %v1388 = vadd.s32 %v1366, 176
        %v1389 = vadd.s32 %v1366, 184
        %v1390 = vadd.s32 %v1366, 192
        %v1391 = vadd.s32 %v1366, 200
        %v1392 = vadd.s32 %v1366, 208
        %v1393 = vadd.s32 %v1366, 216
        %v1394 = vadd.s32 %v1366, 224
        %v1395 = vadd.s32 %v1366, 232
        %v1396 = vadd.s32 %v1366, 240
        %v1397 = vadd.s32 %v1366, 248
        %vm1398 = vcmp.lt.s32.totalorder %v1366, 0
        %v1399 = vsub.s32 0, %v1366
        %v1400 = vsel %vm1398, %v1399, %v1366
        %v1401 = vshrl.u32 %v1400, 5
        %v1402 = vand.u32 %v1400, 31
        %v1403 = vsub.s32 0, %v1402
        %v1404 = vsel %vm1398, %v1403, %v1402
        %vm1405 = vcmp.lt.s32.totalorder %v1367, 0
        %v1406 = vsub.s32 0, %v1367
        %v1407 = vsel %vm1405, %v1406, %v1367
        %v1408 = vshrl.u32 %v1407, 5
        %v1409 = vand.u32 %v1407, 31
        %v1410 = vsub.s32 0, %v1409
        %v1411 = vsel %vm1405, %v1410, %v1409
        %vm1412 = vcmp.lt.s32.totalorder %v1368, 0
        %v1413 = vsub.s32 0, %v1368
        %v1414 = vsel %vm1412, %v1413, %v1368
        %v1415 = vshrl.u32 %v1414, 5
        %v1416 = vand.u32 %v1414, 31
        %v1417 = vsub.s32 0, %v1416
        %v1418 = vsel %vm1412, %v1417, %v1416
        %vm1419 = vcmp.lt.s32.totalorder %v1369, 0
        %v1420 = vsub.s32 0, %v1369
        %v1421 = vsel %vm1419, %v1420, %v1369
        %v1422 = vshrl.u32 %v1421, 5
        %v1423 = vand.u32 %v1421, 31
        %v1424 = vsub.s32 0, %v1423
        %v1425 = vsel %vm1419, %v1424, %v1423
        %vm1426 = vcmp.lt.s32.totalorder %v1370, 0
        %v1427 = vsub.s32 0, %v1370
        %v1428 = vsel %vm1426, %v1427, %v1370
        %v1429 = vshrl.u32 %v1428, 5
        %v1430 = vand.u32 %v1428, 31
        %v1431 = vsub.s32 0, %v1430
        %v1432 = vsel %vm1426, %v1431, %v1430
        %vm1433 = vcmp.lt.s32.totalorder %v1371, 0
        %v1434 = vsub.s32 0, %v1371
        %v1435 = vsel %vm1433, %v1434, %v1371
        %v1436 = vshrl.u32 %v1435, 5
        %v1437 = vand.u32 %v1435, 31
        %v1438 = vsub.s32 0, %v1437
        %v1439 = vsel %vm1433, %v1438, %v1437
        %vm1440 = vcmp.lt.s32.totalorder %v1372, 0
        %v1441 = vsub.s32 0, %v1372
        %v1442 = vsel %vm1440, %v1441, %v1372
        %v1443 = vshrl.u32 %v1442, 5
        %v1444 = vand.u32 %v1442, 31
        %v1445 = vsub.s32 0, %v1444
        %v1446 = vsel %vm1440, %v1445, %v1444
        %vm1447 = vcmp.lt.s32.totalorder %v1373, 0
        %v1448 = vsub.s32 0, %v1373
        %v1449 = vsel %vm1447, %v1448, %v1373
        %v1450 = vshrl.u32 %v1449, 5
        %v1451 = vand.u32 %v1449, 31
        %v1452 = vsub.s32 0, %v1451
        %v1453 = vsel %vm1447, %v1452, %v1451
        %vm1454 = vcmp.lt.s32.totalorder %v1374, 0
        %v1455 = vsub.s32 0, %v1374
        %v1456 = vsel %vm1454, %v1455, %v1374
        %v1457 = vshrl.u32 %v1456, 5
        %v1458 = vand.u32 %v1456, 31
        %v1459 = vsub.s32 0, %v1458
        %v1460 = vsel %vm1454, %v1459, %v1458
        %vm1461 = vcmp.lt.s32.totalorder %v1375, 0
        %v1462 = vsub.s32 0, %v1375
        %v1463 = vsel %vm1461, %v1462, %v1375
        %v1464 = vshrl.u32 %v1463, 5
        %v1465 = vand.u32 %v1463, 31
        %v1466 = vsub.s32 0, %v1465
        %v1467 = vsel %vm1461, %v1466, %v1465
        %vm1468 = vcmp.lt.s32.totalorder %v1376, 0
        %v1469 = vsub.s32 0, %v1376
        %v1470 = vsel %vm1468, %v1469, %v1376
        %v1471 = vshrl.u32 %v1470, 5
        %v1472 = vand.u32 %v1470, 31
        %v1473 = vsub.s32 0, %v1472
        %v1474 = vsel %vm1468, %v1473, %v1472
        %vm1475 = vcmp.lt.s32.totalorder %v1377, 0
        %v1476 = vsub.s32 0, %v1377
        %v1477 = vsel %vm1475, %v1476, %v1377
        %v1478 = vshrl.u32 %v1477, 5
        %v1479 = vand.u32 %v1477, 31
        %v1480 = vsub.s32 0, %v1479
        %v1481 = vsel %vm1475, %v1480, %v1479
        %vm1482 = vcmp.lt.s32.totalorder %v1378, 0
        %v1483 = vsub.s32 0, %v1378
        %v1484 = vsel %vm1482, %v1483, %v1378
        %v1485 = vshrl.u32 %v1484, 5
        %v1486 = vand.u32 %v1484, 31
        %v1487 = vsub.s32 0, %v1486
        %v1488 = vsel %vm1482, %v1487, %v1486
        %vm1489 = vcmp.lt.s32.totalorder %v1379, 0
        %v1490 = vsub.s32 0, %v1379
        %v1491 = vsel %vm1489, %v1490, %v1379
        %v1492 = vshrl.u32 %v1491, 5
        %v1493 = vand.u32 %v1491, 31
        %v1494 = vsub.s32 0, %v1493
        %v1495 = vsel %vm1489, %v1494, %v1493
        %vm1496 = vcmp.lt.s32.totalorder %v1380, 0
        %v1497 = vsub.s32 0, %v1380
        %v1498 = vsel %vm1496, %v1497, %v1380
        %v1499 = vshrl.u32 %v1498, 5
        %v1500 = vand.u32 %v1498, 31
        %v1501 = vsub.s32 0, %v1500
        %v1502 = vsel %vm1496, %v1501, %v1500
        %vm1503 = vcmp.lt.s32.totalorder %v1381, 0
        %v1504 = vsub.s32 0, %v1381
        %v1505 = vsel %vm1503, %v1504, %v1381
        %v1506 = vshrl.u32 %v1505, 5
        %v1507 = vand.u32 %v1505, 31
        %v1508 = vsub.s32 0, %v1507
        %v1509 = vsel %vm1503, %v1508, %v1507
        %vm1510 = vcmp.lt.s32.totalorder %v1382, 0
        %v1511 = vsub.s32 0, %v1382
        %v1512 = vsel %vm1510, %v1511, %v1382
        %v1513 = vshrl.u32 %v1512, 5
        %v1514 = vand.u32 %v1512, 31
        %v1515 = vsub.s32 0, %v1514
        %v1516 = vsel %vm1510, %v1515, %v1514
        %vm1517 = vcmp.lt.s32.totalorder %v1383, 0
        %v1518 = vsub.s32 0, %v1383
        %v1519 = vsel %vm1517, %v1518, %v1383
        %v1520 = vshrl.u32 %v1519, 5
        %v1521 = vand.u32 %v1519, 31
        %v1522 = vsub.s32 0, %v1521
        %v1523 = vsel %vm1517, %v1522, %v1521
        %vm1524 = vcmp.lt.s32.totalorder %v1384, 0
        %v1525 = vsub.s32 0, %v1384
        %v1526 = vsel %vm1524, %v1525, %v1384
        %v1527 = vshrl.u32 %v1526, 5
        %v1528 = vand.u32 %v1526, 31
        %v1529 = vsub.s32 0, %v1528
        %v1530 = vsel %vm1524, %v1529, %v1528
        %vm1531 = vcmp.lt.s32.totalorder %v1385, 0
        %v1532 = vsub.s32 0, %v1385
        %v1533 = vsel %vm1531, %v1532, %v1385
        %v1534 = vshrl.u32 %v1533, 5
        %v1535 = vand.u32 %v1533, 31
        %v1536 = vsub.s32 0, %v1535
        %v1537 = vsel %vm1531, %v1536, %v1535
        %vm1538 = vcmp.lt.s32.totalorder %v1386, 0
        %v1539 = vsub.s32 0, %v1386
        %v1540 = vsel %vm1538, %v1539, %v1386
        %v1541 = vshrl.u32 %v1540, 5
        %v1542 = vand.u32 %v1540, 31
        %v1543 = vsub.s32 0, %v1542
        %v1544 = vsel %vm1538, %v1543, %v1542
        %vm1545 = vcmp.lt.s32.totalorder %v1387, 0
        %v1546 = vsub.s32 0, %v1387
        %v1547 = vsel %vm1545, %v1546, %v1387
        %v1548 = vshrl.u32 %v1547, 5
        %v1549 = vand.u32 %v1547, 31
        %v1550 = vsub.s32 0, %v1549
        %v1551 = vsel %vm1545, %v1550, %v1549
        %vm1552 = vcmp.lt.s32.totalorder %v1388, 0
        %v1553 = vsub.s32 0, %v1388
        %v1554 = vsel %vm1552, %v1553, %v1388
        %v1555 = vshrl.u32 %v1554, 5
        %v1556 = vand.u32 %v1554, 31
        %v1557 = vsub.s32 0, %v1556
        %v1558 = vsel %vm1552, %v1557, %v1556
        %vm1559 = vcmp.lt.s32.totalorder %v1389, 0
        %v1560 = vsub.s32 0, %v1389
        %v1561 = vsel %vm1559, %v1560, %v1389
        %v1562 = vshrl.u32 %v1561, 5
        %v1563 = vand.u32 %v1561, 31
        %v1564 = vsub.s32 0, %v1563
        %v1565 = vsel %vm1559, %v1564, %v1563
        %vm1566 = vcmp.lt.s32.totalorder %v1390, 0
        %v1567 = vsub.s32 0, %v1390
        %v1568 = vsel %vm1566, %v1567, %v1390
        %v1569 = vshrl.u32 %v1568, 5
        %v1570 = vand.u32 %v1568, 31
        %v1571 = vsub.s32 0, %v1570
        %v1572 = vsel %vm1566, %v1571, %v1570
        %vm1573 = vcmp.lt.s32.totalorder %v1391, 0
        %v1574 = vsub.s32 0, %v1391
        %v1575 = vsel %vm1573, %v1574, %v1391
        %v1576 = vshrl.u32 %v1575, 5
        %v1577 = vand.u32 %v1575, 31
        %v1578 = vsub.s32 0, %v1577
        %v1579 = vsel %vm1573, %v1578, %v1577
        %vm1580 = vcmp.lt.s32.totalorder %v1392, 0
        %v1581 = vsub.s32 0, %v1392
        %v1582 = vsel %vm1580, %v1581, %v1392
        %v1583 = vshrl.u32 %v1582, 5
        %v1584 = vand.u32 %v1582, 31
        %v1585 = vsub.s32 0, %v1584
        %v1586 = vsel %vm1580, %v1585, %v1584
        %vm1587 = vcmp.lt.s32.totalorder %v1393, 0
        %v1588 = vsub.s32 0, %v1393
        %v1589 = vsel %vm1587, %v1588, %v1393
        %v1590 = vshrl.u32 %v1589, 5
        %v1591 = vand.u32 %v1589, 31
        %v1592 = vsub.s32 0, %v1591
        %v1593 = vsel %vm1587, %v1592, %v1591
        %vm1594 = vcmp.lt.s32.totalorder %v1394, 0
        %v1595 = vsub.s32 0, %v1394
        %v1596 = vsel %vm1594, %v1595, %v1394
        %v1597 = vshrl.u32 %v1596, 5
        %v1598 = vand.u32 %v1596, 31
        %v1599 = vsub.s32 0, %v1598
        %v1600 = vsel %vm1594, %v1599, %v1598
        %vm1601 = vcmp.lt.s32.totalorder %v1395, 0
        %v1602 = vsub.s32 0, %v1395
        %v1603 = vsel %vm1601, %v1602, %v1395
        %v1604 = vshrl.u32 %v1603, 5
        %v1605 = vand.u32 %v1603, 31
        %v1606 = vsub.s32 0, %v1605
        %v1607 = vsel %vm1601, %v1606, %v1605
        %vm1608 = vcmp.lt.s32.totalorder %v1396, 0
        %v1609 = vsub.s32 0, %v1396
        %v1610 = vsel %vm1608, %v1609, %v1396
        %v1611 = vshrl.u32 %v1610, 5
        %v1612 = vand.u32 %v1610, 31
        %v1613 = vsub.s32 0, %v1612
        %v1614 = vsel %vm1608, %v1613, %v1612
        %vm1615 = vcmp.lt.s32.totalorder %v1397, 0
        %v1616 = vsub.s32 0, %v1397
        %v1617 = vsel %vm1615, %v1616, %v1397
        %v1618 = vshrl.u32 %v1617, 5
        %v1619 = vand.u32 %v1617, 31
        %v1620 = vsub.s32 0, %v1619
        %v1621 = vsel %vm1615, %v1620, %v1619
        %vm1622 = vcmp.ne.s32.totalorder %v1404, 0
        %vm1623 = vcmp.ne.s32.totalorder %v1411, 0
        %vm1624 = vcmp.ne.s32.totalorder %v1418, 0
        %vm1625 = vcmp.ne.s32.totalorder %v1425, 0
        %vm1626 = vcmp.ne.s32.totalorder %v1432, 0
        %vm1627 = vcmp.ne.s32.totalorder %v1439, 0
        %vm1628 = vcmp.ne.s32.totalorder %v1446, 0
        %vm1629 = vcmp.ne.s32.totalorder %v1453, 0
        %vm1630 = vcmp.ne.s32.totalorder %v1460, 0
        %vm1631 = vcmp.ne.s32.totalorder %v1467, 0
        %vm1632 = vcmp.ne.s32.totalorder %v1474, 0
        %vm1633 = vcmp.ne.s32.totalorder %v1481, 0
        %vm1634 = vcmp.ne.s32.totalorder %v1488, 0
        %vm1635 = vcmp.ne.s32.totalorder %v1495, 0
        %vm1636 = vcmp.ne.s32.totalorder %v1502, 0
        %vm1637 = vcmp.ne.s32.totalorder %v1509, 0
        %vm1638 = vcmp.ne.s32.totalorder %v1516, 0
        %vm1639 = vcmp.ne.s32.totalorder %v1523, 0
        %vm1640 = vcmp.ne.s32.totalorder %v1530, 0
        %vm1641 = vcmp.ne.s32.totalorder %v1537, 0
        %vm1642 = vcmp.ne.s32.totalorder %v1544, 0
        %vm1643 = vcmp.ne.s32.totalorder %v1551, 0
        %vm1644 = vcmp.ne.s32.totalorder %v1558, 0
        %vm1645 = vcmp.ne.s32.totalorder %v1565, 0
        %vm1646 = vcmp.ne.s32.totalorder %v1572, 0
        %vm1647 = vcmp.ne.s32.totalorder %v1579, 0
        %vm1648 = vcmp.ne.s32.totalorder %v1586, 0
        %vm1649 = vcmp.ne.s32.totalorder %v1593, 0
        %vm1650 = vcmp.ne.s32.totalorder %v1600, 0
        %vm1651 = vcmp.ne.s32.totalorder %v1607, 0
        %vm1652 = vcmp.ne.s32.totalorder %v1614, 0
        %vm1653 = vcmp.ne.s32.totalorder %v1621, 0
        %vm1654 = vcmp.lt.s32.totalorder %v1404, 0
        %vm1655 = vcmp.lt.s32.totalorder %v1411, 0
        %vm1656 = vcmp.lt.s32.totalorder %v1418, 0
        %vm1657 = vcmp.lt.s32.totalorder %v1425, 0
        %vm1658 = vcmp.lt.s32.totalorder %v1432, 0
        %vm1659 = vcmp.lt.s32.totalorder %v1439, 0
        %vm1660 = vcmp.lt.s32.totalorder %v1446, 0
        %vm1661 = vcmp.lt.s32.totalorder %v1453, 0
        %vm1662 = vcmp.lt.s32.totalorder %v1460, 0
        %vm1663 = vcmp.lt.s32.totalorder %v1467, 0
        %vm1664 = vcmp.lt.s32.totalorder %v1474, 0
        %vm1665 = vcmp.lt.s32.totalorder %v1481, 0
        %vm1666 = vcmp.lt.s32.totalorder %v1488, 0
        %vm1667 = vcmp.lt.s32.totalorder %v1495, 0
        %vm1668 = vcmp.lt.s32.totalorder %v1502, 0
        %vm1669 = vcmp.lt.s32.totalorder %v1509, 0
        %vm1670 = vcmp.lt.s32.totalorder %v1516, 0
        %vm1671 = vcmp.lt.s32.totalorder %v1523, 0
        %vm1672 = vcmp.lt.s32.totalorder %v1530, 0
        %vm1673 = vcmp.lt.s32.totalorder %v1537, 0
        %vm1674 = vcmp.lt.s32.totalorder %v1544, 0
        %vm1675 = vcmp.lt.s32.totalorder %v1551, 0
        %vm1676 = vcmp.lt.s32.totalorder %v1558, 0
        %vm1677 = vcmp.lt.s32.totalorder %v1565, 0
        %vm1678 = vcmp.lt.s32.totalorder %v1572, 0
        %vm1679 = vcmp.lt.s32.totalorder %v1579, 0
        %vm1680 = vcmp.lt.s32.totalorder %v1586, 0
        %vm1681 = vcmp.lt.s32.totalorder %v1593, 0
        %vm1682 = vcmp.lt.s32.totalorder %v1600, 0
        %vm1683 = vcmp.lt.s32.totalorder %v1607, 0
        %vm1684 = vcmp.lt.s32.totalorder %v1614, 0
        %vm1685 = vcmp.lt.s32.totalorder %v1621, 0
        %vm1686 = vmand %vm1654, %vm1622
        %vm1687 = vmand %vm1655, %vm1623
        %vm1688 = vmand %vm1656, %vm1624
        %vm1689 = vmand %vm1657, %vm1625
        %vm1690 = vmand %vm1658, %vm1626
        %vm1691 = vmand %vm1659, %vm1627
        %vm1692 = vmand %vm1660, %vm1628
        %vm1693 = vmand %vm1661, %vm1629
        %vm1694 = vmand %vm1662, %vm1630
        %vm1695 = vmand %vm1663, %vm1631
        %vm1696 = vmand %vm1664, %vm1632
        %vm1697 = vmand %vm1665, %vm1633
        %vm1698 = vmand %vm1666, %vm1634
        %vm1699 = vmand %vm1667, %vm1635
        %vm1700 = vmand %vm1668, %vm1636
        %vm1701 = vmand %vm1669, %vm1637
        %vm1702 = vmand %vm1670, %vm1638
        %vm1703 = vmand %vm1671, %vm1639
        %vm1704 = vmand %vm1672, %vm1640
        %vm1705 = vmand %vm1673, %vm1641
        %vm1706 = vmand %vm1674, %vm1642
        %vm1707 = vmand %vm1675, %vm1643
        %vm1708 = vmand %vm1676, %vm1644
        %vm1709 = vmand %vm1677, %vm1645
        %vm1710 = vmand %vm1678, %vm1646
        %vm1711 = vmand %vm1679, %vm1647
        %vm1712 = vmand %vm1680, %vm1648
        %vm1713 = vmand %vm1681, %vm1649
        %vm1714 = vmand %vm1682, %vm1650
        %vm1715 = vmand %vm1683, %vm1651
        %vm1716 = vmand %vm1684, %vm1652
        %vm1717 = vmand %vm1685, %vm1653
        %v1718 = vadd.s32 %v1404, 32
        %v1719 = vadd.s32 %v1411, 32
        %v1720 = vadd.s32 %v1418, 32
        %v1721 = vadd.s32 %v1425, 32
        %v1722 = vadd.s32 %v1432, 32
        %v1723 = vadd.s32 %v1439, 32
        %v1724 = vadd.s32 %v1446, 32
        %v1725 = vadd.s32 %v1453, 32
        %v1726 = vadd.s32 %v1460, 32
        %v1727 = vadd.s32 %v1467, 32
        %v1728 = vadd.s32 %v1474, 32
        %v1729 = vadd.s32 %v1481, 32
        %v1730 = vadd.s32 %v1488, 32
        %v1731 = vadd.s32 %v1495, 32
        %v1732 = vadd.s32 %v1502, 32
        %v1733 = vadd.s32 %v1509, 32
        %v1734 = vadd.s32 %v1516, 32
        %v1735 = vadd.s32 %v1523, 32
        %v1736 = vadd.s32 %v1530, 32
        %v1737 = vadd.s32 %v1537, 32
        %v1738 = vadd.s32 %v1544, 32
        %v1739 = vadd.s32 %v1551, 32
        %v1740 = vadd.s32 %v1558, 32
        %v1741 = vadd.s32 %v1565, 32
        %v1742 = vadd.s32 %v1572, 32
        %v1743 = vadd.s32 %v1579, 32
        %v1744 = vadd.s32 %v1586, 32
        %v1745 = vadd.s32 %v1593, 32
        %v1746 = vadd.s32 %v1600, 32
        %v1747 = vadd.s32 %v1607, 32
        %v1748 = vadd.s32 %v1614, 32
        %v1749 = vadd.s32 %v1621, 32
        %v1750 = vsel %vm1686, %v1718, %v1404
        %v1751 = vsel %vm1687, %v1719, %v1411
        %v1752 = vsel %vm1688, %v1720, %v1418
        %v1753 = vsel %vm1689, %v1721, %v1425
        %v1754 = vsel %vm1690, %v1722, %v1432
        %v1755 = vsel %vm1691, %v1723, %v1439
        %v1756 = vsel %vm1692, %v1724, %v1446
        %v1757 = vsel %vm1693, %v1725, %v1453
        %v1758 = vsel %vm1694, %v1726, %v1460
        %v1759 = vsel %vm1695, %v1727, %v1467
        %v1760 = vsel %vm1696, %v1728, %v1474
        %v1761 = vsel %vm1697, %v1729, %v1481
        %v1762 = vsel %vm1698, %v1730, %v1488
        %v1763 = vsel %vm1699, %v1731, %v1495
        %v1764 = vsel %vm1700, %v1732, %v1502
        %v1765 = vsel %vm1701, %v1733, %v1509
        %v1766 = vsel %vm1702, %v1734, %v1516
        %v1767 = vsel %vm1703, %v1735, %v1523
        %v1768 = vsel %vm1704, %v1736, %v1530
        %v1769 = vsel %vm1705, %v1737, %v1537
        %v1770 = vsel %vm1706, %v1738, %v1544
        %v1771 = vsel %vm1707, %v1739, %v1551
        %v1772 = vsel %vm1708, %v1740, %v1558
        %v1773 = vsel %vm1709, %v1741, %v1565
        %v1774 = vsel %vm1710, %v1742, %v1572
        %v1775 = vsel %vm1711, %v1743, %v1579
        %v1776 = vsel %vm1712, %v1744, %v1586
        %v1777 = vsel %vm1713, %v1745, %v1593
        %v1778 = vsel %vm1714, %v1746, %v1600
        %v1779 = vsel %vm1715, %v1747, %v1607
        %v1780 = vsel %vm1716, %v1748, %v1614
        %v1781 = vsel %vm1717, %v1749, %v1621
        %vm1782 = vcmp.ge.s32.totalorder %v1750, 1
        %vm1783 = vcmp.ge.s32.totalorder %v1751, 1
        %vm1784 = vcmp.ge.s32.totalorder %v1752, 1
        %vm1785 = vcmp.ge.s32.totalorder %v1753, 1
        %vm1786 = vcmp.ge.s32.totalorder %v1754, 1
        %vm1787 = vcmp.ge.s32.totalorder %v1755, 1
        %vm1788 = vcmp.ge.s32.totalorder %v1756, 1
        %vm1789 = vcmp.ge.s32.totalorder %v1757, 1
        %vm1790 = vcmp.ge.s32.totalorder %v1758, 1
        %vm1791 = vcmp.ge.s32.totalorder %v1759, 1
        %vm1792 = vcmp.ge.s32.totalorder %v1760, 1
        %vm1793 = vcmp.ge.s32.totalorder %v1761, 1
        %vm1794 = vcmp.ge.s32.totalorder %v1762, 1
        %vm1795 = vcmp.ge.s32.totalorder %v1763, 1
        %vm1796 = vcmp.ge.s32.totalorder %v1764, 1
        %vm1797 = vcmp.ge.s32.totalorder %v1765, 1
        %vm1798 = vcmp.ge.s32.totalorder %v1766, 1
        %vm1799 = vcmp.ge.s32.totalorder %v1767, 1
        %vm1800 = vcmp.ge.s32.totalorder %v1768, 1
        %vm1801 = vcmp.ge.s32.totalorder %v1769, 1
        %vm1802 = vcmp.ge.s32.totalorder %v1770, 1
        %vm1803 = vcmp.ge.s32.totalorder %v1771, 1
        %vm1804 = vcmp.ge.s32.totalorder %v1772, 1
        %vm1805 = vcmp.ge.s32.totalorder %v1773, 1
        %vm1806 = vcmp.ge.s32.totalorder %v1774, 1
        %vm1807 = vcmp.ge.s32.totalorder %v1775, 1
        %vm1808 = vcmp.ge.s32.totalorder %v1776, 1
        %vm1809 = vcmp.ge.s32.totalorder %v1777, 1
        %vm1810 = vcmp.ge.s32.totalorder %v1778, 1
        %vm1811 = vcmp.ge.s32.totalorder %v1779, 1
        %vm1812 = vcmp.ge.s32.totalorder %v1780, 1
        %vm1813 = vcmp.ge.s32.totalorder %v1781, 1
        %vm1814 = vcmp.ge.s32.totalorder %v1750, 2
        %vm1815 = vcmp.ge.s32.totalorder %v1751, 2
        %vm1816 = vcmp.ge.s32.totalorder %v1752, 2
        %vm1817 = vcmp.ge.s32.totalorder %v1753, 2
        %vm1818 = vcmp.ge.s32.totalorder %v1754, 2
        %vm1819 = vcmp.ge.s32.totalorder %v1755, 2
        %vm1820 = vcmp.ge.s32.totalorder %v1756, 2
        %vm1821 = vcmp.ge.s32.totalorder %v1757, 2
        %vm1822 = vcmp.ge.s32.totalorder %v1758, 2
        %vm1823 = vcmp.ge.s32.totalorder %v1759, 2
        %vm1824 = vcmp.ge.s32.totalorder %v1760, 2
        %vm1825 = vcmp.ge.s32.totalorder %v1761, 2
        %vm1826 = vcmp.ge.s32.totalorder %v1762, 2
        %vm1827 = vcmp.ge.s32.totalorder %v1763, 2
        %vm1828 = vcmp.ge.s32.totalorder %v1764, 2
        %vm1829 = vcmp.ge.s32.totalorder %v1765, 2
        %vm1830 = vcmp.ge.s32.totalorder %v1766, 2
        %vm1831 = vcmp.ge.s32.totalorder %v1767, 2
        %vm1832 = vcmp.ge.s32.totalorder %v1768, 2
        %vm1833 = vcmp.ge.s32.totalorder %v1769, 2
        %vm1834 = vcmp.ge.s32.totalorder %v1770, 2
        %vm1835 = vcmp.ge.s32.totalorder %v1771, 2
        %vm1836 = vcmp.ge.s32.totalorder %v1772, 2
        %vm1837 = vcmp.ge.s32.totalorder %v1773, 2
        %vm1838 = vcmp.ge.s32.totalorder %v1774, 2
        %vm1839 = vcmp.ge.s32.totalorder %v1775, 2
        %vm1840 = vcmp.ge.s32.totalorder %v1776, 2
        %vm1841 = vcmp.ge.s32.totalorder %v1777, 2
        %vm1842 = vcmp.ge.s32.totalorder %v1778, 2
        %vm1843 = vcmp.ge.s32.totalorder %v1779, 2
        %vm1844 = vcmp.ge.s32.totalorder %v1780, 2
        %vm1845 = vcmp.ge.s32.totalorder %v1781, 2
        %vm1846 = vcmp.ge.s32.totalorder %v1750, 3
        %vm1847 = vcmp.ge.s32.totalorder %v1751, 3
        %vm1848 = vcmp.ge.s32.totalorder %v1752, 3
        %vm1849 = vcmp.ge.s32.totalorder %v1753, 3
        %vm1850 = vcmp.ge.s32.totalorder %v1754, 3
        %vm1851 = vcmp.ge.s32.totalorder %v1755, 3
        %vm1852 = vcmp.ge.s32.totalorder %v1756, 3
        %vm1853 = vcmp.ge.s32.totalorder %v1757, 3
        %vm1854 = vcmp.ge.s32.totalorder %v1758, 3
        %vm1855 = vcmp.ge.s32.totalorder %v1759, 3
        %vm1856 = vcmp.ge.s32.totalorder %v1760, 3
        %vm1857 = vcmp.ge.s32.totalorder %v1761, 3
        %vm1858 = vcmp.ge.s32.totalorder %v1762, 3
        %vm1859 = vcmp.ge.s32.totalorder %v1763, 3
        %vm1860 = vcmp.ge.s32.totalorder %v1764, 3
        %vm1861 = vcmp.ge.s32.totalorder %v1765, 3
        %vm1862 = vcmp.ge.s32.totalorder %v1766, 3
        %vm1863 = vcmp.ge.s32.totalorder %v1767, 3
        %vm1864 = vcmp.ge.s32.totalorder %v1768, 3
        %vm1865 = vcmp.ge.s32.totalorder %v1769, 3
        %vm1866 = vcmp.ge.s32.totalorder %v1770, 3
        %vm1867 = vcmp.ge.s32.totalorder %v1771, 3
        %vm1868 = vcmp.ge.s32.totalorder %v1772, 3
        %vm1869 = vcmp.ge.s32.totalorder %v1773, 3
        %vm1870 = vcmp.ge.s32.totalorder %v1774, 3
        %vm1871 = vcmp.ge.s32.totalorder %v1775, 3
        %vm1872 = vcmp.ge.s32.totalorder %v1776, 3
        %vm1873 = vcmp.ge.s32.totalorder %v1777, 3
        %vm1874 = vcmp.ge.s32.totalorder %v1778, 3
        %vm1875 = vcmp.ge.s32.totalorder %v1779, 3
        %vm1876 = vcmp.ge.s32.totalorder %v1780, 3
        %vm1877 = vcmp.ge.s32.totalorder %v1781, 3
        %v1879 = vperm.slane %v1364, 3
        %v1880 = vperm.slane %v1364, 7
        %v1883 = vperm.slane %v1879, 3
        %v1884 = vperm.slane %v1880, 3
        %v1885 = vmul.f32 %v1156, %v1883
        %v1886 = vmul.f32 %v1269, %v1884
        %v1887 = vmul.f32 %v1159, %v1883
        %v1888 = vmul.f32 %v1272, %v1884
        %v1889 = vmul.f32 %v1162, %v1883
        %v1890 = vmul.f32 %v1275, %v1884
        %v1891 = vmul.f32 %v1165, %v1883
        %v1892 = vmul.f32 %v1278, %v1884
        %v1893 = vmul.f32 %v1168, %v1883
        %v1894 = vmul.f32 %v1281, %v1884
        %v1895 = vmul.f32 %v1171, %v1883
        %v1896 = vmul.f32 %v1284, %v1884
        %v1897 = vmul.f32 %v1174, %v1883
        %v1898 = vmul.f32 %v1287, %v1884
        %v1899 = vmul.f32 %v1177, %v1883
        %v1900 = vmul.f32 %v1290, %v1884
        %v1901 = vmul.f32 %v1180, %v1883
        %v1902 = vmul.f32 %v1293, %v1884
        %v1903 = vmul.f32 %v1183, %v1883
        %v1904 = vmul.f32 %v1296, %v1884
        %v1905 = vmul.f32 %v1186, %v1883
        %v1906 = vmul.f32 %v1299, %v1884
        %v1907 = vmul.f32 %v1189, %v1883
        %v1908 = vmul.f32 %v1302, %v1884
        %v1909 = vmul.f32 %v1192, %v1883
        %v1910 = vmul.f32 %v1305, %v1884
        %v1911 = vmul.f32 %v1195, %v1883
        %v1912 = vmul.f32 %v1308, %v1884
        %v1913 = vmul.f32 %v1198, %v1883
        %v1914 = vmul.f32 %v1311, %v1884
        %v1915 = vmul.f32 %v1201, %v1883
        %v1916 = vmul.f32 %v1314, %v1884
        %v1917 = vmul.f32 %v1204, %v1883
        %v1918 = vmul.f32 %v1317, %v1884
        %v1919 = vmul.f32 %v1207, %v1883
        %v1920 = vmul.f32 %v1320, %v1884
        %v1921 = vmul.f32 %v1210, %v1883
        %v1922 = vmul.f32 %v1323, %v1884
        %v1923 = vmul.f32 %v1213, %v1883
        %v1924 = vmul.f32 %v1326, %v1884
        %v1925 = vmul.f32 %v1216, %v1883
        %v1926 = vmul.f32 %v1329, %v1884
        %v1927 = vmul.f32 %v1219, %v1883
        %v1928 = vmul.f32 %v1332, %v1884
        %v1929 = vmul.f32 %v1222, %v1883
        %v1930 = vmul.f32 %v1335, %v1884
        %v1931 = vmul.f32 %v1225, %v1883
        %v1932 = vmul.f32 %v1338, %v1884
        %v1933 = vmul.f32 %v1228, %v1883
        %v1934 = vmul.f32 %v1341, %v1884
        %v1935 = vmul.f32 %v1231, %v1883
        %v1936 = vmul.f32 %v1344, %v1884
        %v1937 = vmul.f32 %v1234, %v1883
        %v1938 = vmul.f32 %v1347, %v1884
        %v1939 = vmul.f32 %v1237, %v1883
        %v1940 = vmul.f32 %v1350, %v1884
        %v1941 = vmul.f32 %v1240, %v1883
        %v1942 = vmul.f32 %v1353, %v1884
        %v1943 = vmul.f32 %v1243, %v1883
        %v1944 = vmul.f32 %v1356, %v1884
        %v1945 = vmul.f32 %v1246, %v1883
        %v1946 = vmul.f32 %v1359, %v1884
        %v1947 = vmul.f32 %v1249, %v1883
        %v1948 = vmul.f32 %v1362, %v1884
        %v1949 = vrot.slane %v1156, 7
        %v1950 = vrot.slane %v1269, 7
        %v1951 = vrot.slane %v1159, 7
        %v1952 = vrot.slane %v1272, 7
        %v1953 = vrot.slane %v1162, 7
        %v1954 = vrot.slane %v1275, 7
        %v1955 = vrot.slane %v1165, 7
        %v1956 = vrot.slane %v1278, 7
        %v1957 = vrot.slane %v1168, 7
        %v1958 = vrot.slane %v1281, 7
        %v1959 = vrot.slane %v1171, 7
        %v1960 = vrot.slane %v1284, 7
        %v1961 = vrot.slane %v1174, 7
        %v1962 = vrot.slane %v1287, 7
        %v1963 = vrot.slane %v1177, 7
        %v1964 = vrot.slane %v1290, 7
        %v1965 = vrot.slane %v1180, 7
        %v1966 = vrot.slane %v1293, 7
        %v1967 = vrot.slane %v1183, 7
        %v1968 = vrot.slane %v1296, 7
        %v1969 = vrot.slane %v1186, 7
        %v1970 = vrot.slane %v1299, 7
        %v1971 = vrot.slane %v1189, 7
        %v1972 = vrot.slane %v1302, 7
        %v1973 = vrot.slane %v1192, 7
        %v1974 = vrot.slane %v1305, 7
        %v1975 = vrot.slane %v1195, 7
        %v1976 = vrot.slane %v1308, 7
        %v1977 = vrot.slane %v1198, 7
        %v1978 = vrot.slane %v1311, 7
        %v1979 = vrot.slane %v1201, 7
        %v1980 = vrot.slane %v1314, 7
        %v1981 = vrot.slane %v1204, 7
        %v1982 = vrot.slane %v1317, 7
        %v1983 = vrot.slane %v1207, 7
        %v1984 = vrot.slane %v1320, 7
        %v1985 = vrot.slane %v1210, 7
        %v1986 = vrot.slane %v1323, 7
        %v1987 = vrot.slane %v1213, 7
        %v1988 = vrot.slane %v1326, 7
        %v1989 = vrot.slane %v1216, 7
        %v1990 = vrot.slane %v1329, 7
        %v1991 = vrot.slane %v1219, 7
        %v1992 = vrot.slane %v1332, 7
        %v1993 = vrot.slane %v1222, 7
        %v1994 = vrot.slane %v1335, 7
        %v1995 = vrot.slane %v1225, 7
        %v1996 = vrot.slane %v1338, 7
        %v1997 = vrot.slane %v1228, 7
        %v1998 = vrot.slane %v1341, 7
        %v1999 = vrot.slane %v1231, 7
        %v2000 = vrot.slane %v1344, 7
        %v2001 = vrot.slane %v1234, 7
        %v2002 = vrot.slane %v1347, 7
        %v2003 = vrot.slane %v1237, 7
        %v2004 = vrot.slane %v1350, 7
        %v2005 = vrot.slane %v1240, 7
        %v2006 = vrot.slane %v1353, 7
        %v2007 = vrot.slane %v1243, 7
        %v2008 = vrot.slane %v1356, 7
        %v2009 = vrot.slane %v1246, 7
        %v2010 = vrot.slane %v1359, 7
        %v2011 = vrot.slane %v1249, 7
        %v2012 = vrot.slane %v1362, 7
        %vm2013 = vcmp.lt.s32.totalorder %v1366, 1
        %v2014 = vsel %vm2013, %v2009, %v2011
        %v2015 = vsel %vm2013, %v2010, %v2012
        %v2016 = vsel %vm2013, %v2007, %v2009
        %v2017 = vsel %vm2013, %v2008, %v2010
        %v2018 = vsel %vm2013, %v2005, %v2007
        %v2019 = vsel %vm2013, %v2006, %v2008
        %v2020 = vsel %vm2013, %v2003, %v2005
        %v2021 = vsel %vm2013, %v2004, %v2006
        %v2022 = vsel %vm2013, %v2001, %v2003
        %v2023 = vsel %vm2013, %v2002, %v2004
        %v2024 = vsel %vm2013, %v1999, %v2001
        %v2025 = vsel %vm2013, %v2000, %v2002
        %v2026 = vsel %vm2013, %v1997, %v1999
        %v2027 = vsel %vm2013, %v1998, %v2000
        %v2028 = vsel %vm2013, %v1995, %v1997
        %v2029 = vsel %vm2013, %v1996, %v1998
        %v2030 = vsel %vm2013, %v1993, %v1995
        %v2031 = vsel %vm2013, %v1994, %v1996
        %v2032 = vsel %vm2013, %v1991, %v1993
        %v2033 = vsel %vm2013, %v1992, %v1994
        %v2034 = vsel %vm2013, %v1989, %v1991
        %v2035 = vsel %vm2013, %v1990, %v1992
        %v2036 = vsel %vm2013, %v1987, %v1989
        %v2037 = vsel %vm2013, %v1988, %v1990
        %v2038 = vsel %vm2013, %v1985, %v1987
        %v2039 = vsel %vm2013, %v1986, %v1988
        %v2040 = vsel %vm2013, %v1983, %v1985
        %v2041 = vsel %vm2013, %v1984, %v1986
        %v2042 = vsel %vm2013, %v1981, %v1983
        %v2043 = vsel %vm2013, %v1982, %v1984
        %v2044 = vsel %vm2013, %v1979, %v1981
        %v2045 = vsel %vm2013, %v1980, %v1982
        %v2046 = vsel %vm2013, %v1977, %v1979
        %v2047 = vsel %vm2013, %v1978, %v1980
        %v2048 = vsel %vm2013, %v1975, %v1977
        %v2049 = vsel %vm2013, %v1976, %v1978
        %v2050 = vsel %vm2013, %v1973, %v1975
        %v2051 = vsel %vm2013, %v1974, %v1976
        %v2052 = vsel %vm2013, %v1971, %v1973
        %v2053 = vsel %vm2013, %v1972, %v1974
        %v2054 = vsel %vm2013, %v1969, %v1971
        %v2055 = vsel %vm2013, %v1970, %v1972
        %v2056 = vsel %vm2013, %v1967, %v1969
        %v2057 = vsel %vm2013, %v1968, %v1970
        %v2058 = vsel %vm2013, %v1965, %v1967
        %v2059 = vsel %vm2013, %v1966, %v1968
        %v2060 = vsel %vm2013, %v1963, %v1965
        %v2061 = vsel %vm2013, %v1964, %v1966
        %v2062 = vsel %vm2013, %v1961, %v1963
        %v2063 = vsel %vm2013, %v1962, %v1964
        %v2064 = vsel %vm2013, %v1959, %v1961
        %v2065 = vsel %vm2013, %v1960, %v1962
        %v2066 = vsel %vm2013, %v1957, %v1959
        %v2067 = vsel %vm2013, %v1958, %v1960
        %v2068 = vsel %vm2013, %v1955, %v1957
        %v2069 = vsel %vm2013, %v1956, %v1958
        %v2070 = vsel %vm2013, %v1953, %v1955
        %v2071 = vsel %vm2013, %v1954, %v1956
        %v2072 = vsel %vm2013, %v1951, %v1953
        %v2073 = vsel %vm2013, %v1952, %v1954
        %v2074 = vsel %vm2013, %v1949, %v1951
        %v2075 = vsel %vm2013, %v1950, %v1952
        %v2076 = vsel %vm2013, %v2011, %v1949
        %v2077 = vsel %vm2013, %v2012, %v1950
        %v2078 = vsel %vm1782, 1, 0
        %v2079 = vsel %vm1783, 1, 0
        %v2080 = vsel %vm1784, 1, 0
        %v2081 = vsel %vm1785, 1, 0
        %v2082 = vsel %vm1786, 1, 0
        %v2083 = vsel %vm1787, 1, 0
        %v2084 = vsel %vm1788, 1, 0
        %v2085 = vsel %vm1789, 1, 0
        %v2086 = vsel %vm1790, 1, 0
        %v2087 = vsel %vm1791, 1, 0
        %v2088 = vsel %vm1792, 1, 0
        %v2089 = vsel %vm1793, 1, 0
        %v2090 = vsel %vm1794, 1, 0
        %v2091 = vsel %vm1795, 1, 0
        %v2092 = vsel %vm1796, 1, 0
        %v2093 = vsel %vm1797, 1, 0
        %v2094 = vsel %vm1798, 1, 0
        %v2095 = vsel %vm1799, 1, 0
        %v2096 = vsel %vm1800, 1, 0
        %v2097 = vsel %vm1801, 1, 0
        %v2098 = vsel %vm1802, 1, 0
        %v2099 = vsel %vm1803, 1, 0
        %v2100 = vsel %vm1804, 1, 0
        %v2101 = vsel %vm1805, 1, 0
        %v2102 = vsel %vm1806, 1, 0
        %v2103 = vsel %vm1807, 1, 0
        %v2104 = vsel %vm1808, 1, 0
        %v2105 = vsel %vm1809, 1, 0
        %v2106 = vsel %vm1810, 1, 0
        %v2107 = vsel %vm1811, 1, 0
        %v2108 = vsel %vm1812, 1, 0
        %v2109 = vsel %vm1813, 1, 0
        %vm2110 = vcmp.eq.s32.totalorder %v2078, 1
        %vm2111 = vcmp.eq.s32.totalorder %v2079, 1
        %vm2112 = vcmp.eq.s32.totalorder %v2080, 1
        %vm2113 = vcmp.eq.s32.totalorder %v2081, 1
        %vm2114 = vcmp.eq.s32.totalorder %v2082, 1
        %vm2115 = vcmp.eq.s32.totalorder %v2083, 1
        %vm2116 = vcmp.eq.s32.totalorder %v2084, 1
        %vm2117 = vcmp.eq.s32.totalorder %v2085, 1
        %vm2118 = vcmp.eq.s32.totalorder %v2086, 1
        %vm2119 = vcmp.eq.s32.totalorder %v2087, 1
        %vm2120 = vcmp.eq.s32.totalorder %v2088, 1
        %vm2121 = vcmp.eq.s32.totalorder %v2089, 1
        %vm2122 = vcmp.eq.s32.totalorder %v2090, 1
        %vm2123 = vcmp.eq.s32.totalorder %v2091, 1
        %vm2124 = vcmp.eq.s32.totalorder %v2092, 1
        %vm2125 = vcmp.eq.s32.totalorder %v2093, 1
        %vm2126 = vcmp.eq.s32.totalorder %v2094, 1
        %vm2127 = vcmp.eq.s32.totalorder %v2095, 1
        %vm2128 = vcmp.eq.s32.totalorder %v2096, 1
        %vm2129 = vcmp.eq.s32.totalorder %v2097, 1
        %vm2130 = vcmp.eq.s32.totalorder %v2098, 1
        %vm2131 = vcmp.eq.s32.totalorder %v2099, 1
        %vm2132 = vcmp.eq.s32.totalorder %v2100, 1
        %vm2133 = vcmp.eq.s32.totalorder %v2101, 1
        %vm2134 = vcmp.eq.s32.totalorder %v2102, 1
        %vm2135 = vcmp.eq.s32.totalorder %v2103, 1
        %vm2136 = vcmp.eq.s32.totalorder %v2104, 1
        %vm2137 = vcmp.eq.s32.totalorder %v2105, 1
        %vm2138 = vcmp.eq.s32.totalorder %v2106, 1
        %vm2139 = vcmp.eq.s32.totalorder %v2107, 1
        %vm2140 = vcmp.eq.s32.totalorder %v2108, 1
        %vm2141 = vcmp.eq.s32.totalorder %v2109, 1
        %v2142 = vsel %vm2110, %v2076, 0.0
        %v2143 = vsel %vm2110, %v2077, 0.0
        %v2144 = vsel %vm2111, %v2074, 0.0
        %v2145 = vsel %vm2111, %v2075, 0.0
        %v2146 = vsel %vm2112, %v2072, 0.0
        %v2147 = vsel %vm2112, %v2073, 0.0
        %v2148 = vsel %vm2113, %v2070, 0.0
        %v2149 = vsel %vm2113, %v2071, 0.0
        %v2150 = vsel %vm2114, %v2068, 0.0
        %v2151 = vsel %vm2114, %v2069, 0.0
        %v2152 = vsel %vm2115, %v2066, 0.0
        %v2153 = vsel %vm2115, %v2067, 0.0
        %v2154 = vsel %vm2116, %v2064, 0.0
        %v2155 = vsel %vm2116, %v2065, 0.0
        %v2156 = vsel %vm2117, %v2062, 0.0
        %v2157 = vsel %vm2117, %v2063, 0.0
        %v2158 = vsel %vm2118, %v2060, 0.0
        %v2159 = vsel %vm2118, %v2061, 0.0
        %v2160 = vsel %vm2119, %v2058, 0.0
        %v2161 = vsel %vm2119, %v2059, 0.0
        %v2162 = vsel %vm2120, %v2056, 0.0
        %v2163 = vsel %vm2120, %v2057, 0.0
        %v2164 = vsel %vm2121, %v2054, 0.0
        %v2165 = vsel %vm2121, %v2055, 0.0
        %v2166 = vsel %vm2122, %v2052, 0.0
        %v2167 = vsel %vm2122, %v2053, 0.0
        %v2168 = vsel %vm2123, %v2050, 0.0
        %v2169 = vsel %vm2123, %v2051, 0.0
        %v2170 = vsel %vm2124, %v2048, 0.0
        %v2171 = vsel %vm2124, %v2049, 0.0
        %v2172 = vsel %vm2125, %v2046, 0.0
        %v2173 = vsel %vm2125, %v2047, 0.0
        %v2174 = vsel %vm2126, %v2044, 0.0
        %v2175 = vsel %vm2126, %v2045, 0.0
        %v2176 = vsel %vm2127, %v2042, 0.0
        %v2177 = vsel %vm2127, %v2043, 0.0
        %v2178 = vsel %vm2128, %v2040, 0.0
        %v2179 = vsel %vm2128, %v2041, 0.0
        %v2180 = vsel %vm2129, %v2038, 0.0
        %v2181 = vsel %vm2129, %v2039, 0.0
        %v2182 = vsel %vm2130, %v2036, 0.0
        %v2183 = vsel %vm2130, %v2037, 0.0
        %v2184 = vsel %vm2131, %v2034, 0.0
        %v2185 = vsel %vm2131, %v2035, 0.0
        %v2186 = vsel %vm2132, %v2032, 0.0
        %v2187 = vsel %vm2132, %v2033, 0.0
        %v2188 = vsel %vm2133, %v2030, 0.0
        %v2189 = vsel %vm2133, %v2031, 0.0
        %v2190 = vsel %vm2134, %v2028, 0.0
        %v2191 = vsel %vm2134, %v2029, 0.0
        %v2192 = vsel %vm2135, %v2026, 0.0
        %v2193 = vsel %vm2135, %v2027, 0.0
        %v2194 = vsel %vm2136, %v2024, 0.0
        %v2195 = vsel %vm2136, %v2025, 0.0
        %v2196 = vsel %vm2137, %v2022, 0.0
        %v2197 = vsel %vm2137, %v2023, 0.0
        %v2198 = vsel %vm2138, %v2020, 0.0
        %v2199 = vsel %vm2138, %v2021, 0.0
        %v2200 = vsel %vm2139, %v2018, 0.0
        %v2201 = vsel %vm2139, %v2019, 0.0
        %v2202 = vsel %vm2140, %v2016, 0.0
        %v2203 = vsel %vm2140, %v2017, 0.0
        %v2204 = vsel %vm2141, %v2014, 0.0
        %v2205 = vsel %vm2141, %v2015, 0.0
        %v2206 = vperm.slane %v1364, 2
        %v2207 = vperm.slane %v1364, 6
        %v2210 = vperm.slane %v2206, 2
        %v2211 = vperm.slane %v2207, 2
        %v2212 = vmul.f32 %v2142, %v2210
        %v2213 = vmul.f32 %v2143, %v2211
        %v2214 = vmul.f32 %v2144, %v2210
        %v2215 = vmul.f32 %v2145, %v2211
        %v2216 = vmul.f32 %v2146, %v2210
        %v2217 = vmul.f32 %v2147, %v2211
        %v2218 = vmul.f32 %v2148, %v2210
        %v2219 = vmul.f32 %v2149, %v2211
        %v2220 = vmul.f32 %v2150, %v2210
        %v2221 = vmul.f32 %v2151, %v2211
        %v2222 = vmul.f32 %v2152, %v2210
        %v2223 = vmul.f32 %v2153, %v2211
        %v2224 = vmul.f32 %v2154, %v2210
        %v2225 = vmul.f32 %v2155, %v2211
        %v2226 = vmul.f32 %v2156, %v2210
        %v2227 = vmul.f32 %v2157, %v2211
        %v2228 = vmul.f32 %v2158, %v2210
        %v2229 = vmul.f32 %v2159, %v2211
        %v2230 = vmul.f32 %v2160, %v2210
        %v2231 = vmul.f32 %v2161, %v2211
        %v2232 = vmul.f32 %v2162, %v2210
        %v2233 = vmul.f32 %v2163, %v2211
        %v2234 = vmul.f32 %v2164, %v2210
        %v2235 = vmul.f32 %v2165, %v2211
        %v2236 = vmul.f32 %v2166, %v2210
        %v2237 = vmul.f32 %v2167, %v2211
        %v2238 = vmul.f32 %v2168, %v2210
        %v2239 = vmul.f32 %v2169, %v2211
        %v2240 = vmul.f32 %v2170, %v2210
        %v2241 = vmul.f32 %v2171, %v2211
        %v2242 = vmul.f32 %v2172, %v2210
        %v2243 = vmul.f32 %v2173, %v2211
        %v2244 = vmul.f32 %v2174, %v2210
        %v2245 = vmul.f32 %v2175, %v2211
        %v2246 = vmul.f32 %v2176, %v2210
        %v2247 = vmul.f32 %v2177, %v2211
        %v2248 = vmul.f32 %v2178, %v2210
        %v2249 = vmul.f32 %v2179, %v2211
        %v2250 = vmul.f32 %v2180, %v2210
        %v2251 = vmul.f32 %v2181, %v2211
        %v2252 = vmul.f32 %v2182, %v2210
        %v2253 = vmul.f32 %v2183, %v2211
        %v2254 = vmul.f32 %v2184, %v2210
        %v2255 = vmul.f32 %v2185, %v2211
        %v2256 = vmul.f32 %v2186, %v2210
        %v2257 = vmul.f32 %v2187, %v2211
        %v2258 = vmul.f32 %v2188, %v2210
        %v2259 = vmul.f32 %v2189, %v2211
        %v2260 = vmul.f32 %v2190, %v2210
        %v2261 = vmul.f32 %v2191, %v2211
        %v2262 = vmul.f32 %v2192, %v2210
        %v2263 = vmul.f32 %v2193, %v2211
        %v2264 = vmul.f32 %v2194, %v2210
        %v2265 = vmul.f32 %v2195, %v2211
        %v2266 = vmul.f32 %v2196, %v2210
        %v2267 = vmul.f32 %v2197, %v2211
        %v2268 = vmul.f32 %v2198, %v2210
        %v2269 = vmul.f32 %v2199, %v2211
        %v2270 = vmul.f32 %v2200, %v2210
        %v2271 = vmul.f32 %v2201, %v2211
        %v2272 = vmul.f32 %v2202, %v2210
        %v2273 = vmul.f32 %v2203, %v2211
        %v2274 = vmul.f32 %v2204, %v2210
        %v2275 = vmul.f32 %v2205, %v2211
        %v2276 = vadd.f32 %v1885, %v2212
        %v2277 = vadd.f32 %v1886, %v2213
        %v2278 = vadd.f32 %v1887, %v2214
        %v2279 = vadd.f32 %v1888, %v2215
        %v2280 = vadd.f32 %v1889, %v2216
        %v2281 = vadd.f32 %v1890, %v2217
        %v2282 = vadd.f32 %v1891, %v2218
        %v2283 = vadd.f32 %v1892, %v2219
        %v2284 = vadd.f32 %v1893, %v2220
        %v2285 = vadd.f32 %v1894, %v2221
        %v2286 = vadd.f32 %v1895, %v2222
        %v2287 = vadd.f32 %v1896, %v2223
        %v2288 = vadd.f32 %v1897, %v2224
        %v2289 = vadd.f32 %v1898, %v2225
        %v2290 = vadd.f32 %v1899, %v2226
        %v2291 = vadd.f32 %v1900, %v2227
        %v2292 = vadd.f32 %v1901, %v2228
        %v2293 = vadd.f32 %v1902, %v2229
        %v2294 = vadd.f32 %v1903, %v2230
        %v2295 = vadd.f32 %v1904, %v2231
        %v2296 = vadd.f32 %v1905, %v2232
        %v2297 = vadd.f32 %v1906, %v2233
        %v2298 = vadd.f32 %v1907, %v2234
        %v2299 = vadd.f32 %v1908, %v2235
        %v2300 = vadd.f32 %v1909, %v2236
        %v2301 = vadd.f32 %v1910, %v2237
        %v2302 = vadd.f32 %v1911, %v2238
        %v2303 = vadd.f32 %v1912, %v2239
        %v2304 = vadd.f32 %v1913, %v2240
        %v2305 = vadd.f32 %v1914, %v2241
        %v2306 = vadd.f32 %v1915, %v2242
        %v2307 = vadd.f32 %v1916, %v2243
        %v2308 = vadd.f32 %v1917, %v2244
        %v2309 = vadd.f32 %v1918, %v2245
        %v2310 = vadd.f32 %v1919, %v2246
        %v2311 = vadd.f32 %v1920, %v2247
        %v2312 = vadd.f32 %v1921, %v2248
        %v2313 = vadd.f32 %v1922, %v2249
        %v2314 = vadd.f32 %v1923, %v2250
        %v2315 = vadd.f32 %v1924, %v2251
        %v2316 = vadd.f32 %v1925, %v2252
        %v2317 = vadd.f32 %v1926, %v2253
        %v2318 = vadd.f32 %v1927, %v2254
        %v2319 = vadd.f32 %v1928, %v2255
        %v2320 = vadd.f32 %v1929, %v2256
        %v2321 = vadd.f32 %v1930, %v2257
        %v2322 = vadd.f32 %v1931, %v2258
        %v2323 = vadd.f32 %v1932, %v2259
        %v2324 = vadd.f32 %v1933, %v2260
        %v2325 = vadd.f32 %v1934, %v2261
        %v2326 = vadd.f32 %v1935, %v2262
        %v2327 = vadd.f32 %v1936, %v2263
        %v2328 = vadd.f32 %v1937, %v2264
        %v2329 = vadd.f32 %v1938, %v2265
        %v2330 = vadd.f32 %v1939, %v2266
        %v2331 = vadd.f32 %v1940, %v2267
        %v2332 = vadd.f32 %v1941, %v2268
        %v2333 = vadd.f32 %v1942, %v2269
        %v2334 = vadd.f32 %v1943, %v2270
        %v2335 = vadd.f32 %v1944, %v2271
        %v2336 = vadd.f32 %v1945, %v2272
        %v2337 = vadd.f32 %v1946, %v2273
        %v2338 = vadd.f32 %v1947, %v2274
        %v2339 = vadd.f32 %v1948, %v2275
        %v2340 = vrot.slane %v1156, 6
        %v2341 = vrot.slane %v1269, 6
        %v2342 = vrot.slane %v1159, 6
        %v2343 = vrot.slane %v1272, 6
        %v2344 = vrot.slane %v1162, 6
        %v2345 = vrot.slane %v1275, 6
        %v2346 = vrot.slane %v1165, 6
        %v2347 = vrot.slane %v1278, 6
        %v2348 = vrot.slane %v1168, 6
        %v2349 = vrot.slane %v1281, 6
        %v2350 = vrot.slane %v1171, 6
        %v2351 = vrot.slane %v1284, 6
        %v2352 = vrot.slane %v1174, 6
        %v2353 = vrot.slane %v1287, 6
        %v2354 = vrot.slane %v1177, 6
        %v2355 = vrot.slane %v1290, 6
        %v2356 = vrot.slane %v1180, 6
        %v2357 = vrot.slane %v1293, 6
        %v2358 = vrot.slane %v1183, 6
        %v2359 = vrot.slane %v1296, 6
        %v2360 = vrot.slane %v1186, 6
        %v2361 = vrot.slane %v1299, 6
        %v2362 = vrot.slane %v1189, 6
        %v2363 = vrot.slane %v1302, 6
        %v2364 = vrot.slane %v1192, 6
        %v2365 = vrot.slane %v1305, 6
        %v2366 = vrot.slane %v1195, 6
        %v2367 = vrot.slane %v1308, 6
        %v2368 = vrot.slane %v1198, 6
        %v2369 = vrot.slane %v1311, 6
        %v2370 = vrot.slane %v1201, 6
        %v2371 = vrot.slane %v1314, 6
        %v2372 = vrot.slane %v1204, 6
        %v2373 = vrot.slane %v1317, 6
        %v2374 = vrot.slane %v1207, 6
        %v2375 = vrot.slane %v1320, 6
        %v2376 = vrot.slane %v1210, 6
        %v2377 = vrot.slane %v1323, 6
        %v2378 = vrot.slane %v1213, 6
        %v2379 = vrot.slane %v1326, 6
        %v2380 = vrot.slane %v1216, 6
        %v2381 = vrot.slane %v1329, 6
        %v2382 = vrot.slane %v1219, 6
        %v2383 = vrot.slane %v1332, 6
        %v2384 = vrot.slane %v1222, 6
        %v2385 = vrot.slane %v1335, 6
        %v2386 = vrot.slane %v1225, 6
        %v2387 = vrot.slane %v1338, 6
        %v2388 = vrot.slane %v1228, 6
        %v2389 = vrot.slane %v1341, 6
        %v2390 = vrot.slane %v1231, 6
        %v2391 = vrot.slane %v1344, 6
        %v2392 = vrot.slane %v1234, 6
        %v2393 = vrot.slane %v1347, 6
        %v2394 = vrot.slane %v1237, 6
        %v2395 = vrot.slane %v1350, 6
        %v2396 = vrot.slane %v1240, 6
        %v2397 = vrot.slane %v1353, 6
        %v2398 = vrot.slane %v1243, 6
        %v2399 = vrot.slane %v1356, 6
        %v2400 = vrot.slane %v1246, 6
        %v2401 = vrot.slane %v1359, 6
        %v2402 = vrot.slane %v1249, 6
        %v2403 = vrot.slane %v1362, 6
        %vm2404 = vcmp.lt.s32.totalorder %v1366, 2
        %v2405 = vsel %vm2404, %v2400, %v2402
        %v2406 = vsel %vm2404, %v2401, %v2403
        %v2407 = vsel %vm2404, %v2398, %v2400
        %v2408 = vsel %vm2404, %v2399, %v2401
        %v2409 = vsel %vm2404, %v2396, %v2398
        %v2410 = vsel %vm2404, %v2397, %v2399
        %v2411 = vsel %vm2404, %v2394, %v2396
        %v2412 = vsel %vm2404, %v2395, %v2397
        %v2413 = vsel %vm2404, %v2392, %v2394
        %v2414 = vsel %vm2404, %v2393, %v2395
        %v2415 = vsel %vm2404, %v2390, %v2392
        %v2416 = vsel %vm2404, %v2391, %v2393
        %v2417 = vsel %vm2404, %v2388, %v2390
        %v2418 = vsel %vm2404, %v2389, %v2391
        %v2419 = vsel %vm2404, %v2386, %v2388
        %v2420 = vsel %vm2404, %v2387, %v2389
        %v2421 = vsel %vm2404, %v2384, %v2386
        %v2422 = vsel %vm2404, %v2385, %v2387
        %v2423 = vsel %vm2404, %v2382, %v2384
        %v2424 = vsel %vm2404, %v2383, %v2385
        %v2425 = vsel %vm2404, %v2380, %v2382
        %v2426 = vsel %vm2404, %v2381, %v2383
        %v2427 = vsel %vm2404, %v2378, %v2380
        %v2428 = vsel %vm2404, %v2379, %v2381
        %v2429 = vsel %vm2404, %v2376, %v2378
        %v2430 = vsel %vm2404, %v2377, %v2379
        %v2431 = vsel %vm2404, %v2374, %v2376
        %v2432 = vsel %vm2404, %v2375, %v2377
        %v2433 = vsel %vm2404, %v2372, %v2374
        %v2434 = vsel %vm2404, %v2373, %v2375
        %v2435 = vsel %vm2404, %v2370, %v2372
        %v2436 = vsel %vm2404, %v2371, %v2373
        %v2437 = vsel %vm2404, %v2368, %v2370
        %v2438 = vsel %vm2404, %v2369, %v2371
        %v2439 = vsel %vm2404, %v2366, %v2368
        %v2440 = vsel %vm2404, %v2367, %v2369
        %v2441 = vsel %vm2404, %v2364, %v2366
        %v2442 = vsel %vm2404, %v2365, %v2367
        %v2443 = vsel %vm2404, %v2362, %v2364
        %v2444 = vsel %vm2404, %v2363, %v2365
        %v2445 = vsel %vm2404, %v2360, %v2362
        %v2446 = vsel %vm2404, %v2361, %v2363
        %v2447 = vsel %vm2404, %v2358, %v2360
        %v2448 = vsel %vm2404, %v2359, %v2361
        %v2449 = vsel %vm2404, %v2356, %v2358
        %v2450 = vsel %vm2404, %v2357, %v2359
        %v2451 = vsel %vm2404, %v2354, %v2356
        %v2452 = vsel %vm2404, %v2355, %v2357
        %v2453 = vsel %vm2404, %v2352, %v2354
        %v2454 = vsel %vm2404, %v2353, %v2355
        %v2455 = vsel %vm2404, %v2350, %v2352
        %v2456 = vsel %vm2404, %v2351, %v2353
        %v2457 = vsel %vm2404, %v2348, %v2350
        %v2458 = vsel %vm2404, %v2349, %v2351
        %v2459 = vsel %vm2404, %v2346, %v2348
        %v2460 = vsel %vm2404, %v2347, %v2349
        %v2461 = vsel %vm2404, %v2344, %v2346
        %v2462 = vsel %vm2404, %v2345, %v2347
        %v2463 = vsel %vm2404, %v2342, %v2344
        %v2464 = vsel %vm2404, %v2343, %v2345
        %v2465 = vsel %vm2404, %v2340, %v2342
        %v2466 = vsel %vm2404, %v2341, %v2343
        %v2467 = vsel %vm2404, %v2402, %v2340
        %v2468 = vsel %vm2404, %v2403, %v2341
        %v2469 = vsel %vm1814, 1, 0
        %v2470 = vsel %vm1815, 1, 0
        %v2471 = vsel %vm1816, 1, 0
        %v2472 = vsel %vm1817, 1, 0
        %v2473 = vsel %vm1818, 1, 0
        %v2474 = vsel %vm1819, 1, 0
        %v2475 = vsel %vm1820, 1, 0
        %v2476 = vsel %vm1821, 1, 0
        %v2477 = vsel %vm1822, 1, 0
        %v2478 = vsel %vm1823, 1, 0
        %v2479 = vsel %vm1824, 1, 0
        %v2480 = vsel %vm1825, 1, 0
        %v2481 = vsel %vm1826, 1, 0
        %v2482 = vsel %vm1827, 1, 0
        %v2483 = vsel %vm1828, 1, 0
        %v2484 = vsel %vm1829, 1, 0
        %v2485 = vsel %vm1830, 1, 0
        %v2486 = vsel %vm1831, 1, 0
        %v2487 = vsel %vm1832, 1, 0
        %v2488 = vsel %vm1833, 1, 0
        %v2489 = vsel %vm1834, 1, 0
        %v2490 = vsel %vm1835, 1, 0
        %v2491 = vsel %vm1836, 1, 0
        %v2492 = vsel %vm1837, 1, 0
        %v2493 = vsel %vm1838, 1, 0
        %v2494 = vsel %vm1839, 1, 0
        %v2495 = vsel %vm1840, 1, 0
        %v2496 = vsel %vm1841, 1, 0
        %v2497 = vsel %vm1842, 1, 0
        %v2498 = vsel %vm1843, 1, 0
        %v2499 = vsel %vm1844, 1, 0
        %v2500 = vsel %vm1845, 1, 0
        %vm2501 = vcmp.eq.s32.totalorder %v2469, 1
        %vm2502 = vcmp.eq.s32.totalorder %v2470, 1
        %vm2503 = vcmp.eq.s32.totalorder %v2471, 1
        %vm2504 = vcmp.eq.s32.totalorder %v2472, 1
        %vm2505 = vcmp.eq.s32.totalorder %v2473, 1
        %vm2506 = vcmp.eq.s32.totalorder %v2474, 1
        %vm2507 = vcmp.eq.s32.totalorder %v2475, 1
        %vm2508 = vcmp.eq.s32.totalorder %v2476, 1
        %vm2509 = vcmp.eq.s32.totalorder %v2477, 1
        %vm2510 = vcmp.eq.s32.totalorder %v2478, 1
        %vm2511 = vcmp.eq.s32.totalorder %v2479, 1
        %vm2512 = vcmp.eq.s32.totalorder %v2480, 1
        %vm2513 = vcmp.eq.s32.totalorder %v2481, 1
        %vm2514 = vcmp.eq.s32.totalorder %v2482, 1
        %vm2515 = vcmp.eq.s32.totalorder %v2483, 1
        %vm2516 = vcmp.eq.s32.totalorder %v2484, 1
        %vm2517 = vcmp.eq.s32.totalorder %v2485, 1
        %vm2518 = vcmp.eq.s32.totalorder %v2486, 1
        %vm2519 = vcmp.eq.s32.totalorder %v2487, 1
        %vm2520 = vcmp.eq.s32.totalorder %v2488, 1
        %vm2521 = vcmp.eq.s32.totalorder %v2489, 1
        %vm2522 = vcmp.eq.s32.totalorder %v2490, 1
        %vm2523 = vcmp.eq.s32.totalorder %v2491, 1
        %vm2524 = vcmp.eq.s32.totalorder %v2492, 1
        %vm2525 = vcmp.eq.s32.totalorder %v2493, 1
        %vm2526 = vcmp.eq.s32.totalorder %v2494, 1
        %vm2527 = vcmp.eq.s32.totalorder %v2495, 1
        %vm2528 = vcmp.eq.s32.totalorder %v2496, 1
        %vm2529 = vcmp.eq.s32.totalorder %v2497, 1
        %vm2530 = vcmp.eq.s32.totalorder %v2498, 1
        %vm2531 = vcmp.eq.s32.totalorder %v2499, 1
        %vm2532 = vcmp.eq.s32.totalorder %v2500, 1
        %v2533 = vsel %vm2501, %v2467, 0.0
        %v2534 = vsel %vm2501, %v2468, 0.0
        %v2535 = vsel %vm2502, %v2465, 0.0
        %v2536 = vsel %vm2502, %v2466, 0.0
        %v2537 = vsel %vm2503, %v2463, 0.0
        %v2538 = vsel %vm2503, %v2464, 0.0
        %v2539 = vsel %vm2504, %v2461, 0.0
        %v2540 = vsel %vm2504, %v2462, 0.0
        %v2541 = vsel %vm2505, %v2459, 0.0
        %v2542 = vsel %vm2505, %v2460, 0.0
        %v2543 = vsel %vm2506, %v2457, 0.0
        %v2544 = vsel %vm2506, %v2458, 0.0
        %v2545 = vsel %vm2507, %v2455, 0.0
        %v2546 = vsel %vm2507, %v2456, 0.0
        %v2547 = vsel %vm2508, %v2453, 0.0
        %v2548 = vsel %vm2508, %v2454, 0.0
        %v2549 = vsel %vm2509, %v2451, 0.0
        %v2550 = vsel %vm2509, %v2452, 0.0
        %v2551 = vsel %vm2510, %v2449, 0.0
        %v2552 = vsel %vm2510, %v2450, 0.0
        %v2553 = vsel %vm2511, %v2447, 0.0
        %v2554 = vsel %vm2511, %v2448, 0.0
        %v2555 = vsel %vm2512, %v2445, 0.0
        %v2556 = vsel %vm2512, %v2446, 0.0
        %v2557 = vsel %vm2513, %v2443, 0.0
        %v2558 = vsel %vm2513, %v2444, 0.0
        %v2559 = vsel %vm2514, %v2441, 0.0
        %v2560 = vsel %vm2514, %v2442, 0.0
        %v2561 = vsel %vm2515, %v2439, 0.0
        %v2562 = vsel %vm2515, %v2440, 0.0
        %v2563 = vsel %vm2516, %v2437, 0.0
        %v2564 = vsel %vm2516, %v2438, 0.0
        %v2565 = vsel %vm2517, %v2435, 0.0
        %v2566 = vsel %vm2517, %v2436, 0.0
        %v2567 = vsel %vm2518, %v2433, 0.0
        %v2568 = vsel %vm2518, %v2434, 0.0
        %v2569 = vsel %vm2519, %v2431, 0.0
        %v2570 = vsel %vm2519, %v2432, 0.0
        %v2571 = vsel %vm2520, %v2429, 0.0
        %v2572 = vsel %vm2520, %v2430, 0.0
        %v2573 = vsel %vm2521, %v2427, 0.0
        %v2574 = vsel %vm2521, %v2428, 0.0
        %v2575 = vsel %vm2522, %v2425, 0.0
        %v2576 = vsel %vm2522, %v2426, 0.0
        %v2577 = vsel %vm2523, %v2423, 0.0
        %v2578 = vsel %vm2523, %v2424, 0.0
        %v2579 = vsel %vm2524, %v2421, 0.0
        %v2580 = vsel %vm2524, %v2422, 0.0
        %v2581 = vsel %vm2525, %v2419, 0.0
        %v2582 = vsel %vm2525, %v2420, 0.0
        %v2583 = vsel %vm2526, %v2417, 0.0
        %v2584 = vsel %vm2526, %v2418, 0.0
        %v2585 = vsel %vm2527, %v2415, 0.0
        %v2586 = vsel %vm2527, %v2416, 0.0
        %v2587 = vsel %vm2528, %v2413, 0.0
        %v2588 = vsel %vm2528, %v2414, 0.0
        %v2589 = vsel %vm2529, %v2411, 0.0
        %v2590 = vsel %vm2529, %v2412, 0.0
        %v2591 = vsel %vm2530, %v2409, 0.0
        %v2592 = vsel %vm2530, %v2410, 0.0
        %v2593 = vsel %vm2531, %v2407, 0.0
        %v2594 = vsel %vm2531, %v2408, 0.0
        %v2595 = vsel %vm2532, %v2405, 0.0
        %v2596 = vsel %vm2532, %v2406, 0.0
        %v2597 = vperm.slane %v1364, 1
        %v2598 = vperm.slane %v1364, 5
        %v2601 = vperm.slane %v2597, 1
        %v2602 = vperm.slane %v2598, 1
        %v2603 = vmul.f32 %v2533, %v2601
        %v2604 = vmul.f32 %v2534, %v2602
        %v2605 = vmul.f32 %v2535, %v2601
        %v2606 = vmul.f32 %v2536, %v2602
        %v2607 = vmul.f32 %v2537, %v2601
        %v2608 = vmul.f32 %v2538, %v2602
        %v2609 = vmul.f32 %v2539, %v2601
        %v2610 = vmul.f32 %v2540, %v2602
        %v2611 = vmul.f32 %v2541, %v2601
        %v2612 = vmul.f32 %v2542, %v2602
        %v2613 = vmul.f32 %v2543, %v2601
        %v2614 = vmul.f32 %v2544, %v2602
        %v2615 = vmul.f32 %v2545, %v2601
        %v2616 = vmul.f32 %v2546, %v2602
        %v2617 = vmul.f32 %v2547, %v2601
        %v2618 = vmul.f32 %v2548, %v2602
        %v2619 = vmul.f32 %v2549, %v2601
        %v2620 = vmul.f32 %v2550, %v2602
        %v2621 = vmul.f32 %v2551, %v2601
        %v2622 = vmul.f32 %v2552, %v2602
        %v2623 = vmul.f32 %v2553, %v2601
        %v2624 = vmul.f32 %v2554, %v2602
        %v2625 = vmul.f32 %v2555, %v2601
        %v2626 = vmul.f32 %v2556, %v2602
        %v2627 = vmul.f32 %v2557, %v2601
        %v2628 = vmul.f32 %v2558, %v2602
        %v2629 = vmul.f32 %v2559, %v2601
        %v2630 = vmul.f32 %v2560, %v2602
        %v2631 = vmul.f32 %v2561, %v2601
        %v2632 = vmul.f32 %v2562, %v2602
        %v2633 = vmul.f32 %v2563, %v2601
        %v2634 = vmul.f32 %v2564, %v2602
        %v2635 = vmul.f32 %v2565, %v2601
        %v2636 = vmul.f32 %v2566, %v2602
        %v2637 = vmul.f32 %v2567, %v2601
        %v2638 = vmul.f32 %v2568, %v2602
        %v2639 = vmul.f32 %v2569, %v2601
        %v2640 = vmul.f32 %v2570, %v2602
        %v2641 = vmul.f32 %v2571, %v2601
        %v2642 = vmul.f32 %v2572, %v2602
        %v2643 = vmul.f32 %v2573, %v2601
        %v2644 = vmul.f32 %v2574, %v2602
        %v2645 = vmul.f32 %v2575, %v2601
        %v2646 = vmul.f32 %v2576, %v2602
        %v2647 = vmul.f32 %v2577, %v2601
        %v2648 = vmul.f32 %v2578, %v2602
        %v2649 = vmul.f32 %v2579, %v2601
        %v2650 = vmul.f32 %v2580, %v2602
        %v2651 = vmul.f32 %v2581, %v2601
        %v2652 = vmul.f32 %v2582, %v2602
        %v2653 = vmul.f32 %v2583, %v2601
        %v2654 = vmul.f32 %v2584, %v2602
        %v2655 = vmul.f32 %v2585, %v2601
        %v2656 = vmul.f32 %v2586, %v2602
        %v2657 = vmul.f32 %v2587, %v2601
        %v2658 = vmul.f32 %v2588, %v2602
        %v2659 = vmul.f32 %v2589, %v2601
        %v2660 = vmul.f32 %v2590, %v2602
        %v2661 = vmul.f32 %v2591, %v2601
        %v2662 = vmul.f32 %v2592, %v2602
        %v2663 = vmul.f32 %v2593, %v2601
        %v2664 = vmul.f32 %v2594, %v2602
        %v2665 = vmul.f32 %v2595, %v2601
        %v2666 = vmul.f32 %v2596, %v2602
        %v2667 = vadd.f32 %v2276, %v2603
        %v2668 = vadd.f32 %v2277, %v2604
        %v2669 = vadd.f32 %v2278, %v2605
        %v2670 = vadd.f32 %v2279, %v2606
        %v2671 = vadd.f32 %v2280, %v2607
        %v2672 = vadd.f32 %v2281, %v2608
        %v2673 = vadd.f32 %v2282, %v2609
        %v2674 = vadd.f32 %v2283, %v2610
        %v2675 = vadd.f32 %v2284, %v2611
        %v2676 = vadd.f32 %v2285, %v2612
        %v2677 = vadd.f32 %v2286, %v2613
        %v2678 = vadd.f32 %v2287, %v2614
        %v2679 = vadd.f32 %v2288, %v2615
        %v2680 = vadd.f32 %v2289, %v2616
        %v2681 = vadd.f32 %v2290, %v2617
        %v2682 = vadd.f32 %v2291, %v2618
        %v2683 = vadd.f32 %v2292, %v2619
        %v2684 = vadd.f32 %v2293, %v2620
        %v2685 = vadd.f32 %v2294, %v2621
        %v2686 = vadd.f32 %v2295, %v2622
        %v2687 = vadd.f32 %v2296, %v2623
        %v2688 = vadd.f32 %v2297, %v2624
        %v2689 = vadd.f32 %v2298, %v2625
        %v2690 = vadd.f32 %v2299, %v2626
        %v2691 = vadd.f32 %v2300, %v2627
        %v2692 = vadd.f32 %v2301, %v2628
        %v2693 = vadd.f32 %v2302, %v2629
        %v2694 = vadd.f32 %v2303, %v2630
        %v2695 = vadd.f32 %v2304, %v2631
        %v2696 = vadd.f32 %v2305, %v2632
        %v2697 = vadd.f32 %v2306, %v2633
        %v2698 = vadd.f32 %v2307, %v2634
        %v2699 = vadd.f32 %v2308, %v2635
        %v2700 = vadd.f32 %v2309, %v2636
        %v2701 = vadd.f32 %v2310, %v2637
        %v2702 = vadd.f32 %v2311, %v2638
        %v2703 = vadd.f32 %v2312, %v2639
        %v2704 = vadd.f32 %v2313, %v2640
        %v2705 = vadd.f32 %v2314, %v2641
        %v2706 = vadd.f32 %v2315, %v2642
        %v2707 = vadd.f32 %v2316, %v2643
        %v2708 = vadd.f32 %v2317, %v2644
        %v2709 = vadd.f32 %v2318, %v2645
        %v2710 = vadd.f32 %v2319, %v2646
        %v2711 = vadd.f32 %v2320, %v2647
        %v2712 = vadd.f32 %v2321, %v2648
        %v2713 = vadd.f32 %v2322, %v2649
        %v2714 = vadd.f32 %v2323, %v2650
        %v2715 = vadd.f32 %v2324, %v2651
        %v2716 = vadd.f32 %v2325, %v2652
        %v2717 = vadd.f32 %v2326, %v2653
        %v2718 = vadd.f32 %v2327, %v2654
        %v2719 = vadd.f32 %v2328, %v2655
        %v2720 = vadd.f32 %v2329, %v2656
        %v2721 = vadd.f32 %v2330, %v2657
        %v2722 = vadd.f32 %v2331, %v2658
        %v2723 = vadd.f32 %v2332, %v2659
        %v2724 = vadd.f32 %v2333, %v2660
        %v2725 = vadd.f32 %v2334, %v2661
        %v2726 = vadd.f32 %v2335, %v2662
        %v2727 = vadd.f32 %v2336, %v2663
        %v2728 = vadd.f32 %v2337, %v2664
        %v2729 = vadd.f32 %v2338, %v2665
        %v2730 = vadd.f32 %v2339, %v2666
        %v2731 = vrot.slane %v1156, 5
        %v2732 = vrot.slane %v1269, 5
        %v2733 = vrot.slane %v1159, 5
        %v2734 = vrot.slane %v1272, 5
        %v2735 = vrot.slane %v1162, 5
        %v2736 = vrot.slane %v1275, 5
        %v2737 = vrot.slane %v1165, 5
        %v2738 = vrot.slane %v1278, 5
        %v2739 = vrot.slane %v1168, 5
        %v2740 = vrot.slane %v1281, 5
        %v2741 = vrot.slane %v1171, 5
        %v2742 = vrot.slane %v1284, 5
        %v2743 = vrot.slane %v1174, 5
        %v2744 = vrot.slane %v1287, 5
        %v2745 = vrot.slane %v1177, 5
        %v2746 = vrot.slane %v1290, 5
        %v2747 = vrot.slane %v1180, 5
        %v2748 = vrot.slane %v1293, 5
        %v2749 = vrot.slane %v1183, 5
        %v2750 = vrot.slane %v1296, 5
        %v2751 = vrot.slane %v1186, 5
        %v2752 = vrot.slane %v1299, 5
        %v2753 = vrot.slane %v1189, 5
        %v2754 = vrot.slane %v1302, 5
        %v2755 = vrot.slane %v1192, 5
        %v2756 = vrot.slane %v1305, 5
        %v2757 = vrot.slane %v1195, 5
        %v2758 = vrot.slane %v1308, 5
        %v2759 = vrot.slane %v1198, 5
        %v2760 = vrot.slane %v1311, 5
        %v2761 = vrot.slane %v1201, 5
        %v2762 = vrot.slane %v1314, 5
        %v2763 = vrot.slane %v1204, 5
        %v2764 = vrot.slane %v1317, 5
        %v2765 = vrot.slane %v1207, 5
        %v2766 = vrot.slane %v1320, 5
        %v2767 = vrot.slane %v1210, 5
        %v2768 = vrot.slane %v1323, 5
        %v2769 = vrot.slane %v1213, 5
        %v2770 = vrot.slane %v1326, 5
        %v2771 = vrot.slane %v1216, 5
        %v2772 = vrot.slane %v1329, 5
        %v2773 = vrot.slane %v1219, 5
        %v2774 = vrot.slane %v1332, 5
        %v2775 = vrot.slane %v1222, 5
        %v2776 = vrot.slane %v1335, 5
        %v2777 = vrot.slane %v1225, 5
        %v2778 = vrot.slane %v1338, 5
        %v2779 = vrot.slane %v1228, 5
        %v2780 = vrot.slane %v1341, 5
        %v2781 = vrot.slane %v1231, 5
        %v2782 = vrot.slane %v1344, 5
        %v2783 = vrot.slane %v1234, 5
        %v2784 = vrot.slane %v1347, 5
        %v2785 = vrot.slane %v1237, 5
        %v2786 = vrot.slane %v1350, 5
        %v2787 = vrot.slane %v1240, 5
        %v2788 = vrot.slane %v1353, 5
        %v2789 = vrot.slane %v1243, 5
        %v2790 = vrot.slane %v1356, 5
        %v2791 = vrot.slane %v1246, 5
        %v2792 = vrot.slane %v1359, 5
        %v2793 = vrot.slane %v1249, 5
        %v2794 = vrot.slane %v1362, 5
        %vm2795 = vcmp.lt.s32.totalorder %v1366, 3
        %v2796 = vsel %vm2795, %v2791, %v2793
        %v2797 = vsel %vm2795, %v2792, %v2794
        %v2798 = vsel %vm2795, %v2789, %v2791
        %v2799 = vsel %vm2795, %v2790, %v2792
        %v2800 = vsel %vm2795, %v2787, %v2789
        %v2801 = vsel %vm2795, %v2788, %v2790
        %v2802 = vsel %vm2795, %v2785, %v2787
        %v2803 = vsel %vm2795, %v2786, %v2788
        %v2804 = vsel %vm2795, %v2783, %v2785
        %v2805 = vsel %vm2795, %v2784, %v2786
        %v2806 = vsel %vm2795, %v2781, %v2783
        %v2807 = vsel %vm2795, %v2782, %v2784
        %v2808 = vsel %vm2795, %v2779, %v2781
        %v2809 = vsel %vm2795, %v2780, %v2782
        %v2810 = vsel %vm2795, %v2777, %v2779
        %v2811 = vsel %vm2795, %v2778, %v2780
        %v2812 = vsel %vm2795, %v2775, %v2777
        %v2813 = vsel %vm2795, %v2776, %v2778
        %v2814 = vsel %vm2795, %v2773, %v2775
        %v2815 = vsel %vm2795, %v2774, %v2776
        %v2816 = vsel %vm2795, %v2771, %v2773
        %v2817 = vsel %vm2795, %v2772, %v2774
        %v2818 = vsel %vm2795, %v2769, %v2771
        %v2819 = vsel %vm2795, %v2770, %v2772
        %v2820 = vsel %vm2795, %v2767, %v2769
        %v2821 = vsel %vm2795, %v2768, %v2770
        %v2822 = vsel %vm2795, %v2765, %v2767
        %v2823 = vsel %vm2795, %v2766, %v2768
        %v2824 = vsel %vm2795, %v2763, %v2765
        %v2825 = vsel %vm2795, %v2764, %v2766
        %v2826 = vsel %vm2795, %v2761, %v2763
        %v2827 = vsel %vm2795, %v2762, %v2764
        %v2828 = vsel %vm2795, %v2759, %v2761
        %v2829 = vsel %vm2795, %v2760, %v2762
        %v2830 = vsel %vm2795, %v2757, %v2759
        %v2831 = vsel %vm2795, %v2758, %v2760
        %v2832 = vsel %vm2795, %v2755, %v2757
        %v2833 = vsel %vm2795, %v2756, %v2758
        %v2834 = vsel %vm2795, %v2753, %v2755
        %v2835 = vsel %vm2795, %v2754, %v2756
        %v2836 = vsel %vm2795, %v2751, %v2753
        %v2837 = vsel %vm2795, %v2752, %v2754
        %v2838 = vsel %vm2795, %v2749, %v2751
        %v2839 = vsel %vm2795, %v2750, %v2752
        %v2840 = vsel %vm2795, %v2747, %v2749
        %v2841 = vsel %vm2795, %v2748, %v2750
        %v2842 = vsel %vm2795, %v2745, %v2747
        %v2843 = vsel %vm2795, %v2746, %v2748
        %v2844 = vsel %vm2795, %v2743, %v2745
        %v2845 = vsel %vm2795, %v2744, %v2746
        %v2846 = vsel %vm2795, %v2741, %v2743
        %v2847 = vsel %vm2795, %v2742, %v2744
        %v2848 = vsel %vm2795, %v2739, %v2741
        %v2849 = vsel %vm2795, %v2740, %v2742
        %v2850 = vsel %vm2795, %v2737, %v2739
        %v2851 = vsel %vm2795, %v2738, %v2740
        %v2852 = vsel %vm2795, %v2735, %v2737
        %v2853 = vsel %vm2795, %v2736, %v2738
        %v2854 = vsel %vm2795, %v2733, %v2735
        %v2855 = vsel %vm2795, %v2734, %v2736
        %v2856 = vsel %vm2795, %v2731, %v2733
        %v2857 = vsel %vm2795, %v2732, %v2734
        %v2858 = vsel %vm2795, %v2793, %v2731
        %v2859 = vsel %vm2795, %v2794, %v2732
        %v2860 = vsel %vm1846, 1, 0
        %v2861 = vsel %vm1847, 1, 0
        %v2862 = vsel %vm1848, 1, 0
        %v2863 = vsel %vm1849, 1, 0
        %v2864 = vsel %vm1850, 1, 0
        %v2865 = vsel %vm1851, 1, 0
        %v2866 = vsel %vm1852, 1, 0
        %v2867 = vsel %vm1853, 1, 0
        %v2868 = vsel %vm1854, 1, 0
        %v2869 = vsel %vm1855, 1, 0
        %v2870 = vsel %vm1856, 1, 0
        %v2871 = vsel %vm1857, 1, 0
        %v2872 = vsel %vm1858, 1, 0
        %v2873 = vsel %vm1859, 1, 0
        %v2874 = vsel %vm1860, 1, 0
        %v2875 = vsel %vm1861, 1, 0
        %v2876 = vsel %vm1862, 1, 0
        %v2877 = vsel %vm1863, 1, 0
        %v2878 = vsel %vm1864, 1, 0
        %v2879 = vsel %vm1865, 1, 0
        %v2880 = vsel %vm1866, 1, 0
        %v2881 = vsel %vm1867, 1, 0
        %v2882 = vsel %vm1868, 1, 0
        %v2883 = vsel %vm1869, 1, 0
        %v2884 = vsel %vm1870, 1, 0
        %v2885 = vsel %vm1871, 1, 0
        %v2886 = vsel %vm1872, 1, 0
        %v2887 = vsel %vm1873, 1, 0
        %v2888 = vsel %vm1874, 1, 0
        %v2889 = vsel %vm1875, 1, 0
        %v2890 = vsel %vm1876, 1, 0
        %v2891 = vsel %vm1877, 1, 0
        %vm2892 = vcmp.eq.s32.totalorder %v2860, 1
        %vm2893 = vcmp.eq.s32.totalorder %v2861, 1
        %vm2894 = vcmp.eq.s32.totalorder %v2862, 1
        %vm2895 = vcmp.eq.s32.totalorder %v2863, 1
        %vm2896 = vcmp.eq.s32.totalorder %v2864, 1
        %vm2897 = vcmp.eq.s32.totalorder %v2865, 1
        %vm2898 = vcmp.eq.s32.totalorder %v2866, 1
        %vm2899 = vcmp.eq.s32.totalorder %v2867, 1
        %vm2900 = vcmp.eq.s32.totalorder %v2868, 1
        %vm2901 = vcmp.eq.s32.totalorder %v2869, 1
        %vm2902 = vcmp.eq.s32.totalorder %v2870, 1
        %vm2903 = vcmp.eq.s32.totalorder %v2871, 1
        %vm2904 = vcmp.eq.s32.totalorder %v2872, 1
        %vm2905 = vcmp.eq.s32.totalorder %v2873, 1
        %vm2906 = vcmp.eq.s32.totalorder %v2874, 1
        %vm2907 = vcmp.eq.s32.totalorder %v2875, 1
        %vm2908 = vcmp.eq.s32.totalorder %v2876, 1
        %vm2909 = vcmp.eq.s32.totalorder %v2877, 1
        %vm2910 = vcmp.eq.s32.totalorder %v2878, 1
        %vm2911 = vcmp.eq.s32.totalorder %v2879, 1
        %vm2912 = vcmp.eq.s32.totalorder %v2880, 1
        %vm2913 = vcmp.eq.s32.totalorder %v2881, 1
        %vm2914 = vcmp.eq.s32.totalorder %v2882, 1
        %vm2915 = vcmp.eq.s32.totalorder %v2883, 1
        %vm2916 = vcmp.eq.s32.totalorder %v2884, 1
        %vm2917 = vcmp.eq.s32.totalorder %v2885, 1
        %vm2918 = vcmp.eq.s32.totalorder %v2886, 1
        %vm2919 = vcmp.eq.s32.totalorder %v2887, 1
        %vm2920 = vcmp.eq.s32.totalorder %v2888, 1
        %vm2921 = vcmp.eq.s32.totalorder %v2889, 1
        %vm2922 = vcmp.eq.s32.totalorder %v2890, 1
        %vm2923 = vcmp.eq.s32.totalorder %v2891, 1
        %v2924 = vsel %vm2892, %v2858, 0.0
        %v2925 = vsel %vm2892, %v2859, 0.0
        %v2926 = vsel %vm2893, %v2856, 0.0
        %v2927 = vsel %vm2893, %v2857, 0.0
        %v2928 = vsel %vm2894, %v2854, 0.0
        %v2929 = vsel %vm2894, %v2855, 0.0
        %v2930 = vsel %vm2895, %v2852, 0.0
        %v2931 = vsel %vm2895, %v2853, 0.0
        %v2932 = vsel %vm2896, %v2850, 0.0
        %v2933 = vsel %vm2896, %v2851, 0.0
        %v2934 = vsel %vm2897, %v2848, 0.0
        %v2935 = vsel %vm2897, %v2849, 0.0
        %v2936 = vsel %vm2898, %v2846, 0.0
        %v2937 = vsel %vm2898, %v2847, 0.0
        %v2938 = vsel %vm2899, %v2844, 0.0
        %v2939 = vsel %vm2899, %v2845, 0.0
        %v2940 = vsel %vm2900, %v2842, 0.0
        %v2941 = vsel %vm2900, %v2843, 0.0
        %v2942 = vsel %vm2901, %v2840, 0.0
        %v2943 = vsel %vm2901, %v2841, 0.0
        %v2944 = vsel %vm2902, %v2838, 0.0
        %v2945 = vsel %vm2902, %v2839, 0.0
        %v2946 = vsel %vm2903, %v2836, 0.0
        %v2947 = vsel %vm2903, %v2837, 0.0
        %v2948 = vsel %vm2904, %v2834, 0.0
        %v2949 = vsel %vm2904, %v2835, 0.0
        %v2950 = vsel %vm2905, %v2832, 0.0
        %v2951 = vsel %vm2905, %v2833, 0.0
        %v2952 = vsel %vm2906, %v2830, 0.0
        %v2953 = vsel %vm2906, %v2831, 0.0
        %v2954 = vsel %vm2907, %v2828, 0.0
        %v2955 = vsel %vm2907, %v2829, 0.0
        %v2956 = vsel %vm2908, %v2826, 0.0
        %v2957 = vsel %vm2908, %v2827, 0.0
        %v2958 = vsel %vm2909, %v2824, 0.0
        %v2959 = vsel %vm2909, %v2825, 0.0
        %v2960 = vsel %vm2910, %v2822, 0.0
        %v2961 = vsel %vm2910, %v2823, 0.0
        %v2962 = vsel %vm2911, %v2820, 0.0
        %v2963 = vsel %vm2911, %v2821, 0.0
        %v2964 = vsel %vm2912, %v2818, 0.0
        %v2965 = vsel %vm2912, %v2819, 0.0
        %v2966 = vsel %vm2913, %v2816, 0.0
        %v2967 = vsel %vm2913, %v2817, 0.0
        %v2968 = vsel %vm2914, %v2814, 0.0
        %v2969 = vsel %vm2914, %v2815, 0.0
        %v2970 = vsel %vm2915, %v2812, 0.0
        %v2971 = vsel %vm2915, %v2813, 0.0
        %v2972 = vsel %vm2916, %v2810, 0.0
        %v2973 = vsel %vm2916, %v2811, 0.0
        %v2974 = vsel %vm2917, %v2808, 0.0
        %v2975 = vsel %vm2917, %v2809, 0.0
        %v2976 = vsel %vm2918, %v2806, 0.0
        %v2977 = vsel %vm2918, %v2807, 0.0
        %v2978 = vsel %vm2919, %v2804, 0.0
        %v2979 = vsel %vm2919, %v2805, 0.0
        %v2980 = vsel %vm2920, %v2802, 0.0
        %v2981 = vsel %vm2920, %v2803, 0.0
        %v2982 = vsel %vm2921, %v2800, 0.0
        %v2983 = vsel %vm2921, %v2801, 0.0
        %v2984 = vsel %vm2922, %v2798, 0.0
        %v2985 = vsel %vm2922, %v2799, 0.0
        %v2986 = vsel %vm2923, %v2796, 0.0
        %v2987 = vsel %vm2923, %v2797, 0.0
        %v2988 = vperm.slane %v1364, 0
        %v2989 = vperm.slane %v1364, 4
        %v2992 = vperm.slane %v2988, 0
        %v2993 = vperm.slane %v2989, 0
        %v2994 = vmul.f32 %v2924, %v2992
        %v2995 = vmul.f32 %v2925, %v2993
        %v2996 = vmul.f32 %v2926, %v2992
        %v2997 = vmul.f32 %v2927, %v2993
        %v2998 = vmul.f32 %v2928, %v2992
        %v2999 = vmul.f32 %v2929, %v2993
        %v3000 = vmul.f32 %v2930, %v2992
        %v3001 = vmul.f32 %v2931, %v2993
        %v3002 = vmul.f32 %v2932, %v2992
        %v3003 = vmul.f32 %v2933, %v2993
        %v3004 = vmul.f32 %v2934, %v2992
        %v3005 = vmul.f32 %v2935, %v2993
        %v3006 = vmul.f32 %v2936, %v2992
        %v3007 = vmul.f32 %v2937, %v2993
        %v3008 = vmul.f32 %v2938, %v2992
        %v3009 = vmul.f32 %v2939, %v2993
        %v3010 = vmul.f32 %v2940, %v2992
        %v3011 = vmul.f32 %v2941, %v2993
        %v3012 = vmul.f32 %v2942, %v2992
        %v3013 = vmul.f32 %v2943, %v2993
        %v3014 = vmul.f32 %v2944, %v2992
        %v3015 = vmul.f32 %v2945, %v2993
        %v3016 = vmul.f32 %v2946, %v2992
        %v3017 = vmul.f32 %v2947, %v2993
        %v3018 = vmul.f32 %v2948, %v2992
        %v3019 = vmul.f32 %v2949, %v2993
        %v3020 = vmul.f32 %v2950, %v2992
        %v3021 = vmul.f32 %v2951, %v2993
        %v3022 = vmul.f32 %v2952, %v2992
        %v3023 = vmul.f32 %v2953, %v2993
        %v3024 = vmul.f32 %v2954, %v2992
        %v3025 = vmul.f32 %v2955, %v2993
        %v3026 = vmul.f32 %v2956, %v2992
        %v3027 = vmul.f32 %v2957, %v2993
        %v3028 = vmul.f32 %v2958, %v2992
        %v3029 = vmul.f32 %v2959, %v2993
        %v3030 = vmul.f32 %v2960, %v2992
        %v3031 = vmul.f32 %v2961, %v2993
        %v3032 = vmul.f32 %v2962, %v2992
        %v3033 = vmul.f32 %v2963, %v2993
        %v3034 = vmul.f32 %v2964, %v2992
        %v3035 = vmul.f32 %v2965, %v2993
        %v3036 = vmul.f32 %v2966, %v2992
        %v3037 = vmul.f32 %v2967, %v2993
        %v3038 = vmul.f32 %v2968, %v2992
        %v3039 = vmul.f32 %v2969, %v2993
        %v3040 = vmul.f32 %v2970, %v2992
        %v3041 = vmul.f32 %v2971, %v2993
        %v3042 = vmul.f32 %v2972, %v2992
        %v3043 = vmul.f32 %v2973, %v2993
        %v3044 = vmul.f32 %v2974, %v2992
        %v3045 = vmul.f32 %v2975, %v2993
        %v3046 = vmul.f32 %v2976, %v2992
        %v3047 = vmul.f32 %v2977, %v2993
        %v3048 = vmul.f32 %v2978, %v2992
        %v3049 = vmul.f32 %v2979, %v2993
        %v3050 = vmul.f32 %v2980, %v2992
        %v3051 = vmul.f32 %v2981, %v2993
        %v3052 = vmul.f32 %v2982, %v2992
        %v3053 = vmul.f32 %v2983, %v2993
        %v3054 = vmul.f32 %v2984, %v2992
        %v3055 = vmul.f32 %v2985, %v2993
        %v3056 = vmul.f32 %v2986, %v2992
        %v3057 = vmul.f32 %v2987, %v2993
        %v3058 = vadd.f32 %v2667, %v2994
        %v3059 = vadd.f32 %v2668, %v2995
        %v3060 = vadd.f32 %v2669, %v2996
        %v3061 = vadd.f32 %v2670, %v2997
        %v3062 = vadd.f32 %v2671, %v2998
        %v3063 = vadd.f32 %v2672, %v2999
        %v3064 = vadd.f32 %v2673, %v3000
        %v3065 = vadd.f32 %v2674, %v3001
        %v3066 = vadd.f32 %v2675, %v3002
        %v3067 = vadd.f32 %v2676, %v3003
        %v3068 = vadd.f32 %v2677, %v3004
        %v3069 = vadd.f32 %v2678, %v3005
        %v3070 = vadd.f32 %v2679, %v3006
        %v3071 = vadd.f32 %v2680, %v3007
        %v3072 = vadd.f32 %v2681, %v3008
        %v3073 = vadd.f32 %v2682, %v3009
        %v3074 = vadd.f32 %v2683, %v3010
        %v3075 = vadd.f32 %v2684, %v3011
        %v3076 = vadd.f32 %v2685, %v3012
        %v3077 = vadd.f32 %v2686, %v3013
        %v3078 = vadd.f32 %v2687, %v3014
        %v3079 = vadd.f32 %v2688, %v3015
        %v3080 = vadd.f32 %v2689, %v3016
        %v3081 = vadd.f32 %v2690, %v3017
        %v3082 = vadd.f32 %v2691, %v3018
        %v3083 = vadd.f32 %v2692, %v3019
        %v3084 = vadd.f32 %v2693, %v3020
        %v3085 = vadd.f32 %v2694, %v3021
        %v3086 = vadd.f32 %v2695, %v3022
        %v3087 = vadd.f32 %v2696, %v3023
        %v3088 = vadd.f32 %v2697, %v3024
        %v3089 = vadd.f32 %v2698, %v3025
        %v3090 = vadd.f32 %v2699, %v3026
        %v3091 = vadd.f32 %v2700, %v3027
        %v3092 = vadd.f32 %v2701, %v3028
        %v3093 = vadd.f32 %v2702, %v3029
        %v3094 = vadd.f32 %v2703, %v3030
        %v3095 = vadd.f32 %v2704, %v3031
        %v3096 = vadd.f32 %v2705, %v3032
        %v3097 = vadd.f32 %v2706, %v3033
        %v3098 = vadd.f32 %v2707, %v3034
        %v3099 = vadd.f32 %v2708, %v3035
        %v3100 = vadd.f32 %v2709, %v3036
        %v3101 = vadd.f32 %v2710, %v3037
        %v3102 = vadd.f32 %v2711, %v3038
        %v3103 = vadd.f32 %v2712, %v3039
        %v3104 = vadd.f32 %v2713, %v3040
        %v3105 = vadd.f32 %v2714, %v3041
        %v3106 = vadd.f32 %v2715, %v3042
        %v3107 = vadd.f32 %v2716, %v3043
        %v3108 = vadd.f32 %v2717, %v3044
        %v3109 = vadd.f32 %v2718, %v3045
        %v3110 = vadd.f32 %v2719, %v3046
        %v3111 = vadd.f32 %v2720, %v3047
        %v3112 = vadd.f32 %v2721, %v3048
        %v3113 = vadd.f32 %v2722, %v3049
        %v3114 = vadd.f32 %v2723, %v3050
        %v3115 = vadd.f32 %v2724, %v3051
        %v3116 = vadd.f32 %v2725, %v3052
        %v3117 = vadd.f32 %v2726, %v3053
        %v3118 = vadd.f32 %v2727, %v3054
        %v3119 = vadd.f32 %v2728, %v3055
        %v3120 = vadd.f32 %v2729, %v3056
        %v3121 = vadd.f32 %v2730, %v3057
        %v3122 = vsub.f32 0.0, %v3058
        %v3123 = vsub.f32 0.0, %v3059
        %v3124 = vsub.f32 0.0, %v3060
        %v3125 = vsub.f32 0.0, %v3061
        %v3126 = vsub.f32 0.0, %v3062
        %v3127 = vsub.f32 0.0, %v3063
        %v3128 = vsub.f32 0.0, %v3064
        %v3129 = vsub.f32 0.0, %v3065
        %v3130 = vsub.f32 0.0, %v3066
        %v3131 = vsub.f32 0.0, %v3067
        %v3132 = vsub.f32 0.0, %v3068
        %v3133 = vsub.f32 0.0, %v3069
        %v3134 = vsub.f32 0.0, %v3070
        %v3135 = vsub.f32 0.0, %v3071
        %v3136 = vsub.f32 0.0, %v3072
        %v3137 = vsub.f32 0.0, %v3073
        %v3138 = vsub.f32 0.0, %v3074
        %v3139 = vsub.f32 0.0, %v3075
        %v3140 = vsub.f32 0.0, %v3076
        %v3141 = vsub.f32 0.0, %v3077
        %v3142 = vsub.f32 0.0, %v3078
        %v3143 = vsub.f32 0.0, %v3079
        %v3144 = vsub.f32 0.0, %v3080
        %v3145 = vsub.f32 0.0, %v3081
        %v3146 = vsub.f32 0.0, %v3082
        %v3147 = vsub.f32 0.0, %v3083
        %v3148 = vsub.f32 0.0, %v3084
        %v3149 = vsub.f32 0.0, %v3085
        %v3150 = vsub.f32 0.0, %v3086
        %v3151 = vsub.f32 0.0, %v3087
        %v3152 = vsub.f32 0.0, %v3088
        %v3153 = vsub.f32 0.0, %v3089
        %v3154 = vsub.f32 0.0, %v3090
        %v3155 = vsub.f32 0.0, %v3091
        %v3156 = vsub.f32 0.0, %v3092
        %v3157 = vsub.f32 0.0, %v3093
        %v3158 = vsub.f32 0.0, %v3094
        %v3159 = vsub.f32 0.0, %v3095
        %v3160 = vsub.f32 0.0, %v3096
        %v3161 = vsub.f32 0.0, %v3097
        %v3162 = vsub.f32 0.0, %v3098
        %v3163 = vsub.f32 0.0, %v3099
        %v3164 = vsub.f32 0.0, %v3100
        %v3165 = vsub.f32 0.0, %v3101
        %v3166 = vsub.f32 0.0, %v3102
        %v3167 = vsub.f32 0.0, %v3103
        %v3168 = vsub.f32 0.0, %v3104
        %v3169 = vsub.f32 0.0, %v3105
        %v3170 = vsub.f32 0.0, %v3106
        %v3171 = vsub.f32 0.0, %v3107
        %v3172 = vsub.f32 0.0, %v3108
        %v3173 = vsub.f32 0.0, %v3109
        %v3174 = vsub.f32 0.0, %v3110
        %v3175 = vsub.f32 0.0, %v3111
        %v3176 = vsub.f32 0.0, %v3112
        %v3177 = vsub.f32 0.0, %v3113
        %v3178 = vsub.f32 0.0, %v3114
        %v3179 = vsub.f32 0.0, %v3115
        %v3180 = vsub.f32 0.0, %v3116
        %v3181 = vsub.f32 0.0, %v3117
        %v3182 = vsub.f32 0.0, %v3118
        %v3183 = vsub.f32 0.0, %v3119
        %v3184 = vsub.f32 0.0, %v3120
        %v3185 = vsub.f32 0.0, %v3121
        %v3186 = vmul.f32 %v3122, 1.442695
        %v3187 = vpow.pop %v3186
        %v3188 = vmul.f32 %v3123, 1.442695
        %v3189 = vpow.pop %v3188
        %v3190 = vmul.f32 %v3124, 1.442695
        %v3191 = vpow.pop %v3190
        %v3192 = vmul.f32 %v3125, 1.442695
        %v3193 = vpow.pop %v3192
        %v3194 = vmul.f32 %v3126, 1.442695
        %v3195 = vpow.pop %v3194
        %v3196 = vmul.f32 %v3127, 1.442695
        %v3197 = vpow.pop %v3196
        %v3198 = vmul.f32 %v3128, 1.442695
        %v3199 = vpow.pop %v3198
        %v3200 = vmul.f32 %v3129, 1.442695
        %v3201 = vpow.pop %v3200
        %v3202 = vmul.f32 %v3130, 1.442695
        %v3203 = vpow.pop %v3202
        %v3204 = vmul.f32 %v3131, 1.442695
        %v3205 = vpow.pop %v3204
        %v3206 = vmul.f32 %v3132, 1.442695
        %v3207 = vpow.pop %v3206
        %v3208 = vmul.f32 %v3133, 1.442695
        %v3209 = vpow.pop %v3208
        %v3210 = vmul.f32 %v3134, 1.442695
        %v3211 = vpow.pop %v3210
        %v3212 = vmul.f32 %v3135, 1.442695
        %v3213 = vpow.pop %v3212
        %v3214 = vmul.f32 %v3136, 1.442695
        %v3215 = vpow.pop %v3214
        %v3216 = vmul.f32 %v3137, 1.442695
        %v3217 = vpow.pop %v3216
        %v3218 = vmul.f32 %v3138, 1.442695
        %v3219 = vpow.pop %v3218
        %v3220 = vmul.f32 %v3139, 1.442695
        %v3221 = vpow.pop %v3220
        %v3222 = vmul.f32 %v3140, 1.442695
        %v3223 = vpow.pop %v3222
        %v3224 = vmul.f32 %v3141, 1.442695
        %v3225 = vpow.pop %v3224
        %v3226 = vmul.f32 %v3142, 1.442695
        %v3227 = vpow.pop %v3226
        %v3228 = vmul.f32 %v3143, 1.442695
        %v3229 = vpow.pop %v3228
        %v3230 = vmul.f32 %v3144, 1.442695
        %v3231 = vpow.pop %v3230
        %v3232 = vmul.f32 %v3145, 1.442695
        %v3233 = vpow.pop %v3232
        %v3234 = vmul.f32 %v3146, 1.442695
        %v3235 = vpow.pop %v3234
        %v3236 = vmul.f32 %v3147, 1.442695
        %v3237 = vpow.pop %v3236
        %v3238 = vmul.f32 %v3148, 1.442695
        %v3239 = vpow.pop %v3238
        %v3240 = vmul.f32 %v3149, 1.442695
        %v3241 = vpow.pop %v3240
        %v3242 = vmul.f32 %v3150, 1.442695
        %v3243 = vpow.pop %v3242
        %v3244 = vmul.f32 %v3151, 1.442695
        %v3245 = vpow.pop %v3244
        %v3246 = vmul.f32 %v3152, 1.442695
        %v3247 = vpow.pop %v3246
        %v3248 = vmul.f32 %v3153, 1.442695
        %v3249 = vpow.pop %v3248
        %v3250 = vmul.f32 %v3154, 1.442695
        %v3251 = vpow.pop %v3250
        %v3252 = vmul.f32 %v3155, 1.442695
        %v3253 = vpow.pop %v3252
        %v3254 = vmul.f32 %v3156, 1.442695
        %v3255 = vpow.pop %v3254
        %v3256 = vmul.f32 %v3157, 1.442695
        %v3257 = vpow.pop %v3256
        %v3258 = vmul.f32 %v3158, 1.442695
        %v3259 = vpow.pop %v3258
        %v3260 = vmul.f32 %v3159, 1.442695
        %v3261 = vpow.pop %v3260
        %v3262 = vmul.f32 %v3160, 1.442695
        %v3263 = vpow.pop %v3262
        %v3264 = vmul.f32 %v3161, 1.442695
        %v3265 = vpow.pop %v3264
        %v3266 = vmul.f32 %v3162, 1.442695
        %v3267 = vpow.pop %v3266
        %v3268 = vmul.f32 %v3163, 1.442695
        %v3269 = vpow.pop %v3268
        %v3270 = vmul.f32 %v3164, 1.442695
        %v3271 = vpow.pop %v3270
        %v3272 = vmul.f32 %v3165, 1.442695
        %v3273 = vpow.pop %v3272
        %v3274 = vmul.f32 %v3166, 1.442695
        %v3275 = vpow.pop %v3274
        %v3276 = vmul.f32 %v3167, 1.442695
        %v3277 = vpow.pop %v3276
        %v3278 = vmul.f32 %v3168, 1.442695
        %v3279 = vpow.pop %v3278
        %v3280 = vmul.f32 %v3169, 1.442695
        %v3281 = vpow.pop %v3280
        %v3282 = vmul.f32 %v3170, 1.442695
        %v3283 = vpow.pop %v3282
        %v3284 = vmul.f32 %v3171, 1.442695
        %v3285 = vpow.pop %v3284
        %v3286 = vmul.f32 %v3172, 1.442695
        %v3287 = vpow.pop %v3286
        %v3288 = vmul.f32 %v3173, 1.442695
        %v3289 = vpow.pop %v3288
        %v3290 = vmul.f32 %v3174, 1.442695
        %v3291 = vpow.pop %v3290
        %v3292 = vmul.f32 %v3175, 1.442695
        %v3293 = vpow.pop %v3292
        %v3294 = vmul.f32 %v3176, 1.442695
        %v3295 = vpow.pop %v3294
        %v3296 = vmul.f32 %v3177, 1.442695
        %v3297 = vpow.pop %v3296
        %v3298 = vmul.f32 %v3178, 1.442695
        %v3299 = vpow.pop %v3298
        %v3300 = vmul.f32 %v3179, 1.442695
        %v3301 = vpow.pop %v3300
        %v3302 = vmul.f32 %v3180, 1.442695
        %v3303 = vpow.pop %v3302
        %v3304 = vmul.f32 %v3181, 1.442695
        %v3305 = vpow.pop %v3304
        %v3306 = vmul.f32 %v3182, 1.442695
        %v3307 = vpow.pop %v3306
        %v3308 = vmul.f32 %v3183, 1.442695
        %v3309 = vpow.pop %v3308
        %v3310 = vmul.f32 %v3184, 1.442695
        %v3311 = vpow.pop %v3310
        %v3312 = vmul.f32 %v3185, 1.442695
        %v3313 = vpow.pop %v3312
        %v3314 = vadd.f32 %v3187, 1.0
        %v3315 = vadd.f32 %v3189, 1.0
        %v3316 = vadd.f32 %v3191, 1.0
        %v3317 = vadd.f32 %v3193, 1.0
        %v3318 = vadd.f32 %v3195, 1.0
        %v3319 = vadd.f32 %v3197, 1.0
        %v3320 = vadd.f32 %v3199, 1.0
        %v3321 = vadd.f32 %v3201, 1.0
        %v3322 = vadd.f32 %v3203, 1.0
        %v3323 = vadd.f32 %v3205, 1.0
        %v3324 = vadd.f32 %v3207, 1.0
        %v3325 = vadd.f32 %v3209, 1.0
        %v3326 = vadd.f32 %v3211, 1.0
        %v3327 = vadd.f32 %v3213, 1.0
        %v3328 = vadd.f32 %v3215, 1.0
        %v3329 = vadd.f32 %v3217, 1.0
        %v3330 = vadd.f32 %v3219, 1.0
        %v3331 = vadd.f32 %v3221, 1.0
        %v3332 = vadd.f32 %v3223, 1.0
        %v3333 = vadd.f32 %v3225, 1.0
        %v3334 = vadd.f32 %v3227, 1.0
        %v3335 = vadd.f32 %v3229, 1.0
        %v3336 = vadd.f32 %v3231, 1.0
        %v3337 = vadd.f32 %v3233, 1.0
        %v3338 = vadd.f32 %v3235, 1.0
        %v3339 = vadd.f32 %v3237, 1.0
        %v3340 = vadd.f32 %v3239, 1.0
        %v3341 = vadd.f32 %v3241, 1.0
        %v3342 = vadd.f32 %v3243, 1.0
        %v3343 = vadd.f32 %v3245, 1.0
        %v3344 = vadd.f32 %v3247, 1.0
        %v3345 = vadd.f32 %v3249, 1.0
        %v3346 = vadd.f32 %v3251, 1.0
        %v3347 = vadd.f32 %v3253, 1.0
        %v3348 = vadd.f32 %v3255, 1.0
        %v3349 = vadd.f32 %v3257, 1.0
        %v3350 = vadd.f32 %v3259, 1.0
        %v3351 = vadd.f32 %v3261, 1.0
        %v3352 = vadd.f32 %v3263, 1.0
        %v3353 = vadd.f32 %v3265, 1.0
        %v3354 = vadd.f32 %v3267, 1.0
        %v3355 = vadd.f32 %v3269, 1.0
        %v3356 = vadd.f32 %v3271, 1.0
        %v3357 = vadd.f32 %v3273, 1.0
        %v3358 = vadd.f32 %v3275, 1.0
        %v3359 = vadd.f32 %v3277, 1.0
        %v3360 = vadd.f32 %v3279, 1.0
        %v3361 = vadd.f32 %v3281, 1.0
        %v3362 = vadd.f32 %v3283, 1.0
        %v3363 = vadd.f32 %v3285, 1.0
        %v3364 = vadd.f32 %v3287, 1.0
        %v3365 = vadd.f32 %v3289, 1.0
        %v3366 = vadd.f32 %v3291, 1.0
        %v3367 = vadd.f32 %v3293, 1.0
        %v3368 = vadd.f32 %v3295, 1.0
        %v3369 = vadd.f32 %v3297, 1.0
        %v3370 = vadd.f32 %v3299, 1.0
        %v3371 = vadd.f32 %v3301, 1.0
        %v3372 = vadd.f32 %v3303, 1.0
        %v3373 = vadd.f32 %v3305, 1.0
        %v3374 = vadd.f32 %v3307, 1.0
        %v3375 = vadd.f32 %v3309, 1.0
        %v3376 = vadd.f32 %v3311, 1.0
        %v3377 = vadd.f32 %v3313, 1.0
        %v3378 = vrcp.pop %v3314
        %v3379 = vrcp.pop %v3315
        %v3380 = vrcp.pop %v3316
        %v3381 = vrcp.pop %v3317
        %v3382 = vrcp.pop %v3318
        %v3383 = vrcp.pop %v3319
        %v3384 = vrcp.pop %v3320
        %v3385 = vrcp.pop %v3321
        %v3386 = vrcp.pop %v3322
        %v3387 = vrcp.pop %v3323
        %v3388 = vrcp.pop %v3324
        %v3389 = vrcp.pop %v3325
        %v3390 = vrcp.pop %v3326
        %v3391 = vrcp.pop %v3327
        %v3392 = vrcp.pop %v3328
        %v3393 = vrcp.pop %v3329
        %v3394 = vrcp.pop %v3330
        %v3395 = vrcp.pop %v3331
        %v3396 = vrcp.pop %v3332
        %v3397 = vrcp.pop %v3333
        %v3398 = vrcp.pop %v3334
        %v3399 = vrcp.pop %v3335
        %v3400 = vrcp.pop %v3336
        %v3401 = vrcp.pop %v3337
        %v3402 = vrcp.pop %v3338
        %v3403 = vrcp.pop %v3339
        %v3404 = vrcp.pop %v3340
        %v3405 = vrcp.pop %v3341
        %v3406 = vrcp.pop %v3342
        %v3407 = vrcp.pop %v3343
        %v3408 = vrcp.pop %v3344
        %v3409 = vrcp.pop %v3345
        %v3410 = vrcp.pop %v3346
        %v3411 = vrcp.pop %v3347
        %v3412 = vrcp.pop %v3348
        %v3413 = vrcp.pop %v3349
        %v3414 = vrcp.pop %v3350
        %v3415 = vrcp.pop %v3351
        %v3416 = vrcp.pop %v3352
        %v3417 = vrcp.pop %v3353
        %v3418 = vrcp.pop %v3354
        %v3419 = vrcp.pop %v3355
        %v3420 = vrcp.pop %v3356
        %v3421 = vrcp.pop %v3357
        %v3422 = vrcp.pop %v3358
        %v3423 = vrcp.pop %v3359
        %v3424 = vrcp.pop %v3360
        %v3425 = vrcp.pop %v3361
        %v3426 = vrcp.pop %v3362
        %v3427 = vrcp.pop %v3363
        %v3428 = vrcp.pop %v3364
        %v3429 = vrcp.pop %v3365
        %v3430 = vrcp.pop %v3366
        %v3431 = vrcp.pop %v3367
        %v3432 = vrcp.pop %v3368
        %v3433 = vrcp.pop %v3369
        %v3434 = vrcp.pop %v3370
        %v3435 = vrcp.pop %v3371
        %v3436 = vrcp.pop %v3372
        %v3437 = vrcp.pop %v3373
        %v3438 = vrcp.pop %v3374
        %v3439 = vrcp.pop %v3375
        %v3440 = vrcp.pop %v3376
        %v3441 = vrcp.pop %v3377
        %v3442 = vmul.f32 %v3058, %v3378
        %v3443 = vmul.f32 %v3059, %v3379
        %v3444 = vmul.f32 %v3060, %v3380
        %v3445 = vmul.f32 %v3061, %v3381
        %v3446 = vmul.f32 %v3062, %v3382
        %v3447 = vmul.f32 %v3063, %v3383
        %v3448 = vmul.f32 %v3064, %v3384
        %v3449 = vmul.f32 %v3065, %v3385
        %v3450 = vmul.f32 %v3066, %v3386
        %v3451 = vmul.f32 %v3067, %v3387
        %v3452 = vmul.f32 %v3068, %v3388
        %v3453 = vmul.f32 %v3069, %v3389
        %v3454 = vmul.f32 %v3070, %v3390
        %v3455 = vmul.f32 %v3071, %v3391
        %v3456 = vmul.f32 %v3072, %v3392
        %v3457 = vmul.f32 %v3073, %v3393
        %v3458 = vmul.f32 %v3074, %v3394
        %v3459 = vmul.f32 %v3075, %v3395
        %v3460 = vmul.f32 %v3076, %v3396
        %v3461 = vmul.f32 %v3077, %v3397
        %v3462 = vmul.f32 %v3078, %v3398
        %v3463 = vmul.f32 %v3079, %v3399
        %v3464 = vmul.f32 %v3080, %v3400
        %v3465 = vmul.f32 %v3081, %v3401
        %v3466 = vmul.f32 %v3082, %v3402
        %v3467 = vmul.f32 %v3083, %v3403
        %v3468 = vmul.f32 %v3084, %v3404
        %v3469 = vmul.f32 %v3085, %v3405
        %v3470 = vmul.f32 %v3086, %v3406
        %v3471 = vmul.f32 %v3087, %v3407
        %v3472 = vmul.f32 %v3088, %v3408
        %v3473 = vmul.f32 %v3089, %v3409
        %v3474 = vmul.f32 %v3090, %v3410
        %v3475 = vmul.f32 %v3091, %v3411
        %v3476 = vmul.f32 %v3092, %v3412
        %v3477 = vmul.f32 %v3093, %v3413
        %v3478 = vmul.f32 %v3094, %v3414
        %v3479 = vmul.f32 %v3095, %v3415
        %v3480 = vmul.f32 %v3096, %v3416
        %v3481 = vmul.f32 %v3097, %v3417
        %v3482 = vmul.f32 %v3098, %v3418
        %v3483 = vmul.f32 %v3099, %v3419
        %v3484 = vmul.f32 %v3100, %v3420
        %v3485 = vmul.f32 %v3101, %v3421
        %v3486 = vmul.f32 %v3102, %v3422
        %v3487 = vmul.f32 %v3103, %v3423
        %v3488 = vmul.f32 %v3104, %v3424
        %v3489 = vmul.f32 %v3105, %v3425
        %v3490 = vmul.f32 %v3106, %v3426
        %v3491 = vmul.f32 %v3107, %v3427
        %v3492 = vmul.f32 %v3108, %v3428
        %v3493 = vmul.f32 %v3109, %v3429
        %v3494 = vmul.f32 %v3110, %v3430
        %v3495 = vmul.f32 %v3111, %v3431
        %v3496 = vmul.f32 %v3112, %v3432
        %v3497 = vmul.f32 %v3113, %v3433
        %v3498 = vmul.f32 %v3114, %v3434
        %v3499 = vmul.f32 %v3115, %v3435
        %v3500 = vmul.f32 %v3116, %v3436
        %v3501 = vmul.f32 %v3117, %v3437
        %v3502 = vmul.f32 %v3118, %v3438
        %v3503 = vmul.f32 %v3119, %v3439
        %v3504 = vmul.f32 %v3120, %v3440
        %v3505 = vmul.f32 %v3121, %v3441
        %v3506 = vld [vmem:[%s5] sm:$0xff]
        %v3507 = vld [vmem:[%s5 + $0x8] sm:$0xff]
        %v3508 = vld [vmem:[%s5 + $0x10] sm:$0xff]
        %v3509 = vld [vmem:[%s5 + $0x18] sm:$0xff]
        %v3510 = vld [vmem:[%s5 + $0x20] sm:$0xff]
        %v3511 = vld [vmem:[%s5 + $0x28] sm:$0xff]
        %v3512 = vld [vmem:[%s5 + $0x30] sm:$0xff]
        %v3513 = vld [vmem:[%s5 + $0x38] sm:$0xff]
        %v3514 = vld [vmem:[%s5 + $0x40] sm:$0xff]
        %v3515 = vld [vmem:[%s5 + $0x48] sm:$0xff]
        %v3516 = vld [vmem:[%s5 + $0x50] sm:$0xff]
        %v3517 = vld [vmem:[%s5 + $0x58] sm:$0xff]
        %v3518 = vld [vmem:[%s5 + $0x60] sm:$0xff]
        %v3519 = vld [vmem:[%s5 + $0x68] sm:$0xff]
        %v3520 = vld [vmem:[%s5 + $0x70] sm:$0xff]
        %v3521 = vld [vmem:[%s5 + $0x78] sm:$0xff]
        %v3522 = vld [vmem:[%s5 + $0x80] sm:$0xff]
        %v3523 = vld [vmem:[%s5 + $0x88] sm:$0xff]
        %v3524 = vld [vmem:[%s5 + $0x90] sm:$0xff]
        %v3525 = vld [vmem:[%s5 + $0x98] sm:$0xff]
        %v3526 = vld [vmem:[%s5 + $0xa0] sm:$0xff]
        %v3527 = vld [vmem:[%s5 + $0xa8] sm:$0xff]
        %v3528 = vld [vmem:[%s5 + $0xb0] sm:$0xff]
        %v3529 = vld [vmem:[%s5 + $0xb8] sm:$0xff]
        %v3530 = vld [vmem:[%s5 + $0xc0] sm:$0xff]
        %v3531 = vld [vmem:[%s5 + $0xc8] sm:$0xff]
        %v3532 = vld [vmem:[%s5 + $0xd0] sm:$0xff]
        %v3533 = vld [vmem:[%s5 + $0xd8] sm:$0xff]
        %v3534 = vld [vmem:[%s5 + $0xe0] sm:$0xff]
        %v3535 = vld [vmem:[%s5 + $0xe8] sm:$0xff]
        %v3536 = vld [vmem:[%s5 + $0xf0] sm:$0xff]
        %v3537 = vld [vmem:[%s5 + $0xf8] sm:$0xff]
        %3538 = vmatpush.msra.mxu0 %v3521
        %3539 = vmatpush.msra.mxu0 %v3520
        %3540 = vmatpush.msra.mxu0 %v3519
        %3541 = vmatpush.msra.mxu0 %v3518
        %3542 = vmatpush.msra.mxu0 %v3517
        %3543 = vmatpush.msra.mxu0 %v3516
        %3544 = vmatpush.msra.mxu0 %v3515
        %3545 = vmatpush.msra.mxu0 %v3514
        %3546 = vmatpush.msra.mxu0 %v3513
        %3547 = vmatpush.msra.mxu0 %v3512
        %3548 = vmatpush.msra.mxu0 %v3511
        %3549 = vmatpush.msra.mxu0 %v3510
        %3550 = vmatpush.msra.mxu0 %v3509
        %3551 = vmatpush.msra.mxu0 %v3508
        %3552 = vmatpush.msra.mxu0 %v3507
        %3553 = vmatpush.msra.mxu0 %v3506
        %3554 = vmatmul.f32.gmra.mxu0 %v3442
        %v3555 = vpop.f32.mrf.mxu0
        %v3556 = vadd.f32 0.0, %v3555
        %3557 = vmatmul.f32.gmra.mxu0 %v3444
        %v3558 = vpop.f32.mrf.mxu0
        %v3559 = vadd.f32 0.0, %v3558
        %3560 = vmatmul.f32.gmra.mxu0 %v3446
        %v3561 = vpop.f32.mrf.mxu0
        %v3562 = vadd.f32 0.0, %v3561
        %3563 = vmatmul.f32.gmra.mxu0 %v3448
        %v3564 = vpop.f32.mrf.mxu0
        %v3565 = vadd.f32 0.0, %v3564
        %3566 = vmatmul.f32.gmra.mxu0 %v3450
        %v3567 = vpop.f32.mrf.mxu0
        %v3568 = vadd.f32 0.0, %v3567
        %3569 = vmatmul.f32.gmra.mxu0 %v3452
        %v3570 = vpop.f32.mrf.mxu0
        %v3571 = vadd.f32 0.0, %v3570
        %3572 = vmatmul.f32.gmra.mxu0 %v3454
        %v3573 = vpop.f32.mrf.mxu0
        %v3574 = vadd.f32 0.0, %v3573
        %3575 = vmatmul.f32.gmra.mxu0 %v3456
        %v3576 = vpop.f32.mrf.mxu0
        %v3577 = vadd.f32 0.0, %v3576
        %3578 = vmatmul.f32.gmra.mxu0 %v3458
        %v3579 = vpop.f32.mrf.mxu0
        %v3580 = vadd.f32 0.0, %v3579
        %3581 = vmatmul.f32.gmra.mxu0 %v3460
        %v3582 = vpop.f32.mrf.mxu0
        %v3583 = vadd.f32 0.0, %v3582
        %3584 = vmatmul.f32.gmra.mxu0 %v3462
        %v3585 = vpop.f32.mrf.mxu0
        %v3586 = vadd.f32 0.0, %v3585
        %3587 = vmatmul.f32.gmra.mxu0 %v3464
        %v3588 = vpop.f32.mrf.mxu0
        %v3589 = vadd.f32 0.0, %v3588
        %3590 = vmatmul.f32.gmra.mxu0 %v3466
        %v3591 = vpop.f32.mrf.mxu0
        %v3592 = vadd.f32 0.0, %v3591
        %3593 = vmatmul.f32.gmra.mxu0 %v3468
        %v3594 = vpop.f32.mrf.mxu0
        %v3595 = vadd.f32 0.0, %v3594
        %3596 = vmatmul.f32.gmra.mxu0 %v3470
        %v3597 = vpop.f32.mrf.mxu0
        %v3598 = vadd.f32 0.0, %v3597
        %3599 = vmatmul.f32.gmra.mxu0 %v3472
        %v3600 = vpop.f32.mrf.mxu0
        %v3601 = vadd.f32 0.0, %v3600
        %3602 = vmatmul.f32.gmra.mxu0 %v3474
        %v3603 = vpop.f32.mrf.mxu0
        %v3604 = vadd.f32 0.0, %v3603
        %3605 = vmatmul.f32.gmra.mxu0 %v3476
        %v3606 = vpop.f32.mrf.mxu0
        %v3607 = vadd.f32 0.0, %v3606
        %3608 = vmatmul.f32.gmra.mxu0 %v3478
        %v3609 = vpop.f32.mrf.mxu0
        %v3610 = vadd.f32 0.0, %v3609
        %3611 = vmatmul.f32.gmra.mxu0 %v3480
        %v3612 = vpop.f32.mrf.mxu0
        %v3613 = vadd.f32 0.0, %v3612
        %3614 = vmatmul.f32.gmra.mxu0 %v3482
        %v3615 = vpop.f32.mrf.mxu0
        %v3616 = vadd.f32 0.0, %v3615
        %3617 = vmatmul.f32.gmra.mxu0 %v3484
        %v3618 = vpop.f32.mrf.mxu0
        %v3619 = vadd.f32 0.0, %v3618
        %3620 = vmatmul.f32.gmra.mxu0 %v3486
        %v3621 = vpop.f32.mrf.mxu0
        %v3622 = vadd.f32 0.0, %v3621
        %3623 = vmatmul.f32.gmra.mxu0 %v3488
        %v3624 = vpop.f32.mrf.mxu0
        %v3625 = vadd.f32 0.0, %v3624
        %3626 = vmatmul.f32.gmra.mxu0 %v3490
        %v3627 = vpop.f32.mrf.mxu0
        %v3628 = vadd.f32 0.0, %v3627
        %3629 = vmatmul.f32.gmra.mxu0 %v3492
        %v3630 = vpop.f32.mrf.mxu0
        %v3631 = vadd.f32 0.0, %v3630
        %3632 = vmatmul.f32.gmra.mxu0 %v3494
        %v3633 = vpop.f32.mrf.mxu0
        %v3634 = vadd.f32 0.0, %v3633
        %3635 = vmatmul.f32.gmra.mxu0 %v3496
        %v3636 = vpop.f32.mrf.mxu0
        %v3637 = vadd.f32 0.0, %v3636
        %3638 = vmatmul.f32.gmra.mxu0 %v3498
        %v3639 = vpop.f32.mrf.mxu0
        %v3640 = vadd.f32 0.0, %v3639
        %3641 = vmatmul.f32.gmra.mxu0 %v3500
        %v3642 = vpop.f32.mrf.mxu0
        %v3643 = vadd.f32 0.0, %v3642
        %3644 = vmatmul.f32.gmra.mxu0 %v3502
        %v3645 = vpop.f32.mrf.mxu0
        %v3646 = vadd.f32 0.0, %v3645
        %3647 = vmatmul.f32.gmra.mxu0 %v3504
        %v3648 = vpop.f32.mrf.mxu0
        %v3649 = vadd.f32 0.0, %v3648
        %3650 = vdwg.mxu0
        %3651 = vmatpush.msra.mxu0 %v3537
        %3652 = vmatpush.msra.mxu0 %v3536
        %3653 = vmatpush.msra.mxu0 %v3535
        %3654 = vmatpush.msra.mxu0 %v3534
        %3655 = vmatpush.msra.mxu0 %v3533
        %3656 = vmatpush.msra.mxu0 %v3532
        %3657 = vmatpush.msra.mxu0 %v3531
        %3658 = vmatpush.msra.mxu0 %v3530
        %3659 = vmatpush.msra.mxu0 %v3529
        %3660 = vmatpush.msra.mxu0 %v3528
        %3661 = vmatpush.msra.mxu0 %v3527
        %3662 = vmatpush.msra.mxu0 %v3526
        %3663 = vmatpush.msra.mxu0 %v3525
        %3664 = vmatpush.msra.mxu0 %v3524
        %3665 = vmatpush.msra.mxu0 %v3523
        %3666 = vmatpush.msra.mxu0 %v3522
        %3667 = vmatmul.f32.gmra.mxu0 %v3443
        %v3668 = vpop.f32.mrf.mxu0
        %v3669 = vadd.f32 %v3556, %v3668
        %3670 = vmatmul.f32.gmra.mxu0 %v3445
        %v3671 = vpop.f32.mrf.mxu0
        %v3672 = vadd.f32 %v3559, %v3671
        %3673 = vmatmul.f32.gmra.mxu0 %v3447
        %v3674 = vpop.f32.mrf.mxu0
        %v3675 = vadd.f32 %v3562, %v3674
        %3676 = vmatmul.f32.gmra.mxu0 %v3449
        %v3677 = vpop.f32.mrf.mxu0
        %v3678 = vadd.f32 %v3565, %v3677
        %3679 = vmatmul.f32.gmra.mxu0 %v3451
        %v3680 = vpop.f32.mrf.mxu0
        %v3681 = vadd.f32 %v3568, %v3680
        %3682 = vmatmul.f32.gmra.mxu0 %v3453
        %v3683 = vpop.f32.mrf.mxu0
        %v3684 = vadd.f32 %v3571, %v3683
        %3685 = vmatmul.f32.gmra.mxu0 %v3455
        %v3686 = vpop.f32.mrf.mxu0
        %v3687 = vadd.f32 %v3574, %v3686
        %3688 = vmatmul.f32.gmra.mxu0 %v3457
        %v3689 = vpop.f32.mrf.mxu0
        %v3690 = vadd.f32 %v3577, %v3689
        %3691 = vmatmul.f32.gmra.mxu0 %v3459
        %v3692 = vpop.f32.mrf.mxu0
        %v3693 = vadd.f32 %v3580, %v3692
        %3694 = vmatmul.f32.gmra.mxu0 %v3461
        %v3695 = vpop.f32.mrf.mxu0
        %v3696 = vadd.f32 %v3583, %v3695
        %3697 = vmatmul.f32.gmra.mxu0 %v3463
        %v3698 = vpop.f32.mrf.mxu0
        %v3699 = vadd.f32 %v3586, %v3698
        %3700 = vmatmul.f32.gmra.mxu0 %v3465
        %v3701 = vpop.f32.mrf.mxu0
        %v3702 = vadd.f32 %v3589, %v3701
        %3703 = vmatmul.f32.gmra.mxu0 %v3467
        %v3704 = vpop.f32.mrf.mxu0
        %v3705 = vadd.f32 %v3592, %v3704
        %3706 = vmatmul.f32.gmra.mxu0 %v3469
        %v3707 = vpop.f32.mrf.mxu0
        %v3708 = vadd.f32 %v3595, %v3707
        %3709 = vmatmul.f32.gmra.mxu0 %v3471
        %v3710 = vpop.f32.mrf.mxu0
        %v3711 = vadd.f32 %v3598, %v3710
        %3712 = vmatmul.f32.gmra.mxu0 %v3473
        %v3713 = vpop.f32.mrf.mxu0
        %v3714 = vadd.f32 %v3601, %v3713
        %3715 = vmatmul.f32.gmra.mxu0 %v3475
        %v3716 = vpop.f32.mrf.mxu0
        %v3717 = vadd.f32 %v3604, %v3716
        %3718 = vmatmul.f32.gmra.mxu0 %v3477
        %v3719 = vpop.f32.mrf.mxu0
        %v3720 = vadd.f32 %v3607, %v3719
        %3721 = vmatmul.f32.gmra.mxu0 %v3479
        %v3722 = vpop.f32.mrf.mxu0
        %v3723 = vadd.f32 %v3610, %v3722
        %3724 = vmatmul.f32.gmra.mxu0 %v3481
        %v3725 = vpop.f32.mrf.mxu0
        %v3726 = vadd.f32 %v3613, %v3725
        %3727 = vmatmul.f32.gmra.mxu0 %v3483
        %v3728 = vpop.f32.mrf.mxu0
        %v3729 = vadd.f32 %v3616, %v3728
        %3730 = vmatmul.f32.gmra.mxu0 %v3485
        %v3731 = vpop.f32.mrf.mxu0
        %v3732 = vadd.f32 %v3619, %v3731
        %3733 = vmatmul.f32.gmra.mxu0 %v3487
        %v3734 = vpop.f32.mrf.mxu0
        %v3735 = vadd.f32 %v3622, %v3734
        %3736 = vmatmul.f32.gmra.mxu0 %v3489
        %v3737 = vpop.f32.mrf.mxu0
        %v3738 = vadd.f32 %v3625, %v3737
        %3739 = vmatmul.f32.gmra.mxu0 %v3491
        %v3740 = vpop.f32.mrf.mxu0
        %v3741 = vadd.f32 %v3628, %v3740
        %3742 = vmatmul.f32.gmra.mxu0 %v3493
        %v3743 = vpop.f32.mrf.mxu0
        %v3744 = vadd.f32 %v3631, %v3743
        %3745 = vmatmul.f32.gmra.mxu0 %v3495
        %v3746 = vpop.f32.mrf.mxu0
        %v3747 = vadd.f32 %v3634, %v3746
        %3748 = vmatmul.f32.gmra.mxu0 %v3497
        %v3749 = vpop.f32.mrf.mxu0
        %v3750 = vadd.f32 %v3637, %v3749
        %3751 = vmatmul.f32.gmra.mxu0 %v3499
        %v3752 = vpop.f32.mrf.mxu0
        %v3753 = vadd.f32 %v3640, %v3752
        %3754 = vmatmul.f32.gmra.mxu0 %v3501
        %v3755 = vpop.f32.mrf.mxu0
        %v3756 = vadd.f32 %v3643, %v3755
        %3757 = vmatmul.f32.gmra.mxu0 %v3503
        %v3758 = vpop.f32.mrf.mxu0
        %v3759 = vadd.f32 %v3646, %v3758
        %3760 = vmatmul.f32.gmra.mxu0 %v3505
        %v3761 = vpop.f32.mrf.mxu0
        %v3762 = vadd.f32 %v3649, %v3761
        %3763 = vdwg.mxu0
        %v3764 = vld [vmem:[%s6] sm:$0xff]
        %v3765 = vld [vmem:[%s6 + $0x8] sm:$0xff]
        %v3766 = vld [vmem:[%s6 + $0x10] sm:$0xff]
        %v3767 = vld [vmem:[%s6 + $0x18] sm:$0xff]
        %v3768 = vld [vmem:[%s6 + $0x20] sm:$0xff]
        %v3769 = vld [vmem:[%s6 + $0x28] sm:$0xff]
        %v3770 = vld [vmem:[%s6 + $0x30] sm:$0xff]
        %v3771 = vld [vmem:[%s6 + $0x38] sm:$0xff]
        %v3772 = vld [vmem:[%s6 + $0x40] sm:$0xff]
        %v3773 = vld [vmem:[%s6 + $0x48] sm:$0xff]
        %v3774 = vld [vmem:[%s6 + $0x50] sm:$0xff]
        %v3775 = vld [vmem:[%s6 + $0x58] sm:$0xff]
        %v3776 = vld [vmem:[%s6 + $0x60] sm:$0xff]
        %v3777 = vld [vmem:[%s6 + $0x68] sm:$0xff]
        %v3778 = vld [vmem:[%s6 + $0x70] sm:$0xff]
        %v3779 = vld [vmem:[%s6 + $0x78] sm:$0xff]
        %v3780 = vld [vmem:[%s7] sm:$0xf]
        %v3782 = vperm.slane %v3780, 0
        %v3783 = vperm.slane %v3780, 1
        %v3784 = vperm.slane %v3780, 2
        %v3785 = vperm.slane %v3780, 3
        %vm3790 = vcmask 261120
        %v3792 = vsel %vm3790, %v3669, 0
        %v3795 = vsel %vm3790, %v3672, 0
        %v3798 = vsel %vm3790, %v3675, 0
        %v3801 = vsel %vm3790, %v3678, 0
        %v3804 = vsel %vm3790, %v3681, 0
        %v3807 = vsel %vm3790, %v3684, 0
        %v3810 = vsel %vm3790, %v3687, 0
        %v3813 = vsel %vm3790, %v3690, 0
        %v3816 = vsel %vm3790, %v3693, 0
        %v3819 = vsel %vm3790, %v3696, 0
        %v3822 = vsel %vm3790, %v3699, 0
        %v3825 = vsel %vm3790, %v3702, 0
        %v3828 = vsel %vm3790, %v3705, 0
        %v3831 = vsel %vm3790, %v3708, 0
        %v3834 = vsel %vm3790, %v3711, 0
        %v3837 = vsel %vm3790, %v3714, 0
        %v3840 = vsel %vm3790, %v3717, 0
        %v3843 = vsel %vm3790, %v3720, 0
        %v3846 = vsel %vm3790, %v3723, 0
        %v3849 = vsel %vm3790, %v3726, 0
        %v3852 = vsel %vm3790, %v3729, 0
        %v3855 = vsel %vm3790, %v3732, 0
        %v3858 = vsel %vm3790, %v3735, 0
        %v3861 = vsel %vm3790, %v3738, 0
        %v3864 = vsel %vm3790, %v3741, 0
        %v3867 = vsel %vm3790, %v3744, 0
        %v3870 = vsel %vm3790, %v3747, 0
        %v3873 = vsel %vm3790, %v3750, 0
        %v3876 = vsel %vm3790, %v3753, 0
        %v3879 = vsel %vm3790, %v3756, 0
        %v3882 = vsel %vm3790, %v3759, 0
        %v3885 = vsel %vm3790, %v3762, 0
        %3887 = vmatpush.msra.mxu0 0.0
        %3888 = vmatpush.msra.mxu0 0.0
        %3889 = vmatpush.msra.mxu0 0.0
        %3890 = vmatpush.msra.mxu0 0.0
        %3891 = vmatpush.msra.mxu0 0.0
        %3892 = vmatpush.msra.mxu0 0.0
        %3893 = vmatpush.msra.mxu0 0.0
        %3894 = vmatpush.msra.mxu0 0.0
        %3895 = vmatpush.msra.mxu0 0.0
        %3896 = vmatpush.msra.mxu0 0.0
        %3897 = vmatpush.msra.mxu0 0.0
        %3898 = vmatpush.msra.mxu0 0.0
        %3899 = vmatpush.msra.mxu0 %v3776
        %3900 = vmatpush.msra.mxu0 %v3772
        %3901 = vmatpush.msra.mxu0 %v3768
        %3902 = vmatpush.msra.mxu0 %v3764
        %3903 = vmatmul.f32.gmra.mxu0 %v3792
        %v3904 = vpop.f32.mrf.mxu0
        %v3905 = vadd.f32 %v3782, %v3904
        %3906 = vmatmul.f32.gmra.mxu0 %v3795
        %v3907 = vpop.f32.mrf.mxu0
        %v3908 = vadd.f32 %v3782, %v3907
        %3909 = vmatmul.f32.gmra.mxu0 %v3798
        %v3910 = vpop.f32.mrf.mxu0
        %v3911 = vadd.f32 %v3782, %v3910
        %3912 = vmatmul.f32.gmra.mxu0 %v3801
        %v3913 = vpop.f32.mrf.mxu0
        %v3914 = vadd.f32 %v3782, %v3913
        %3915 = vmatmul.f32.gmra.mxu0 %v3804
        %v3916 = vpop.f32.mrf.mxu0
        %v3917 = vadd.f32 %v3782, %v3916
        %3918 = vmatmul.f32.gmra.mxu0 %v3807
        %v3919 = vpop.f32.mrf.mxu0
        %v3920 = vadd.f32 %v3782, %v3919
        %3921 = vmatmul.f32.gmra.mxu0 %v3810
        %v3922 = vpop.f32.mrf.mxu0
        %v3923 = vadd.f32 %v3782, %v3922
        %3924 = vmatmul.f32.gmra.mxu0 %v3813
        %v3925 = vpop.f32.mrf.mxu0
        %v3926 = vadd.f32 %v3782, %v3925
        %3927 = vmatmul.f32.gmra.mxu0 %v3816
        %v3928 = vpop.f32.mrf.mxu0
        %v3929 = vadd.f32 %v3782, %v3928
        %3930 = vmatmul.f32.gmra.mxu0 %v3819
        %v3931 = vpop.f32.mrf.mxu0
        %v3932 = vadd.f32 %v3782, %v3931
        %3933 = vmatmul.f32.gmra.mxu0 %v3822
        %v3934 = vpop.f32.mrf.mxu0
        %v3935 = vadd.f32 %v3782, %v3934
        %3936 = vmatmul.f32.gmra.mxu0 %v3825
        %v3937 = vpop.f32.mrf.mxu0
        %v3938 = vadd.f32 %v3782, %v3937
        %3939 = vmatmul.f32.gmra.mxu0 %v3828
        %v3940 = vpop.f32.mrf.mxu0
        %v3941 = vadd.f32 %v3782, %v3940
        %3942 = vmatmul.f32.gmra.mxu0 %v3831
        %v3943 = vpop.f32.mrf.mxu0
        %v3944 = vadd.f32 %v3782, %v3943
        %3945 = vmatmul.f32.gmra.mxu0 %v3834
        %v3946 = vpop.f32.mrf.mxu0
        %v3947 = vadd.f32 %v3782, %v3946
        %3948 = vmatmul.f32.gmra.mxu0 %v3837
        %v3949 = vpop.f32.mrf.mxu0
        %v3950 = vadd.f32 %v3782, %v3949
        %3951 = vmatmul.f32.gmra.mxu0 %v3840
        %v3952 = vpop.f32.mrf.mxu0
        %v3953 = vadd.f32 %v3782, %v3952
        %3954 = vmatmul.f32.gmra.mxu0 %v3843
        %v3955 = vpop.f32.mrf.mxu0
        %v3956 = vadd.f32 %v3782, %v3955
        %3957 = vmatmul.f32.gmra.mxu0 %v3846
        %v3958 = vpop.f32.mrf.mxu0
        %v3959 = vadd.f32 %v3782, %v3958
        %3960 = vmatmul.f32.gmra.mxu0 %v3849
        %v3961 = vpop.f32.mrf.mxu0
        %v3962 = vadd.f32 %v3782, %v3961
        %3963 = vmatmul.f32.gmra.mxu0 %v3852
        %v3964 = vpop.f32.mrf.mxu0
        %v3965 = vadd.f32 %v3782, %v3964
        %3966 = vmatmul.f32.gmra.mxu0 %v3855
        %v3967 = vpop.f32.mrf.mxu0
        %v3968 = vadd.f32 %v3782, %v3967
        %3969 = vmatmul.f32.gmra.mxu0 %v3858
        %v3970 = vpop.f32.mrf.mxu0
        %v3971 = vadd.f32 %v3782, %v3970
        %3972 = vmatmul.f32.gmra.mxu0 %v3861
        %v3973 = vpop.f32.mrf.mxu0
        %v3974 = vadd.f32 %v3782, %v3973
        %3975 = vmatmul.f32.gmra.mxu0 %v3864
        %v3976 = vpop.f32.mrf.mxu0
        %v3977 = vadd.f32 %v3782, %v3976
        %3978 = vmatmul.f32.gmra.mxu0 %v3867
        %v3979 = vpop.f32.mrf.mxu0
        %v3980 = vadd.f32 %v3782, %v3979
        %3981 = vmatmul.f32.gmra.mxu0 %v3870
        %v3982 = vpop.f32.mrf.mxu0
        %v3983 = vadd.f32 %v3782, %v3982
        %3984 = vmatmul.f32.gmra.mxu0 %v3873
        %v3985 = vpop.f32.mrf.mxu0
        %v3986 = vadd.f32 %v3782, %v3985
        %3987 = vmatmul.f32.gmra.mxu0 %v3876
        %v3988 = vpop.f32.mrf.mxu0
        %v3989 = vadd.f32 %v3782, %v3988
        %3990 = vmatmul.f32.gmra.mxu0 %v3879
        %v3991 = vpop.f32.mrf.mxu0
        %v3992 = vadd.f32 %v3782, %v3991
        %3993 = vmatmul.f32.gmra.mxu0 %v3882
        %v3994 = vpop.f32.mrf.mxu0
        %v3995 = vadd.f32 %v3782, %v3994
        %3996 = vmatmul.f32.gmra.mxu0 %v3885
        %v3997 = vpop.f32.mrf.mxu0
        %v3998 = vadd.f32 %v3782, %v3997
        %3999 = vdwg.mxu0
        %4000 = vmatpush.msra.mxu0 0.0
        %4001 = vmatpush.msra.mxu0 0.0
        %4002 = vmatpush.msra.mxu0 0.0
        %4003 = vmatpush.msra.mxu0 0.0
        %4004 = vmatpush.msra.mxu0 0.0
        %4005 = vmatpush.msra.mxu0 0.0
        %4006 = vmatpush.msra.mxu0 0.0
        %4007 = vmatpush.msra.mxu0 0.0
        %4008 = vmatpush.msra.mxu0 0.0
        %4009 = vmatpush.msra.mxu0 0.0
        %4010 = vmatpush.msra.mxu0 0.0
        %4011 = vmatpush.msra.mxu0 0.0
        %4012 = vmatpush.msra.mxu0 %v3777
        %4013 = vmatpush.msra.mxu0 %v3773
        %4014 = vmatpush.msra.mxu0 %v3769
        %4015 = vmatpush.msra.mxu0 %v3765
        %4016 = vmatmul.f32.gmra.mxu0 %v3792
        %v4017 = vpop.f32.mrf.mxu0
        %v4018 = vadd.f32 %v3783, %v4017
        %4019 = vmatmul.f32.gmra.mxu0 %v3795
        %v4020 = vpop.f32.mrf.mxu0
        %v4021 = vadd.f32 %v3783, %v4020
        %4022 = vmatmul.f32.gmra.mxu0 %v3798
        %v4023 = vpop.f32.mrf.mxu0
        %v4024 = vadd.f32 %v3783, %v4023
        %4025 = vmatmul.f32.gmra.mxu0 %v3801
        %v4026 = vpop.f32.mrf.mxu0
        %v4027 = vadd.f32 %v3783, %v4026
        %4028 = vmatmul.f32.gmra.mxu0 %v3804
        %v4029 = vpop.f32.mrf.mxu0
        %v4030 = vadd.f32 %v3783, %v4029
        %4031 = vmatmul.f32.gmra.mxu0 %v3807
        %v4032 = vpop.f32.mrf.mxu0
        %v4033 = vadd.f32 %v3783, %v4032
        %4034 = vmatmul.f32.gmra.mxu0 %v3810
        %v4035 = vpop.f32.mrf.mxu0
        %v4036 = vadd.f32 %v3783, %v4035
        %4037 = vmatmul.f32.gmra.mxu0 %v3813
        %v4038 = vpop.f32.mrf.mxu0
        %v4039 = vadd.f32 %v3783, %v4038
        %4040 = vmatmul.f32.gmra.mxu0 %v3816
        %v4041 = vpop.f32.mrf.mxu0
        %v4042 = vadd.f32 %v3783, %v4041
        %4043 = vmatmul.f32.gmra.mxu0 %v3819
        %v4044 = vpop.f32.mrf.mxu0
        %v4045 = vadd.f32 %v3783, %v4044
        %4046 = vmatmul.f32.gmra.mxu0 %v3822
        %v4047 = vpop.f32.mrf.mxu0
        %v4048 = vadd.f32 %v3783, %v4047
        %4049 = vmatmul.f32.gmra.mxu0 %v3825
        %v4050 = vpop.f32.mrf.mxu0
        %v4051 = vadd.f32 %v3783, %v4050
        %4052 = vmatmul.f32.gmra.mxu0 %v3828
        %v4053 = vpop.f32.mrf.mxu0
        %v4054 = vadd.f32 %v3783, %v4053
        %4055 = vmatmul.f32.gmra.mxu0 %v3831
        %v4056 = vpop.f32.mrf.mxu0
        %v4057 = vadd.f32 %v3783, %v4056
        %4058 = vmatmul.f32.gmra.mxu0 %v3834
        %v4059 = vpop.f32.mrf.mxu0
        %v4060 = vadd.f32 %v3783, %v4059
        %4061 = vmatmul.f32.gmra.mxu0 %v3837
        %v4062 = vpop.f32.mrf.mxu0
        %v4063 = vadd.f32 %v3783, %v4062
        %4064 = vmatmul.f32.gmra.mxu0 %v3840
        %v4065 = vpop.f32.mrf.mxu0
        %v4066 = vadd.f32 %v3783, %v4065
        %4067 = vmatmul.f32.gmra.mxu0 %v3843
        %v4068 = vpop.f32.mrf.mxu0
        %v4069 = vadd.f32 %v3783, %v4068
        %4070 = vmatmul.f32.gmra.mxu0 %v3846
        %v4071 = vpop.f32.mrf.mxu0
        %v4072 = vadd.f32 %v3783, %v4071
        %4073 = vmatmul.f32.gmra.mxu0 %v3849
        %v4074 = vpop.f32.mrf.mxu0
        %v4075 = vadd.f32 %v3783, %v4074
        %4076 = vmatmul.f32.gmra.mxu0 %v3852
        %v4077 = vpop.f32.mrf.mxu0
        %v4078 = vadd.f32 %v3783, %v4077
        %4079 = vmatmul.f32.gmra.mxu0 %v3855
        %v4080 = vpop.f32.mrf.mxu0
        %v4081 = vadd.f32 %v3783, %v4080
        %4082 = vmatmul.f32.gmra.mxu0 %v3858
        %v4083 = vpop.f32.mrf.mxu0
        %v4084 = vadd.f32 %v3783, %v4083
        %4085 = vmatmul.f32.gmra.mxu0 %v3861
        %v4086 = vpop.f32.mrf.mxu0
        %v4087 = vadd.f32 %v3783, %v4086
        %4088 = vmatmul.f32.gmra.mxu0 %v3864
        %v4089 = vpop.f32.mrf.mxu0
        %v4090 = vadd.f32 %v3783, %v4089
        %4091 = vmatmul.f32.gmra.mxu0 %v3867
        %v4092 = vpop.f32.mrf.mxu0
        %v4093 = vadd.f32 %v3783, %v4092
        %4094 = vmatmul.f32.gmra.mxu0 %v3870
        %v4095 = vpop.f32.mrf.mxu0
        %v4096 = vadd.f32 %v3783, %v4095
        %4097 = vmatmul.f32.gmra.mxu0 %v3873
        %v4098 = vpop.f32.mrf.mxu0
        %v4099 = vadd.f32 %v3783, %v4098
        %4100 = vmatmul.f32.gmra.mxu0 %v3876
        %v4101 = vpop.f32.mrf.mxu0
        %v4102 = vadd.f32 %v3783, %v4101
        %4103 = vmatmul.f32.gmra.mxu0 %v3879
        %v4104 = vpop.f32.mrf.mxu0
        %v4105 = vadd.f32 %v3783, %v4104
        %4106 = vmatmul.f32.gmra.mxu0 %v3882
        %v4107 = vpop.f32.mrf.mxu0
        %v4108 = vadd.f32 %v3783, %v4107
        %4109 = vmatmul.f32.gmra.mxu0 %v3885
        %v4110 = vpop.f32.mrf.mxu0
        %v4111 = vadd.f32 %v3783, %v4110
        %4112 = vdwg.mxu0
        %4113 = vmatpush.msra.mxu0 0.0
        %4114 = vmatpush.msra.mxu0 0.0
        %4115 = vmatpush.msra.mxu0 0.0
        %4116 = vmatpush.msra.mxu0 0.0
        %4117 = vmatpush.msra.mxu0 0.0
        %4118 = vmatpush.msra.mxu0 0.0
        %4119 = vmatpush.msra.mxu0 0.0
        %4120 = vmatpush.msra.mxu0 0.0
        %4121 = vmatpush.msra.mxu0 0.0
        %4122 = vmatpush.msra.mxu0 0.0
        %4123 = vmatpush.msra.mxu0 0.0
        %4124 = vmatpush.msra.mxu0 0.0
        %4125 = vmatpush.msra.mxu0 %v3778
        %4126 = vmatpush.msra.mxu0 %v3774
        %4127 = vmatpush.msra.mxu0 %v3770
        %4128 = vmatpush.msra.mxu0 %v3766
        %4129 = vmatmul.f32.gmra.mxu0 %v3792
        %v4130 = vpop.f32.mrf.mxu0
        %v4131 = vadd.f32 %v3784, %v4130
        %4132 = vmatmul.f32.gmra.mxu0 %v3795
        %v4133 = vpop.f32.mrf.mxu0
        %v4134 = vadd.f32 %v3784, %v4133
        %4135 = vmatmul.f32.gmra.mxu0 %v3798
        %v4136 = vpop.f32.mrf.mxu0
        %v4137 = vadd.f32 %v3784, %v4136
        %4138 = vmatmul.f32.gmra.mxu0 %v3801
        %v4139 = vpop.f32.mrf.mxu0
        %v4140 = vadd.f32 %v3784, %v4139
        %4141 = vmatmul.f32.gmra.mxu0 %v3804
        %v4142 = vpop.f32.mrf.mxu0
        %v4143 = vadd.f32 %v3784, %v4142
        %4144 = vmatmul.f32.gmra.mxu0 %v3807
        %v4145 = vpop.f32.mrf.mxu0
        %v4146 = vadd.f32 %v3784, %v4145
        %4147 = vmatmul.f32.gmra.mxu0 %v3810
        %v4148 = vpop.f32.mrf.mxu0
        %v4149 = vadd.f32 %v3784, %v4148
        %4150 = vmatmul.f32.gmra.mxu0 %v3813
        %v4151 = vpop.f32.mrf.mxu0
        %v4152 = vadd.f32 %v3784, %v4151
        %4153 = vmatmul.f32.gmra.mxu0 %v3816
        %v4154 = vpop.f32.mrf.mxu0
        %v4155 = vadd.f32 %v3784, %v4154
        %4156 = vmatmul.f32.gmra.mxu0 %v3819
        %v4157 = vpop.f32.mrf.mxu0
        %v4158 = vadd.f32 %v3784, %v4157
        %4159 = vmatmul.f32.gmra.mxu0 %v3822
        %v4160 = vpop.f32.mrf.mxu0
        %v4161 = vadd.f32 %v3784, %v4160
        %4162 = vmatmul.f32.gmra.mxu0 %v3825
        %v4163 = vpop.f32.mrf.mxu0
        %v4164 = vadd.f32 %v3784, %v4163
        %4165 = vmatmul.f32.gmra.mxu0 %v3828
        %v4166 = vpop.f32.mrf.mxu0
        %v4167 = vadd.f32 %v3784, %v4166
        %4168 = vmatmul.f32.gmra.mxu0 %v3831
        %v4169 = vpop.f32.mrf.mxu0
        %v4170 = vadd.f32 %v3784, %v4169
        %4171 = vmatmul.f32.gmra.mxu0 %v3834
        %v4172 = vpop.f32.mrf.mxu0
        %v4173 = vadd.f32 %v3784, %v4172
        %4174 = vmatmul.f32.gmra.mxu0 %v3837
        %v4175 = vpop.f32.mrf.mxu0
        %v4176 = vadd.f32 %v3784, %v4175
        %4177 = vmatmul.f32.gmra.mxu0 %v3840
        %v4178 = vpop.f32.mrf.mxu0
        %v4179 = vadd.f32 %v3784, %v4178
        %4180 = vmatmul.f32.gmra.mxu0 %v3843
        %v4181 = vpop.f32.mrf.mxu0
        %v4182 = vadd.f32 %v3784, %v4181
        %4183 = vmatmul.f32.gmra.mxu0 %v3846
        %v4184 = vpop.f32.mrf.mxu0
        %v4185 = vadd.f32 %v3784, %v4184
        %4186 = vmatmul.f32.gmra.mxu0 %v3849
        %v4187 = vpop.f32.mrf.mxu0
        %v4188 = vadd.f32 %v3784, %v4187
        %4189 = vmatmul.f32.gmra.mxu0 %v3852
        %v4190 = vpop.f32.mrf.mxu0
        %v4191 = vadd.f32 %v3784, %v4190
        %4192 = vmatmul.f32.gmra.mxu0 %v3855
        %v4193 = vpop.f32.mrf.mxu0
        %v4194 = vadd.f32 %v3784, %v4193
        %4195 = vmatmul.f32.gmra.mxu0 %v3858
        %v4196 = vpop.f32.mrf.mxu0
        %v4197 = vadd.f32 %v3784, %v4196
        %4198 = vmatmul.f32.gmra.mxu0 %v3861
        %v4199 = vpop.f32.mrf.mxu0
        %v4200 = vadd.f32 %v3784, %v4199
        %4201 = vmatmul.f32.gmra.mxu0 %v3864
        %v4202 = vpop.f32.mrf.mxu0
        %v4203 = vadd.f32 %v3784, %v4202
        %4204 = vmatmul.f32.gmra.mxu0 %v3867
        %v4205 = vpop.f32.mrf.mxu0
        %v4206 = vadd.f32 %v3784, %v4205
        %4207 = vmatmul.f32.gmra.mxu0 %v3870
        %v4208 = vpop.f32.mrf.mxu0
        %v4209 = vadd.f32 %v3784, %v4208
        %4210 = vmatmul.f32.gmra.mxu0 %v3873
        %v4211 = vpop.f32.mrf.mxu0
        %v4212 = vadd.f32 %v3784, %v4211
        %4213 = vmatmul.f32.gmra.mxu0 %v3876
        %v4214 = vpop.f32.mrf.mxu0
        %v4215 = vadd.f32 %v3784, %v4214
        %4216 = vmatmul.f32.gmra.mxu0 %v3879
        %v4217 = vpop.f32.mrf.mxu0
        %v4218 = vadd.f32 %v3784, %v4217
        %4219 = vmatmul.f32.gmra.mxu0 %v3882
        %v4220 = vpop.f32.mrf.mxu0
        %v4221 = vadd.f32 %v3784, %v4220
        %4222 = vmatmul.f32.gmra.mxu0 %v3885
        %v4223 = vpop.f32.mrf.mxu0
        %v4224 = vadd.f32 %v3784, %v4223
        %4225 = vdwg.mxu0
        %4226 = vmatpush.msra.mxu0 0.0
        %4227 = vmatpush.msra.mxu0 0.0
        %4228 = vmatpush.msra.mxu0 0.0
        %4229 = vmatpush.msra.mxu0 0.0
        %4230 = vmatpush.msra.mxu0 0.0
        %4231 = vmatpush.msra.mxu0 0.0
        %4232 = vmatpush.msra.mxu0 0.0
        %4233 = vmatpush.msra.mxu0 0.0
        %4234 = vmatpush.msra.mxu0 0.0
        %4235 = vmatpush.msra.mxu0 0.0
        %4236 = vmatpush.msra.mxu0 0.0
        %4237 = vmatpush.msra.mxu0 0.0
        %4238 = vmatpush.msra.mxu0 %v3779
        %4239 = vmatpush.msra.mxu0 %v3775
        %4240 = vmatpush.msra.mxu0 %v3771
        %4241 = vmatpush.msra.mxu0 %v3767
        %4242 = vmatmul.f32.gmra.mxu0 %v3792
        %v4243 = vpop.f32.mrf.mxu0
        %v4244 = vadd.f32 %v3785, %v4243
        %4245 = vmatmul.f32.gmra.mxu0 %v3795
        %v4246 = vpop.f32.mrf.mxu0
        %v4247 = vadd.f32 %v3785, %v4246
        %4248 = vmatmul.f32.gmra.mxu0 %v3798
        %v4249 = vpop.f32.mrf.mxu0
        %v4250 = vadd.f32 %v3785, %v4249
        %4251 = vmatmul.f32.gmra.mxu0 %v3801
        %v4252 = vpop.f32.mrf.mxu0
        %v4253 = vadd.f32 %v3785, %v4252
        %4254 = vmatmul.f32.gmra.mxu0 %v3804
        %v4255 = vpop.f32.mrf.mxu0
        %v4256 = vadd.f32 %v3785, %v4255
        %4257 = vmatmul.f32.gmra.mxu0 %v3807
        %v4258 = vpop.f32.mrf.mxu0
        %v4259 = vadd.f32 %v3785, %v4258
        %4260 = vmatmul.f32.gmra.mxu0 %v3810
        %v4261 = vpop.f32.mrf.mxu0
        %v4262 = vadd.f32 %v3785, %v4261
        %4263 = vmatmul.f32.gmra.mxu0 %v3813
        %v4264 = vpop.f32.mrf.mxu0
        %v4265 = vadd.f32 %v3785, %v4264
        %4266 = vmatmul.f32.gmra.mxu0 %v3816
        %v4267 = vpop.f32.mrf.mxu0
        %v4268 = vadd.f32 %v3785, %v4267
        %4269 = vmatmul.f32.gmra.mxu0 %v3819
        %v4270 = vpop.f32.mrf.mxu0
        %v4271 = vadd.f32 %v3785, %v4270
        %4272 = vmatmul.f32.gmra.mxu0 %v3822
        %v4273 = vpop.f32.mrf.mxu0
        %v4274 = vadd.f32 %v3785, %v4273
        %4275 = vmatmul.f32.gmra.mxu0 %v3825
        %v4276 = vpop.f32.mrf.mxu0
        %v4277 = vadd.f32 %v3785, %v4276
        %4278 = vmatmul.f32.gmra.mxu0 %v3828
        %v4279 = vpop.f32.mrf.mxu0
        %v4280 = vadd.f32 %v3785, %v4279
        %4281 = vmatmul.f32.gmra.mxu0 %v3831
        %v4282 = vpop.f32.mrf.mxu0
        %v4283 = vadd.f32 %v3785, %v4282
        %4284 = vmatmul.f32.gmra.mxu0 %v3834
        %v4285 = vpop.f32.mrf.mxu0
        %v4286 = vadd.f32 %v3785, %v4285
        %4287 = vmatmul.f32.gmra.mxu0 %v3837
        %v4288 = vpop.f32.mrf.mxu0
        %v4289 = vadd.f32 %v3785, %v4288
        %4290 = vmatmul.f32.gmra.mxu0 %v3840
        %v4291 = vpop.f32.mrf.mxu0
        %v4292 = vadd.f32 %v3785, %v4291
        %4293 = vmatmul.f32.gmra.mxu0 %v3843
        %v4294 = vpop.f32.mrf.mxu0
        %v4295 = vadd.f32 %v3785, %v4294
        %4296 = vmatmul.f32.gmra.mxu0 %v3846
        %v4297 = vpop.f32.mrf.mxu0
        %v4298 = vadd.f32 %v3785, %v4297
        %4299 = vmatmul.f32.gmra.mxu0 %v3849
        %v4300 = vpop.f32.mrf.mxu0
        %v4301 = vadd.f32 %v3785, %v4300
        %4302 = vmatmul.f32.gmra.mxu0 %v3852
        %v4303 = vpop.f32.mrf.mxu0
        %v4304 = vadd.f32 %v3785, %v4303
        %4305 = vmatmul.f32.gmra.mxu0 %v3855
        %v4306 = vpop.f32.mrf.mxu0
        %v4307 = vadd.f32 %v3785, %v4306
        %4308 = vmatmul.f32.gmra.mxu0 %v3858
        %v4309 = vpop.f32.mrf.mxu0
        %v4310 = vadd.f32 %v3785, %v4309
        %4311 = vmatmul.f32.gmra.mxu0 %v3861
        %v4312 = vpop.f32.mrf.mxu0
        %v4313 = vadd.f32 %v3785, %v4312
        %4314 = vmatmul.f32.gmra.mxu0 %v3864
        %v4315 = vpop.f32.mrf.mxu0
        %v4316 = vadd.f32 %v3785, %v4315
        %4317 = vmatmul.f32.gmra.mxu0 %v3867
        %v4318 = vpop.f32.mrf.mxu0
        %v4319 = vadd.f32 %v3785, %v4318
        %4320 = vmatmul.f32.gmra.mxu0 %v3870
        %v4321 = vpop.f32.mrf.mxu0
        %v4322 = vadd.f32 %v3785, %v4321
        %4323 = vmatmul.f32.gmra.mxu0 %v3873
        %v4324 = vpop.f32.mrf.mxu0
        %v4325 = vadd.f32 %v3785, %v4324
        %4326 = vmatmul.f32.gmra.mxu0 %v3876
        %v4327 = vpop.f32.mrf.mxu0
        %v4328 = vadd.f32 %v3785, %v4327
        %4329 = vmatmul.f32.gmra.mxu0 %v3879
        %v4330 = vpop.f32.mrf.mxu0
        %v4331 = vadd.f32 %v3785, %v4330
        %4332 = vmatmul.f32.gmra.mxu0 %v3882
        %v4333 = vpop.f32.mrf.mxu0
        %v4334 = vadd.f32 %v3785, %v4333
        %4335 = vmatmul.f32.gmra.mxu0 %v3885
        %v4336 = vpop.f32.mrf.mxu0
        %v4337 = vadd.f32 %v3785, %v4336
        %4338 = vdwg.mxu0
        %v4339 = vsub.f32 0.0, %v3905
        %v4340 = vsub.f32 0.0, %v4018
        %v4341 = vsub.f32 0.0, %v3908
        %v4342 = vsub.f32 0.0, %v4021
        %v4343 = vsub.f32 0.0, %v3911
        %v4344 = vsub.f32 0.0, %v4024
        %v4345 = vsub.f32 0.0, %v3914
        %v4346 = vsub.f32 0.0, %v4027
        %v4347 = vsub.f32 0.0, %v3917
        %v4348 = vsub.f32 0.0, %v4030
        %v4349 = vsub.f32 0.0, %v3920
        %v4350 = vsub.f32 0.0, %v4033
        %v4351 = vsub.f32 0.0, %v3923
        %v4352 = vsub.f32 0.0, %v4036
        %v4353 = vsub.f32 0.0, %v3926
        %v4354 = vsub.f32 0.0, %v4039
        %v4355 = vsub.f32 0.0, %v3929
        %v4356 = vsub.f32 0.0, %v4042
        %v4357 = vsub.f32 0.0, %v3932
        %v4358 = vsub.f32 0.0, %v4045
        %v4359 = vsub.f32 0.0, %v3935
        %v4360 = vsub.f32 0.0, %v4048
        %v4361 = vsub.f32 0.0, %v3938
        %v4362 = vsub.f32 0.0, %v4051
        %v4363 = vsub.f32 0.0, %v3941
        %v4364 = vsub.f32 0.0, %v4054
        %v4365 = vsub.f32 0.0, %v3944
        %v4366 = vsub.f32 0.0, %v4057
        %v4367 = vsub.f32 0.0, %v3947
        %v4368 = vsub.f32 0.0, %v4060
        %v4369 = vsub.f32 0.0, %v3950
        %v4370 = vsub.f32 0.0, %v4063
        %v4371 = vsub.f32 0.0, %v3953
        %v4372 = vsub.f32 0.0, %v4066
        %v4373 = vsub.f32 0.0, %v3956
        %v4374 = vsub.f32 0.0, %v4069
        %v4375 = vsub.f32 0.0, %v3959
        %v4376 = vsub.f32 0.0, %v4072
        %v4377 = vsub.f32 0.0, %v3962
        %v4378 = vsub.f32 0.0, %v4075
        %v4379 = vsub.f32 0.0, %v3965
        %v4380 = vsub.f32 0.0, %v4078
        %v4381 = vsub.f32 0.0, %v3968
        %v4382 = vsub.f32 0.0, %v4081
        %v4383 = vsub.f32 0.0, %v3971
        %v4384 = vsub.f32 0.0, %v4084
        %v4385 = vsub.f32 0.0, %v3974
        %v4386 = vsub.f32 0.0, %v4087
        %v4387 = vsub.f32 0.0, %v3977
        %v4388 = vsub.f32 0.0, %v4090
        %v4389 = vsub.f32 0.0, %v3980
        %v4390 = vsub.f32 0.0, %v4093
        %v4391 = vsub.f32 0.0, %v3983
        %v4392 = vsub.f32 0.0, %v4096
        %v4393 = vsub.f32 0.0, %v3986
        %v4394 = vsub.f32 0.0, %v4099
        %v4395 = vsub.f32 0.0, %v3989
        %v4396 = vsub.f32 0.0, %v4102
        %v4397 = vsub.f32 0.0, %v3992
        %v4398 = vsub.f32 0.0, %v4105
        %v4399 = vsub.f32 0.0, %v3995
        %v4400 = vsub.f32 0.0, %v4108
        %v4401 = vsub.f32 0.0, %v3998
        %v4402 = vsub.f32 0.0, %v4111
        %v4403 = vmul.f32 %v4339, 1.442695
        %v4404 = vpow.pop %v4403
        %v4405 = vmul.f32 %v4340, 1.442695
        %v4406 = vpow.pop %v4405
        %v4407 = vmul.f32 %v4341, 1.442695
        %v4408 = vpow.pop %v4407
        %v4409 = vmul.f32 %v4342, 1.442695
        %v4410 = vpow.pop %v4409
        %v4411 = vmul.f32 %v4343, 1.442695
        %v4412 = vpow.pop %v4411
        %v4413 = vmul.f32 %v4344, 1.442695
        %v4414 = vpow.pop %v4413
        %v4415 = vmul.f32 %v4345, 1.442695
        %v4416 = vpow.pop %v4415
        %v4417 = vmul.f32 %v4346, 1.442695
        %v4418 = vpow.pop %v4417
        %v4419 = vmul.f32 %v4347, 1.442695
        %v4420 = vpow.pop %v4419
        %v4421 = vmul.f32 %v4348, 1.442695
        %v4422 = vpow.pop %v4421
        %v4423 = vmul.f32 %v4349, 1.442695
        %v4424 = vpow.pop %v4423
        %v4425 = vmul.f32 %v4350, 1.442695
        %v4426 = vpow.pop %v4425
        %v4427 = vmul.f32 %v4351, 1.442695
        %v4428 = vpow.pop %v4427
        %v4429 = vmul.f32 %v4352, 1.442695
        %v4430 = vpow.pop %v4429
        %v4431 = vmul.f32 %v4353, 1.442695
        %v4432 = vpow.pop %v4431
        %v4433 = vmul.f32 %v4354, 1.442695
        %v4434 = vpow.pop %v4433
        %v4435 = vmul.f32 %v4355, 1.442695
        %v4436 = vpow.pop %v4435
        %v4437 = vmul.f32 %v4356, 1.442695
        %v4438 = vpow.pop %v4437
        %v4439 = vmul.f32 %v4357, 1.442695
        %v4440 = vpow.pop %v4439
        %v4441 = vmul.f32 %v4358, 1.442695
        %v4442 = vpow.pop %v4441
        %v4443 = vmul.f32 %v4359, 1.442695
        %v4444 = vpow.pop %v4443
        %v4445 = vmul.f32 %v4360, 1.442695
        %v4446 = vpow.pop %v4445
        %v4447 = vmul.f32 %v4361, 1.442695
        %v4448 = vpow.pop %v4447
        %v4449 = vmul.f32 %v4362, 1.442695
        %v4450 = vpow.pop %v4449
        %v4451 = vmul.f32 %v4363, 1.442695
        %v4452 = vpow.pop %v4451
        %v4453 = vmul.f32 %v4364, 1.442695
        %v4454 = vpow.pop %v4453
        %v4455 = vmul.f32 %v4365, 1.442695
        %v4456 = vpow.pop %v4455
        %v4457 = vmul.f32 %v4366, 1.442695
        %v4458 = vpow.pop %v4457
        %v4459 = vmul.f32 %v4367, 1.442695
        %v4460 = vpow.pop %v4459
        %v4461 = vmul.f32 %v4368, 1.442695
        %v4462 = vpow.pop %v4461
        %v4463 = vmul.f32 %v4369, 1.442695
        %v4464 = vpow.pop %v4463
        %v4465 = vmul.f32 %v4370, 1.442695
        %v4466 = vpow.pop %v4465
        %v4467 = vmul.f32 %v4371, 1.442695
        %v4468 = vpow.pop %v4467
        %v4469 = vmul.f32 %v4372, 1.442695
        %v4470 = vpow.pop %v4469
        %v4471 = vmul.f32 %v4373, 1.442695
        %v4472 = vpow.pop %v4471
        %v4473 = vmul.f32 %v4374, 1.442695
        %v4474 = vpow.pop %v4473
        %v4475 = vmul.f32 %v4375, 1.442695
        %v4476 = vpow.pop %v4475
        %v4477 = vmul.f32 %v4376, 1.442695
        %v4478 = vpow.pop %v4477
        %v4479 = vmul.f32 %v4377, 1.442695
        %v4480 = vpow.pop %v4479
        %v4481 = vmul.f32 %v4378, 1.442695
        %v4482 = vpow.pop %v4481
        %v4483 = vmul.f32 %v4379, 1.442695
        %v4484 = vpow.pop %v4483
        %v4485 = vmul.f32 %v4380, 1.442695
        %v4486 = vpow.pop %v4485
        %v4487 = vmul.f32 %v4381, 1.442695
        %v4488 = vpow.pop %v4487
        %v4489 = vmul.f32 %v4382, 1.442695
        %v4490 = vpow.pop %v4489
        %v4491 = vmul.f32 %v4383, 1.442695
        %v4492 = vpow.pop %v4491
        %v4493 = vmul.f32 %v4384, 1.442695
        %v4494 = vpow.pop %v4493
        %v4495 = vmul.f32 %v4385, 1.442695
        %v4496 = vpow.pop %v4495
        %v4497 = vmul.f32 %v4386, 1.442695
        %v4498 = vpow.pop %v4497
        %v4499 = vmul.f32 %v4387, 1.442695
        %v4500 = vpow.pop %v4499
        %v4501 = vmul.f32 %v4388, 1.442695
        %v4502 = vpow.pop %v4501
        %v4503 = vmul.f32 %v4389, 1.442695
        %v4504 = vpow.pop %v4503
        %v4505 = vmul.f32 %v4390, 1.442695
        %v4506 = vpow.pop %v4505
        %v4507 = vmul.f32 %v4391, 1.442695
        %v4508 = vpow.pop %v4507
        %v4509 = vmul.f32 %v4392, 1.442695
        %v4510 = vpow.pop %v4509
        %v4511 = vmul.f32 %v4393, 1.442695
        %v4512 = vpow.pop %v4511
        %v4513 = vmul.f32 %v4394, 1.442695
        %v4514 = vpow.pop %v4513
        %v4515 = vmul.f32 %v4395, 1.442695
        %v4516 = vpow.pop %v4515
        %v4517 = vmul.f32 %v4396, 1.442695
        %v4518 = vpow.pop %v4517
        %v4519 = vmul.f32 %v4397, 1.442695
        %v4520 = vpow.pop %v4519
        %v4521 = vmul.f32 %v4398, 1.442695
        %v4522 = vpow.pop %v4521
        %v4523 = vmul.f32 %v4399, 1.442695
        %v4524 = vpow.pop %v4523
        %v4525 = vmul.f32 %v4400, 1.442695
        %v4526 = vpow.pop %v4525
        %v4527 = vmul.f32 %v4401, 1.442695
        %v4528 = vpow.pop %v4527
        %v4529 = vmul.f32 %v4402, 1.442695
        %v4530 = vpow.pop %v4529
        %v4531 = vadd.f32 %v4404, 1.0
        %v4532 = vadd.f32 %v4406, 1.0
        %v4533 = vadd.f32 %v4408, 1.0
        %v4534 = vadd.f32 %v4410, 1.0
        %v4535 = vadd.f32 %v4412, 1.0
        %v4536 = vadd.f32 %v4414, 1.0
        %v4537 = vadd.f32 %v4416, 1.0
        %v4538 = vadd.f32 %v4418, 1.0
        %v4539 = vadd.f32 %v4420, 1.0
        %v4540 = vadd.f32 %v4422, 1.0
        %v4541 = vadd.f32 %v4424, 1.0
        %v4542 = vadd.f32 %v4426, 1.0
        %v4543 = vadd.f32 %v4428, 1.0
        %v4544 = vadd.f32 %v4430, 1.0
        %v4545 = vadd.f32 %v4432, 1.0
        %v4546 = vadd.f32 %v4434, 1.0
        %v4547 = vadd.f32 %v4436, 1.0
        %v4548 = vadd.f32 %v4438, 1.0
        %v4549 = vadd.f32 %v4440, 1.0
        %v4550 = vadd.f32 %v4442, 1.0
        %v4551 = vadd.f32 %v4444, 1.0
        %v4552 = vadd.f32 %v4446, 1.0
        %v4553 = vadd.f32 %v4448, 1.0
        %v4554 = vadd.f32 %v4450, 1.0
        %v4555 = vadd.f32 %v4452, 1.0
        %v4556 = vadd.f32 %v4454, 1.0
        %v4557 = vadd.f32 %v4456, 1.0
        %v4558 = vadd.f32 %v4458, 1.0
        %v4559 = vadd.f32 %v4460, 1.0
        %v4560 = vadd.f32 %v4462, 1.0
        %v4561 = vadd.f32 %v4464, 1.0
        %v4562 = vadd.f32 %v4466, 1.0
        %v4563 = vadd.f32 %v4468, 1.0
        %v4564 = vadd.f32 %v4470, 1.0
        %v4565 = vadd.f32 %v4472, 1.0
        %v4566 = vadd.f32 %v4474, 1.0
        %v4567 = vadd.f32 %v4476, 1.0
        %v4568 = vadd.f32 %v4478, 1.0
        %v4569 = vadd.f32 %v4480, 1.0
        %v4570 = vadd.f32 %v4482, 1.0
        %v4571 = vadd.f32 %v4484, 1.0
        %v4572 = vadd.f32 %v4486, 1.0
        %v4573 = vadd.f32 %v4488, 1.0
        %v4574 = vadd.f32 %v4490, 1.0
        %v4575 = vadd.f32 %v4492, 1.0
        %v4576 = vadd.f32 %v4494, 1.0
        %v4577 = vadd.f32 %v4496, 1.0
        %v4578 = vadd.f32 %v4498, 1.0
        %v4579 = vadd.f32 %v4500, 1.0
        %v4580 = vadd.f32 %v4502, 1.0
        %v4581 = vadd.f32 %v4504, 1.0
        %v4582 = vadd.f32 %v4506, 1.0
        %v4583 = vadd.f32 %v4508, 1.0
        %v4584 = vadd.f32 %v4510, 1.0
        %v4585 = vadd.f32 %v4512, 1.0
        %v4586 = vadd.f32 %v4514, 1.0
        %v4587 = vadd.f32 %v4516, 1.0
        %v4588 = vadd.f32 %v4518, 1.0
        %v4589 = vadd.f32 %v4520, 1.0
        %v4590 = vadd.f32 %v4522, 1.0
        %v4591 = vadd.f32 %v4524, 1.0
        %v4592 = vadd.f32 %v4526, 1.0
        %v4593 = vadd.f32 %v4528, 1.0
        %v4594 = vadd.f32 %v4530, 1.0
        %v4595 = vrcp.pop %v4531
        %v4596 = vrcp.pop %v4532
        %v4597 = vrcp.pop %v4533
        %v4598 = vrcp.pop %v4534
        %v4599 = vrcp.pop %v4535
        %v4600 = vrcp.pop %v4536
        %v4601 = vrcp.pop %v4537
        %v4602 = vrcp.pop %v4538
        %v4603 = vrcp.pop %v4539
        %v4604 = vrcp.pop %v4540
        %v4605 = vrcp.pop %v4541
        %v4606 = vrcp.pop %v4542
        %v4607 = vrcp.pop %v4543
        %v4608 = vrcp.pop %v4544
        %v4609 = vrcp.pop %v4545
        %v4610 = vrcp.pop %v4546
        %v4611 = vrcp.pop %v4547
        %v4612 = vrcp.pop %v4548
        %v4613 = vrcp.pop %v4549
        %v4614 = vrcp.pop %v4550
        %v4615 = vrcp.pop %v4551
        %v4616 = vrcp.pop %v4552
        %v4617 = vrcp.pop %v4553
        %v4618 = vrcp.pop %v4554
        %v4619 = vrcp.pop %v4555
        %v4620 = vrcp.pop %v4556
        %v4621 = vrcp.pop %v4557
        %v4622 = vrcp.pop %v4558
        %v4623 = vrcp.pop %v4559
        %v4624 = vrcp.pop %v4560
        %v4625 = vrcp.pop %v4561
        %v4626 = vrcp.pop %v4562
        %v4627 = vrcp.pop %v4563
        %v4628 = vrcp.pop %v4564
        %v4629 = vrcp.pop %v4565
        %v4630 = vrcp.pop %v4566
        %v4631 = vrcp.pop %v4567
        %v4632 = vrcp.pop %v4568
        %v4633 = vrcp.pop %v4569
        %v4634 = vrcp.pop %v4570
        %v4635 = vrcp.pop %v4571
        %v4636 = vrcp.pop %v4572
        %v4637 = vrcp.pop %v4573
        %v4638 = vrcp.pop %v4574
        %v4639 = vrcp.pop %v4575
        %v4640 = vrcp.pop %v4576
        %v4641 = vrcp.pop %v4577
        %v4642 = vrcp.pop %v4578
        %v4643 = vrcp.pop %v4579
        %v4644 = vrcp.pop %v4580
        %v4645 = vrcp.pop %v4581
        %v4646 = vrcp.pop %v4582
        %v4647 = vrcp.pop %v4583
        %v4648 = vrcp.pop %v4584
        %v4649 = vrcp.pop %v4585
        %v4650 = vrcp.pop %v4586
        %v4651 = vrcp.pop %v4587
        %v4652 = vrcp.pop %v4588
        %v4653 = vrcp.pop %v4589
        %v4654 = vrcp.pop %v4590
        %v4655 = vrcp.pop %v4591
        %v4656 = vrcp.pop %v4592
        %v4657 = vrcp.pop %v4593
        %v4658 = vrcp.pop %v4594
        %v4659 = vmul.f32 %v3442, %v4595
        %v4660 = vmul.f32 %v3443, %v4596
        %v4661 = vmul.f32 %v3444, %v4597
        %v4662 = vmul.f32 %v3445, %v4598
        %v4663 = vmul.f32 %v3446, %v4599
        %v4664 = vmul.f32 %v3447, %v4600
        %v4665 = vmul.f32 %v3448, %v4601
        %v4666 = vmul.f32 %v3449, %v4602
        %v4667 = vmul.f32 %v3450, %v4603
        %v4668 = vmul.f32 %v3451, %v4604
        %v4669 = vmul.f32 %v3452, %v4605
        %v4670 = vmul.f32 %v3453, %v4606
        %v4671 = vmul.f32 %v3454, %v4607
        %v4672 = vmul.f32 %v3455, %v4608
        %v4673 = vmul.f32 %v3456, %v4609
        %v4674 = vmul.f32 %v3457, %v4610
        %v4675 = vmul.f32 %v3458, %v4611
        %v4676 = vmul.f32 %v3459, %v4612
        %v4677 = vmul.f32 %v3460, %v4613
        %v4678 = vmul.f32 %v3461, %v4614
        %v4679 = vmul.f32 %v3462, %v4615
        %v4680 = vmul.f32 %v3463, %v4616
        %v4681 = vmul.f32 %v3464, %v4617
        %v4682 = vmul.f32 %v3465, %v4618
        %v4683 = vmul.f32 %v3466, %v4619
        %v4684 = vmul.f32 %v3467, %v4620
        %v4685 = vmul.f32 %v3468, %v4621
        %v4686 = vmul.f32 %v3469, %v4622
        %v4687 = vmul.f32 %v3470, %v4623
        %v4688 = vmul.f32 %v3471, %v4624
        %v4689 = vmul.f32 %v3472, %v4625
        %v4690 = vmul.f32 %v3473, %v4626
        %v4691 = vmul.f32 %v3474, %v4627
        %v4692 = vmul.f32 %v3475, %v4628
        %v4693 = vmul.f32 %v3476, %v4629
        %v4694 = vmul.f32 %v3477, %v4630
        %v4695 = vmul.f32 %v3478, %v4631
        %v4696 = vmul.f32 %v3479, %v4632
        %v4697 = vmul.f32 %v3480, %v4633
        %v4698 = vmul.f32 %v3481, %v4634
        %v4699 = vmul.f32 %v3482, %v4635
        %v4700 = vmul.f32 %v3483, %v4636
        %v4701 = vmul.f32 %v3484, %v4637
        %v4702 = vmul.f32 %v3485, %v4638
        %v4703 = vmul.f32 %v3486, %v4639
        %v4704 = vmul.f32 %v3487, %v4640
        %v4705 = vmul.f32 %v3488, %v4641
        %v4706 = vmul.f32 %v3489, %v4642
        %v4707 = vmul.f32 %v3490, %v4643
        %v4708 = vmul.f32 %v3491, %v4644
        %v4709 = vmul.f32 %v3492, %v4645
        %v4710 = vmul.f32 %v3493, %v4646
        %v4711 = vmul.f32 %v3494, %v4647
        %v4712 = vmul.f32 %v3495, %v4648
        %v4713 = vmul.f32 %v3496, %v4649
        %v4714 = vmul.f32 %v3497, %v4650
        %v4715 = vmul.f32 %v3498, %v4651
        %v4716 = vmul.f32 %v3499, %v4652
        %v4717 = vmul.f32 %v3500, %v4653
        %v4718 = vmul.f32 %v3501, %v4654
        %v4719 = vmul.f32 %v3502, %v4655
        %v4720 = vmul.f32 %v3503, %v4656
        %v4721 = vmul.f32 %v3504, %v4657
        %v4722 = vmul.f32 %v3505, %v4658
        %v4723 = vadd.f32 %v4659, %v4131
        %v4724 = vadd.f32 %v4660, %v4244
        %v4725 = vadd.f32 %v4661, %v4134
        %v4726 = vadd.f32 %v4662, %v4247
        %v4727 = vadd.f32 %v4663, %v4137
        %v4728 = vadd.f32 %v4664, %v4250
        %v4729 = vadd.f32 %v4665, %v4140
        %v4730 = vadd.f32 %v4666, %v4253
        %v4731 = vadd.f32 %v4667, %v4143
        %v4732 = vadd.f32 %v4668, %v4256
        %v4733 = vadd.f32 %v4669, %v4146
        %v4734 = vadd.f32 %v4670, %v4259
        %v4735 = vadd.f32 %v4671, %v4149
        %v4736 = vadd.f32 %v4672, %v4262
        %v4737 = vadd.f32 %v4673, %v4152
        %v4738 = vadd.f32 %v4674, %v4265
        %v4739 = vadd.f32 %v4675, %v4155
        %v4740 = vadd.f32 %v4676, %v4268
        %v4741 = vadd.f32 %v4677, %v4158
        %v4742 = vadd.f32 %v4678, %v4271
        %v4743 = vadd.f32 %v4679, %v4161
        %v4744 = vadd.f32 %v4680, %v4274
        %v4745 = vadd.f32 %v4681, %v4164
        %v4746 = vadd.f32 %v4682, %v4277
        %v4747 = vadd.f32 %v4683, %v4167
        %v4748 = vadd.f32 %v4684, %v4280
        %v4749 = vadd.f32 %v4685, %v4170
        %v4750 = vadd.f32 %v4686, %v4283
        %v4751 = vadd.f32 %v4687, %v4173
        %v4752 = vadd.f32 %v4688, %v4286
        %v4753 = vadd.f32 %v4689, %v4176
        %v4754 = vadd.f32 %v4690, %v4289
        %v4755 = vadd.f32 %v4691, %v4179
        %v4756 = vadd.f32 %v4692, %v4292
        %v4757 = vadd.f32 %v4693, %v4182
        %v4758 = vadd.f32 %v4694, %v4295
        %v4759 = vadd.f32 %v4695, %v4185
        %v4760 = vadd.f32 %v4696, %v4298
        %v4761 = vadd.f32 %v4697, %v4188
        %v4762 = vadd.f32 %v4698, %v4301
        %v4763 = vadd.f32 %v4699, %v4191
        %v4764 = vadd.f32 %v4700, %v4304
        %v4765 = vadd.f32 %v4701, %v4194
        %v4766 = vadd.f32 %v4702, %v4307
        %v4767 = vadd.f32 %v4703, %v4197
        %v4768 = vadd.f32 %v4704, %v4310
        %v4769 = vadd.f32 %v4705, %v4200
        %v4770 = vadd.f32 %v4706, %v4313
        %v4771 = vadd.f32 %v4707, %v4203
        %v4772 = vadd.f32 %v4708, %v4316
        %v4773 = vadd.f32 %v4709, %v4206
        %v4774 = vadd.f32 %v4710, %v4319
        %v4775 = vadd.f32 %v4711, %v4209
        %v4776 = vadd.f32 %v4712, %v4322
        %v4777 = vadd.f32 %v4713, %v4212
        %v4778 = vadd.f32 %v4714, %v4325
        %v4779 = vadd.f32 %v4715, %v4215
        %v4780 = vadd.f32 %v4716, %v4328
        %v4781 = vadd.f32 %v4717, %v4218
        %v4782 = vadd.f32 %v4718, %v4331
        %v4783 = vadd.f32 %v4719, %v4221
        %v4784 = vadd.f32 %v4720, %v4334
        %v4785 = vadd.f32 %v4721, %v4224
        %v4786 = vadd.f32 %v4722, %v4337
        %v4787 = vld [vmem:[%s8] sm:$0xff]
        %v4788 = vld [vmem:[%s8 + $0x8] sm:$0xff]
        %v4789 = vld [vmem:[%s8 + $0x10] sm:$0xff]
        %v4790 = vld [vmem:[%s8 + $0x18] sm:$0xff]
        %v4791 = vld [vmem:[%s8 + $0x20] sm:$0xff]
        %v4792 = vld [vmem:[%s8 + $0x28] sm:$0xff]
        %v4793 = vld [vmem:[%s8 + $0x30] sm:$0xff]
        %v4794 = vld [vmem:[%s8 + $0x38] sm:$0xff]
        %v4795 = vld [vmem:[%s8 + $0x40] sm:$0xff]
        %v4796 = vld [vmem:[%s8 + $0x48] sm:$0xff]
        %v4797 = vld [vmem:[%s8 + $0x50] sm:$0xff]
        %v4798 = vld [vmem:[%s8 + $0x58] sm:$0xff]
        %v4799 = vld [vmem:[%s8 + $0x60] sm:$0xff]
        %v4800 = vld [vmem:[%s8 + $0x68] sm:$0xff]
        %v4801 = vld [vmem:[%s8 + $0x70] sm:$0xff]
        %v4802 = vld [vmem:[%s8 + $0x78] sm:$0xff]
        %v4803 = vld [vmem:[%s8 + $0x80] sm:$0xff]
        %v4804 = vld [vmem:[%s8 + $0x88] sm:$0xff]
        %v4805 = vld [vmem:[%s8 + $0x90] sm:$0xff]
        %v4806 = vld [vmem:[%s8 + $0x98] sm:$0xff]
        %v4807 = vld [vmem:[%s8 + $0xa0] sm:$0xff]
        %v4808 = vld [vmem:[%s8 + $0xa8] sm:$0xff]
        %v4809 = vld [vmem:[%s8 + $0xb0] sm:$0xff]
        %v4810 = vld [vmem:[%s8 + $0xb8] sm:$0xff]
        %v4811 = vld [vmem:[%s8 + $0xc0] sm:$0xff]
        %v4812 = vld [vmem:[%s8 + $0xc8] sm:$0xff]
        %v4813 = vld [vmem:[%s8 + $0xd0] sm:$0xff]
        %v4814 = vld [vmem:[%s8 + $0xd8] sm:$0xff]
        %v4815 = vld [vmem:[%s8 + $0xe0] sm:$0xff]
        %v4816 = vld [vmem:[%s8 + $0xe8] sm:$0xff]
        %v4817 = vld [vmem:[%s8 + $0xf0] sm:$0xff]
        %v4818 = vld [vmem:[%s8 + $0xf8] sm:$0xff]
        %4819 = vmatpush.msra.mxu0 %v4802
        %4820 = vmatpush.msra.mxu0 %v4801
        %4821 = vmatpush.msra.mxu0 %v4800
        %4822 = vmatpush.msra.mxu0 %v4799
        %4823 = vmatpush.msra.mxu0 %v4798
        %4824 = vmatpush.msra.mxu0 %v4797
        %4825 = vmatpush.msra.mxu0 %v4796
        %4826 = vmatpush.msra.mxu0 %v4795
        %4827 = vmatpush.msra.mxu0 %v4794
        %4828 = vmatpush.msra.mxu0 %v4793
        %4829 = vmatpush.msra.mxu0 %v4792
        %4830 = vmatpush.msra.mxu0 %v4791
        %4831 = vmatpush.msra.mxu0 %v4790
        %4832 = vmatpush.msra.mxu0 %v4789
        %4833 = vmatpush.msra.mxu0 %v4788
        %4834 = vmatpush.msra.mxu0 %v4787
        %4835 = vmatmul.f32.gmra.mxu0 %v4723
        %v4836 = vpop.f32.mrf.mxu0
        %v4837 = vadd.f32 0.0, %v4836
        %4838 = vmatmul.f32.gmra.mxu0 %v4725
        %v4839 = vpop.f32.mrf.mxu0
        %v4840 = vadd.f32 0.0, %v4839
        %4841 = vmatmul.f32.gmra.mxu0 %v4727
        %v4842 = vpop.f32.mrf.mxu0
        %v4843 = vadd.f32 0.0, %v4842
        %4844 = vmatmul.f32.gmra.mxu0 %v4729
        %v4845 = vpop.f32.mrf.mxu0
        %v4846 = vadd.f32 0.0, %v4845
        %4847 = vmatmul.f32.gmra.mxu0 %v4731
        %v4848 = vpop.f32.mrf.mxu0
        %v4849 = vadd.f32 0.0, %v4848
        %4850 = vmatmul.f32.gmra.mxu0 %v4733
        %v4851 = vpop.f32.mrf.mxu0
        %v4852 = vadd.f32 0.0, %v4851
        %4853 = vmatmul.f32.gmra.mxu0 %v4735
        %v4854 = vpop.f32.mrf.mxu0
        %v4855 = vadd.f32 0.0, %v4854
        %4856 = vmatmul.f32.gmra.mxu0 %v4737
        %v4857 = vpop.f32.mrf.mxu0
        %v4858 = vadd.f32 0.0, %v4857
        %4859 = vmatmul.f32.gmra.mxu0 %v4739
        %v4860 = vpop.f32.mrf.mxu0
        %v4861 = vadd.f32 0.0, %v4860
        %4862 = vmatmul.f32.gmra.mxu0 %v4741
        %v4863 = vpop.f32.mrf.mxu0
        %v4864 = vadd.f32 0.0, %v4863
        %4865 = vmatmul.f32.gmra.mxu0 %v4743
        %v4866 = vpop.f32.mrf.mxu0
        %v4867 = vadd.f32 0.0, %v4866
        %4868 = vmatmul.f32.gmra.mxu0 %v4745
        %v4869 = vpop.f32.mrf.mxu0
        %v4870 = vadd.f32 0.0, %v4869
        %4871 = vmatmul.f32.gmra.mxu0 %v4747
        %v4872 = vpop.f32.mrf.mxu0
        %v4873 = vadd.f32 0.0, %v4872
        %4874 = vmatmul.f32.gmra.mxu0 %v4749
        %v4875 = vpop.f32.mrf.mxu0
        %v4876 = vadd.f32 0.0, %v4875
        %4877 = vmatmul.f32.gmra.mxu0 %v4751
        %v4878 = vpop.f32.mrf.mxu0
        %v4879 = vadd.f32 0.0, %v4878
        %4880 = vmatmul.f32.gmra.mxu0 %v4753
        %v4881 = vpop.f32.mrf.mxu0
        %v4882 = vadd.f32 0.0, %v4881
        %4883 = vmatmul.f32.gmra.mxu0 %v4755
        %v4884 = vpop.f32.mrf.mxu0
        %v4885 = vadd.f32 0.0, %v4884
        %4886 = vmatmul.f32.gmra.mxu0 %v4757
        %v4887 = vpop.f32.mrf.mxu0
        %v4888 = vadd.f32 0.0, %v4887
        %4889 = vmatmul.f32.gmra.mxu0 %v4759
        %v4890 = vpop.f32.mrf.mxu0
        %v4891 = vadd.f32 0.0, %v4890
        %4892 = vmatmul.f32.gmra.mxu0 %v4761
        %v4893 = vpop.f32.mrf.mxu0
        %v4894 = vadd.f32 0.0, %v4893
        %4895 = vmatmul.f32.gmra.mxu0 %v4763
        %v4896 = vpop.f32.mrf.mxu0
        %v4897 = vadd.f32 0.0, %v4896
        %4898 = vmatmul.f32.gmra.mxu0 %v4765
        %v4899 = vpop.f32.mrf.mxu0
        %v4900 = vadd.f32 0.0, %v4899
        %4901 = vmatmul.f32.gmra.mxu0 %v4767
        %v4902 = vpop.f32.mrf.mxu0
        %v4903 = vadd.f32 0.0, %v4902
        %4904 = vmatmul.f32.gmra.mxu0 %v4769
        %v4905 = vpop.f32.mrf.mxu0
        %v4906 = vadd.f32 0.0, %v4905
        %4907 = vmatmul.f32.gmra.mxu0 %v4771
        %v4908 = vpop.f32.mrf.mxu0
        %v4909 = vadd.f32 0.0, %v4908
        %4910 = vmatmul.f32.gmra.mxu0 %v4773
        %v4911 = vpop.f32.mrf.mxu0
        %v4912 = vadd.f32 0.0, %v4911
        %4913 = vmatmul.f32.gmra.mxu0 %v4775
        %v4914 = vpop.f32.mrf.mxu0
        %v4915 = vadd.f32 0.0, %v4914
        %4916 = vmatmul.f32.gmra.mxu0 %v4777
        %v4917 = vpop.f32.mrf.mxu0
        %v4918 = vadd.f32 0.0, %v4917
        %4919 = vmatmul.f32.gmra.mxu0 %v4779
        %v4920 = vpop.f32.mrf.mxu0
        %v4921 = vadd.f32 0.0, %v4920
        %4922 = vmatmul.f32.gmra.mxu0 %v4781
        %v4923 = vpop.f32.mrf.mxu0
        %v4924 = vadd.f32 0.0, %v4923
        %4925 = vmatmul.f32.gmra.mxu0 %v4783
        %v4926 = vpop.f32.mrf.mxu0
        %v4927 = vadd.f32 0.0, %v4926
        %4928 = vmatmul.f32.gmra.mxu0 %v4785
        %v4929 = vpop.f32.mrf.mxu0
        %v4930 = vadd.f32 0.0, %v4929
        %4931 = vdwg.mxu0
        %4932 = vmatpush.msra.mxu0 %v4818
        %4933 = vmatpush.msra.mxu0 %v4817
        %4934 = vmatpush.msra.mxu0 %v4816
        %4935 = vmatpush.msra.mxu0 %v4815
        %4936 = vmatpush.msra.mxu0 %v4814
        %4937 = vmatpush.msra.mxu0 %v4813
        %4938 = vmatpush.msra.mxu0 %v4812
        %4939 = vmatpush.msra.mxu0 %v4811
        %4940 = vmatpush.msra.mxu0 %v4810
        %4941 = vmatpush.msra.mxu0 %v4809
        %4942 = vmatpush.msra.mxu0 %v4808
        %4943 = vmatpush.msra.mxu0 %v4807
        %4944 = vmatpush.msra.mxu0 %v4806
        %4945 = vmatpush.msra.mxu0 %v4805
        %4946 = vmatpush.msra.mxu0 %v4804
        %4947 = vmatpush.msra.mxu0 %v4803
        %4948 = vmatmul.f32.gmra.mxu0 %v4724
        %v4949 = vpop.f32.mrf.mxu0
        %v4950 = vadd.f32 %v4837, %v4949
        %4951 = vmatmul.f32.gmra.mxu0 %v4726
        %v4952 = vpop.f32.mrf.mxu0
        %v4953 = vadd.f32 %v4840, %v4952
        %4954 = vmatmul.f32.gmra.mxu0 %v4728
        %v4955 = vpop.f32.mrf.mxu0
        %v4956 = vadd.f32 %v4843, %v4955
        %4957 = vmatmul.f32.gmra.mxu0 %v4730
        %v4958 = vpop.f32.mrf.mxu0
        %v4959 = vadd.f32 %v4846, %v4958
        %4960 = vmatmul.f32.gmra.mxu0 %v4732
        %v4961 = vpop.f32.mrf.mxu0
        %v4962 = vadd.f32 %v4849, %v4961
        %4963 = vmatmul.f32.gmra.mxu0 %v4734
        %v4964 = vpop.f32.mrf.mxu0
        %v4965 = vadd.f32 %v4852, %v4964
        %4966 = vmatmul.f32.gmra.mxu0 %v4736
        %v4967 = vpop.f32.mrf.mxu0
        %v4968 = vadd.f32 %v4855, %v4967
        %4969 = vmatmul.f32.gmra.mxu0 %v4738
        %v4970 = vpop.f32.mrf.mxu0
        %v4971 = vadd.f32 %v4858, %v4970
        %4972 = vmatmul.f32.gmra.mxu0 %v4740
        %v4973 = vpop.f32.mrf.mxu0
        %v4974 = vadd.f32 %v4861, %v4973
        %4975 = vmatmul.f32.gmra.mxu0 %v4742
        %v4976 = vpop.f32.mrf.mxu0
        %v4977 = vadd.f32 %v4864, %v4976
        %4978 = vmatmul.f32.gmra.mxu0 %v4744
        %v4979 = vpop.f32.mrf.mxu0
        %v4980 = vadd.f32 %v4867, %v4979
        %4981 = vmatmul.f32.gmra.mxu0 %v4746
        %v4982 = vpop.f32.mrf.mxu0
        %v4983 = vadd.f32 %v4870, %v4982
        %4984 = vmatmul.f32.gmra.mxu0 %v4748
        %v4985 = vpop.f32.mrf.mxu0
        %v4986 = vadd.f32 %v4873, %v4985
        %4987 = vmatmul.f32.gmra.mxu0 %v4750
        %v4988 = vpop.f32.mrf.mxu0
        %v4989 = vadd.f32 %v4876, %v4988
        %4990 = vmatmul.f32.gmra.mxu0 %v4752
        %v4991 = vpop.f32.mrf.mxu0
        %v4992 = vadd.f32 %v4879, %v4991
        %4993 = vmatmul.f32.gmra.mxu0 %v4754
        %v4994 = vpop.f32.mrf.mxu0
        %v4995 = vadd.f32 %v4882, %v4994
        %4996 = vmatmul.f32.gmra.mxu0 %v4756
        %v4997 = vpop.f32.mrf.mxu0
        %v4998 = vadd.f32 %v4885, %v4997
        %4999 = vmatmul.f32.gmra.mxu0 %v4758
        %v5000 = vpop.f32.mrf.mxu0
        %v5001 = vadd.f32 %v4888, %v5000
        %5002 = vmatmul.f32.gmra.mxu0 %v4760
        %v5003 = vpop.f32.mrf.mxu0
        %v5004 = vadd.f32 %v4891, %v5003
        %5005 = vmatmul.f32.gmra.mxu0 %v4762
        %v5006 = vpop.f32.mrf.mxu0
        %v5007 = vadd.f32 %v4894, %v5006
        %5008 = vmatmul.f32.gmra.mxu0 %v4764
        %v5009 = vpop.f32.mrf.mxu0
        %v5010 = vadd.f32 %v4897, %v5009
        %5011 = vmatmul.f32.gmra.mxu0 %v4766
        %v5012 = vpop.f32.mrf.mxu0
        %v5013 = vadd.f32 %v4900, %v5012
        %5014 = vmatmul.f32.gmra.mxu0 %v4768
        %v5015 = vpop.f32.mrf.mxu0
        %v5016 = vadd.f32 %v4903, %v5015
        %5017 = vmatmul.f32.gmra.mxu0 %v4770
        %v5018 = vpop.f32.mrf.mxu0
        %v5019 = vadd.f32 %v4906, %v5018
        %5020 = vmatmul.f32.gmra.mxu0 %v4772
        %v5021 = vpop.f32.mrf.mxu0
        %v5022 = vadd.f32 %v4909, %v5021
        %5023 = vmatmul.f32.gmra.mxu0 %v4774
        %v5024 = vpop.f32.mrf.mxu0
        %v5025 = vadd.f32 %v4912, %v5024
        %5026 = vmatmul.f32.gmra.mxu0 %v4776
        %v5027 = vpop.f32.mrf.mxu0
        %v5028 = vadd.f32 %v4915, %v5027
        %5029 = vmatmul.f32.gmra.mxu0 %v4778
        %v5030 = vpop.f32.mrf.mxu0
        %v5031 = vadd.f32 %v4918, %v5030
        %5032 = vmatmul.f32.gmra.mxu0 %v4780
        %v5033 = vpop.f32.mrf.mxu0
        %v5034 = vadd.f32 %v4921, %v5033
        %5035 = vmatmul.f32.gmra.mxu0 %v4782
        %v5036 = vpop.f32.mrf.mxu0
        %v5037 = vadd.f32 %v4924, %v5036
        %5038 = vmatmul.f32.gmra.mxu0 %v4784
        %v5039 = vpop.f32.mrf.mxu0
        %v5040 = vadd.f32 %v4927, %v5039
        %5041 = vmatmul.f32.gmra.mxu0 %v4786
        %v5042 = vpop.f32.mrf.mxu0
        %v5043 = vadd.f32 %v4930, %v5042
        %5044 = vdwg.mxu0
        %v5045 = vadd.f32 %v355, %v4950
        %v5046 = vadd.f32 %v356, %v4953
        %v5047 = vadd.f32 %v357, %v4956
        %v5048 = vadd.f32 %v358, %v4959
        %v5049 = vadd.f32 %v359, %v4962
        %v5050 = vadd.f32 %v360, %v4965
        %v5051 = vadd.f32 %v361, %v4968
        %v5052 = vadd.f32 %v362, %v4971
        %v5053 = vadd.f32 %v363, %v4974
        %v5054 = vadd.f32 %v364, %v4977
        %v5055 = vadd.f32 %v365, %v4980
        %v5056 = vadd.f32 %v366, %v4983
        %v5057 = vadd.f32 %v367, %v4986
        %v5058 = vadd.f32 %v368, %v4989
        %v5059 = vadd.f32 %v369, %v4992
        %v5060 = vadd.f32 %v370, %v4995
        %v5061 = vadd.f32 %v371, %v4998
        %v5062 = vadd.f32 %v372, %v5001
        %v5063 = vadd.f32 %v373, %v5004
        %v5064 = vadd.f32 %v374, %v5007
        %v5065 = vadd.f32 %v375, %v5010
        %v5066 = vadd.f32 %v376, %v5013
        %v5067 = vadd.f32 %v377, %v5016
        %v5068 = vadd.f32 %v378, %v5019
        %v5069 = vadd.f32 %v379, %v5022
        %v5070 = vadd.f32 %v380, %v5025
        %v5071 = vadd.f32 %v381, %v5028
        %v5072 = vadd.f32 %v382, %v5031
        %v5073 = vadd.f32 %v383, %v5034
        %v5074 = vadd.f32 %v384, %v5037
        %v5075 = vadd.f32 %v385, %v5040
        %v5076 = vadd.f32 %v386, %v5043
        %5077 = vst [vmem:[%s352] sm:$0xff] %v5045
        %5078 = vst [vmem:[%s352 + $0x8] sm:$0xff] %v5046
        %5079 = vst [vmem:[%s352 + $0x10] sm:$0xff] %v5047
        %5080 = vst [vmem:[%s352 + $0x18] sm:$0xff] %v5048
        %5081 = vst [vmem:[%s352 + $0x20] sm:$0xff] %v5049
        %5082 = vst [vmem:[%s352 + $0x28] sm:$0xff] %v5050
        %5083 = vst [vmem:[%s352 + $0x30] sm:$0xff] %v5051
        %5084 = vst [vmem:[%s352 + $0x38] sm:$0xff] %v5052
        %5085 = vst [vmem:[%s352 + $0x40] sm:$0xff] %v5053
        %5086 = vst [vmem:[%s352 + $0x48] sm:$0xff] %v5054
        %5087 = vst [vmem:[%s352 + $0x50] sm:$0xff] %v5055
        %5088 = vst [vmem:[%s352 + $0x58] sm:$0xff] %v5056
        %5089 = vst [vmem:[%s352 + $0x60] sm:$0xff] %v5057
        %5090 = vst [vmem:[%s352 + $0x68] sm:$0xff] %v5058
        %5091 = vst [vmem:[%s352 + $0x70] sm:$0xff] %v5059
        %5092 = vst [vmem:[%s352 + $0x78] sm:$0xff] %v5060
        %5093 = vst [vmem:[%s352 + $0x80] sm:$0xff] %v5061
        %5094 = vst [vmem:[%s352 + $0x88] sm:$0xff] %v5062
        %5095 = vst [vmem:[%s352 + $0x90] sm:$0xff] %v5063
        %5096 = vst [vmem:[%s352 + $0x98] sm:$0xff] %v5064
        %5097 = vst [vmem:[%s352 + $0xa0] sm:$0xff] %v5065
        %5098 = vst [vmem:[%s352 + $0xa8] sm:$0xff] %v5066
        %5099 = vst [vmem:[%s352 + $0xb0] sm:$0xff] %v5067
        %5100 = vst [vmem:[%s352 + $0xb8] sm:$0xff] %v5068
        %5101 = vst [vmem:[%s352 + $0xc0] sm:$0xff] %v5069
        %5102 = vst [vmem:[%s352 + $0xc8] sm:$0xff] %v5070
        %5103 = vst [vmem:[%s352 + $0xd0] sm:$0xff] %v5071
        %5104 = vst [vmem:[%s352 + $0xd8] sm:$0xff] %v5072
        %5105 = vst [vmem:[%s352 + $0xe0] sm:$0xff] %v5073
        %5106 = vst [vmem:[%s352 + $0xe8] sm:$0xff] %v5074
        %5107 = vst [vmem:[%s352 + $0xf0] sm:$0xff] %v5075
        %5108 = vst [vmem:[%s352 + $0xf8] sm:$0xff] %v5076
        %s5109 = sand.u32 %s228, 1
        %s5110 = scalar_lea.sflag [#allocation4], %s5109
        %s5111 = sand.u32 %s228, 1
        %s5112 = smul.addr %s5111, 256
        %s5113 = scalar_lea.vmem [#allocation5], %s5112
        // Predicated region
        $region61: #{tpu_custom_call.1} parent=55 // pred_check
          %p5114 = pneg %p238
        $region62: #{tpu_custom_call.1} parent=55 // pred_check_branch
          %5116 = sbr.rel (%p5114) target = $region64
        $region63: #{tpu_custom_call.1} parent=55 // pred_region
          %s5117 = smul.u32 32, %s26
          %5119 = vsyncadd %s5110, 0
          %s5120 = smul.addr %s5117, 8
          %s5121 = scalar_lea.hbm %s9, %s5120
          %s5122 = sshll.u32 %s5113, 4
          %s5123 = int_to_ptr.vmem [resolvable:$true] %s5122
          %s5124 = sshll.u32 %s5121, 4
          %s5125 = int_to_ptr.hbm [resolvable:$true] %s5124
          %5130 = dma.vmem_to_hbm [thread:$0]  %s5123, 4096, %s5125, %s5110, 128, 128, 8
        $region64: #{tpu_custom_call.1} parent=55 // pred_fallthru
          _
      $region56: #{tpu_custom_call.1} parent=5 // pred_fallthru
        _
      %p5131 = scmp.le.s32.totalorder 2, %s21
      // Predicated region
      $region65: #{tpu_custom_call.1} parent=5 // pred_check
        %p5132 = pneg %p5131
      $region66: #{tpu_custom_call.1} parent=5 // pred_check_branch
        %5134 = sbr.rel (%p5132) target = $region68
      $region67: #{tpu_custom_call.1} parent=5 // pred_region
        %s5135 = ssub.s32 %s21, 2
        // Predicated region
        $region69: #{tpu_custom_call.1} parent=67 // pred_check
          %p5136 = pneg %p244
        $region70: #{tpu_custom_call.1} parent=67 // pred_check_branch
          %5138 = sbr.rel (%p5136) target = $region72
        $region71: #{tpu_custom_call.1} parent=67 // pred_region
          %s5139 = sand.u32 %s229, 1
          %s5140 = scalar_lea.sflag [#allocation4], %s5139
          %s5141 = sand.u32 %s229, 1
          %s5142 = smul.addr %s5141, 256
          %s5143 = scalar_lea.vmem [#allocation5], %s5142
          %5145 = dma.done %s5140, 4096
        $region72: #{tpu_custom_call.1} parent=67 // pred_fallthru
          _
      $region68: #{tpu_custom_call.1} parent=5 // pred_fallthru
        _
    $region6: #{tpu_custom_call.1} parent=1 // loop_footer
      %s25 = sadd.s32 1, %s21
    $region7: #{tpu_custom_call.1} parent=1 // loop_footer_branch
      %20 = sbr.rel target = $region3
    $region8: #{tpu_custom_call.1} parent=1 // loop_exit
      _
    %5146 = vsyncpa [#allocation3], 1
    %s5147 = scalar_lea.sflag [#allocation3], 1
    %5148 = vsyncpa %s5147, 1
    %5149 = vsyncpa [#allocation4], 1
    %s5150 = scalar_lea.sflag [#allocation4], 1
    %5151 = vsyncpa %s5150, 1

// kernel: tpu_custom_call.1
$region0: #{tpu_custom_call.1}
  #allocation0 [shape = 'u32[]', space=smem, size = 0x4, offset = 0x4, fixed_abs, tag = 'smem constant byte address 0x4 - core index']
  #allocation1 [shape = 'u32[72,128]{1,0:T(1,128)}', space=vmem, size = 0x9000, scoped, tag = 'internal scratch']
  %s0 = inlined_call_operand.hbm [shape: f32[512,128], index: 0, kind: input, shape index: {}, may-alias: {0,9}]
  %s1 = inlined_call_operand.vmem [shape: f32[1,128], index: 1, kind: input, shape index: {}]
  %s2 = inlined_call_operand.vmem [shape: f32[1,128], index: 2, kind: input, shape index: {}]
  %s3 = inlined_call_operand.vmem [shape: f32[128,256], index: 3, kind: input, shape index: {}]
  %s4 = inlined_call_operand.vmem [shape: f32[4,256], index: 4, kind: input, shape index: {}]
  %s5 = inlined_call_operand.vmem [shape: f32[256,32], index: 5, kind: input, shape index: {}]
  %s6 = inlined_call_operand.vmem [shape: f32[32,512], index: 6, kind: input, shape index: {}]
  %s7 = inlined_call_operand.vmem [shape: f32[1,512], index: 7, kind: input, shape index: {}]
  %s8 = inlined_call_operand.vmem [shape: f32[256,128], index: 8, kind: input, shape index: {}]
  %s9 = inlined_call_operand.hbm [shape: f32[512,128], index: 9, kind: output, shape index: {}, may-alias: {0,9}]
  %s10 = sld [smem:[#allocation0]]
  $region73: #{tpu_custom_call.1} parent=0
    _
  %s12 = ssub.s32 1, %s10
  %s13 = scalar_select 0, %s12, %s10
  $region1: #{tpu_custom_call.1} parent=0
    #allocation2 [shape = 'u8[262144]{0}', space=vmem, size = 0x40000, scoped, tag = 'input window, operand 0']
    #allocation3 [shape = 's32[2]{0}', space=sflag, size = 0x8, scoped, tag = 'scoped memory for tpu_custom_call.1']
    #allocation4 [shape = 's32[2]{0}', space=sflag, size = 0x8, scoped, tag = 'scoped memory for tpu_custom_call.1']
    #allocation5 [shape = 'u8[262144]{0}', space=vmem, size = 0x40000, scoped, tag = 'output window, operand 0']
    %14 = vsyncpa [#allocation3], 0
    %s15 = scalar_lea.sflag [#allocation3], 1
    %16 = vsyncpa %s15, 0
    %17 = vsyncpa [#allocation4], 0
    %s18 = scalar_lea.sflag [#allocation4], 1
    %19 = vsyncpa %s18, 0
    loop: start=0, step=1, limit=4
    $region2: #{tpu_custom_call.1} parent=1 // loop_pre_header
      _
    $region3: #{tpu_custom_call.1} parent=1 // loop_header
      %s21 = sphi 0, %s25
      %p22 = scmp.ge.s32.totalorder %s21, 4
      %s31 = sphi 0, %s33
      %s34 = sphi 0, %s31
      %s35 = sphi 0, %s34
      %s51 = sphi 0, %s35
      %s55 = sphi 0, %s55
      %s57 = sphi 0, %s55
      %s58 = sphi 0, %s57
      %s72 = sphi 0, %s58
      %s76 = sphi 0, %s76
      %s78 = sphi 0, %s76
      %s79 = sphi 0, %s78
      %s93 = sphi 0, %s79
      %s97 = sphi 0, %s97
      %s99 = sphi 0, %s97
      %s100 = sphi 0, %s99
      %s114 = sphi 0, %s100
      %s118 = sphi 0, %s118
      %s120 = sphi 0, %s118
      %s121 = sphi 0, %s120
      %s135 = sphi 0, %s121
      %s139 = sphi 0, %s139
      %s141 = sphi 0, %s139
      %s142 = sphi 0, %s141
      %s156 = sphi 0, %s142
      %s160 = sphi 0, %s160
      %s162 = sphi 0, %s160
      %s163 = sphi 0, %s162
      %s177 = sphi 0, %s163
      %s181 = sphi 0, %s181
      %s183 = sphi 0, %s181
      %s184 = sphi 0, %s183
      %s198 = sphi 0, %s184
      %s202 = sphi 0, %s202
      %s204 = sphi 0, %s202
      %s205 = sphi 0, %s204
      %s219 = sphi 0, %s205
      %s225 = sphi 0, %s227
      %s228 = sphi 0, %s225
      %s229 = sphi 0, %s228
      %s245 = sphi 0, %s229
    $region4: #{tpu_custom_call.1} parent=1 // loop_header_branch
      %24 = sbr.rel (%p22) target = $region8
    $region5: #{tpu_custom_call.1} parent=1 // loop_body
      %s26 = ssub.s32 %s21, 1
      %s27 = ssub.s32 %s21, 2
      %s28 = sadd.s32 %s21, 1
      %s29 = ssub.s32 %s21, %s28
      %p30 = scmp.eq.s32.totalorder %s29, 0
      %s32 = sadd.s32 %s31, 1
      %s33 = scalar_select %p30, %s31, %s32
      %p36 = pneg %p30
      %p37 = scmp.eq.s32.totalorder %s21, 1
      %p38 = por %p36, %p37
      %p39 = scmp.ne.s32.totalorder %s31, %s34
      %p40 = scmp.eq.s32.totalorder %s21, 0
      %p41 = por %p39, %p40
      %p42 = scmp.ne.s32.totalorder %s31, %s34
      %p43 = scmp.eq.s32.totalorder %s26, 1
      %p44 = por %p42, %p43
      %p45 = scmp.ne.s32.totalorder %s34, %s35
      %p46 = scmp.eq.s32.totalorder %s26, 0
      %p47 = por %p45, %p46
      %p48 = scmp.ne.s32.totalorder %s34, %s35
      %p49 = scmp.eq.s32.totalorder %s27, 1
      %p50 = por %p48, %p49
      %p52 = scmp.ne.s32.totalorder %s35, %s51
      %p53 = scmp.eq.s32.totalorder %s27, 0
      %p54 = por %p52, %p53
      %s56 = sadd.s32 %s55, 1
      %p59 = scmp.eq.s32.totalorder %s21, 1
      %p60 = scmp.ne.s32.totalorder %s55, %s57
      %p61 = scmp.eq.s32.totalorder %s21, 0
      %p62 = por %p60, %p61
      %p63 = scmp.ne.s32.totalorder %s55, %s57
      %p64 = scmp.eq.s32.totalorder %s26, 1
      %p65 = por %p63, %p64
      %p66 = scmp.ne.s32.totalorder %s57, %s58
      %p67 = scmp.eq.s32.totalorder %s26, 0
      %p68 = por %p66, %p67
      %p69 = scmp.ne.s32.totalorder %s57, %s58
      %p70 = scmp.eq.s32.totalorder %s27, 1
      %p71 = por %p69, %p70
      %p73 = scmp.ne.s32.totalorder %s58, %s72
      %p74 = scmp.eq.s32.totalorder %s27, 0
      %p75 = por %p73, %p74
      %s77 = sadd.s32 %s76, 1
      %p80 = scmp.eq.s32.totalorder %s21, 1
      %p81 = scmp.ne.s32.totalorder %s76, %s78
      %p82 = scmp.eq.s32.totalorder %s21, 0
      %p83 = por %p81, %p82
      %p84 = scmp.ne.s32.totalorder %s76, %s78
      %p85 = scmp.eq.s32.totalorder %s26, 1
      %p86 = por %p84, %p85
      %p87 = scmp.ne.s32.totalorder %s78, %s79
      %p88 = scmp.eq.s32.totalorder %s26, 0
      %p89 = por %p87, %p88
      %p90 = scmp.ne.s32.totalorder %s78, %s79
      %p91 = scmp.eq.s32.totalorder %s27, 1
      %p92 = por %p90, %p91
      %p94 = scmp.ne.s32.totalorder %s79, %s93
      %p95 = scmp.eq.s32.totalorder %s27, 0
      %p96 = por %p94, %p95
      %s98 = sadd.s32 %s97, 1
      %p101 = scmp.eq.s32.totalorder %s21, 1
      %p102 = scmp.ne.s32.totalorder %s97, %s99
      %p103 = scmp.eq.s32.totalorder %s21, 0
      %p104 = por %p102, %p103
      %p105 = scmp.ne.s32.totalorder %s97, %s99
      %p106 = scmp.eq.s32.totalorder %s26, 1
      %p107 = por %p105, %p106
      %p108 = scmp.ne.s32.totalorder %s99, %s100
      %p109 = scmp.eq.s32.totalorder %s26, 0
      %p110 = por %p108, %p109
      %p111 = scmp.ne.s32.totalorder %s99, %s100
      %p112 = scmp.eq.s32.totalorder %s27, 1
      %p113 = por %p111, %p112
      %p115 = scmp.ne.s32.totalorder %s100, %s114
      %p116 = scmp.eq.s32.totalorder %s27, 0
      %p117 = por %p115, %p116
      %s119 = sadd.s32 %s118, 1
      %p122 = scmp.eq.s32.totalorder %s21, 1
      %p123 = scmp.ne.s32.totalorder %s118, %s120
      %p124 = scmp.eq.s32.totalorder %s21, 0
      %p125 = por %p123, %p124
      %p126 = scmp.ne.s32.totalorder %s118, %s120
      %p127 = scmp.eq.s32.totalorder %s26, 1
      %p128 = por %p126, %p127
      %p129 = scmp.ne.s32.totalorder %s120, %s121
      %p130 = scmp.eq.s32.totalorder %s26, 0
      %p131 = por %p129, %p130
      %p132 = scmp.ne.s32.totalorder %s120, %s121
      %p133 = scmp.eq.s32.totalorder %s27, 1
      %p134 = por %p132, %p133
      %p136 = scmp.ne.s32.totalorder %s121, %s135
      %p137 = scmp.eq.s32.totalorder %s27, 0
      %p138 = por %p136, %p137
      %s140 = sadd.s32 %s139, 1
      %p143 = scmp.eq.s32.totalorder %s21, 1
      %p144 = scmp.ne.s32.totalorder %s139, %s141
      %p145 = scmp.eq.s32.totalorder %s21, 0
      %p146 = por %p144, %p145
      %p147 = scmp.ne.s32.totalorder %s139, %s141
      %p148 = scmp.eq.s32.totalorder %s26, 1
      %p149 = por %p147, %p148
      %p150 = scmp.ne.s32.totalorder %s141, %s142
      %p151 = scmp.eq.s32.totalorder %s26, 0
      %p152 = por %p150, %p151
      %p153 = scmp.ne.s32.totalorder %s141, %s142
      %p154 = scmp.eq.s32.totalorder %s27, 1
      %p155 = por %p153, %p154
      %p157 = scmp.ne.s32.totalorder %s142, %s156
      %p158 = scmp.eq.s32.totalorder %s27, 0
      %p159 = por %p157, %p158
      %s161 = sadd.s32 %s160, 1
      %p164 = scmp.eq.s32.totalorder %s21, 1
      %p165 = scmp.ne.s32.totalorder %s160, %s162
      %p166 = scmp.eq.s32.totalorder %s21, 0
      %p167 = por %p165, %p166
      %p168 = scmp.ne.s32.totalorder %s160, %s162
      %p169 = scmp.eq.s32.totalorder %s26, 1
      %p170 = por %p168, %p169
      %p171 = scmp.ne.s32.totalorder %s162, %s163
      %p172 = scmp.eq.s32.totalorder %s26, 0
      %p173 = por %p171, %p172
      %p174 = scmp.ne.s32.totalorder %s162, %s163
      %p175 = scmp.eq.s32.totalorder %s27, 1
      %p176 = por %p174, %p175
      %p178 = scmp.ne.s32.totalorder %s163, %s177
      %p179 = scmp.eq.s32.totalorder %s27, 0
      %p180 = por %p178, %p179
      %s182 = sadd.s32 %s181, 1
      %p185 = scmp.eq.s32.totalorder %s21, 1
      %p186 = scmp.ne.s32.totalorder %s181, %s183
      %p187 = scmp.eq.s32.totalorder %s21, 0
      %p188 = por %p186, %p187
      %p189 = scmp.ne.s32.totalorder %s181, %s183
      %p190 = scmp.eq.s32.totalorder %s26, 1
      %p191 = por %p189, %p190
      %p192 = scmp.ne.s32.totalorder %s183, %s184
      %p193 = scmp.eq.s32.totalorder %s26, 0
      %p194 = por %p192, %p193
      %p195 = scmp.ne.s32.totalorder %s183, %s184
      %p196 = scmp.eq.s32.totalorder %s27, 1
      %p197 = por %p195, %p196
      %p199 = scmp.ne.s32.totalorder %s184, %s198
      %p200 = scmp.eq.s32.totalorder %s27, 0
      %p201 = por %p199, %p200
      %s203 = sadd.s32 %s202, 1
      %p206 = scmp.eq.s32.totalorder %s21, 1
      %p207 = scmp.ne.s32.totalorder %s202, %s204
      %p208 = scmp.eq.s32.totalorder %s21, 0
      %p209 = por %p207, %p208
      %p210 = scmp.ne.s32.totalorder %s202, %s204
      %p211 = scmp.eq.s32.totalorder %s26, 1
      %p212 = por %p210, %p211
      %p213 = scmp.ne.s32.totalorder %s204, %s205
      %p214 = scmp.eq.s32.totalorder %s26, 0
      %p215 = por %p213, %p214
      %p216 = scmp.ne.s32.totalorder %s204, %s205
      %p217 = scmp.eq.s32.totalorder %s27, 1
      %p218 = por %p216, %p217
      %p220 = scmp.ne.s32.totalorder %s205, %s219
      %p221 = scmp.eq.s32.totalorder %s27, 0
      %p222 = por %p220, %p221
      %s223 = ssub.s32 %s21, %s28
      %p224 = scmp.eq.s32.totalorder %s223, 0
      %s226 = sadd.s32 %s225, 1
      %s227 = scalar_select %p224, %s225, %s226
      %p230 = pneg %p224
      %p231 = scmp.eq.s32.totalorder %s21, 1
      %p232 = por %p230, %p231
      %p233 = scmp.ne.s32.totalorder %s225, %s228
      %p234 = scmp.eq.s32.totalorder %s21, 0
      %p235 = por %p233, %p234
      %p236 = scmp.ne.s32.totalorder %s225, %s228
      %p237 = scmp.eq.s32.totalorder %s26, 1
      %p238 = por %p236, %p237
      %p239 = scmp.ne.s32.totalorder %s228, %s229
      %p240 = scmp.eq.s32.totalorder %s26, 0
      %p241 = por %p239, %p240
      %p242 = scmp.ne.s32.totalorder %s228, %s229
      %p243 = scmp.eq.s32.totalorder %s27, 1
      %p244 = por %p242, %p243
      %p246 = scmp.ne.s32.totalorder %s229, %s245
      %p247 = scmp.eq.s32.totalorder %s27, 0
      %p248 = por %p246, %p247
      %p249 = scmp.le.s32.totalorder 1, %s21
      %p250 = scmp.lt.s32.totalorder %s21, 3
      %p251 = pnand %p249, %p250
      %p252 = pneg %p251
      // Predicated region
      $region9: #{tpu_custom_call.1} parent=5 // pred_check
        _
      $region10: #{tpu_custom_call.1} parent=5 // pred_check_branch
        %254 = sbr.rel (%p251) target = $region12
      $region11: #{tpu_custom_call.1} parent=5 // pred_region
        %s255 = ssub.s32 %s21, 1
        // Predicated region
        $region13: #{tpu_custom_call.1} parent=11 // pred_check
          %p256 = pneg %p68
        $region14: #{tpu_custom_call.1} parent=11 // pred_check_branch
          %258 = sbr.rel (%p256) target = $region16
        $region15: #{tpu_custom_call.1} parent=11 // pred_region
          _
        $region16: #{tpu_custom_call.1} parent=11 // pred_fallthru
          _
        // Predicated region
        $region17: #{tpu_custom_call.1} parent=11 // pred_check
          %p259 = pneg %p89
        $region18: #{tpu_custom_call.1} parent=11 // pred_check_branch
          %261 = sbr.rel (%p259) target = $region20
        $region19: #{tpu_custom_call.1} parent=11 // pred_region
          _
        $region20: #{tpu_custom_call.1} parent=11 // pred_fallthru
          _
        // Predicated region
        $region21: #{tpu_custom_call.1} parent=11 // pred_check
          %p262 = pneg %p110
        $region22: #{tpu_custom_call.1} parent=11 // pred_check_branch
          %264 = sbr.rel (%p262) target = $region24
        $region23: #{tpu_custom_call.1} parent=11 // pred_region
          _
        $region24: #{tpu_custom_call.1} parent=11 // pred_fallthru
          _
        // Predicated region
        $region25: #{tpu_custom_call.1} parent=11 // pred_check
          %p265 = pneg %p131
        $region26: #{tpu_custom_call.1} parent=11 // pred_check_branch
          %267 = sbr.rel (%p265) target = $region28
        $region27: #{tpu_custom_call.1} parent=11 // pred_region
          _
        $region28: #{tpu_custom_call.1} parent=11 // pred_fallthru
          _
        // Predicated region
        $region29: #{tpu_custom_call.1} parent=11 // pred_check
          %p268 = pneg %p152
        $region30: #{tpu_custom_call.1} parent=11 // pred_check_branch
          %270 = sbr.rel (%p268) target = $region32
        $region31: #{tpu_custom_call.1} parent=11 // pred_region
          _
        $region32: #{tpu_custom_call.1} parent=11 // pred_fallthru
          _
        // Predicated region
        $region33: #{tpu_custom_call.1} parent=11 // pred_check
          %p271 = pneg %p173
        $region34: #{tpu_custom_call.1} parent=11 // pred_check_branch
          %273 = sbr.rel (%p271) target = $region36
        $region35: #{tpu_custom_call.1} parent=11 // pred_region
          _
        $region36: #{tpu_custom_call.1} parent=11 // pred_fallthru
          _
        // Predicated region
        $region37: #{tpu_custom_call.1} parent=11 // pred_check
          %p274 = pneg %p194
        $region38: #{tpu_custom_call.1} parent=11 // pred_check_branch
          %276 = sbr.rel (%p274) target = $region40
        $region39: #{tpu_custom_call.1} parent=11 // pred_region
          _
        $region40: #{tpu_custom_call.1} parent=11 // pred_fallthru
          _
        // Predicated region
        $region41: #{tpu_custom_call.1} parent=11 // pred_check
          %p277 = pneg %p215
        $region42: #{tpu_custom_call.1} parent=11 // pred_check_branch
          %279 = sbr.rel (%p277) target = $region44
        $region43: #{tpu_custom_call.1} parent=11 // pred_region
          _
        $region44: #{tpu_custom_call.1} parent=11 // pred_fallthru
          _
      $region12: #{tpu_custom_call.1} parent=5 // pred_fallthru
        _
      %p280 = scmp.lt.s32.totalorder %s21, 2
      // Predicated region
      $region45: #{tpu_custom_call.1} parent=5 // pred_check
        %p281 = pneg %p280
      $region46: #{tpu_custom_call.1} parent=5 // pred_check_branch
        %283 = sbr.rel (%p281) target = $region48
      $region47: #{tpu_custom_call.1} parent=5 // pred_region
        // Predicated region
        $region49: #{tpu_custom_call.1} parent=47 // pred_check
          %p284 = pneg %p41
        $region50: #{tpu_custom_call.1} parent=47 // pred_check_branch
          %286 = sbr.rel (%p284) target = $region52
        $region51: #{tpu_custom_call.1} parent=47 // pred_region
          %s287 = sand.u32 %s31, 1
          %s288 = scalar_lea.sflag [#allocation3], %s287
          %s289 = sand.u32 %s31, 1
          %s290 = smul.addr %s289, 256
          %s291 = scalar_lea.vmem [#allocation2], %s290
          %s292 = smul.u32 32, %s21
          %294 = vsyncadd %s288, 0
          %s295 = smul.addr %s292, 8
          %s296 = scalar_lea.hbm %s0, %s295
          %s297 = sshll.u32 %s296, 4
          %s298 = int_to_ptr.hbm [resolvable:$true] %s297
          %s299 = sshll.u32 %s291, 4
          %s300 = int_to_ptr.vmem [resolvable:$true] %s299
          %305 = dma.hbm_to_vmem [thread:$0]  %s298, 4096, %s300, %s288, 128, 128, 8
        $region52: #{tpu_custom_call.1} parent=47 // pred_fallthru
          _
      $region48: #{tpu_custom_call.1} parent=5 // pred_fallthru
        _
      %p306 = scmp.le.s32.totalorder 1, %s21
      %p307 = scmp.lt.s32.totalorder %s21, 3
      %p308 = pnand %p306, %p307
      %p309 = pneg %p308
      // Predicated region
      $region53: #{tpu_custom_call.1} parent=5 // pred_check
        _
      $region54: #{tpu_custom_call.1} parent=5 // pred_check_branch
        %311 = sbr.rel (%p308) target = $region56
      $region55: #{tpu_custom_call.1} parent=5 // pred_region
        %s312 = ssub.s32 %s21, 1
        %s313 = sand.u32 %s34, 1
        %s314 = scalar_lea.sflag [#allocation3], %s313
        %s315 = sand.u32 %s34, 1
        %s316 = smul.addr %s315, 256
        %s317 = scalar_lea.vmem [#allocation2], %s316
        // Predicated region
        $region57: #{tpu_custom_call.1} parent=55 // pred_check
          %p318 = pneg %p47
        $region58: #{tpu_custom_call.1} parent=55 // pred_check_branch
          %320 = sbr.rel (%p318) target = $region60
        $region59: #{tpu_custom_call.1} parent=55 // pred_region
          %322 = dma.done %s314, 4096
        $region60: #{tpu_custom_call.1} parent=55 // pred_fallthru
          _
        %s323 = sand.u32 %s34, 1
        %s324 = scalar_lea.sflag [#allocation3], %s323
        %s325 = sand.u32 %s34, 1
        %s326 = smul.addr %s325, 256
        %s327 = scalar_lea.vmem [#allocation2], %s326
        %p328 = pneg %p47
        %p329 = pneg %p44
        %p330 = pneg %p68
        %p331 = pneg %p65
        %p332 = pneg %p89
        %p333 = pneg %p86
        %p334 = pneg %p110
        %p335 = pneg %p107
        %p336 = pneg %p131
        %p337 = pneg %p128
        %p338 = pneg %p152
        %p339 = pneg %p149
        %p340 = pneg %p173
        %p341 = pneg %p170
        %p342 = pneg %p194
        %p343 = pneg %p191
        %p344 = pneg %p215
        %p345 = pneg %p212
        %p346 = pneg %p241
        %p347 = pneg %p238
        %s348 = sand.u32 %s228, 1
        %s349 = scalar_lea.sflag [#allocation4], %s348
        %s350 = sand.u32 %s228, 1
        %s351 = smul.addr %s350, 256
        %s352 = scalar_lea.vmem [#allocation5], %s351
        %s353 = smul.u32 32, %s26
        %s354 = smul.u32 32, %s26
        %v355 = vld [vmem:[%s317] sm:$0xff]
        %v356 = vld [vmem:[%s317 + $0x8] sm:$0xff]
        %v357 = vld [vmem:[%s317 + $0x10] sm:$0xff]
        %v358 = vld [vmem:[%s317 + $0x18] sm:$0xff]
        %v359 = vld [vmem:[%s317 + $0x20] sm:$0xff]
        %v360 = vld [vmem:[%s317 + $0x28] sm:$0xff]
        %v361 = vld [vmem:[%s317 + $0x30] sm:$0xff]
        %v362 = vld [vmem:[%s317 + $0x38] sm:$0xff]
        %v363 = vld [vmem:[%s317 + $0x40] sm:$0xff]
        %v364 = vld [vmem:[%s317 + $0x48] sm:$0xff]
        %v365 = vld [vmem:[%s317 + $0x50] sm:$0xff]
        %v366 = vld [vmem:[%s317 + $0x58] sm:$0xff]
        %v367 = vld [vmem:[%s317 + $0x60] sm:$0xff]
        %v368 = vld [vmem:[%s317 + $0x68] sm:$0xff]
        %v369 = vld [vmem:[%s317 + $0x70] sm:$0xff]
        %v370 = vld [vmem:[%s317 + $0x78] sm:$0xff]
        %v371 = vld [vmem:[%s317 + $0x80] sm:$0xff]
        %v372 = vld [vmem:[%s317 + $0x88] sm:$0xff]
        %v373 = vld [vmem:[%s317 + $0x90] sm:$0xff]
        %v374 = vld [vmem:[%s317 + $0x98] sm:$0xff]
        %v375 = vld [vmem:[%s317 + $0xa0] sm:$0xff]
        %v376 = vld [vmem:[%s317 + $0xa8] sm:$0xff]
        %v377 = vld [vmem:[%s317 + $0xb0] sm:$0xff]
        %v378 = vld [vmem:[%s317 + $0xb8] sm:$0xff]
        %v379 = vld [vmem:[%s317 + $0xc0] sm:$0xff]
        %v380 = vld [vmem:[%s317 + $0xc8] sm:$0xff]
        %v381 = vld [vmem:[%s317 + $0xd0] sm:$0xff]
        %v382 = vld [vmem:[%s317 + $0xd8] sm:$0xff]
        %v383 = vld [vmem:[%s317 + $0xe0] sm:$0xff]
        %v384 = vld [vmem:[%s317 + $0xe8] sm:$0xff]
        %v385 = vld [vmem:[%s317 + $0xf0] sm:$0xff]
        %v386 = vld [vmem:[%s317 + $0xf8] sm:$0xff]
        %387 = vadd.xlane.f32.xlu0 %v355
        %v388 = vpop.xlane.xlu0 %387
        %389 = vadd.xlane.f32.xlu0 %v356
        %v390 = vpop.xlane.xlu0 %389
        %391 = vadd.xlane.f32.xlu0 %v357
        %v392 = vpop.xlane.xlu0 %391
        %393 = vadd.xlane.f32.xlu0 %v358
        %v394 = vpop.xlane.xlu0 %393
        %395 = vadd.xlane.f32.xlu0 %v359
        %v396 = vpop.xlane.xlu0 %395
        %397 = vadd.xlane.f32.xlu0 %v360
        %v398 = vpop.xlane.xlu0 %397
        %399 = vadd.xlane.f32.xlu0 %v361
        %v400 = vpop.xlane.xlu0 %399
        %401 = vadd.xlane.f32.xlu0 %v362
        %v402 = vpop.xlane.xlu0 %401
        %403 = vadd.xlane.f32.xlu0 %v363
        %v404 = vpop.xlane.xlu0 %403
        %405 = vadd.xlane.f32.xlu0 %v364
        %v406 = vpop.xlane.xlu0 %405
        %407 = vadd.xlane.f32.xlu0 %v365
        %v408 = vpop.xlane.xlu0 %407
        %409 = vadd.xlane.f32.xlu0 %v366
        %v410 = vpop.xlane.xlu0 %409
        %411 = vadd.xlane.f32.xlu0 %v367
        %v412 = vpop.xlane.xlu0 %411
        %413 = vadd.xlane.f32.xlu0 %v368
        %v414 = vpop.xlane.xlu0 %413
        %415 = vadd.xlane.f32.xlu0 %v369
        %v416 = vpop.xlane.xlu0 %415
        %417 = vadd.xlane.f32.xlu0 %v370
        %v418 = vpop.xlane.xlu0 %417
        %419 = vadd.xlane.f32.xlu0 %v371
        %v420 = vpop.xlane.xlu0 %419
        %421 = vadd.xlane.f32.xlu0 %v372
        %v422 = vpop.xlane.xlu0 %421
        %423 = vadd.xlane.f32.xlu0 %v373
        %v424 = vpop.xlane.xlu0 %423
        %425 = vadd.xlane.f32.xlu0 %v374
        %v426 = vpop.xlane.xlu0 %425
        %427 = vadd.xlane.f32.xlu0 %v375
        %v428 = vpop.xlane.xlu0 %427
        %429 = vadd.xlane.f32.xlu0 %v376
        %v430 = vpop.xlane.xlu0 %429
        %431 = vadd.xlane.f32.xlu0 %v377
        %v432 = vpop.xlane.xlu0 %431
        %433 = vadd.xlane.f32.xlu0 %v378
        %v434 = vpop.xlane.xlu0 %433
        %435 = vadd.xlane.f32.xlu0 %v379
        %v436 = vpop.xlane.xlu0 %435
        %437 = vadd.xlane.f32.xlu0 %v380
        %v438 = vpop.xlane.xlu0 %437
        %439 = vadd.xlane.f32.xlu0 %v381
        %v440 = vpop.xlane.xlu0 %439
        %441 = vadd.xlane.f32.xlu0 %v382
        %v442 = vpop.xlane.xlu0 %441
        %443 = vadd.xlane.f32.xlu0 %v383
        %v444 = vpop.xlane.xlu0 %443
        %445 = vadd.xlane.f32.xlu0 %v384
        %v446 = vpop.xlane.xlu0 %445
        %447 = vadd.xlane.f32.xlu0 %v385
        %v448 = vpop.xlane.xlu0 %447
        %449 = vadd.xlane.f32.xlu0 %v386
        %v450 = vpop.xlane.xlu0 %449
        %v451 = vrcp.pop 128.0
        %v452 = vmul.f32 128.0, %v451
        %v453 = vsub.f32 1.0, %v452
        %v454 = vmul.f32 %v451, %v453
        %v455 = vadd.f32 %v451, %v454
        %vm456 = vweird.f32 %v451
        %v457 = vsel %vm456, %v451, %v455
        %v458 = vmul.f32 %v388, %v457
        %v459 = vmul.f32 %v390, %v457
        %v460 = vmul.f32 %v392, %v457
        %v461 = vmul.f32 %v394, %v457
        %v462 = vmul.f32 %v396, %v457
        %v463 = vmul.f32 %v398, %v457
        %v464 = vmul.f32 %v400, %v457
        %v465 = vmul.f32 %v402, %v457
        %v466 = vmul.f32 %v404, %v457
        %v467 = vmul.f32 %v406, %v457
        %v468 = vmul.f32 %v408, %v457
        %v469 = vmul.f32 %v410, %v457
        %v470 = vmul.f32 %v412, %v457
        %v471 = vmul.f32 %v414, %v457
        %v472 = vmul.f32 %v416, %v457
        %v473 = vmul.f32 %v418, %v457
        %v474 = vmul.f32 %v420, %v457
        %v475 = vmul.f32 %v422, %v457
        %v476 = vmul.f32 %v424, %v457
        %v477 = vmul.f32 %v426, %v457
        %v478 = vmul.f32 %v428, %v457
        %v479 = vmul.f32 %v430, %v457
        %v480 = vmul.f32 %v432, %v457
        %v481 = vmul.f32 %v434, %v457
        %v482 = vmul.f32 %v436, %v457
        %v483 = vmul.f32 %v438, %v457
        %v484 = vmul.f32 %v440, %v457
        %v485 = vmul.f32 %v442, %v457
        %v486 = vmul.f32 %v444, %v457
        %v487 = vmul.f32 %v446, %v457
        %v488 = vmul.f32 %v448, %v457
        %v489 = vmul.f32 %v450, %v457
        %v490 = vsub.f32 %v355, %v458
        %v491 = vsub.f32 %v356, %v459
        %v492 = vsub.f32 %v357, %v460
        %v493 = vsub.f32 %v358, %v461
        %v494 = vsub.f32 %v359, %v462
        %v495 = vsub.f32 %v360, %v463
        %v496 = vsub.f32 %v361, %v464
        %v497 = vsub.f32 %v362, %v465
        %v498 = vsub.f32 %v363, %v466
        %v499 = vsub.f32 %v364, %v467
        %v500 = vsub.f32 %v365, %v468
        %v501 = vsub.f32 %v366, %v469
        %v502 = vsub.f32 %v367, %v470
        %v503 = vsub.f32 %v368, %v471
        %v504 = vsub.f32 %v369, %v472
        %v505 = vsub.f32 %v370, %v473
        %v506 = vsub.f32 %v371, %v474
        %v507 = vsub.f32 %v372, %v475
        %v508 = vsub.f32 %v373, %v476
        %v509 = vsub.f32 %v374, %v477
        %v510 = vsub.f32 %v375, %v478
        %v511 = vsub.f32 %v376, %v479
        %v512 = vsub.f32 %v377, %v480
        %v513 = vsub.f32 %v378, %v481
        %v514 = vsub.f32 %v379, %v482
        %v515 = vsub.f32 %v380, %v483
        %v516 = vsub.f32 %v381, %v484
        %v517 = vsub.f32 %v382, %v485
        %v518 = vsub.f32 %v383, %v486
        %v519 = vsub.f32 %v384, %v487
        %v520 = vsub.f32 %v385, %v488
        %v521 = vsub.f32 %v386, %v489
        %v522 = vmul.f32 %v490, %v490
        %v523 = vmul.f32 %v491, %v491
        %v524 = vmul.f32 %v492, %v492
        %v525 = vmul.f32 %v493, %v493
        %v526 = vmul.f32 %v494, %v494
        %v527 = vmul.f32 %v495, %v495
        %v528 = vmul.f32 %v496, %v496
        %v529 = vmul.f32 %v497, %v497
        %v530 = vmul.f32 %v498, %v498
        %v531 = vmul.f32 %v499, %v499
        %v532 = vmul.f32 %v500, %v500
        %v533 = vmul.f32 %v501, %v501
        %v534 = vmul.f32 %v502, %v502
        %v535 = vmul.f32 %v503, %v503
        %v536 = vmul.f32 %v504, %v504
        %v537 = vmul.f32 %v505, %v505
        %v538 = vmul.f32 %v506, %v506
        %v539 = vmul.f32 %v507, %v507
        %v540 = vmul.f32 %v508, %v508
        %v541 = vmul.f32 %v509, %v509
        %v542 = vmul.f32 %v510, %v510
        %v543 = vmul.f32 %v511, %v511
        %v544 = vmul.f32 %v512, %v512
        %v545 = vmul.f32 %v513, %v513
        %v546 = vmul.f32 %v514, %v514
        %v547 = vmul.f32 %v515, %v515
        %v548 = vmul.f32 %v516, %v516
        %v549 = vmul.f32 %v517, %v517
        %v550 = vmul.f32 %v518, %v518
        %v551 = vmul.f32 %v519, %v519
        %v552 = vmul.f32 %v520, %v520
        %v553 = vmul.f32 %v521, %v521
        %554 = vadd.xlane.f32.xlu0 %v522
        %v555 = vpop.xlane.xlu0 %554
        %556 = vadd.xlane.f32.xlu0 %v523
        %v557 = vpop.xlane.xlu0 %556
        %558 = vadd.xlane.f32.xlu0 %v524
        %v559 = vpop.xlane.xlu0 %558
        %560 = vadd.xlane.f32.xlu0 %v525
        %v561 = vpop.xlane.xlu0 %560
        %562 = vadd.xlane.f32.xlu0 %v526
        %v563 = vpop.xlane.xlu0 %562
        %564 = vadd.xlane.f32.xlu0 %v527
        %v565 = vpop.xlane.xlu0 %564
        %566 = vadd.xlane.f32.xlu0 %v528
        %v567 = vpop.xlane.xlu0 %566
        %568 = vadd.xlane.f32.xlu0 %v529
        %v569 = vpop.xlane.xlu0 %568
        %570 = vadd.xlane.f32.xlu0 %v530
        %v571 = vpop.xlane.xlu0 %570
        %572 = vadd.xlane.f32.xlu0 %v531
        %v573 = vpop.xlane.xlu0 %572
        %574 = vadd.xlane.f32.xlu0 %v532
        %v575 = vpop.xlane.xlu0 %574
        %576 = vadd.xlane.f32.xlu0 %v533
        %v577 = vpop.xlane.xlu0 %576
        %578 = vadd.xlane.f32.xlu0 %v534
        %v579 = vpop.xlane.xlu0 %578
        %580 = vadd.xlane.f32.xlu0 %v535
        %v581 = vpop.xlane.xlu0 %580
        %582 = vadd.xlane.f32.xlu0 %v536
        %v583 = vpop.xlane.xlu0 %582
        %584 = vadd.xlane.f32.xlu0 %v537
        %v585 = vpop.xlane.xlu0 %584
        %586 = vadd.xlane.f32.xlu0 %v538
        %v587 = vpop.xlane.xlu0 %586
        %588 = vadd.xlane.f32.xlu0 %v539
        %v589 = vpop.xlane.xlu0 %588
        %590 = vadd.xlane.f32.xlu0 %v540
        %v591 = vpop.xlane.xlu0 %590
        %592 = vadd.xlane.f32.xlu0 %v541
        %v593 = vpop.xlane.xlu0 %592
        %594 = vadd.xlane.f32.xlu0 %v542
        %v595 = vpop.xlane.xlu0 %594
        %596 = vadd.xlane.f32.xlu0 %v543
        %v597 = vpop.xlane.xlu0 %596
        %598 = vadd.xlane.f32.xlu0 %v544
        %v599 = vpop.xlane.xlu0 %598
        %600 = vadd.xlane.f32.xlu0 %v545
        %v601 = vpop.xlane.xlu0 %600
        %602 = vadd.xlane.f32.xlu0 %v546
        %v603 = vpop.xlane.xlu0 %602
        %604 = vadd.xlane.f32.xlu0 %v547
        %v605 = vpop.xlane.xlu0 %604
        %606 = vadd.xlane.f32.xlu0 %v548
        %v607 = vpop.xlane.xlu0 %606
        %608 = vadd.xlane.f32.xlu0 %v549
        %v609 = vpop.xlane.xlu0 %608
        %610 = vadd.xlane.f32.xlu0 %v550
        %v611 = vpop.xlane.xlu0 %610
        %612 = vadd.xlane.f32.xlu0 %v551
        %v613 = vpop.xlane.xlu0 %612
        %614 = vadd.xlane.f32.xlu0 %v552
        %v615 = vpop.xlane.xlu0 %614
        %616 = vadd.xlane.f32.xlu0 %v553
        %v617 = vpop.xlane.xlu0 %616
        %v618 = vmul.f32 %v555, %v457
        %v619 = vmul.f32 %v557, %v457
        %v620 = vmul.f32 %v559, %v457
        %v621 = vmul.f32 %v561, %v457
        %v622 = vmul.f32 %v563, %v457
        %v623 = vmul.f32 %v565, %v457
        %v624 = vmul.f32 %v567, %v457
        %v625 = vmul.f32 %v569, %v457
        %v626 = vmul.f32 %v571, %v457
        %v627 = vmul.f32 %v573, %v457
        %v628 = vmul.f32 %v575, %v457
        %v629 = vmul.f32 %v577, %v457
        %v630 = vmul.f32 %v579, %v457
        %v631 = vmul.f32 %v581, %v457
        %v632 = vmul.f32 %v583, %v457
        %v633 = vmul.f32 %v585, %v457
        %v634 = vmul.f32 %v587, %v457
        %v635 = vmul.f32 %v589, %v457
        %v636 = vmul.f32 %v591, %v457
        %v637 = vmul.f32 %v593, %v457
        %v638 = vmul.f32 %v595, %v457
        %v639 = vmul.f32 %v597, %v457
        %v640 = vmul.f32 %v599, %v457
        %v641 = vmul.f32 %v601, %v457
        %v642 = vmul.f32 %v603, %v457
        %v643 = vmul.f32 %v605, %v457
        %v644 = vmul.f32 %v607, %v457
        %v645 = vmul.f32 %v609, %v457
        %v646 = vmul.f32 %v611, %v457
        %v647 = vmul.f32 %v613, %v457
        %v648 = vmul.f32 %v615, %v457
        %v649 = vmul.f32 %v617, %v457
        %v650 = vadd.f32 %v618, 1e-05
        %v651 = vadd.f32 %v619, 1e-05
        %v652 = vadd.f32 %v620, 1e-05
        %v653 = vadd.f32 %v621, 1e-05
        %v654 = vadd.f32 %v622, 1e-05
        %v655 = vadd.f32 %v623, 1e-05
        %v656 = vadd.f32 %v624, 1e-05
        %v657 = vadd.f32 %v625, 1e-05
        %v658 = vadd.f32 %v626, 1e-05
        %v659 = vadd.f32 %v627, 1e-05
        %v660 = vadd.f32 %v628, 1e-05
        %v661 = vadd.f32 %v629, 1e-05
        %v662 = vadd.f32 %v630, 1e-05
        %v663 = vadd.f32 %v631, 1e-05
        %v664 = vadd.f32 %v632, 1e-05
        %v665 = vadd.f32 %v633, 1e-05
        %v666 = vadd.f32 %v634, 1e-05
        %v667 = vadd.f32 %v635, 1e-05
        %v668 = vadd.f32 %v636, 1e-05
        %v669 = vadd.f32 %v637, 1e-05
        %v670 = vadd.f32 %v638, 1e-05
        %v671 = vadd.f32 %v639, 1e-05
        %v672 = vadd.f32 %v640, 1e-05
        %v673 = vadd.f32 %v641, 1e-05
        %v674 = vadd.f32 %v642, 1e-05
        %v675 = vadd.f32 %v643, 1e-05
        %v676 = vadd.f32 %v644, 1e-05
        %v677 = vadd.f32 %v645, 1e-05
        %v678 = vadd.f32 %v646, 1e-05
        %v679 = vadd.f32 %v647, 1e-05
        %v680 = vadd.f32 %v648, 1e-05
        %v681 = vadd.f32 %v649, 1e-05
        %v682 = vrsqrt.pop %v650
        %v683 = vmul.f32 %v682, %v650
        %v684 = vmul.f32 %v683, %v682
        %v685 = vmul.f32 0.5, %v684
        %v686 = vsub.f32 1.5, %v685
        %v687 = vmul.f32 %v682, %v686
        %vm688 = vweird.f32 %v650
        %vm689 = vweird.f32 %v682
        %vm690 = vmor %vm688, %vm689
        %v691 = vsel %vm690, %v682, %v687
        %v692 = vrsqrt.pop %v651
        %v693 = vmul.f32 %v692, %v651
        %v694 = vmul.f32 %v693, %v692
        %v695 = vmul.f32 0.5, %v694
        %v696 = vsub.f32 1.5, %v695
        %v697 = vmul.f32 %v692, %v696
        %vm698 = vweird.f32 %v651
        %vm699 = vweird.f32 %v692
        %vm700 = vmor %vm698, %vm699
        %v701 = vsel %vm700, %v692, %v697
        %v702 = vrsqrt.pop %v652
        %v703 = vmul.f32 %v702, %v652
        %v704 = vmul.f32 %v703, %v702
        %v705 = vmul.f32 0.5, %v704
        %v706 = vsub.f32 1.5, %v705
        %v707 = vmul.f32 %v702, %v706
        %vm708 = vweird.f32 %v652
        %vm709 = vweird.f32 %v702
        %vm710 = vmor %vm708, %vm709
        %v711 = vsel %vm710, %v702, %v707
        %v712 = vrsqrt.pop %v653
        %v713 = vmul.f32 %v712, %v653
        %v714 = vmul.f32 %v713, %v712
        %v715 = vmul.f32 0.5, %v714
        %v716 = vsub.f32 1.5, %v715
        %v717 = vmul.f32 %v712, %v716
        %vm718 = vweird.f32 %v653
        %vm719 = vweird.f32 %v712
        %vm720 = vmor %vm718, %vm719
        %v721 = vsel %vm720, %v712, %v717
        %v722 = vrsqrt.pop %v654
        %v723 = vmul.f32 %v722, %v654
        %v724 = vmul.f32 %v723, %v722
        %v725 = vmul.f32 0.5, %v724
        %v726 = vsub.f32 1.5, %v725
        %v727 = vmul.f32 %v722, %v726
        %vm728 = vweird.f32 %v654
        %vm729 = vweird.f32 %v722
        %vm730 = vmor %vm728, %vm729
        %v731 = vsel %vm730, %v722, %v727
        %v732 = vrsqrt.pop %v655
        %v733 = vmul.f32 %v732, %v655
        %v734 = vmul.f32 %v733, %v732
        %v735 = vmul.f32 0.5, %v734
        %v736 = vsub.f32 1.5, %v735
        %v737 = vmul.f32 %v732, %v736
        %vm738 = vweird.f32 %v655
        %vm739 = vweird.f32 %v732
        %vm740 = vmor %vm738, %vm739
        %v741 = vsel %vm740, %v732, %v737
        %v742 = vrsqrt.pop %v656
        %v743 = vmul.f32 %v742, %v656
        %v744 = vmul.f32 %v743, %v742
        %v745 = vmul.f32 0.5, %v744
        %v746 = vsub.f32 1.5, %v745
        %v747 = vmul.f32 %v742, %v746
        %vm748 = vweird.f32 %v656
        %vm749 = vweird.f32 %v742
        %vm750 = vmor %vm748, %vm749
        %v751 = vsel %vm750, %v742, %v747
        %v752 = vrsqrt.pop %v657
        %v753 = vmul.f32 %v752, %v657
        %v754 = vmul.f32 %v753, %v752
        %v755 = vmul.f32 0.5, %v754
        %v756 = vsub.f32 1.5, %v755
        %v757 = vmul.f32 %v752, %v756
        %vm758 = vweird.f32 %v657
        %vm759 = vweird.f32 %v752
        %vm760 = vmor %vm758, %vm759
        %v761 = vsel %vm760, %v752, %v757
        %v762 = vrsqrt.pop %v658
        %v763 = vmul.f32 %v762, %v658
        %v764 = vmul.f32 %v763, %v762
        %v765 = vmul.f32 0.5, %v764
        %v766 = vsub.f32 1.5, %v765
        %v767 = vmul.f32 %v762, %v766
        %vm768 = vweird.f32 %v658
        %vm769 = vweird.f32 %v762
        %vm770 = vmor %vm768, %vm769
        %v771 = vsel %vm770, %v762, %v767
        %v772 = vrsqrt.pop %v659
        %v773 = vmul.f32 %v772, %v659
        %v774 = vmul.f32 %v773, %v772
        %v775 = vmul.f32 0.5, %v774
        %v776 = vsub.f32 1.5, %v775
        %v777 = vmul.f32 %v772, %v776
        %vm778 = vweird.f32 %v659
        %vm779 = vweird.f32 %v772
        %vm780 = vmor %vm778, %vm779
        %v781 = vsel %vm780, %v772, %v777
        %v782 = vrsqrt.pop %v660
        %v783 = vmul.f32 %v782, %v660
        %v784 = vmul.f32 %v783, %v782
        %v785 = vmul.f32 0.5, %v784
        %v786 = vsub.f32 1.5, %v785
        %v787 = vmul.f32 %v782, %v786
        %vm788 = vweird.f32 %v660
        %vm789 = vweird.f32 %v782
        %vm790 = vmor %vm788, %vm789
        %v791 = vsel %vm790, %v782, %v787
        %v792 = vrsqrt.pop %v661
        %v793 = vmul.f32 %v792, %v661
        %v794 = vmul.f32 %v793, %v792
        %v795 = vmul.f32 0.5, %v794
        %v796 = vsub.f32 1.5, %v795
        %v797 = vmul.f32 %v792, %v796
        %vm798 = vweird.f32 %v661
        %vm799 = vweird.f32 %v792
        %vm800 = vmor %vm798, %vm799
        %v801 = vsel %vm800, %v792, %v797
        %v802 = vrsqrt.pop %v662
        %v803 = vmul.f32 %v802, %v662
        %v804 = vmul.f32 %v803, %v802
        %v805 = vmul.f32 0.5, %v804
        %v806 = vsub.f32 1.5, %v805
        %v807 = vmul.f32 %v802, %v806
        %vm808 = vweird.f32 %v662
        %vm809 = vweird.f32 %v802
        %vm810 = vmor %vm808, %vm809
        %v811 = vsel %vm810, %v802, %v807
        %v812 = vrsqrt.pop %v663
        %v813 = vmul.f32 %v812, %v663
        %v814 = vmul.f32 %v813, %v812
        %v815 = vmul.f32 0.5, %v814
        %v816 = vsub.f32 1.5, %v815
        %v817 = vmul.f32 %v812, %v816
        %vm818 = vweird.f32 %v663
        %vm819 = vweird.f32 %v812
        %vm820 = vmor %vm818, %vm819
        %v821 = vsel %vm820, %v812, %v817
        %v822 = vrsqrt.pop %v664
        %v823 = vmul.f32 %v822, %v664
        %v824 = vmul.f32 %v823, %v822
        %v825 = vmul.f32 0.5, %v824
        %v826 = vsub.f32 1.5, %v825
        %v827 = vmul.f32 %v822, %v826
        %vm828 = vweird.f32 %v664
        %vm829 = vweird.f32 %v822
        %vm830 = vmor %vm828, %vm829
        %v831 = vsel %vm830, %v822, %v827
        %v832 = vrsqrt.pop %v665
        %v833 = vmul.f32 %v832, %v665
        %v834 = vmul.f32 %v833, %v832
        %v835 = vmul.f32 0.5, %v834
        %v836 = vsub.f32 1.5, %v835
        %v837 = vmul.f32 %v832, %v836
        %vm838 = vweird.f32 %v665
        %vm839 = vweird.f32 %v832
        %vm840 = vmor %vm838, %vm839
        %v841 = vsel %vm840, %v832, %v837
        %v842 = vrsqrt.pop %v666
        %v843 = vmul.f32 %v842, %v666
        %v844 = vmul.f32 %v843, %v842
        %v845 = vmul.f32 0.5, %v844
        %v846 = vsub.f32 1.5, %v845
        %v847 = vmul.f32 %v842, %v846
        %vm848 = vweird.f32 %v666
        %vm849 = vweird.f32 %v842
        %vm850 = vmor %vm848, %vm849
        %v851 = vsel %vm850, %v842, %v847
        %v852 = vrsqrt.pop %v667
        %v853 = vmul.f32 %v852, %v667
        %v854 = vmul.f32 %v853, %v852
        %v855 = vmul.f32 0.5, %v854
        %v856 = vsub.f32 1.5, %v855
        %v857 = vmul.f32 %v852, %v856
        %vm858 = vweird.f32 %v667
        %vm859 = vweird.f32 %v852
        %vm860 = vmor %vm858, %vm859
        %v861 = vsel %vm860, %v852, %v857
        %v862 = vrsqrt.pop %v668
        %v863 = vmul.f32 %v862, %v668
        %v864 = vmul.f32 %v863, %v862
        %v865 = vmul.f32 0.5, %v864
        %v866 = vsub.f32 1.5, %v865
        %v867 = vmul.f32 %v862, %v866
        %vm868 = vweird.f32 %v668
        %vm869 = vweird.f32 %v862
        %vm870 = vmor %vm868, %vm869
        %v871 = vsel %vm870, %v862, %v867
        %v872 = vrsqrt.pop %v669
        %v873 = vmul.f32 %v872, %v669
        %v874 = vmul.f32 %v873, %v872
        %v875 = vmul.f32 0.5, %v874
        %v876 = vsub.f32 1.5, %v875
        %v877 = vmul.f32 %v872, %v876
        %vm878 = vweird.f32 %v669
        %vm879 = vweird.f32 %v872
        %vm880 = vmor %vm878, %vm879
        %v881 = vsel %vm880, %v872, %v877
        %v882 = vrsqrt.pop %v670
        %v883 = vmul.f32 %v882, %v670
        %v884 = vmul.f32 %v883, %v882
        %v885 = vmul.f32 0.5, %v884
        %v886 = vsub.f32 1.5, %v885
        %v887 = vmul.f32 %v882, %v886
        %vm888 = vweird.f32 %v670
        %vm889 = vweird.f32 %v882
        %vm890 = vmor %vm888, %vm889
        %v891 = vsel %vm890, %v882, %v887
        %v892 = vrsqrt.pop %v671
        %v893 = vmul.f32 %v892, %v671
        %v894 = vmul.f32 %v893, %v892
        %v895 = vmul.f32 0.5, %v894
        %v896 = vsub.f32 1.5, %v895
        %v897 = vmul.f32 %v892, %v896
        %vm898 = vweird.f32 %v671
        %vm899 = vweird.f32 %v892
        %vm900 = vmor %vm898, %vm899
        %v901 = vsel %vm900, %v892, %v897
        %v902 = vrsqrt.pop %v672
        %v903 = vmul.f32 %v902, %v672
        %v904 = vmul.f32 %v903, %v902
        %v905 = vmul.f32 0.5, %v904
        %v906 = vsub.f32 1.5, %v905
        %v907 = vmul.f32 %v902, %v906
        %vm908 = vweird.f32 %v672
        %vm909 = vweird.f32 %v902
        %vm910 = vmor %vm908, %vm909
        %v911 = vsel %vm910, %v902, %v907
        %v912 = vrsqrt.pop %v673
        %v913 = vmul.f32 %v912, %v673
        %v914 = vmul.f32 %v913, %v912
        %v915 = vmul.f32 0.5, %v914
        %v916 = vsub.f32 1.5, %v915
        %v917 = vmul.f32 %v912, %v916
        %vm918 = vweird.f32 %v673
        %vm919 = vweird.f32 %v912
        %vm920 = vmor %vm918, %vm919
        %v921 = vsel %vm920, %v912, %v917
        %v922 = vrsqrt.pop %v674
        %v923 = vmul.f32 %v922, %v674
        %v924 = vmul.f32 %v923, %v922
        %v925 = vmul.f32 0.5, %v924
        %v926 = vsub.f32 1.5, %v925
        %v927 = vmul.f32 %v922, %v926
        %vm928 = vweird.f32 %v674
        %vm929 = vweird.f32 %v922
        %vm930 = vmor %vm928, %vm929
        %v931 = vsel %vm930, %v922, %v927
        %v932 = vrsqrt.pop %v675
        %v933 = vmul.f32 %v932, %v675
        %v934 = vmul.f32 %v933, %v932
        %v935 = vmul.f32 0.5, %v934
        %v936 = vsub.f32 1.5, %v935
        %v937 = vmul.f32 %v932, %v936
        %vm938 = vweird.f32 %v675
        %vm939 = vweird.f32 %v932
        %vm940 = vmor %vm938, %vm939
        %v941 = vsel %vm940, %v932, %v937
        %v942 = vrsqrt.pop %v676
        %v943 = vmul.f32 %v942, %v676
        %v944 = vmul.f32 %v943, %v942
        %v945 = vmul.f32 0.5, %v944
        %v946 = vsub.f32 1.5, %v945
        %v947 = vmul.f32 %v942, %v946
        %vm948 = vweird.f32 %v676
        %vm949 = vweird.f32 %v942
        %vm950 = vmor %vm948, %vm949
        %v951 = vsel %vm950, %v942, %v947
        %v952 = vrsqrt.pop %v677
        %v953 = vmul.f32 %v952, %v677
        %v954 = vmul.f32 %v953, %v952
        %v955 = vmul.f32 0.5, %v954
        %v956 = vsub.f32 1.5, %v955
        %v957 = vmul.f32 %v952, %v956
        %vm958 = vweird.f32 %v677
        %vm959 = vweird.f32 %v952
        %vm960 = vmor %vm958, %vm959
        %v961 = vsel %vm960, %v952, %v957
        %v962 = vrsqrt.pop %v678
        %v963 = vmul.f32 %v962, %v678
        %v964 = vmul.f32 %v963, %v962
        %v965 = vmul.f32 0.5, %v964
        %v966 = vsub.f32 1.5, %v965
        %v967 = vmul.f32 %v962, %v966
        %vm968 = vweird.f32 %v678
        %vm969 = vweird.f32 %v962
        %vm970 = vmor %vm968, %vm969
        %v971 = vsel %vm970, %v962, %v967
        %v972 = vrsqrt.pop %v679
        %v973 = vmul.f32 %v972, %v679
        %v974 = vmul.f32 %v973, %v972
        %v975 = vmul.f32 0.5, %v974
        %v976 = vsub.f32 1.5, %v975
        %v977 = vmul.f32 %v972, %v976
        %vm978 = vweird.f32 %v679
        %vm979 = vweird.f32 %v972
        %vm980 = vmor %vm978, %vm979
        %v981 = vsel %vm980, %v972, %v977
        %v982 = vrsqrt.pop %v680
        %v983 = vmul.f32 %v982, %v680
        %v984 = vmul.f32 %v983, %v982
        %v985 = vmul.f32 0.5, %v984
        %v986 = vsub.f32 1.5, %v985
        %v987 = vmul.f32 %v982, %v986
        %vm988 = vweird.f32 %v680
        %vm989 = vweird.f32 %v982
        %vm990 = vmor %vm988, %vm989
        %v991 = vsel %vm990, %v982, %v987
        %v992 = vrsqrt.pop %v681
        %v993 = vmul.f32 %v992, %v681
        %v994 = vmul.f32 %v993, %v992
        %v995 = vmul.f32 0.5, %v994
        %v996 = vsub.f32 1.5, %v995
        %v997 = vmul.f32 %v992, %v996
        %vm998 = vweird.f32 %v681
        %vm999 = vweird.f32 %v992
        %vm1000 = vmor %vm998, %vm999
        %v1001 = vsel %vm1000, %v992, %v997
        %v1002 = vmul.f32 %v490, %v691
        %v1003 = vmul.f32 %v491, %v701
        %v1004 = vmul.f32 %v492, %v711
        %v1005 = vmul.f32 %v493, %v721
        %v1006 = vmul.f32 %v494, %v731
        %v1007 = vmul.f32 %v495, %v741
        %v1008 = vmul.f32 %v496, %v751
        %v1009 = vmul.f32 %v497, %v761
        %v1010 = vmul.f32 %v498, %v771
        %v1011 = vmul.f32 %v499, %v781
        %v1012 = vmul.f32 %v500, %v791
        %v1013 = vmul.f32 %v501, %v801
        %v1014 = vmul.f32 %v502, %v811
        %v1015 = vmul.f32 %v503, %v821
        %v1016 = vmul.f32 %v504, %v831
        %v1017 = vmul.f32 %v505, %v841
        %v1018 = vmul.f32 %v506, %v851
        %v1019 = vmul.f32 %v507, %v861
        %v1020 = vmul.f32 %v508, %v871
        %v1021 = vmul.f32 %v509, %v881
        %v1022 = vmul.f32 %v510, %v891
        %v1023 = vmul.f32 %v511, %v901
        %v1024 = vmul.f32 %v512, %v911
        %v1025 = vmul.f32 %v513, %v921
        %v1026 = vmul.f32 %v514, %v931
        %v1027 = vmul.f32 %v515, %v941
        %v1028 = vmul.f32 %v516, %v951
        %v1029 = vmul.f32 %v517, %v961
        %v1030 = vmul.f32 %v518, %v971
        %v1031 = vmul.f32 %v519, %v981
        %v1032 = vmul.f32 %v520, %v991
        %v1033 = vmul.f32 %v521, %v1001
        %v1034 = vld [vmem:[%s1] sm:$0x1]
        %v1036 = vperm.slane %v1034, 0
        %v1038 = vmul.f32 %v1002, %v1036
        %v1039 = vmul.f32 %v1003, %v1036
        %v1040 = vmul.f32 %v1004, %v1036
        %v1041 = vmul.f32 %v1005, %v1036
        %v1042 = vmul.f32 %v1006, %v1036
        %v1043 = vmul.f32 %v1007, %v1036
        %v1044 = vmul.f32 %v1008, %v1036
        %v1045 = vmul.f32 %v1009, %v1036
        %v1046 = vmul.f32 %v1010, %v1036
        %v1047 = vmul.f32 %v1011, %v1036
        %v1048 = vmul.f32 %v1012, %v1036
        %v1049 = vmul.f32 %v1013, %v1036
        %v1050 = vmul.f32 %v1014, %v1036
        %v1051 = vmul.f32 %v1015, %v1036
        %v1052 = vmul.f32 %v1016, %v1036
        %v1053 = vmul.f32 %v1017, %v1036
        %v1054 = vmul.f32 %v1018, %v1036
        %v1055 = vmul.f32 %v1019, %v1036
        %v1056 = vmul.f32 %v1020, %v1036
        %v1057 = vmul.f32 %v1021, %v1036
        %v1058 = vmul.f32 %v1022, %v1036
        %v1059 = vmul.f32 %v1023, %v1036
        %v1060 = vmul.f32 %v1024, %v1036
        %v1061 = vmul.f32 %v1025, %v1036
        %v1062 = vmul.f32 %v1026, %v1036
        %v1063 = vmul.f32 %v1027, %v1036
        %v1064 = vmul.f32 %v1028, %v1036
        %v1065 = vmul.f32 %v1029, %v1036
        %v1066 = vmul.f32 %v1030, %v1036
        %v1067 = vmul.f32 %v1031, %v1036
        %v1068 = vmul.f32 %v1032, %v1036
        %v1069 = vmul.f32 %v1033, %v1036
        %v1070 = vld [vmem:[%s2] sm:$0x1]
        %v1072 = vperm.slane %v1070, 0
        %v1074 = vadd.f32 %v1038, %v1072
        %v1075 = vadd.f32 %v1039, %v1072
        %v1076 = vadd.f32 %v1040, %v1072
        %v1077 = vadd.f32 %v1041, %v1072
        %v1078 = vadd.f32 %v1042, %v1072
        %v1079 = vadd.f32 %v1043, %v1072
        %v1080 = vadd.f32 %v1044, %v1072
        %v1081 = vadd.f32 %v1045, %v1072
        %v1082 = vadd.f32 %v1046, %v1072
        %v1083 = vadd.f32 %v1047, %v1072
        %v1084 = vadd.f32 %v1048, %v1072
        %v1085 = vadd.f32 %v1049, %v1072
        %v1086 = vadd.f32 %v1050, %v1072
        %v1087 = vadd.f32 %v1051, %v1072
        %v1088 = vadd.f32 %v1052, %v1072
        %v1089 = vadd.f32 %v1053, %v1072
        %v1090 = vadd.f32 %v1054, %v1072
        %v1091 = vadd.f32 %v1055, %v1072
        %v1092 = vadd.f32 %v1056, %v1072
        %v1093 = vadd.f32 %v1057, %v1072
        %v1094 = vadd.f32 %v1058, %v1072
        %v1095 = vadd.f32 %v1059, %v1072
        %v1096 = vadd.f32 %v1060, %v1072
        %v1097 = vadd.f32 %v1061, %v1072
        %v1098 = vadd.f32 %v1062, %v1072
        %v1099 = vadd.f32 %v1063, %v1072
        %v1100 = vadd.f32 %v1064, %v1072
        %v1101 = vadd.f32 %v1065, %v1072
        %v1102 = vadd.f32 %v1066, %v1072
        %v1103 = vadd.f32 %v1067, %v1072
        %v1104 = vadd.f32 %v1068, %v1072
        %v1105 = vadd.f32 %v1069, %v1072
        %v1106 = vld [vmem:[%s3] sm:$0xff]
        %v1107 = vld [vmem:[%s3 + $0x8] sm:$0xff]
        %v1108 = vld [vmem:[%s3 + $0x10] sm:$0xff]
        %v1109 = vld [vmem:[%s3 + $0x18] sm:$0xff]
        %v1110 = vld [vmem:[%s3 + $0x20] sm:$0xff]
        %v1111 = vld [vmem:[%s3 + $0x28] sm:$0xff]
        %v1112 = vld [vmem:[%s3 + $0x30] sm:$0xff]
        %v1113 = vld [vmem:[%s3 + $0x38] sm:$0xff]
        %v1114 = vld [vmem:[%s3 + $0x40] sm:$0xff]
        %v1115 = vld [vmem:[%s3 + $0x48] sm:$0xff]
        %v1116 = vld [vmem:[%s3 + $0x50] sm:$0xff]
        %v1117 = vld [vmem:[%s3 + $0x58] sm:$0xff]
        %v1118 = vld [vmem:[%s3 + $0x60] sm:$0xff]
        %v1119 = vld [vmem:[%s3 + $0x68] sm:$0xff]
        %v1120 = vld [vmem:[%s3 + $0x70] sm:$0xff]
        %v1121 = vld [vmem:[%s3 + $0x78] sm:$0xff]
        %v1122 = vld [vmem:[%s3 + $0x80] sm:$0xff]
        %v1123 = vld [vmem:[%s3 + $0x88] sm:$0xff]
        %v1124 = vld [vmem:[%s3 + $0x90] sm:$0xff]
        %v1125 = vld [vmem:[%s3 + $0x98] sm:$0xff]
        %v1126 = vld [vmem:[%s3 + $0xa0] sm:$0xff]
        %v1127 = vld [vmem:[%s3 + $0xa8] sm:$0xff]
        %v1128 = vld [vmem:[%s3 + $0xb0] sm:$0xff]
        %v1129 = vld [vmem:[%s3 + $0xb8] sm:$0xff]
        %v1130 = vld [vmem:[%s3 + $0xc0] sm:$0xff]
        %v1131 = vld [vmem:[%s3 + $0xc8] sm:$0xff]
        %v1132 = vld [vmem:[%s3 + $0xd0] sm:$0xff]
        %v1133 = vld [vmem:[%s3 + $0xd8] sm:$0xff]
        %v1134 = vld [vmem:[%s3 + $0xe0] sm:$0xff]
        %v1135 = vld [vmem:[%s3 + $0xe8] sm:$0xff]
        %v1136 = vld [vmem:[%s3 + $0xf0] sm:$0xff]
        %v1137 = vld [vmem:[%s3 + $0xf8] sm:$0xff]
        %1138 = vmatpush.msra.mxu0 %v1136
        %1139 = vmatpush.msra.mxu0 %v1134
        %1140 = vmatpush.msra.mxu0 %v1132
        %1141 = vmatpush.msra.mxu0 %v1130
        %1142 = vmatpush.msra.mxu0 %v1128
        %1143 = vmatpush.msra.mxu0 %v1126
        %1144 = vmatpush.msra.mxu0 %v1124
        %1145 = vmatpush.msra.mxu0 %v1122
        %1146 = vmatpush.msra.mxu0 %v1120
        %1147 = vmatpush.msra.mxu0 %v1118
        %1148 = vmatpush.msra.mxu0 %v1116
        %1149 = vmatpush.msra.mxu0 %v1114
        %1150 = vmatpush.msra.mxu0 %v1112
        %1151 = vmatpush.msra.mxu0 %v1110
        %1152 = vmatpush.msra.mxu0 %v1108
        %1153 = vmatpush.msra.mxu0 %v1106
        %1154 = vmatmul.f32.gmra.mxu0 %v1074
        %v1155 = vpop.f32.mrf.mxu0
        %v1156 = vadd.f32 0.0, %v1155
        %1157 = vmatmul.f32.gmra.mxu0 %v1075
        %v1158 = vpop.f32.mrf.mxu0
        %v1159 = vadd.f32 0.0, %v1158
        %1160 = vmatmul.f32.gmra.mxu0 %v1076
        %v1161 = vpop.f32.mrf.mxu0
        %v1162 = vadd.f32 0.0, %v1161
        %1163 = vmatmul.f32.gmra.mxu0 %v1077
        %v1164 = vpop.f32.mrf.mxu0
        %v1165 = vadd.f32 0.0, %v1164
        %1166 = vmatmul.f32.gmra.mxu0 %v1078
        %v1167 = vpop.f32.mrf.mxu0
        %v1168 = vadd.f32 0.0, %v1167
        %1169 = vmatmul.f32.gmra.mxu0 %v1079
        %v1170 = vpop.f32.mrf.mxu0
        %v1171 = vadd.f32 0.0, %v1170
        %1172 = vmatmul.f32.gmra.mxu0 %v1080
        %v1173 = vpop.f32.mrf.mxu0
        %v1174 = vadd.f32 0.0, %v1173
        %1175 = vmatmul.f32.gmra.mxu0 %v1081
        %v1176 = vpop.f32.mrf.mxu0
        %v1177 = vadd.f32 0.0, %v1176
        %1178 = vmatmul.f32.gmra.mxu0 %v1082
        %v1179 = vpop.f32.mrf.mxu0
        %v1180 = vadd.f32 0.0, %v1179
        %1181 = vmatmul.f32.gmra.mxu0 %v1083
        %v1182 = vpop.f32.mrf.mxu0
        %v1183 = vadd.f32 0.0, %v1182
        %1184 = vmatmul.f32.gmra.mxu0 %v1084
        %v1185 = vpop.f32.mrf.mxu0
        %v1186 = vadd.f32 0.0, %v1185
        %1187 = vmatmul.f32.gmra.mxu0 %v1085
        %v1188 = vpop.f32.mrf.mxu0
        %v1189 = vadd.f32 0.0, %v1188
        %1190 = vmatmul.f32.gmra.mxu0 %v1086
        %v1191 = vpop.f32.mrf.mxu0
        %v1192 = vadd.f32 0.0, %v1191
        %1193 = vmatmul.f32.gmra.mxu0 %v1087
        %v1194 = vpop.f32.mrf.mxu0
        %v1195 = vadd.f32 0.0, %v1194
        %1196 = vmatmul.f32.gmra.mxu0 %v1088
        %v1197 = vpop.f32.mrf.mxu0
        %v1198 = vadd.f32 0.0, %v1197
        %1199 = vmatmul.f32.gmra.mxu0 %v1089
        %v1200 = vpop.f32.mrf.mxu0
        %v1201 = vadd.f32 0.0, %v1200
        %1202 = vmatmul.f32.gmra.mxu0 %v1090
        %v1203 = vpop.f32.mrf.mxu0
        %v1204 = vadd.f32 0.0, %v1203
        %1205 = vmatmul.f32.gmra.mxu0 %v1091
        %v1206 = vpop.f32.mrf.mxu0
        %v1207 = vadd.f32 0.0, %v1206
        %1208 = vmatmul.f32.gmra.mxu0 %v1092
        %v1209 = vpop.f32.mrf.mxu0
        %v1210 = vadd.f32 0.0, %v1209
        %1211 = vmatmul.f32.gmra.mxu0 %v1093
        %v1212 = vpop.f32.mrf.mxu0
        %v1213 = vadd.f32 0.0, %v1212
        %1214 = vmatmul.f32.gmra.mxu0 %v1094
        %v1215 = vpop.f32.mrf.mxu0
        %v1216 = vadd.f32 0.0, %v1215
        %1217 = vmatmul.f32.gmra.mxu0 %v1095
        %v1218 = vpop.f32.mrf.mxu0
        %v1219 = vadd.f32 0.0, %v1218
        %1220 = vmatmul.f32.gmra.mxu0 %v1096
        %v1221 = vpop.f32.mrf.mxu0
        %v1222 = vadd.f32 0.0, %v1221
        %1223 = vmatmul.f32.gmra.mxu0 %v1097
        %v1224 = vpop.f32.mrf.mxu0
        %v1225 = vadd.f32 0.0, %v1224
        %1226 = vmatmul.f32.gmra.mxu0 %v1098
        %v1227 = vpop.f32.mrf.mxu0
        %v1228 = vadd.f32 0.0, %v1227
        %1229 = vmatmul.f32.gmra.mxu0 %v1099
        %v1230 = vpop.f32.mrf.mxu0
        %v1231 = vadd.f32 0.0, %v1230
        %1232 = vmatmul.f32.gmra.mxu0 %v1100
        %v1233 = vpop.f32.mrf.mxu0
        %v1234 = vadd.f32 0.0, %v1233
        %1235 = vmatmul.f32.gmra.mxu0 %v1101
        %v1236 = vpop.f32.mrf.mxu0
        %v1237 = vadd.f32 0.0, %v1236
        %1238 = vmatmul.f32.gmra.mxu0 %v1102
        %v1239 = vpop.f32.mrf.mxu0
        %v1240 = vadd.f32 0.0, %v1239
        %1241 = vmatmul.f32.gmra.mxu0 %v1103
        %v1242 = vpop.f32.mrf.mxu0
        %v1243 = vadd.f32 0.0, %v1242
        %1244 = vmatmul.f32.gmra.mxu0 %v1104
        %v1245 = vpop.f32.mrf.mxu0
        %v1246 = vadd.f32 0.0, %v1245
        %1247 = vmatmul.f32.gmra.mxu0 %v1105
        %v1248 = vpop.f32.mrf.mxu0
        %v1249 = vadd.f32 0.0, %v1248
        %1250 = vdwg.mxu0
        %1251 = vmatpush.msra.mxu0 %v1137
        %1252 = vmatpush.msra.mxu0 %v1135
        %1253 = vmatpush.msra.mxu0 %v1133
        %1254 = vmatpush.msra.mxu0 %v1131
        %1255 = vmatpush.msra.mxu0 %v1129
        %1256 = vmatpush.msra.mxu0 %v1127
        %1257 = vmatpush.msra.mxu0 %v1125
        %1258 = vmatpush.msra.mxu0 %v1123
        %1259 = vmatpush.msra.mxu0 %v1121
        %1260 = vmatpush.msra.mxu0 %v1119
        %1261 = vmatpush.msra.mxu0 %v1117
        %1262 = vmatpush.msra.mxu0 %v1115
        %1263 = vmatpush.msra.mxu0 %v1113
        %1264 = vmatpush.msra.mxu0 %v1111
        %1265 = vmatpush.msra.mxu0 %v1109
        %1266 = vmatpush.msra.mxu0 %v1107
        %1267 = vmatmul.f32.gmra.mxu0 %v1074
        %v1268 = vpop.f32.mrf.mxu0
        %v1269 = vadd.f32 0.0, %v1268
        %1270 = vmatmul.f32.gmra.mxu0 %v1075
        %v1271 = vpop.f32.mrf.mxu0
        %v1272 = vadd.f32 0.0, %v1271
        %1273 = vmatmul.f32.gmra.mxu0 %v1076
        %v1274 = vpop.f32.mrf.mxu0
        %v1275 = vadd.f32 0.0, %v1274
        %1276 = vmatmul.f32.gmra.mxu0 %v1077
        %v1277 = vpop.f32.mrf.mxu0
        %v1278 = vadd.f32 0.0, %v1277
        %1279 = vmatmul.f32.gmra.mxu0 %v1078
        %v1280 = vpop.f32.mrf.mxu0
        %v1281 = vadd.f32 0.0, %v1280
        %1282 = vmatmul.f32.gmra.mxu0 %v1079
        %v1283 = vpop.f32.mrf.mxu0
        %v1284 = vadd.f32 0.0, %v1283
        %1285 = vmatmul.f32.gmra.mxu0 %v1080
        %v1286 = vpop.f32.mrf.mxu0
        %v1287 = vadd.f32 0.0, %v1286
        %1288 = vmatmul.f32.gmra.mxu0 %v1081
        %v1289 = vpop.f32.mrf.mxu0
        %v1290 = vadd.f32 0.0, %v1289
        %1291 = vmatmul.f32.gmra.mxu0 %v1082
        %v1292 = vpop.f32.mrf.mxu0
        %v1293 = vadd.f32 0.0, %v1292
        %1294 = vmatmul.f32.gmra.mxu0 %v1083
        %v1295 = vpop.f32.mrf.mxu0
        %v1296 = vadd.f32 0.0, %v1295
        %1297 = vmatmul.f32.gmra.mxu0 %v1084
        %v1298 = vpop.f32.mrf.mxu0
        %v1299 = vadd.f32 0.0, %v1298
        %1300 = vmatmul.f32.gmra.mxu0 %v1085
        %v1301 = vpop.f32.mrf.mxu0
        %v1302 = vadd.f32 0.0, %v1301
        %1303 = vmatmul.f32.gmra.mxu0 %v1086
        %v1304 = vpop.f32.mrf.mxu0
        %v1305 = vadd.f32 0.0, %v1304
        %1306 = vmatmul.f32.gmra.mxu0 %v1087
        %v1307 = vpop.f32.mrf.mxu0
        %v1308 = vadd.f32 0.0, %v1307
        %1309 = vmatmul.f32.gmra.mxu0 %v1088
        %v1310 = vpop.f32.mrf.mxu0
        %v1311 = vadd.f32 0.0, %v1310
        %1312 = vmatmul.f32.gmra.mxu0 %v1089
        %v1313 = vpop.f32.mrf.mxu0
        %v1314 = vadd.f32 0.0, %v1313
        %1315 = vmatmul.f32.gmra.mxu0 %v1090
        %v1316 = vpop.f32.mrf.mxu0
        %v1317 = vadd.f32 0.0, %v1316
        %1318 = vmatmul.f32.gmra.mxu0 %v1091
        %v1319 = vpop.f32.mrf.mxu0
        %v1320 = vadd.f32 0.0, %v1319
        %1321 = vmatmul.f32.gmra.mxu0 %v1092
        %v1322 = vpop.f32.mrf.mxu0
        %v1323 = vadd.f32 0.0, %v1322
        %1324 = vmatmul.f32.gmra.mxu0 %v1093
        %v1325 = vpop.f32.mrf.mxu0
        %v1326 = vadd.f32 0.0, %v1325
        %1327 = vmatmul.f32.gmra.mxu0 %v1094
        %v1328 = vpop.f32.mrf.mxu0
        %v1329 = vadd.f32 0.0, %v1328
        %1330 = vmatmul.f32.gmra.mxu0 %v1095
        %v1331 = vpop.f32.mrf.mxu0
        %v1332 = vadd.f32 0.0, %v1331
        %1333 = vmatmul.f32.gmra.mxu0 %v1096
        %v1334 = vpop.f32.mrf.mxu0
        %v1335 = vadd.f32 0.0, %v1334
        %1336 = vmatmul.f32.gmra.mxu0 %v1097
        %v1337 = vpop.f32.mrf.mxu0
        %v1338 = vadd.f32 0.0, %v1337
        %1339 = vmatmul.f32.gmra.mxu0 %v1098
        %v1340 = vpop.f32.mrf.mxu0
        %v1341 = vadd.f32 0.0, %v1340
        %1342 = vmatmul.f32.gmra.mxu0 %v1099
        %v1343 = vpop.f32.mrf.mxu0
        %v1344 = vadd.f32 0.0, %v1343
        %1345 = vmatmul.f32.gmra.mxu0 %v1100
        %v1346 = vpop.f32.mrf.mxu0
        %v1347 = vadd.f32 0.0, %v1346
        %1348 = vmatmul.f32.gmra.mxu0 %v1101
        %v1349 = vpop.f32.mrf.mxu0
        %v1350 = vadd.f32 0.0, %v1349
        %1351 = vmatmul.f32.gmra.mxu0 %v1102
        %v1352 = vpop.f32.mrf.mxu0
        %v1353 = vadd.f32 0.0, %v1352
        %1354 = vmatmul.f32.gmra.mxu0 %v1103
        %v1355 = vpop.f32.mrf.mxu0
        %v1356 = vadd.f32 0.0, %v1355
        %1357 = vmatmul.f32.gmra.mxu0 %v1104
        %v1358 = vpop.f32.mrf.mxu0
        %v1359 = vadd.f32 0.0, %v1358
        %1360 = vmatmul.f32.gmra.mxu0 %v1105
        %v1361 = vpop.f32.mrf.mxu0
        %v1362 = vadd.f32 0.0, %v1361
        %1363 = vdwg.mxu0
        %v1364 = vld [vmem:[%s4] sm:$0xff]
        %v1365 = vlaneseq
        %v1366 = vshrl.u32 %v1365, 7
        %v1367 = vadd.s32 %v1366, 8
        %v1368 = vadd.s32 %v1366, 16
        %v1369 = vadd.s32 %v1366, 24
        %v1370 = vadd.s32 %v1366, 32
        %v1371 = vadd.s32 %v1366, 40
        %v1372 = vadd.s32 %v1366, 48
        %v1373 = vadd.s32 %v1366, 56
        %v1374 = vadd.s32 %v1366, 64
        %v1375 = vadd.s32 %v1366, 72
        %v1376 = vadd.s32 %v1366, 80
        %v1377 = vadd.s32 %v1366, 88
        %v1378 = vadd.s32 %v1366, 96
        %v1379 = vadd.s32 %v1366, 104
        %v1380 = vadd.s32 %v1366, 112
        %v1381 = vadd.s32 %v1366, 120
        %v1382 = vadd.s32 %v1366, 128
        %v1383 = vadd.s32 %v1366, 136
        %v1384 = vadd.s32 %v1366, 144
        %v1385 = vadd.s32 %v1366, 152
        %v1386 = vadd.s32 %v1366, 160
        %v1387 = vadd.s32 %v1366, 168
        %v1388 = vadd.s32 %v1366, 176
        %v1389 = vadd.s32 %v1366, 184
        %v1390 = vadd.s32 %v1366, 192
        %v1391 = vadd.s32 %v1366, 200
        %v1392 = vadd.s32 %v1366, 208
        %v1393 = vadd.s32 %v1366, 216
        %v1394 = vadd.s32 %v1366, 224
        %v1395 = vadd.s32 %v1366, 232
        %v1396 = vadd.s32 %v1366, 240
        %v1397 = vadd.s32 %v1366, 248
        %vm1398 = vcmp.lt.s32.totalorder %v1366, 0
        %v1399 = vsub.s32 0, %v1366
        %v1400 = vsel %vm1398, %v1399, %v1366
        %v1401 = vshrl.u32 %v1400, 5
        %v1402 = vand.u32 %v1400, 31
        %v1403 = vsub.s32 0, %v1402
        %v1404 = vsel %vm1398, %v1403, %v1402
        %vm1405 = vcmp.lt.s32.totalorder %v1367, 0
        %v1406 = vsub.s32 0, %v1367
        %v1407 = vsel %vm1405, %v1406, %v1367
        %v1408 = vshrl.u32 %v1407, 5
        %v1409 = vand.u32 %v1407, 31
        %v1410 = vsub.s32 0, %v1409
        %v1411 = vsel %vm1405, %v1410, %v1409
        %vm1412 = vcmp.lt.s32.totalorder %v1368, 0
        %v1413 = vsub.s32 0, %v1368
        %v1414 = vsel %vm1412, %v1413, %v1368
        %v1415 = vshrl.u32 %v1414, 5
        %v1416 = vand.u32 %v1414, 31
        %v1417 = vsub.s32 0, %v1416
        %v1418 = vsel %vm1412, %v1417, %v1416
        %vm1419 = vcmp.lt.s32.totalorder %v1369, 0
        %v1420 = vsub.s32 0, %v1369
        %v1421 = vsel %vm1419, %v1420, %v1369
        %v1422 = vshrl.u32 %v1421, 5
        %v1423 = vand.u32 %v1421, 31
        %v1424 = vsub.s32 0, %v1423
        %v1425 = vsel %vm1419, %v1424, %v1423
        %vm1426 = vcmp.lt.s32.totalorder %v1370, 0
        %v1427 = vsub.s32 0, %v1370
        %v1428 = vsel %vm1426, %v1427, %v1370
        %v1429 = vshrl.u32 %v1428, 5
        %v1430 = vand.u32 %v1428, 31
        %v1431 = vsub.s32 0, %v1430
        %v1432 = vsel %vm1426, %v1431, %v1430
        %vm1433 = vcmp.lt.s32.totalorder %v1371, 0
        %v1434 = vsub.s32 0, %v1371
        %v1435 = vsel %vm1433, %v1434, %v1371
        %v1436 = vshrl.u32 %v1435, 5
        %v1437 = vand.u32 %v1435, 31
        %v1438 = vsub.s32 0, %v1437
        %v1439 = vsel %vm1433, %v1438, %v1437
        %vm1440 = vcmp.lt.s32.totalorder %v1372, 0
        %v1441 = vsub.s32 0, %v1372
        %v1442 = vsel %vm1440, %v1441, %v1372
        %v1443 = vshrl.u32 %v1442, 5
        %v1444 = vand.u32 %v1442, 31
        %v1445 = vsub.s32 0, %v1444
        %v1446 = vsel %vm1440, %v1445, %v1444
        %vm1447 = vcmp.lt.s32.totalorder %v1373, 0
        %v1448 = vsub.s32 0, %v1373
        %v1449 = vsel %vm1447, %v1448, %v1373
        %v1450 = vshrl.u32 %v1449, 5
        %v1451 = vand.u32 %v1449, 31
        %v1452 = vsub.s32 0, %v1451
        %v1453 = vsel %vm1447, %v1452, %v1451
        %vm1454 = vcmp.lt.s32.totalorder %v1374, 0
        %v1455 = vsub.s32 0, %v1374
        %v1456 = vsel %vm1454, %v1455, %v1374
        %v1457 = vshrl.u32 %v1456, 5
        %v1458 = vand.u32 %v1456, 31
        %v1459 = vsub.s32 0, %v1458
        %v1460 = vsel %vm1454, %v1459, %v1458
        %vm1461 = vcmp.lt.s32.totalorder %v1375, 0
        %v1462 = vsub.s32 0, %v1375
        %v1463 = vsel %vm1461, %v1462, %v1375
        %v1464 = vshrl.u32 %v1463, 5
        %v1465 = vand.u32 %v1463, 31
        %v1466 = vsub.s32 0, %v1465
        %v1467 = vsel %vm1461, %v1466, %v1465
        %vm1468 = vcmp.lt.s32.totalorder %v1376, 0
        %v1469 = vsub.s32 0, %v1376
        %v1470 = vsel %vm1468, %v1469, %v1376
        %v1471 = vshrl.u32 %v1470, 5
        %v1472 = vand.u32 %v1470, 31
        %v1473 = vsub.s32 0, %v1472
        %v1474 = vsel %vm1468, %v1473, %v1472
        %vm1475 = vcmp.lt.s32.totalorder %v1377, 0
        %v1476 = vsub.s32 0, %v1377
        %v1477 = vsel %vm1475, %v1476, %v1377
        %v1478 = vshrl.u32 %v1477, 5
        %v1479 = vand.u32 %v1477, 31
        %v1480 = vsub.s32 0, %v1479
        %v1481 = vsel %vm1475, %v1480, %v1479
        %vm1482 = vcmp.lt.s32.totalorder %v1378, 0
        %v1483 = vsub.s32 0, %v1378
        %v1484 = vsel %vm1482, %v1483, %v1378
        %v1485 = vshrl.u32 %v1484, 5
        %v1486 = vand.u32 %v1484, 31
        %v1487 = vsub.s32 0, %v1486
        %v1488 = vsel %vm1482, %v1487, %v1486
        %vm1489 = vcmp.lt.s32.totalorder %v1379, 0
        %v1490 = vsub.s32 0, %v1379
        %v1491 = vsel %vm1489, %v1490, %v1379
        %v1492 = vshrl.u32 %v1491, 5
        %v1493 = vand.u32 %v1491, 31
        %v1494 = vsub.s32 0, %v1493
        %v1495 = vsel %vm1489, %v1494, %v1493
        %vm1496 = vcmp.lt.s32.totalorder %v1380, 0
        %v1497 = vsub.s32 0, %v1380
        %v1498 = vsel %vm1496, %v1497, %v1380
        %v1499 = vshrl.u32 %v1498, 5
        %v1500 = vand.u32 %v1498, 31
        %v1501 = vsub.s32 0, %v1500
        %v1502 = vsel %vm1496, %v1501, %v1500
        %vm1503 = vcmp.lt.s32.totalorder %v1381, 0
        %v1504 = vsub.s32 0, %v1381
        %v1505 = vsel %vm1503, %v1504, %v1381
        %v1506 = vshrl.u32 %v1505, 5
        %v1507 = vand.u32 %v1505, 31
        %v1508 = vsub.s32 0, %v1507
        %v1509 = vsel %vm1503, %v1508, %v1507
        %vm1510 = vcmp.lt.s32.totalorder %v1382, 0
        %v1511 = vsub.s32 0, %v1382
        %v1512 = vsel %vm1510, %v1511, %v1382
        %v1513 = vshrl.u32 %v1512, 5
        %v1514 = vand.u32 %v1512, 31
        %v1515 = vsub.s32 0, %v1514
        %v1516 = vsel %vm1510, %v1515, %v1514
        %vm1517 = vcmp.lt.s32.totalorder %v1383, 0
        %v1518 = vsub.s32 0, %v1383
        %v1519 = vsel %vm1517, %v1518, %v1383
        %v1520 = vshrl.u32 %v1519, 5
        %v1521 = vand.u32 %v1519, 31
        %v1522 = vsub.s32 0, %v1521
        %v1523 = vsel %vm1517, %v1522, %v1521
        %vm1524 = vcmp.lt.s32.totalorder %v1384, 0
        %v1525 = vsub.s32 0, %v1384
        %v1526 = vsel %vm1524, %v1525, %v1384
        %v1527 = vshrl.u32 %v1526, 5
        %v1528 = vand.u32 %v1526, 31
        %v1529 = vsub.s32 0, %v1528
        %v1530 = vsel %vm1524, %v1529, %v1528
        %vm1531 = vcmp.lt.s32.totalorder %v1385, 0
        %v1532 = vsub.s32 0, %v1385
        %v1533 = vsel %vm1531, %v1532, %v1385
        %v1534 = vshrl.u32 %v1533, 5
        %v1535 = vand.u32 %v1533, 31
        %v1536 = vsub.s32 0, %v1535
        %v1537 = vsel %vm1531, %v1536, %v1535
        %vm1538 = vcmp.lt.s32.totalorder %v1386, 0
        %v1539 = vsub.s32 0, %v1386
        %v1540 = vsel %vm1538, %v1539, %v1386
        %v1541 = vshrl.u32 %v1540, 5
        %v1542 = vand.u32 %v1540, 31
        %v1543 = vsub.s32 0, %v1542
        %v1544 = vsel %vm1538, %v1543, %v1542
        %vm1545 = vcmp.lt.s32.totalorder %v1387, 0
        %v1546 = vsub.s32 0, %v1387
        %v1547 = vsel %vm1545, %v1546, %v1387
        %v1548 = vshrl.u32 %v1547, 5
        %v1549 = vand.u32 %v1547, 31
        %v1550 = vsub.s32 0, %v1549
        %v1551 = vsel %vm1545, %v1550, %v1549
        %vm1552 = vcmp.lt.s32.totalorder %v1388, 0
        %v1553 = vsub.s32 0, %v1388
        %v1554 = vsel %vm1552, %v1553, %v1388
        %v1555 = vshrl.u32 %v1554, 5
        %v1556 = vand.u32 %v1554, 31
        %v1557 = vsub.s32 0, %v1556
        %v1558 = vsel %vm1552, %v1557, %v1556
        %vm1559 = vcmp.lt.s32.totalorder %v1389, 0
        %v1560 = vsub.s32 0, %v1389
        %v1561 = vsel %vm1559, %v1560, %v1389
        %v1562 = vshrl.u32 %v1561, 5
        %v1563 = vand.u32 %v1561, 31
        %v1564 = vsub.s32 0, %v1563
        %v1565 = vsel %vm1559, %v1564, %v1563
        %vm1566 = vcmp.lt.s32.totalorder %v1390, 0
        %v1567 = vsub.s32 0, %v1390
        %v1568 = vsel %vm1566, %v1567, %v1390
        %v1569 = vshrl.u32 %v1568, 5
        %v1570 = vand.u32 %v1568, 31
        %v1571 = vsub.s32 0, %v1570
        %v1572 = vsel %vm1566, %v1571, %v1570
        %vm1573 = vcmp.lt.s32.totalorder %v1391, 0
        %v1574 = vsub.s32 0, %v1391
        %v1575 = vsel %vm1573, %v1574, %v1391
        %v1576 = vshrl.u32 %v1575, 5
        %v1577 = vand.u32 %v1575, 31
        %v1578 = vsub.s32 0, %v1577
        %v1579 = vsel %vm1573, %v1578, %v1577
        %vm1580 = vcmp.lt.s32.totalorder %v1392, 0
        %v1581 = vsub.s32 0, %v1392
        %v1582 = vsel %vm1580, %v1581, %v1392
        %v1583 = vshrl.u32 %v1582, 5
        %v1584 = vand.u32 %v1582, 31
        %v1585 = vsub.s32 0, %v1584
        %v1586 = vsel %vm1580, %v1585, %v1584
        %vm1587 = vcmp.lt.s32.totalorder %v1393, 0
        %v1588 = vsub.s32 0, %v1393
        %v1589 = vsel %vm1587, %v1588, %v1393
        %v1590 = vshrl.u32 %v1589, 5
        %v1591 = vand.u32 %v1589, 31
        %v1592 = vsub.s32 0, %v1591
        %v1593 = vsel %vm1587, %v1592, %v1591
        %vm1594 = vcmp.lt.s32.totalorder %v1394, 0
        %v1595 = vsub.s32 0, %v1394
        %v1596 = vsel %vm1594, %v1595, %v1394
        %v1597 = vshrl.u32 %v1596, 5
        %v1598 = vand.u32 %v1596, 31
        %v1599 = vsub.s32 0, %v1598
        %v1600 = vsel %vm1594, %v1599, %v1598
        %vm1601 = vcmp.lt.s32.totalorder %v1395, 0
        %v1602 = vsub.s32 0, %v1395
        %v1603 = vsel %vm1601, %v1602, %v1395
        %v1604 = vshrl.u32 %v1603, 5
        %v1605 = vand.u32 %v1603, 31
        %v1606 = vsub.s32 0, %v1605
        %v1607 = vsel %vm1601, %v1606, %v1605
        %vm1608 = vcmp.lt.s32.totalorder %v1396, 0
        %v1609 = vsub.s32 0, %v1396
        %v1610 = vsel %vm1608, %v1609, %v1396
        %v1611 = vshrl.u32 %v1610, 5
        %v1612 = vand.u32 %v1610, 31
        %v1613 = vsub.s32 0, %v1612
        %v1614 = vsel %vm1608, %v1613, %v1612
        %vm1615 = vcmp.lt.s32.totalorder %v1397, 0
        %v1616 = vsub.s32 0, %v1397
        %v1617 = vsel %vm1615, %v1616, %v1397
        %v1618 = vshrl.u32 %v1617, 5
        %v1619 = vand.u32 %v1617, 31
        %v1620 = vsub.s32 0, %v1619
        %v1621 = vsel %vm1615, %v1620, %v1619
        %vm1622 = vcmp.ne.s32.totalorder %v1404, 0
        %vm1623 = vcmp.ne.s32.totalorder %v1411, 0
        %vm1624 = vcmp.ne.s32.totalorder %v1418, 0
        %vm1625 = vcmp.ne.s32.totalorder %v1425, 0
        %vm1626 = vcmp.ne.s32.totalorder %v1432, 0
        %vm1627 = vcmp.ne.s32.totalorder %v1439, 0
        %vm1628 = vcmp.ne.s32.totalorder %v1446, 0
        %vm1629 = vcmp.ne.s32.totalorder %v1453, 0
        %vm1630 = vcmp.ne.s32.totalorder %v1460, 0
        %vm1631 = vcmp.ne.s32.totalorder %v1467, 0
        %vm1632 = vcmp.ne.s32.totalorder %v1474, 0
        %vm1633 = vcmp.ne.s32.totalorder %v1481, 0
        %vm1634 = vcmp.ne.s32.totalorder %v1488, 0
        %vm1635 = vcmp.ne.s32.totalorder %v1495, 0
        %vm1636 = vcmp.ne.s32.totalorder %v1502, 0
        %vm1637 = vcmp.ne.s32.totalorder %v1509, 0
        %vm1638 = vcmp.ne.s32.totalorder %v1516, 0
        %vm1639 = vcmp.ne.s32.totalorder %v1523, 0
        %vm1640 = vcmp.ne.s32.totalorder %v1530, 0
        %vm1641 = vcmp.ne.s32.totalorder %v1537, 0
        %vm1642 = vcmp.ne.s32.totalorder %v1544, 0
        %vm1643 = vcmp.ne.s32.totalorder %v1551, 0
        %vm1644 = vcmp.ne.s32.totalorder %v1558, 0
        %vm1645 = vcmp.ne.s32.totalorder %v1565, 0
        %vm1646 = vcmp.ne.s32.totalorder %v1572, 0
        %vm1647 = vcmp.ne.s32.totalorder %v1579, 0
        %vm1648 = vcmp.ne.s32.totalorder %v1586, 0
        %vm1649 = vcmp.ne.s32.totalorder %v1593, 0
        %vm1650 = vcmp.ne.s32.totalorder %v1600, 0
        %vm1651 = vcmp.ne.s32.totalorder %v1607, 0
        %vm1652 = vcmp.ne.s32.totalorder %v1614, 0
        %vm1653 = vcmp.ne.s32.totalorder %v1621, 0
        %vm1654 = vcmp.lt.s32.totalorder %v1404, 0
        %vm1655 = vcmp.lt.s32.totalorder %v1411, 0
        %vm1656 = vcmp.lt.s32.totalorder %v1418, 0
        %vm1657 = vcmp.lt.s32.totalorder %v1425, 0
        %vm1658 = vcmp.lt.s32.totalorder %v1432, 0
        %vm1659 = vcmp.lt.s32.totalorder %v1439, 0
        %vm1660 = vcmp.lt.s32.totalorder %v1446, 0
        %vm1661 = vcmp.lt.s32.totalorder %v1453, 0
        %vm1662 = vcmp.lt.s32.totalorder %v1460, 0
        %vm1663 = vcmp.lt.s32.totalorder %v1467, 0
        %vm1664 = vcmp.lt.s32.totalorder %v1474, 0
        %vm1665 = vcmp.lt.s32.totalorder %v1481, 0
        %vm1666 = vcmp.lt.s32.totalorder %v1488, 0
        %vm1667 = vcmp.lt.s32.totalorder %v1495, 0
        %vm1668 = vcmp.lt.s32.totalorder %v1502, 0
        %vm1669 = vcmp.lt.s32.totalorder %v1509, 0
        %vm1670 = vcmp.lt.s32.totalorder %v1516, 0
        %vm1671 = vcmp.lt.s32.totalorder %v1523, 0
        %vm1672 = vcmp.lt.s32.totalorder %v1530, 0
        %vm1673 = vcmp.lt.s32.totalorder %v1537, 0
        %vm1674 = vcmp.lt.s32.totalorder %v1544, 0
        %vm1675 = vcmp.lt.s32.totalorder %v1551, 0
        %vm1676 = vcmp.lt.s32.totalorder %v1558, 0
        %vm1677 = vcmp.lt.s32.totalorder %v1565, 0
        %vm1678 = vcmp.lt.s32.totalorder %v1572, 0
        %vm1679 = vcmp.lt.s32.totalorder %v1579, 0
        %vm1680 = vcmp.lt.s32.totalorder %v1586, 0
        %vm1681 = vcmp.lt.s32.totalorder %v1593, 0
        %vm1682 = vcmp.lt.s32.totalorder %v1600, 0
        %vm1683 = vcmp.lt.s32.totalorder %v1607, 0
        %vm1684 = vcmp.lt.s32.totalorder %v1614, 0
        %vm1685 = vcmp.lt.s32.totalorder %v1621, 0
        %vm1686 = vmand %vm1654, %vm1622
        %vm1687 = vmand %vm1655, %vm1623
        %vm1688 = vmand %vm1656, %vm1624
        %vm1689 = vmand %vm1657, %vm1625
        %vm1690 = vmand %vm1658, %vm1626
        %vm1691 = vmand %vm1659, %vm1627
        %vm1692 = vmand %vm1660, %vm1628
        %vm1693 = vmand %vm1661, %vm1629
        %vm1694 = vmand %vm1662, %vm1630
        %vm1695 = vmand %vm1663, %vm1631
        %vm1696 = vmand %vm1664, %vm1632
        %vm1697 = vmand %vm1665, %vm1633
        %vm1698 = vmand %vm1666, %vm1634
        %vm1699 = vmand %vm1667, %vm1635
        %vm1700 = vmand %vm1668, %vm1636
        %vm1701 = vmand %vm1669, %vm1637
        %vm1702 = vmand %vm1670, %vm1638
        %vm1703 = vmand %vm1671, %vm1639
        %vm1704 = vmand %vm1672, %vm1640
        %vm1705 = vmand %vm1673, %vm1641
        %vm1706 = vmand %vm1674, %vm1642
        %vm1707 = vmand %vm1675, %vm1643
        %vm1708 = vmand %vm1676, %vm1644
        %vm1709 = vmand %vm1677, %vm1645
        %vm1710 = vmand %vm1678, %vm1646
        %vm1711 = vmand %vm1679, %vm1647
        %vm1712 = vmand %vm1680, %vm1648
        %vm1713 = vmand %vm1681, %vm1649
        %vm1714 = vmand %vm1682, %vm1650
        %vm1715 = vmand %vm1683, %vm1651
        %vm1716 = vmand %vm1684, %vm1652
        %vm1717 = vmand %vm1685, %vm1653
        %v1718 = vadd.s32 %v1404, 32
        %v1719 = vadd.s32 %v1411, 32
        %v1720 = vadd.s32 %v1418, 32
        %v1721 = vadd.s32 %v1425, 32
        %v1722 = vadd.s32 %v1432, 32
        %v1723 = vadd.s32 %v1439, 32
        %v1724 = vadd.s32 %v1446, 32
        %v1725 = vadd.s32 %v1453, 32
        %v1726 = vadd.s32 %v1460, 32
        %v1727 = vadd.s32 %v1467, 32
        %v1728 = vadd.s32 %v1474, 32
        %v1729 = vadd.s32 %v1481, 32
        %v1730 = vadd.s32 %v1488, 32
        %v1731 = vadd.s32 %v1495, 32
        %v1732 = vadd.s32 %v1502, 32
        %v1733 = vadd.s32 %v1509, 32
        %v1734 = vadd.s32 %v1516, 32
        %v1735 = vadd.s32 %v1523, 32
        %v1736 = vadd.s32 %v1530, 32
        %v1737 = vadd.s32 %v1537, 32
        %v1738 = vadd.s32 %v1544, 32
        %v1739 = vadd.s32 %v1551, 32
        %v1740 = vadd.s32 %v1558, 32
        %v1741 = vadd.s32 %v1565, 32
        %v1742 = vadd.s32 %v1572, 32
        %v1743 = vadd.s32 %v1579, 32
        %v1744 = vadd.s32 %v1586, 32
        %v1745 = vadd.s32 %v1593, 32
        %v1746 = vadd.s32 %v1600, 32
        %v1747 = vadd.s32 %v1607, 32
        %v1748 = vadd.s32 %v1614, 32
        %v1749 = vadd.s32 %v1621, 32
        %v1750 = vsel %vm1686, %v1718, %v1404
        %v1751 = vsel %vm1687, %v1719, %v1411
        %v1752 = vsel %vm1688, %v1720, %v1418
        %v1753 = vsel %vm1689, %v1721, %v1425
        %v1754 = vsel %vm1690, %v1722, %v1432
        %v1755 = vsel %vm1691, %v1723, %v1439
        %v1756 = vsel %vm1692, %v1724, %v1446
        %v1757 = vsel %vm1693, %v1725, %v1453
        %v1758 = vsel %vm1694, %v1726, %v1460
        %v1759 = vsel %vm1695, %v1727, %v1467
        %v1760 = vsel %vm1696, %v1728, %v1474
        %v1761 = vsel %vm1697, %v1729, %v1481
        %v1762 = vsel %vm1698, %v1730, %v1488
        %v1763 = vsel %vm1699, %v1731, %v1495
        %v1764 = vsel %vm1700, %v1732, %v1502
        %v1765 = vsel %vm1701, %v1733, %v1509
        %v1766 = vsel %vm1702, %v1734, %v1516
        %v1767 = vsel %vm1703, %v1735, %v1523
        %v1768 = vsel %vm1704, %v1736, %v1530
        %v1769 = vsel %vm1705, %v1737, %v1537
        %v1770 = vsel %vm1706, %v1738, %v1544
        %v1771 = vsel %vm1707, %v1739, %v1551
        %v1772 = vsel %vm1708, %v1740, %v1558
        %v1773 = vsel %vm1709, %v1741, %v1565
        %v1774 = vsel %vm1710, %v1742, %v1572
        %v1775 = vsel %vm1711, %v1743, %v1579
        %v1776 = vsel %vm1712, %v1744, %v1586
        %v1777 = vsel %vm1713, %v1745, %v1593
        %v1778 = vsel %vm1714, %v1746, %v1600
        %v1779 = vsel %vm1715, %v1747, %v1607
        %v1780 = vsel %vm1716, %v1748, %v1614
        %v1781 = vsel %vm1717, %v1749, %v1621
        %vm1782 = vcmp.ge.s32.totalorder %v1750, 1
        %vm1783 = vcmp.ge.s32.totalorder %v1751, 1
        %vm1784 = vcmp.ge.s32.totalorder %v1752, 1
        %vm1785 = vcmp.ge.s32.totalorder %v1753, 1
        %vm1786 = vcmp.ge.s32.totalorder %v1754, 1
        %vm1787 = vcmp.ge.s32.totalorder %v1755, 1
        %vm1788 = vcmp.ge.s32.totalorder %v1756, 1
        %vm1789 = vcmp.ge.s32.totalorder %v1757, 1
        %vm1790 = vcmp.ge.s32.totalorder %v1758, 1
        %vm1791 = vcmp.ge.s32.totalorder %v1759, 1
        %vm1792 = vcmp.ge.s32.totalorder %v1760, 1
        %vm1793 = vcmp.ge.s32.totalorder %v1761, 1
        %vm1794 = vcmp.ge.s32.totalorder %v1762, 1
        %vm1795 = vcmp.ge.s32.totalorder %v1763, 1
        %vm1796 = vcmp.ge.s32.totalorder %v1764, 1
        %vm1797 = vcmp.ge.s32.totalorder %v1765, 1
        %vm1798 = vcmp.ge.s32.totalorder %v1766, 1
        %vm1799 = vcmp.ge.s32.totalorder %v1767, 1
        %vm1800 = vcmp.ge.s32.totalorder %v1768, 1
        %vm1801 = vcmp.ge.s32.totalorder %v1769, 1
        %vm1802 = vcmp.ge.s32.totalorder %v1770, 1
        %vm1803 = vcmp.ge.s32.totalorder %v1771, 1
        %vm1804 = vcmp.ge.s32.totalorder %v1772, 1
        %vm1805 = vcmp.ge.s32.totalorder %v1773, 1
        %vm1806 = vcmp.ge.s32.totalorder %v1774, 1
        %vm1807 = vcmp.ge.s32.totalorder %v1775, 1
        %vm1808 = vcmp.ge.s32.totalorder %v1776, 1
        %vm1809 = vcmp.ge.s32.totalorder %v1777, 1
        %vm1810 = vcmp.ge.s32.totalorder %v1778, 1
        %vm1811 = vcmp.ge.s32.totalorder %v1779, 1
        %vm1812 = vcmp.ge.s32.totalorder %v1780, 1
        %vm1813 = vcmp.ge.s32.totalorder %v1781, 1
        %vm1814 = vcmp.ge.s32.totalorder %v1750, 2
        %vm1815 = vcmp.ge.s32.totalorder %v1751, 2
        %vm1816 = vcmp.ge.s32.totalorder %v1752, 2
        %vm1817 = vcmp.ge.s32.totalorder %v1753, 2
        %vm1818 = vcmp.ge.s32.totalorder %v1754, 2
        %vm1819 = vcmp.ge.s32.totalorder %v1755, 2
        %vm1820 = vcmp.ge.s32.totalorder %v1756, 2
        %vm1821 = vcmp.ge.s32.totalorder %v1757, 2
        %vm1822 = vcmp.ge.s32.totalorder %v1758, 2
        %vm1823 = vcmp.ge.s32.totalorder %v1759, 2
        %vm1824 = vcmp.ge.s32.totalorder %v1760, 2
        %vm1825 = vcmp.ge.s32.totalorder %v1761, 2
        %vm1826 = vcmp.ge.s32.totalorder %v1762, 2
        %vm1827 = vcmp.ge.s32.totalorder %v1763, 2
        %vm1828 = vcmp.ge.s32.totalorder %v1764, 2
        %vm1829 = vcmp.ge.s32.totalorder %v1765, 2
        %vm1830 = vcmp.ge.s32.totalorder %v1766, 2
        %vm1831 = vcmp.ge.s32.totalorder %v1767, 2
        %vm1832 = vcmp.ge.s32.totalorder %v1768, 2
        %vm1833 = vcmp.ge.s32.totalorder %v1769, 2
        %vm1834 = vcmp.ge.s32.totalorder %v1770, 2
        %vm1835 = vcmp.ge.s32.totalorder %v1771, 2
        %vm1836 = vcmp.ge.s32.totalorder %v1772, 2
        %vm1837 = vcmp.ge.s32.totalorder %v1773, 2
        %vm1838 = vcmp.ge.s32.totalorder %v1774, 2
        %vm1839 = vcmp.ge.s32.totalorder %v1775, 2
        %vm1840 = vcmp.ge.s32.totalorder %v1776, 2
        %vm1841 = vcmp.ge.s32.totalorder %v1777, 2
        %vm1842 = vcmp.ge.s32.totalorder %v1778, 2
        %vm1843 = vcmp.ge.s32.totalorder %v1779, 2
        %vm1844 = vcmp.ge.s32.totalorder %v1780, 2
        %vm1845 = vcmp.ge.s32.totalorder %v1781, 2
        %vm1846 = vcmp.ge.s32.totalorder %v1750, 3
        %vm1847 = vcmp.ge.s32.totalorder %v1751, 3
        %vm1848 = vcmp.ge.s32.totalorder %v1752, 3
        %vm1849 = vcmp.ge.s32.totalorder %v1753, 3
        %vm1850 = vcmp.ge.s32.totalorder %v1754, 3
        %vm1851 = vcmp.ge.s32.totalorder %v1755, 3
        %vm1852 = vcmp.ge.s32.totalorder %v1756, 3
        %vm1853 = vcmp.ge.s32.totalorder %v1757, 3
        %vm1854 = vcmp.ge.s32.totalorder %v1758, 3
        %vm1855 = vcmp.ge.s32.totalorder %v1759, 3
        %vm1856 = vcmp.ge.s32.totalorder %v1760, 3
        %vm1857 = vcmp.ge.s32.totalorder %v1761, 3
        %vm1858 = vcmp.ge.s32.totalorder %v1762, 3
        %vm1859 = vcmp.ge.s32.totalorder %v1763, 3
        %vm1860 = vcmp.ge.s32.totalorder %v1764, 3
        %vm1861 = vcmp.ge.s32.totalorder %v1765, 3
        %vm1862 = vcmp.ge.s32.totalorder %v1766, 3
        %vm1863 = vcmp.ge.s32.totalorder %v1767, 3
        %vm1864 = vcmp.ge.s32.totalorder %v1768, 3
        %vm1865 = vcmp.ge.s32.totalorder %v1769, 3
        %vm1866 = vcmp.ge.s32.totalorder %v1770, 3
        %vm1867 = vcmp.ge.s32.totalorder %v1771, 3
        %vm1868 = vcmp.ge.s32.totalorder %v1772, 3
        %vm1869 = vcmp.ge.s32.totalorder %v1773, 3
        %vm1870 = vcmp.ge.s32.totalorder %v1774, 3
        %vm1871 = vcmp.ge.s32.totalorder %v1775, 3
        %vm1872 = vcmp.ge.s32.totalorder %v1776, 3
        %vm1873 = vcmp.ge.s32.totalorder %v1777, 3
        %vm1874 = vcmp.ge.s32.totalorder %v1778, 3
        %vm1875 = vcmp.ge.s32.totalorder %v1779, 3
        %vm1876 = vcmp.ge.s32.totalorder %v1780, 3
        %vm1877 = vcmp.ge.s32.totalorder %v1781, 3
        %v1879 = vperm.slane %v1364, 3
        %v1880 = vperm.slane %v1364, 7
        %v1883 = vperm.slane %v1879, 3
        %v1884 = vperm.slane %v1880, 3
        %v1885 = vmul.f32 %v1156, %v1883
        %v1886 = vmul.f32 %v1269, %v1884
        %v1887 = vmul.f32 %v1159, %v1883
        %v1888 = vmul.f32 %v1272, %v1884
        %v1889 = vmul.f32 %v1162, %v1883
        %v1890 = vmul.f32 %v1275, %v1884
        %v1891 = vmul.f32 %v1165, %v1883
        %v1892 = vmul.f32 %v1278, %v1884
        %v1893 = vmul.f32 %v1168, %v1883
        %v1894 = vmul.f32 %v1281, %v1884
        %v1895 = vmul.f32 %v1171, %v1883
        %v1896 = vmul.f32 %v1284, %v1884
        %v1897 = vmul.f32 %v1174, %v1883
        %v1898 = vmul.f32 %v1287, %v1884
        %v1899 = vmul.f32 %v1177, %v1883
        %v1900 = vmul.f32 %v1290, %v1884
        %v1901 = vmul.f32 %v1180, %v1883
        %v1902 = vmul.f32 %v1293, %v1884
        %v1903 = vmul.f32 %v1183, %v1883
        %v1904 = vmul.f32 %v1296, %v1884
        %v1905 = vmul.f32 %v1186, %v1883
        %v1906 = vmul.f32 %v1299, %v1884
        %v1907 = vmul.f32 %v1189, %v1883
        %v1908 = vmul.f32 %v1302, %v1884
        %v1909 = vmul.f32 %v1192, %v1883
        %v1910 = vmul.f32 %v1305, %v1884
        %v1911 = vmul.f32 %v1195, %v1883
        %v1912 = vmul.f32 %v1308, %v1884
        %v1913 = vmul.f32 %v1198, %v1883
        %v1914 = vmul.f32 %v1311, %v1884
        %v1915 = vmul.f32 %v1201, %v1883
        %v1916 = vmul.f32 %v1314, %v1884
        %v1917 = vmul.f32 %v1204, %v1883
        %v1918 = vmul.f32 %v1317, %v1884
        %v1919 = vmul.f32 %v1207, %v1883
        %v1920 = vmul.f32 %v1320, %v1884
        %v1921 = vmul.f32 %v1210, %v1883
        %v1922 = vmul.f32 %v1323, %v1884
        %v1923 = vmul.f32 %v1213, %v1883
        %v1924 = vmul.f32 %v1326, %v1884
        %v1925 = vmul.f32 %v1216, %v1883
        %v1926 = vmul.f32 %v1329, %v1884
        %v1927 = vmul.f32 %v1219, %v1883
        %v1928 = vmul.f32 %v1332, %v1884
        %v1929 = vmul.f32 %v1222, %v1883
        %v1930 = vmul.f32 %v1335, %v1884
        %v1931 = vmul.f32 %v1225, %v1883
        %v1932 = vmul.f32 %v1338, %v1884
        %v1933 = vmul.f32 %v1228, %v1883
        %v1934 = vmul.f32 %v1341, %v1884
        %v1935 = vmul.f32 %v1231, %v1883
        %v1936 = vmul.f32 %v1344, %v1884
        %v1937 = vmul.f32 %v1234, %v1883
        %v1938 = vmul.f32 %v1347, %v1884
        %v1939 = vmul.f32 %v1237, %v1883
        %v1940 = vmul.f32 %v1350, %v1884
        %v1941 = vmul.f32 %v1240, %v1883
        %v1942 = vmul.f32 %v1353, %v1884
        %v1943 = vmul.f32 %v1243, %v1883
        %v1944 = vmul.f32 %v1356, %v1884
        %v1945 = vmul.f32 %v1246, %v1883
        %v1946 = vmul.f32 %v1359, %v1884
        %v1947 = vmul.f32 %v1249, %v1883
        %v1948 = vmul.f32 %v1362, %v1884
        %v1949 = vrot.slane %v1156, 7
        %v1950 = vrot.slane %v1269, 7
        %v1951 = vrot.slane %v1159, 7
        %v1952 = vrot.slane %v1272, 7
        %v1953 = vrot.slane %v1162, 7
        %v1954 = vrot.slane %v1275, 7
        %v1955 = vrot.slane %v1165, 7
        %v1956 = vrot.slane %v1278, 7
        %v1957 = vrot.slane %v1168, 7
        %v1958 = vrot.slane %v1281, 7
        %v1959 = vrot.slane %v1171, 7
        %v1960 = vrot.slane %v1284, 7
        %v1961 = vrot.slane %v1174, 7
        %v1962 = vrot.slane %v1287, 7
        %v1963 = vrot.slane %v1177, 7
        %v1964 = vrot.slane %v1290, 7
        %v1965 = vrot.slane %v1180, 7
        %v1966 = vrot.slane %v1293, 7
        %v1967 = vrot.slane %v1183, 7
        %v1968 = vrot.slane %v1296, 7
        %v1969 = vrot.slane %v1186, 7
        %v1970 = vrot.slane %v1299, 7
        %v1971 = vrot.slane %v1189, 7
        %v1972 = vrot.slane %v1302, 7
        %v1973 = vrot.slane %v1192, 7
        %v1974 = vrot.slane %v1305, 7
        %v1975 = vrot.slane %v1195, 7
        %v1976 = vrot.slane %v1308, 7
        %v1977 = vrot.slane %v1198, 7
        %v1978 = vrot.slane %v1311, 7
        %v1979 = vrot.slane %v1201, 7
        %v1980 = vrot.slane %v1314, 7
        %v1981 = vrot.slane %v1204, 7
        %v1982 = vrot.slane %v1317, 7
        %v1983 = vrot.slane %v1207, 7
        %v1984 = vrot.slane %v1320, 7
        %v1985 = vrot.slane %v1210, 7
        %v1986 = vrot.slane %v1323, 7
        %v1987 = vrot.slane %v1213, 7
        %v1988 = vrot.slane %v1326, 7
        %v1989 = vrot.slane %v1216, 7
        %v1990 = vrot.slane %v1329, 7
        %v1991 = vrot.slane %v1219, 7
        %v1992 = vrot.slane %v1332, 7
        %v1993 = vrot.slane %v1222, 7
        %v1994 = vrot.slane %v1335, 7
        %v1995 = vrot.slane %v1225, 7
        %v1996 = vrot.slane %v1338, 7
        %v1997 = vrot.slane %v1228, 7
        %v1998 = vrot.slane %v1341, 7
        %v1999 = vrot.slane %v1231, 7
        %v2000 = vrot.slane %v1344, 7
        %v2001 = vrot.slane %v1234, 7
        %v2002 = vrot.slane %v1347, 7
        %v2003 = vrot.slane %v1237, 7
        %v2004 = vrot.slane %v1350, 7
        %v2005 = vrot.slane %v1240, 7
        %v2006 = vrot.slane %v1353, 7
        %v2007 = vrot.slane %v1243, 7
        %v2008 = vrot.slane %v1356, 7
        %v2009 = vrot.slane %v1246, 7
        %v2010 = vrot.slane %v1359, 7
        %v2011 = vrot.slane %v1249, 7
        %v2012 = vrot.slane %v1362, 7
        %vm2013 = vcmp.lt.s32.totalorder %v1366, 1
        %v2014 = vsel %vm2013, %v2009, %v2011
        %v2015 = vsel %vm2013, %v2010, %v2012
        %v2016 = vsel %vm2013, %v2007, %v2009
        %v2017 = vsel %vm2013, %v2008, %v2010
        %v2018 = vsel %vm2013, %v2005, %v2007
        %v2019 = vsel %vm2013, %v2006, %v2008
        %v2020 = vsel %vm2013, %v2003, %v2005
        %v2021 = vsel %vm2013, %v2004, %v2006
        %v2022 = vsel %vm2013, %v2001, %v2003
        %v2023 = vsel %vm2013, %v2002, %v2004
        %v2024 = vsel %vm2013, %v1999, %v2001
        %v2025 = vsel %vm2013, %v2000, %v2002
        %v2026 = vsel %vm2013, %v1997, %v1999
        %v2027 = vsel %vm2013, %v1998, %v2000
        %v2028 = vsel %vm2013, %v1995, %v1997
        %v2029 = vsel %vm2013, %v1996, %v1998
        %v2030 = vsel %vm2013, %v1993, %v1995
        %v2031 = vsel %vm2013, %v1994, %v1996
        %v2032 = vsel %vm2013, %v1991, %v1993
        %v2033 = vsel %vm2013, %v1992, %v1994
        %v2034 = vsel %vm2013, %v1989, %v1991
        %v2035 = vsel %vm2013, %v1990, %v1992
        %v2036 = vsel %vm2013, %v1987, %v1989
        %v2037 = vsel %vm2013, %v1988, %v1990
        %v2038 = vsel %vm2013, %v1985, %v1987
        %v2039 = vsel %vm2013, %v1986, %v1988
        %v2040 = vsel %vm2013, %v1983, %v1985
        %v2041 = vsel %vm2013, %v1984, %v1986
        %v2042 = vsel %vm2013, %v1981, %v1983
        %v2043 = vsel %vm2013, %v1982, %v1984
        %v2044 = vsel %vm2013, %v1979, %v1981
        %v2045 = vsel %vm2013, %v1980, %v1982
        %v2046 = vsel %vm2013, %v1977, %v1979
        %v2047 = vsel %vm2013, %v1978, %v1980
        %v2048 = vsel %vm2013, %v1975, %v1977
        %v2049 = vsel %vm2013, %v1976, %v1978
        %v2050 = vsel %vm2013, %v1973, %v1975
        %v2051 = vsel %vm2013, %v1974, %v1976
        %v2052 = vsel %vm2013, %v1971, %v1973
        %v2053 = vsel %vm2013, %v1972, %v1974
        %v2054 = vsel %vm2013, %v1969, %v1971
        %v2055 = vsel %vm2013, %v1970, %v1972
        %v2056 = vsel %vm2013, %v1967, %v1969
        %v2057 = vsel %vm2013, %v1968, %v1970
        %v2058 = vsel %vm2013, %v1965, %v1967
        %v2059 = vsel %vm2013, %v1966, %v1968
        %v2060 = vsel %vm2013, %v1963, %v1965
        %v2061 = vsel %vm2013, %v1964, %v1966
        %v2062 = vsel %vm2013, %v1961, %v1963
        %v2063 = vsel %vm2013, %v1962, %v1964
        %v2064 = vsel %vm2013, %v1959, %v1961
        %v2065 = vsel %vm2013, %v1960, %v1962
        %v2066 = vsel %vm2013, %v1957, %v1959
        %v2067 = vsel %vm2013, %v1958, %v1960
        %v2068 = vsel %vm2013, %v1955, %v1957
        %v2069 = vsel %vm2013, %v1956, %v1958
        %v2070 = vsel %vm2013, %v1953, %v1955
        %v2071 = vsel %vm2013, %v1954, %v1956
        %v2072 = vsel %vm2013, %v1951, %v1953
        %v2073 = vsel %vm2013, %v1952, %v1954
        %v2074 = vsel %vm2013, %v1949, %v1951
        %v2075 = vsel %vm2013, %v1950, %v1952
        %v2076 = vsel %vm2013, %v2011, %v1949
        %v2077 = vsel %vm2013, %v2012, %v1950
        %v2078 = vsel %vm1782, 1, 0
        %v2079 = vsel %vm1783, 1, 0
        %v2080 = vsel %vm1784, 1, 0
        %v2081 = vsel %vm1785, 1, 0
        %v2082 = vsel %vm1786, 1, 0
        %v2083 = vsel %vm1787, 1, 0
        %v2084 = vsel %vm1788, 1, 0
        %v2085 = vsel %vm1789, 1, 0
        %v2086 = vsel %vm1790, 1, 0
        %v2087 = vsel %vm1791, 1, 0
        %v2088 = vsel %vm1792, 1, 0
        %v2089 = vsel %vm1793, 1, 0
        %v2090 = vsel %vm1794, 1, 0
        %v2091 = vsel %vm1795, 1, 0
        %v2092 = vsel %vm1796, 1, 0
        %v2093 = vsel %vm1797, 1, 0
        %v2094 = vsel %vm1798, 1, 0
        %v2095 = vsel %vm1799, 1, 0
        %v2096 = vsel %vm1800, 1, 0
        %v2097 = vsel %vm1801, 1, 0
        %v2098 = vsel %vm1802, 1, 0
        %v2099 = vsel %vm1803, 1, 0
        %v2100 = vsel %vm1804, 1, 0
        %v2101 = vsel %vm1805, 1, 0
        %v2102 = vsel %vm1806, 1, 0
        %v2103 = vsel %vm1807, 1, 0
        %v2104 = vsel %vm1808, 1, 0
        %v2105 = vsel %vm1809, 1, 0
        %v2106 = vsel %vm1810, 1, 0
        %v2107 = vsel %vm1811, 1, 0
        %v2108 = vsel %vm1812, 1, 0
        %v2109 = vsel %vm1813, 1, 0
        %vm2110 = vcmp.eq.s32.totalorder %v2078, 1
        %vm2111 = vcmp.eq.s32.totalorder %v2079, 1
        %vm2112 = vcmp.eq.s32.totalorder %v2080, 1
        %vm2113 = vcmp.eq.s32.totalorder %v2081, 1
        %vm2114 = vcmp.eq.s32.totalorder %v2082, 1
        %vm2115 = vcmp.eq.s32.totalorder %v2083, 1
        %vm2116 = vcmp.eq.s32.totalorder %v2084, 1
        %vm2117 = vcmp.eq.s32.totalorder %v2085, 1
        %vm2118 = vcmp.eq.s32.totalorder %v2086, 1
        %vm2119 = vcmp.eq.s32.totalorder %v2087, 1
        %vm2120 = vcmp.eq.s32.totalorder %v2088, 1
        %vm2121 = vcmp.eq.s32.totalorder %v2089, 1
        %vm2122 = vcmp.eq.s32.totalorder %v2090, 1
        %vm2123 = vcmp.eq.s32.totalorder %v2091, 1
        %vm2124 = vcmp.eq.s32.totalorder %v2092, 1
        %vm2125 = vcmp.eq.s32.totalorder %v2093, 1
        %vm2126 = vcmp.eq.s32.totalorder %v2094, 1
        %vm2127 = vcmp.eq.s32.totalorder %v2095, 1
        %vm2128 = vcmp.eq.s32.totalorder %v2096, 1
        %vm2129 = vcmp.eq.s32.totalorder %v2097, 1
        %vm2130 = vcmp.eq.s32.totalorder %v2098, 1
        %vm2131 = vcmp.eq.s32.totalorder %v2099, 1
        %vm2132 = vcmp.eq.s32.totalorder %v2100, 1
        %vm2133 = vcmp.eq.s32.totalorder %v2101, 1
        %vm2134 = vcmp.eq.s32.totalorder %v2102, 1
        %vm2135 = vcmp.eq.s32.totalorder %v2103, 1
        %vm2136 = vcmp.eq.s32.totalorder %v2104, 1
        %vm2137 = vcmp.eq.s32.totalorder %v2105, 1
        %vm2138 = vcmp.eq.s32.totalorder %v2106, 1
        %vm2139 = vcmp.eq.s32.totalorder %v2107, 1
        %vm2140 = vcmp.eq.s32.totalorder %v2108, 1
        %vm2141 = vcmp.eq.s32.totalorder %v2109, 1
        %v2142 = vsel %vm2110, %v2076, 0.0
        %v2143 = vsel %vm2110, %v2077, 0.0
        %v2144 = vsel %vm2111, %v2074, 0.0
        %v2145 = vsel %vm2111, %v2075, 0.0
        %v2146 = vsel %vm2112, %v2072, 0.0
        %v2147 = vsel %vm2112, %v2073, 0.0
        %v2148 = vsel %vm2113, %v2070, 0.0
        %v2149 = vsel %vm2113, %v2071, 0.0
        %v2150 = vsel %vm2114, %v2068, 0.0
        %v2151 = vsel %vm2114, %v2069, 0.0
        %v2152 = vsel %vm2115, %v2066, 0.0
        %v2153 = vsel %vm2115, %v2067, 0.0
        %v2154 = vsel %vm2116, %v2064, 0.0
        %v2155 = vsel %vm2116, %v2065, 0.0
        %v2156 = vsel %vm2117, %v2062, 0.0
        %v2157 = vsel %vm2117, %v2063, 0.0
        %v2158 = vsel %vm2118, %v2060, 0.0
        %v2159 = vsel %vm2118, %v2061, 0.0
        %v2160 = vsel %vm2119, %v2058, 0.0
        %v2161 = vsel %vm2119, %v2059, 0.0
        %v2162 = vsel %vm2120, %v2056, 0.0
        %v2163 = vsel %vm2120, %v2057, 0.0
        %v2164 = vsel %vm2121, %v2054, 0.0
        %v2165 = vsel %vm2121, %v2055, 0.0
        %v2166 = vsel %vm2122, %v2052, 0.0
        %v2167 = vsel %vm2122, %v2053, 0.0
        %v2168 = vsel %vm2123, %v2050, 0.0
        %v2169 = vsel %vm2123, %v2051, 0.0
        %v2170 = vsel %vm2124, %v2048, 0.0
        %v2171 = vsel %vm2124, %v2049, 0.0
        %v2172 = vsel %vm2125, %v2046, 0.0
        %v2173 = vsel %vm2125, %v2047, 0.0
        %v2174 = vsel %vm2126, %v2044, 0.0
        %v2175 = vsel %vm2126, %v2045, 0.0
        %v2176 = vsel %vm2127, %v2042, 0.0
        %v2177 = vsel %vm2127, %v2043, 0.0
        %v2178 = vsel %vm2128, %v2040, 0.0
        %v2179 = vsel %vm2128, %v2041, 0.0
        %v2180 = vsel %vm2129, %v2038, 0.0
        %v2181 = vsel %vm2129, %v2039, 0.0
        %v2182 = vsel %vm2130, %v2036, 0.0
        %v2183 = vsel %vm2130, %v2037, 0.0
        %v2184 = vsel %vm2131, %v2034, 0.0
        %v2185 = vsel %vm2131, %v2035, 0.0
        %v2186 = vsel %vm2132, %v2032, 0.0
        %v2187 = vsel %vm2132, %v2033, 0.0
        %v2188 = vsel %vm2133, %v2030, 0.0
        %v2189 = vsel %vm2133, %v2031, 0.0
        %v2190 = vsel %vm2134, %v2028, 0.0
        %v2191 = vsel %vm2134, %v2029, 0.0
        %v2192 = vsel %vm2135, %v2026, 0.0
        %v2193 = vsel %vm2135, %v2027, 0.0
        %v2194 = vsel %vm2136, %v2024, 0.0
        %v2195 = vsel %vm2136, %v2025, 0.0
        %v2196 = vsel %vm2137, %v2022, 0.0
        %v2197 = vsel %vm2137, %v2023, 0.0
        %v2198 = vsel %vm2138, %v2020, 0.0
        %v2199 = vsel %vm2138, %v2021, 0.0
        %v2200 = vsel %vm2139, %v2018, 0.0
        %v2201 = vsel %vm2139, %v2019, 0.0
        %v2202 = vsel %vm2140, %v2016, 0.0
        %v2203 = vsel %vm2140, %v2017, 0.0
        %v2204 = vsel %vm2141, %v2014, 0.0
        %v2205 = vsel %vm2141, %v2015, 0.0
        %v2206 = vperm.slane %v1364, 2
        %v2207 = vperm.slane %v1364, 6
        %v2210 = vperm.slane %v2206, 2
        %v2211 = vperm.slane %v2207, 2
        %v2212 = vmul.f32 %v2142, %v2210
        %v2213 = vmul.f32 %v2143, %v2211
        %v2214 = vmul.f32 %v2144, %v2210
        %v2215 = vmul.f32 %v2145, %v2211
        %v2216 = vmul.f32 %v2146, %v2210
        %v2217 = vmul.f32 %v2147, %v2211
        %v2218 = vmul.f32 %v2148, %v2210
        %v2219 = vmul.f32 %v2149, %v2211
        %v2220 = vmul.f32 %v2150, %v2210
        %v2221 = vmul.f32 %v2151, %v2211
        %v2222 = vmul.f32 %v2152, %v2210
        %v2223 = vmul.f32 %v2153, %v2211
        %v2224 = vmul.f32 %v2154, %v2210
        %v2225 = vmul.f32 %v2155, %v2211
        %v2226 = vmul.f32 %v2156, %v2210
        %v2227 = vmul.f32 %v2157, %v2211
        %v2228 = vmul.f32 %v2158, %v2210
        %v2229 = vmul.f32 %v2159, %v2211
        %v2230 = vmul.f32 %v2160, %v2210
        %v2231 = vmul.f32 %v2161, %v2211
        %v2232 = vmul.f32 %v2162, %v2210
        %v2233 = vmul.f32 %v2163, %v2211
        %v2234 = vmul.f32 %v2164, %v2210
        %v2235 = vmul.f32 %v2165, %v2211
        %v2236 = vmul.f32 %v2166, %v2210
        %v2237 = vmul.f32 %v2167, %v2211
        %v2238 = vmul.f32 %v2168, %v2210
        %v2239 = vmul.f32 %v2169, %v2211
        %v2240 = vmul.f32 %v2170, %v2210
        %v2241 = vmul.f32 %v2171, %v2211
        %v2242 = vmul.f32 %v2172, %v2210
        %v2243 = vmul.f32 %v2173, %v2211
        %v2244 = vmul.f32 %v2174, %v2210
        %v2245 = vmul.f32 %v2175, %v2211
        %v2246 = vmul.f32 %v2176, %v2210
        %v2247 = vmul.f32 %v2177, %v2211
        %v2248 = vmul.f32 %v2178, %v2210
        %v2249 = vmul.f32 %v2179, %v2211
        %v2250 = vmul.f32 %v2180, %v2210
        %v2251 = vmul.f32 %v2181, %v2211
        %v2252 = vmul.f32 %v2182, %v2210
        %v2253 = vmul.f32 %v2183, %v2211
        %v2254 = vmul.f32 %v2184, %v2210
        %v2255 = vmul.f32 %v2185, %v2211
        %v2256 = vmul.f32 %v2186, %v2210
        %v2257 = vmul.f32 %v2187, %v2211
        %v2258 = vmul.f32 %v2188, %v2210
        %v2259 = vmul.f32 %v2189, %v2211
        %v2260 = vmul.f32 %v2190, %v2210
        %v2261 = vmul.f32 %v2191, %v2211
        %v2262 = vmul.f32 %v2192, %v2210
        %v2263 = vmul.f32 %v2193, %v2211
        %v2264 = vmul.f32 %v2194, %v2210
        %v2265 = vmul.f32 %v2195, %v2211
        %v2266 = vmul.f32 %v2196, %v2210
        %v2267 = vmul.f32 %v2197, %v2211
        %v2268 = vmul.f32 %v2198, %v2210
        %v2269 = vmul.f32 %v2199, %v2211
        %v2270 = vmul.f32 %v2200, %v2210
        %v2271 = vmul.f32 %v2201, %v2211
        %v2272 = vmul.f32 %v2202, %v2210
        %v2273 = vmul.f32 %v2203, %v2211
        %v2274 = vmul.f32 %v2204, %v2210
        %v2275 = vmul.f32 %v2205, %v2211
        %v2276 = vadd.f32 %v1885, %v2212
        %v2277 = vadd.f32 %v1886, %v2213
        %v2278 = vadd.f32 %v1887, %v2214
        %v2279 = vadd.f32 %v1888, %v2215
        %v2280 = vadd.f32 %v1889, %v2216
        %v2281 = vadd.f32 %v1890, %v2217
        %v2282 = vadd.f32 %v1891, %v2218
        %v2283 = vadd.f32 %v1892, %v2219
        %v2284 = vadd.f32 %v1893, %v2220
        %v2285 = vadd.f32 %v1894, %v2221
        %v2286 = vadd.f32 %v1895, %v2222
        %v2287 = vadd.f32 %v1896, %v2223
        %v2288 = vadd.f32 %v1897, %v2224
        %v2289 = vadd.f32 %v1898, %v2225
        %v2290 = vadd.f32 %v1899, %v2226
        %v2291 = vadd.f32 %v1900, %v2227
        %v2292 = vadd.f32 %v1901, %v2228
        %v2293 = vadd.f32 %v1902, %v2229
        %v2294 = vadd.f32 %v1903, %v2230
        %v2295 = vadd.f32 %v1904, %v2231
        %v2296 = vadd.f32 %v1905, %v2232
        %v2297 = vadd.f32 %v1906, %v2233
        %v2298 = vadd.f32 %v1907, %v2234
        %v2299 = vadd.f32 %v1908, %v2235
        %v2300 = vadd.f32 %v1909, %v2236
        %v2301 = vadd.f32 %v1910, %v2237
        %v2302 = vadd.f32 %v1911, %v2238
        %v2303 = vadd.f32 %v1912, %v2239
        %v2304 = vadd.f32 %v1913, %v2240
        %v2305 = vadd.f32 %v1914, %v2241
        %v2306 = vadd.f32 %v1915, %v2242
        %v2307 = vadd.f32 %v1916, %v2243
        %v2308 = vadd.f32 %v1917, %v2244
        %v2309 = vadd.f32 %v1918, %v2245
        %v2310 = vadd.f32 %v1919, %v2246
        %v2311 = vadd.f32 %v1920, %v2247
        %v2312 = vadd.f32 %v1921, %v2248
        %v2313 = vadd.f32 %v1922, %v2249
        %v2314 = vadd.f32 %v1923, %v2250
        %v2315 = vadd.f32 %v1924, %v2251
        %v2316 = vadd.f32 %v1925, %v2252
        %v2317 = vadd.f32 %v1926, %v2253
        %v2318 = vadd.f32 %v1927, %v2254
        %v2319 = vadd.f32 %v1928, %v2255
        %v2320 = vadd.f32 %v1929, %v2256
        %v2321 = vadd.f32 %v1930, %v2257
        %v2322 = vadd.f32 %v1931, %v2258
        %v2323 = vadd.f32 %v1932, %v2259
        %v2324 = vadd.f32 %v1933, %v2260
        %v2325 = vadd.f32 %v1934, %v2261
        %v2326 = vadd.f32 %v1935, %v2262
        %v2327 = vadd.f32 %v1936, %v2263
        %v2328 = vadd.f32 %v1937, %v2264
        %v2329 = vadd.f32 %v1938, %v2265
        %v2330 = vadd.f32 %v1939, %v2266
        %v2331 = vadd.f32 %v1940, %v2267
        %v2332 = vadd.f32 %v1941, %v2268
        %v2333 = vadd.f32 %v1942, %v2269
        %v2334 = vadd.f32 %v1943, %v2270
        %v2335 = vadd.f32 %v1944, %v2271
        %v2336 = vadd.f32 %v1945, %v2272
        %v2337 = vadd.f32 %v1946, %v2273
        %v2338 = vadd.f32 %v1947, %v2274
        %v2339 = vadd.f32 %v1948, %v2275
        %v2340 = vrot.slane %v1156, 6
        %v2341 = vrot.slane %v1269, 6
        %v2342 = vrot.slane %v1159, 6
        %v2343 = vrot.slane %v1272, 6
        %v2344 = vrot.slane %v1162, 6
        %v2345 = vrot.slane %v1275, 6
        %v2346 = vrot.slane %v1165, 6
        %v2347 = vrot.slane %v1278, 6
        %v2348 = vrot.slane %v1168, 6
        %v2349 = vrot.slane %v1281, 6
        %v2350 = vrot.slane %v1171, 6
        %v2351 = vrot.slane %v1284, 6
        %v2352 = vrot.slane %v1174, 6
        %v2353 = vrot.slane %v1287, 6
        %v2354 = vrot.slane %v1177, 6
        %v2355 = vrot.slane %v1290, 6
        %v2356 = vrot.slane %v1180, 6
        %v2357 = vrot.slane %v1293, 6
        %v2358 = vrot.slane %v1183, 6
        %v2359 = vrot.slane %v1296, 6
        %v2360 = vrot.slane %v1186, 6
        %v2361 = vrot.slane %v1299, 6
        %v2362 = vrot.slane %v1189, 6
        %v2363 = vrot.slane %v1302, 6
        %v2364 = vrot.slane %v1192, 6
        %v2365 = vrot.slane %v1305, 6
        %v2366 = vrot.slane %v1195, 6
        %v2367 = vrot.slane %v1308, 6
        %v2368 = vrot.slane %v1198, 6
        %v2369 = vrot.slane %v1311, 6
        %v2370 = vrot.slane %v1201, 6
        %v2371 = vrot.slane %v1314, 6
        %v2372 = vrot.slane %v1204, 6
        %v2373 = vrot.slane %v1317, 6
        %v2374 = vrot.slane %v1207, 6
        %v2375 = vrot.slane %v1320, 6
        %v2376 = vrot.slane %v1210, 6
        %v2377 = vrot.slane %v1323, 6
        %v2378 = vrot.slane %v1213, 6
        %v2379 = vrot.slane %v1326, 6
        %v2380 = vrot.slane %v1216, 6
        %v2381 = vrot.slane %v1329, 6
        %v2382 = vrot.slane %v1219, 6
        %v2383 = vrot.slane %v1332, 6
        %v2384 = vrot.slane %v1222, 6
        %v2385 = vrot.slane %v1335, 6
        %v2386 = vrot.slane %v1225, 6
        %v2387 = vrot.slane %v1338, 6
        %v2388 = vrot.slane %v1228, 6
        %v2389 = vrot.slane %v1341, 6
        %v2390 = vrot.slane %v1231, 6
        %v2391 = vrot.slane %v1344, 6
        %v2392 = vrot.slane %v1234, 6
        %v2393 = vrot.slane %v1347, 6
        %v2394 = vrot.slane %v1237, 6
        %v2395 = vrot.slane %v1350, 6
        %v2396 = vrot.slane %v1240, 6
        %v2397 = vrot.slane %v1353, 6
        %v2398 = vrot.slane %v1243, 6
        %v2399 = vrot.slane %v1356, 6
        %v2400 = vrot.slane %v1246, 6
        %v2401 = vrot.slane %v1359, 6
        %v2402 = vrot.slane %v1249, 6
        %v2403 = vrot.slane %v1362, 6
        %vm2404 = vcmp.lt.s32.totalorder %v1366, 2
        %v2405 = vsel %vm2404, %v2400, %v2402
        %v2406 = vsel %vm2404, %v2401, %v2403
        %v2407 = vsel %vm2404, %v2398, %v2400
        %v2408 = vsel %vm2404, %v2399, %v2401
        %v2409 = vsel %vm2404, %v2396, %v2398
        %v2410 = vsel %vm2404, %v2397, %v2399
        %v2411 = vsel %vm2404, %v2394, %v2396
        %v2412 = vsel %vm2404, %v2395, %v2397
        %v2413 = vsel %vm2404, %v2392, %v2394
        %v2414 = vsel %vm2404, %v2393, %v2395
        %v2415 = vsel %vm2404, %v2390, %v2392
        %v2416 = vsel %vm2404, %v2391, %v2393
        %v2417 = vsel %vm2404, %v2388, %v2390
        %v2418 = vsel %vm2404, %v2389, %v2391
        %v2419 = vsel %vm2404, %v2386, %v2388
        %v2420 = vsel %vm2404, %v2387, %v2389
        %v2421 = vsel %vm2404, %v2384, %v2386
        %v2422 = vsel %vm2404, %v2385, %v2387
        %v2423 = vsel %vm2404, %v2382, %v2384
        %v2424 = vsel %vm2404, %v2383, %v2385
        %v2425 = vsel %vm2404, %v2380, %v2382
        %v2426 = vsel %vm2404, %v2381, %v2383
        %v2427 = vsel %vm2404, %v2378, %v2380
        %v2428 = vsel %vm2404, %v2379, %v2381
        %v2429 = vsel %vm2404, %v2376, %v2378
        %v2430 = vsel %vm2404, %v2377, %v2379
        %v2431 = vsel %vm2404, %v2374, %v2376
        %v2432 = vsel %vm2404, %v2375, %v2377
        %v2433 = vsel %vm2404, %v2372, %v2374
        %v2434 = vsel %vm2404, %v2373, %v2375
        %v2435 = vsel %vm2404, %v2370, %v2372
        %v2436 = vsel %vm2404, %v2371, %v2373
        %v2437 = vsel %vm2404, %v2368, %v2370
        %v2438 = vsel %vm2404, %v2369, %v2371
        %v2439 = vsel %vm2404, %v2366, %v2368
        %v2440 = vsel %vm2404, %v2367, %v2369
        %v2441 = vsel %vm2404, %v2364, %v2366
        %v2442 = vsel %vm2404, %v2365, %v2367
        %v2443 = vsel %vm2404, %v2362, %v2364
        %v2444 = vsel %vm2404, %v2363, %v2365
        %v2445 = vsel %vm2404, %v2360, %v2362
        %v2446 = vsel %vm2404, %v2361, %v2363
        %v2447 = vsel %vm2404, %v2358, %v2360
        %v2448 = vsel %vm2404, %v2359, %v2361
        %v2449 = vsel %vm2404, %v2356, %v2358
        %v2450 = vsel %vm2404, %v2357, %v2359
        %v2451 = vsel %vm2404, %v2354, %v2356
        %v2452 = vsel %vm2404, %v2355, %v2357
        %v2453 = vsel %vm2404, %v2352, %v2354
        %v2454 = vsel %vm2404, %v2353, %v2355
        %v2455 = vsel %vm2404, %v2350, %v2352
        %v2456 = vsel %vm2404, %v2351, %v2353
        %v2457 = vsel %vm2404, %v2348, %v2350
        %v2458 = vsel %vm2404, %v2349, %v2351
        %v2459 = vsel %vm2404, %v2346, %v2348
        %v2460 = vsel %vm2404, %v2347, %v2349
        %v2461 = vsel %vm2404, %v2344, %v2346
        %v2462 = vsel %vm2404, %v2345, %v2347
        %v2463 = vsel %vm2404, %v2342, %v2344
        %v2464 = vsel %vm2404, %v2343, %v2345
        %v2465 = vsel %vm2404, %v2340, %v2342
        %v2466 = vsel %vm2404, %v2341, %v2343
        %v2467 = vsel %vm2404, %v2402, %v2340
        %v2468 = vsel %vm2404, %v2403, %v2341
        %v2469 = vsel %vm1814, 1, 0
        %v2470 = vsel %vm1815, 1, 0
        %v2471 = vsel %vm1816, 1, 0
        %v2472 = vsel %vm1817, 1, 0
        %v2473 = vsel %vm1818, 1, 0
        %v2474 = vsel %vm1819, 1, 0
        %v2475 = vsel %vm1820, 1, 0
        %v2476 = vsel %vm1821, 1, 0
        %v2477 = vsel %vm1822, 1, 0
        %v2478 = vsel %vm1823, 1, 0
        %v2479 = vsel %vm1824, 1, 0
        %v2480 = vsel %vm1825, 1, 0
        %v2481 = vsel %vm1826, 1, 0
        %v2482 = vsel %vm1827, 1, 0
        %v2483 = vsel %vm1828, 1, 0
        %v2484 = vsel %vm1829, 1, 0
        %v2485 = vsel %vm1830, 1, 0
        %v2486 = vsel %vm1831, 1, 0
        %v2487 = vsel %vm1832, 1, 0
        %v2488 = vsel %vm1833, 1, 0
        %v2489 = vsel %vm1834, 1, 0
        %v2490 = vsel %vm1835, 1, 0
        %v2491 = vsel %vm1836, 1, 0
        %v2492 = vsel %vm1837, 1, 0
        %v2493 = vsel %vm1838, 1, 0
        %v2494 = vsel %vm1839, 1, 0
        %v2495 = vsel %vm1840, 1, 0
        %v2496 = vsel %vm1841, 1, 0
        %v2497 = vsel %vm1842, 1, 0
        %v2498 = vsel %vm1843, 1, 0
        %v2499 = vsel %vm1844, 1, 0
        %v2500 = vsel %vm1845, 1, 0
        %vm2501 = vcmp.eq.s32.totalorder %v2469, 1
        %vm2502 = vcmp.eq.s32.totalorder %v2470, 1
        %vm2503 = vcmp.eq.s32.totalorder %v2471, 1
        %vm2504 = vcmp.eq.s32.totalorder %v2472, 1
        %vm2505 = vcmp.eq.s32.totalorder %v2473, 1
        %vm2506 = vcmp.eq.s32.totalorder %v2474, 1
        %vm2507 = vcmp.eq.s32.totalorder %v2475, 1
        %vm2508 = vcmp.eq.s32.totalorder %v2476, 1
        %vm2509 = vcmp.eq.s32.totalorder %v2477, 1
        %vm2510 = vcmp.eq.s32.totalorder %v2478, 1
        %vm2511 = vcmp.eq.s32.totalorder %v2479, 1
        %vm2512 = vcmp.eq.s32.totalorder %v2480, 1
        %vm2513 = vcmp.eq.s32.totalorder %v2481, 1
        %vm2514 = vcmp.eq.s32.totalorder %v2482, 1
        %vm2515 = vcmp.eq.s32.totalorder %v2483, 1
        %vm2516 = vcmp.eq.s32.totalorder %v2484, 1
        %vm2517 = vcmp.eq.s32.totalorder %v2485, 1
        %vm2518 = vcmp.eq.s32.totalorder %v2486, 1
        %vm2519 = vcmp.eq.s32.totalorder %v2487, 1
        %vm2520 = vcmp.eq.s32.totalorder %v2488, 1
        %vm2521 = vcmp.eq.s32.totalorder %v2489, 1
        %vm2522 = vcmp.eq.s32.totalorder %v2490, 1
        %vm2523 = vcmp.eq.s32.totalorder %v2491, 1
        %vm2524 = vcmp.eq.s32.totalorder %v2492, 1
        %vm2525 = vcmp.eq.s32.totalorder %v2493, 1
        %vm2526 = vcmp.eq.s32.totalorder %v2494, 1
        %vm2527 = vcmp.eq.s32.totalorder %v2495, 1
        %vm2528 = vcmp.eq.s32.totalorder %v2496, 1
        %vm2529 = vcmp.eq.s32.totalorder %v2497, 1
        %vm2530 = vcmp.eq.s32.totalorder %v2498, 1
        %vm2531 = vcmp.eq.s32.totalorder %v2499, 1
        %vm2532 = vcmp.eq.s32.totalorder %v2500, 1
        %v2533 = vsel %vm2501, %v2467, 0.0
        %v2534 = vsel %vm2501, %v2468, 0.0
        %v2535 = vsel %vm2502, %v2465, 0.0
        %v2536 = vsel %vm2502, %v2466, 0.0
        %v2537 = vsel %vm2503, %v2463, 0.0
        %v2538 = vsel %vm2503, %v2464, 0.0
        %v2539 = vsel %vm2504, %v2461, 0.0
        %v2540 = vsel %vm2504, %v2462, 0.0
        %v2541 = vsel %vm2505, %v2459, 0.0
        %v2542 = vsel %vm2505, %v2460, 0.0
        %v2543 = vsel %vm2506, %v2457, 0.0
        %v2544 = vsel %vm2506, %v2458, 0.0
        %v2545 = vsel %vm2507, %v2455, 0.0
        %v2546 = vsel %vm2507, %v2456, 0.0
        %v2547 = vsel %vm2508, %v2453, 0.0
        %v2548 = vsel %vm2508, %v2454, 0.0
        %v2549 = vsel %vm2509, %v2451, 0.0
        %v2550 = vsel %vm2509, %v2452, 0.0
        %v2551 = vsel %vm2510, %v2449, 0.0
        %v2552 = vsel %vm2510, %v2450, 0.0
        %v2553 = vsel %vm2511, %v2447, 0.0
        %v2554 = vsel %vm2511, %v2448, 0.0
        %v2555 = vsel %vm2512, %v2445, 0.0
        %v2556 = vsel %vm2512, %v2446, 0.0
        %v2557 = vsel %vm2513, %v2443, 0.0
        %v2558 = vsel %vm2513, %v2444, 0.0
        %v2559 = vsel %vm2514, %v2441, 0.0
        %v2560 = vsel %vm2514, %v2442, 0.0
        %v2561 = vsel %vm2515, %v2439, 0.0
        %v2562 = vsel %vm2515, %v2440, 0.0
        %v2563 = vsel %vm2516, %v2437, 0.0
        %v2564 = vsel %vm2516, %v2438, 0.0
        %v2565 = vsel %vm2517, %v2435, 0.0
        %v2566 = vsel %vm2517, %v2436, 0.0
        %v2567 = vsel %vm2518, %v2433, 0.0
        %v2568 = vsel %vm2518, %v2434, 0.0
        %v2569 = vsel %vm2519, %v2431, 0.0
        %v2570 = vsel %vm2519, %v2432, 0.0
        %v2571 = vsel %vm2520, %v2429, 0.0
        %v2572 = vsel %vm2520, %v2430, 0.0
        %v2573 = vsel %vm2521, %v2427, 0.0
        %v2574 = vsel %vm2521, %v2428, 0.0
        %v2575 = vsel %vm2522, %v2425, 0.0
        %v2576 = vsel %vm2522, %v2426, 0.0
        %v2577 = vsel %vm2523, %v2423, 0.0
        %v2578 = vsel %vm2523, %v2424, 0.0
        %v2579 = vsel %vm2524, %v2421, 0.0
        %v2580 = vsel %vm2524, %v2422, 0.0
        %v2581 = vsel %vm2525, %v2419, 0.0
        %v2582 = vsel %vm2525, %v2420, 0.0
        %v2583 = vsel %vm2526, %v2417, 0.0
        %v2584 = vsel %vm2526, %v2418, 0.0
        %v2585 = vsel %vm2527, %v2415, 0.0
        %v2586 = vsel %vm2527, %v2416, 0.0
        %v2587 = vsel %vm2528, %v2413, 0.0
        %v2588 = vsel %vm2528, %v2414, 0.0
        %v2589 = vsel %vm2529, %v2411, 0.0
        %v2590 = vsel %vm2529, %v2412, 0.0
        %v2591 = vsel %vm2530, %v2409, 0.0
        %v2592 = vsel %vm2530, %v2410, 0.0
        %v2593 = vsel %vm2531, %v2407, 0.0
        %v2594 = vsel %vm2531, %v2408, 0.0
        %v2595 = vsel %vm2532, %v2405, 0.0
        %v2596 = vsel %vm2532, %v2406, 0.0
        %v2597 = vperm.slane %v1364, 1
        %v2598 = vperm.slane %v1364, 5
        %v2601 = vperm.slane %v2597, 1
        %v2602 = vperm.slane %v2598, 1
        %v2603 = vmul.f32 %v2533, %v2601
        %v2604 = vmul.f32 %v2534, %v2602
        %v2605 = vmul.f32 %v2535, %v2601
        %v2606 = vmul.f32 %v2536, %v2602
        %v2607 = vmul.f32 %v2537, %v2601
        %v2608 = vmul.f32 %v2538, %v2602
        %v2609 = vmul.f32 %v2539, %v2601
        %v2610 = vmul.f32 %v2540, %v2602
        %v2611 = vmul.f32 %v2541, %v2601
        %v2612 = vmul.f32 %v2542, %v2602
        %v2613 = vmul.f32 %v2543, %v2601
        %v2614 = vmul.f32 %v2544, %v2602
        %v2615 = vmul.f32 %v2545, %v2601
        %v2616 = vmul.f32 %v2546, %v2602
        %v2617 = vmul.f32 %v2547, %v2601
        %v2618 = vmul.f32 %v2548, %v2602
        %v2619 = vmul.f32 %v2549, %v2601
        %v2620 = vmul.f32 %v2550, %v2602
        %v2621 = vmul.f32 %v2551, %v2601
        %v2622 = vmul.f32 %v2552, %v2602
        %v2623 = vmul.f32 %v2553, %v2601
        %v2624 = vmul.f32 %v2554, %v2602
        %v2625 = vmul.f32 %v2555, %v2601
        %v2626 = vmul.f32 %v2556, %v2602
        %v2627 = vmul.f32 %v2557, %v2601
        %v2628 = vmul.f32 %v2558, %v2602
        %v2629 = vmul.f32 %v2559, %v2601
        %v2630 = vmul.f32 %v2560, %v2602
        %v2631 = vmul.f32 %v2561, %v2601
        %v2632 = vmul.f32 %v2562, %v2602
        %v2633 = vmul.f32 %v2563, %v2601
        %v2634 = vmul.f32 %v2564, %v2602
        %v2635 = vmul.f32 %v2565, %v2601
        %v2636 = vmul.f32 %v2566, %v2602
        %v2637 = vmul.f32 %v2567, %v2601
        %v2638 = vmul.f32 %v2568, %v2602
        %v2639 = vmul.f32 %v2569, %v2601
        %v2640 = vmul.f32 %v2570, %v2602
        %v2641 = vmul.f32 %v2571, %v2601
        %v2642 = vmul.f32 %v2572, %v2602
        %v2643 = vmul.f32 %v2573, %v2601
        %v2644 = vmul.f32 %v2574, %v2602
        %v2645 = vmul.f32 %v2575, %v2601
        %v2646 = vmul.f32 %v2576, %v2602
        %v2647 = vmul.f32 %v2577, %v2601
        %v2648 = vmul.f32 %v2578, %v2602
        %v2649 = vmul.f32 %v2579, %v2601
        %v2650 = vmul.f32 %v2580, %v2602
        %v2651 = vmul.f32 %v2581, %v2601
        %v2652 = vmul.f32 %v2582, %v2602
        %v2653 = vmul.f32 %v2583, %v2601
        %v2654 = vmul.f32 %v2584, %v2602
        %v2655 = vmul.f32 %v2585, %v2601
        %v2656 = vmul.f32 %v2586, %v2602
        %v2657 = vmul.f32 %v2587, %v2601
        %v2658 = vmul.f32 %v2588, %v2602
        %v2659 = vmul.f32 %v2589, %v2601
        %v2660 = vmul.f32 %v2590, %v2602
        %v2661 = vmul.f32 %v2591, %v2601
        %v2662 = vmul.f32 %v2592, %v2602
        %v2663 = vmul.f32 %v2593, %v2601
        %v2664 = vmul.f32 %v2594, %v2602
        %v2665 = vmul.f32 %v2595, %v2601
        %v2666 = vmul.f32 %v2596, %v2602
        %v2667 = vadd.f32 %v2276, %v2603
        %v2668 = vadd.f32 %v2277, %v2604
        %v2669 = vadd.f32 %v2278, %v2605
        %v2670 = vadd.f32 %v2279, %v2606
        %v2671 = vadd.f32 %v2280, %v2607
        %v2672 = vadd.f32 %v2281, %v2608
        %v2673 = vadd.f32 %v2282, %v2609
        %v2674 = vadd.f32 %v2283, %v2610
        %v2675 = vadd.f32 %v2284, %v2611
        %v2676 = vadd.f32 %v2285, %v2612
        %v2677 = vadd.f32 %v2286, %v2613
        %v2678 = vadd.f32 %v2287, %v2614
        %v2679 = vadd.f32 %v2288, %v2615
        %v2680 = vadd.f32 %v2289, %v2616
        %v2681 = vadd.f32 %v2290, %v2617
        %v2682 = vadd.f32 %v2291, %v2618
        %v2683 = vadd.f32 %v2292, %v2619
        %v2684 = vadd.f32 %v2293, %v2620
        %v2685 = vadd.f32 %v2294, %v2621
        %v2686 = vadd.f32 %v2295, %v2622
        %v2687 = vadd.f32 %v2296, %v2623
        %v2688 = vadd.f32 %v2297, %v2624
        %v2689 = vadd.f32 %v2298, %v2625
        %v2690 = vadd.f32 %v2299, %v2626
        %v2691 = vadd.f32 %v2300, %v2627
        %v2692 = vadd.f32 %v2301, %v2628
        %v2693 = vadd.f32 %v2302, %v2629
        %v2694 = vadd.f32 %v2303, %v2630
        %v2695 = vadd.f32 %v2304, %v2631
        %v2696 = vadd.f32 %v2305, %v2632
        %v2697 = vadd.f32 %v2306, %v2633
        %v2698 = vadd.f32 %v2307, %v2634
        %v2699 = vadd.f32 %v2308, %v2635
        %v2700 = vadd.f32 %v2309, %v2636
        %v2701 = vadd.f32 %v2310, %v2637
        %v2702 = vadd.f32 %v2311, %v2638
        %v2703 = vadd.f32 %v2312, %v2639
        %v2704 = vadd.f32 %v2313, %v2640
        %v2705 = vadd.f32 %v2314, %v2641
        %v2706 = vadd.f32 %v2315, %v2642
        %v2707 = vadd.f32 %v2316, %v2643
        %v2708 = vadd.f32 %v2317, %v2644
        %v2709 = vadd.f32 %v2318, %v2645
        %v2710 = vadd.f32 %v2319, %v2646
        %v2711 = vadd.f32 %v2320, %v2647
        %v2712 = vadd.f32 %v2321, %v2648
        %v2713 = vadd.f32 %v2322, %v2649
        %v2714 = vadd.f32 %v2323, %v2650
        %v2715 = vadd.f32 %v2324, %v2651
        %v2716 = vadd.f32 %v2325, %v2652
        %v2717 = vadd.f32 %v2326, %v2653
        %v2718 = vadd.f32 %v2327, %v2654
        %v2719 = vadd.f32 %v2328, %v2655
        %v2720 = vadd.f32 %v2329, %v2656
        %v2721 = vadd.f32 %v2330, %v2657
        %v2722 = vadd.f32 %v2331, %v2658
        %v2723 = vadd.f32 %v2332, %v2659
        %v2724 = vadd.f32 %v2333, %v2660
        %v2725 = vadd.f32 %v2334, %v2661
        %v2726 = vadd.f32 %v2335, %v2662
        %v2727 = vadd.f32 %v2336, %v2663
        %v2728 = vadd.f32 %v2337, %v2664
        %v2729 = vadd.f32 %v2338, %v2665
        %v2730 = vadd.f32 %v2339, %v2666
        %v2731 = vrot.slane %v1156, 5
        %v2732 = vrot.slane %v1269, 5
        %v2733 = vrot.slane %v1159, 5
        %v2734 = vrot.slane %v1272, 5
        %v2735 = vrot.slane %v1162, 5
        %v2736 = vrot.slane %v1275, 5
        %v2737 = vrot.slane %v1165, 5
        %v2738 = vrot.slane %v1278, 5
        %v2739 = vrot.slane %v1168, 5
        %v2740 = vrot.slane %v1281, 5
        %v2741 = vrot.slane %v1171, 5
        %v2742 = vrot.slane %v1284, 5
        %v2743 = vrot.slane %v1174, 5
        %v2744 = vrot.slane %v1287, 5
        %v2745 = vrot.slane %v1177, 5
        %v2746 = vrot.slane %v1290, 5
        %v2747 = vrot.slane %v1180, 5
        %v2748 = vrot.slane %v1293, 5
        %v2749 = vrot.slane %v1183, 5
        %v2750 = vrot.slane %v1296, 5
        %v2751 = vrot.slane %v1186, 5
        %v2752 = vrot.slane %v1299, 5
        %v2753 = vrot.slane %v1189, 5
        %v2754 = vrot.slane %v1302, 5
        %v2755 = vrot.slane %v1192, 5
        %v2756 = vrot.slane %v1305, 5
        %v2757 = vrot.slane %v1195, 5
        %v2758 = vrot.slane %v1308, 5
        %v2759 = vrot.slane %v1198, 5
        %v2760 = vrot.slane %v1311, 5
        %v2761 = vrot.slane %v1201, 5
        %v2762 = vrot.slane %v1314, 5
        %v2763 = vrot.slane %v1204, 5
        %v2764 = vrot.slane %v1317, 5
        %v2765 = vrot.slane %v1207, 5
        %v2766 = vrot.slane %v1320, 5
        %v2767 = vrot.slane %v1210, 5
        %v2768 = vrot.slane %v1323, 5
        %v2769 = vrot.slane %v1213, 5
        %v2770 = vrot.slane %v1326, 5
        %v2771 = vrot.slane %v1216, 5
        %v2772 = vrot.slane %v1329, 5
        %v2773 = vrot.slane %v1219, 5
        %v2774 = vrot.slane %v1332, 5
        %v2775 = vrot.slane %v1222, 5
        %v2776 = vrot.slane %v1335, 5
        %v2777 = vrot.slane %v1225, 5
        %v2778 = vrot.slane %v1338, 5
        %v2779 = vrot.slane %v1228, 5
        %v2780 = vrot.slane %v1341, 5
        %v2781 = vrot.slane %v1231, 5
        %v2782 = vrot.slane %v1344, 5
        %v2783 = vrot.slane %v1234, 5
        %v2784 = vrot.slane %v1347, 5
        %v2785 = vrot.slane %v1237, 5
        %v2786 = vrot.slane %v1350, 5
        %v2787 = vrot.slane %v1240, 5
        %v2788 = vrot.slane %v1353, 5
        %v2789 = vrot.slane %v1243, 5
        %v2790 = vrot.slane %v1356, 5
        %v2791 = vrot.slane %v1246, 5
        %v2792 = vrot.slane %v1359, 5
        %v2793 = vrot.slane %v1249, 5
        %v2794 = vrot.slane %v1362, 5
        %vm2795 = vcmp.lt.s32.totalorder %v1366, 3
        %v2796 = vsel %vm2795, %v2791, %v2793
        %v2797 = vsel %vm2795, %v2792, %v2794
        %v2798 = vsel %vm2795, %v2789, %v2791
        %v2799 = vsel %vm2795, %v2790, %v2792
        %v2800 = vsel %vm2795, %v2787, %v2789
        %v2801 = vsel %vm2795, %v2788, %v2790
        %v2802 = vsel %vm2795, %v2785, %v2787
        %v2803 = vsel %vm2795, %v2786, %v2788
        %v2804 = vsel %vm2795, %v2783, %v2785
        %v2805 = vsel %vm2795, %v2784, %v2786
        %v2806 = vsel %vm2795, %v2781, %v2783
        %v2807 = vsel %vm2795, %v2782, %v2784
        %v2808 = vsel %vm2795, %v2779, %v2781
        %v2809 = vsel %vm2795, %v2780, %v2782
        %v2810 = vsel %vm2795, %v2777, %v2779
        %v2811 = vsel %vm2795, %v2778, %v2780
        %v2812 = vsel %vm2795, %v2775, %v2777
        %v2813 = vsel %vm2795, %v2776, %v2778
        %v2814 = vsel %vm2795, %v2773, %v2775
        %v2815 = vsel %vm2795, %v2774, %v2776
        %v2816 = vsel %vm2795, %v2771, %v2773
        %v2817 = vsel %vm2795, %v2772, %v2774
        %v2818 = vsel %vm2795, %v2769, %v2771
        %v2819 = vsel %vm2795, %v2770, %v2772
        %v2820 = vsel %vm2795, %v2767, %v2769
        %v2821 = vsel %vm2795, %v2768, %v2770
        %v2822 = vsel %vm2795, %v2765, %v2767
        %v2823 = vsel %vm2795, %v2766, %v2768
        %v2824 = vsel %vm2795, %v2763, %v2765
        %v2825 = vsel %vm2795, %v2764, %v2766
        %v2826 = vsel %vm2795, %v2761, %v2763
        %v2827 = vsel %vm2795, %v2762, %v2764
        %v2828 = vsel %vm2795, %v2759, %v2761
        %v2829 = vsel %vm2795, %v2760, %v2762
        %v2830 = vsel %vm2795, %v2757, %v2759
        %v2831 = vsel %vm2795, %v2758, %v2760
        %v2832 = vsel %vm2795, %v2755, %v2757
        %v2833 = vsel %vm2795, %v2756, %v2758
        %v2834 = vsel %vm2795, %v2753, %v2755
        %v2835 = vsel %vm2795, %v2754, %v2756
        %v2836 = vsel %vm2795, %v2751, %v2753
        %v2837 = vsel %vm2795, %v2752, %v2754
        %v2838 = vsel %vm2795, %v2749, %v2751
        %v2839 = vsel %vm2795, %v2750, %v2752
        %v2840 = vsel %vm2795, %v2747, %v2749
        %v2841 = vsel %vm2795, %v2748, %v2750
        %v2842 = vsel %vm2795, %v2745, %v2747
        %v2843 = vsel %vm2795, %v2746, %v2748
        %v2844 = vsel %vm2795, %v2743, %v2745
        %v2845 = vsel %vm2795, %v2744, %v2746
        %v2846 = vsel %vm2795, %v2741, %v2743
        %v2847 = vsel %vm2795, %v2742, %v2744
        %v2848 = vsel %vm2795, %v2739, %v2741
        %v2849 = vsel %vm2795, %v2740, %v2742
        %v2850 = vsel %vm2795, %v2737, %v2739
        %v2851 = vsel %vm2795, %v2738, %v2740
        %v2852 = vsel %vm2795, %v2735, %v2737
        %v2853 = vsel %vm2795, %v2736, %v2738
        %v2854 = vsel %vm2795, %v2733, %v2735
        %v2855 = vsel %vm2795, %v2734, %v2736
        %v2856 = vsel %vm2795, %v2731, %v2733
        %v2857 = vsel %vm2795, %v2732, %v2734
        %v2858 = vsel %vm2795, %v2793, %v2731
        %v2859 = vsel %vm2795, %v2794, %v2732
        %v2860 = vsel %vm1846, 1, 0
        %v2861 = vsel %vm1847, 1, 0
        %v2862 = vsel %vm1848, 1, 0
        %v2863 = vsel %vm1849, 1, 0
        %v2864 = vsel %vm1850, 1, 0
        %v2865 = vsel %vm1851, 1, 0
        %v2866 = vsel %vm1852, 1, 0
        %v2867 = vsel %vm1853, 1, 0
        %v2868 = vsel %vm1854, 1, 0
        %v2869 = vsel %vm1855, 1, 0
        %v2870 = vsel %vm1856, 1, 0
        %v2871 = vsel %vm1857, 1, 0
        %v2872 = vsel %vm1858, 1, 0
        %v2873 = vsel %vm1859, 1, 0
        %v2874 = vsel %vm1860, 1, 0
        %v2875 = vsel %vm1861, 1, 0
        %v2876 = vsel %vm1862, 1, 0
        %v2877 = vsel %vm1863, 1, 0
        %v2878 = vsel %vm1864, 1, 0
        %v2879 = vsel %vm1865, 1, 0
        %v2880 = vsel %vm1866, 1, 0
        %v2881 = vsel %vm1867, 1, 0
        %v2882 = vsel %vm1868, 1, 0
        %v2883 = vsel %vm1869, 1, 0
        %v2884 = vsel %vm1870, 1, 0
        %v2885 = vsel %vm1871, 1, 0
        %v2886 = vsel %vm1872, 1, 0
        %v2887 = vsel %vm1873, 1, 0
        %v2888 = vsel %vm1874, 1, 0
        %v2889 = vsel %vm1875, 1, 0
        %v2890 = vsel %vm1876, 1, 0
        %v2891 = vsel %vm1877, 1, 0
        %vm2892 = vcmp.eq.s32.totalorder %v2860, 1
        %vm2893 = vcmp.eq.s32.totalorder %v2861, 1
        %vm2894 = vcmp.eq.s32.totalorder %v2862, 1
        %vm2895 = vcmp.eq.s32.totalorder %v2863, 1
        %vm2896 = vcmp.eq.s32.totalorder %v2864, 1
        %vm2897 = vcmp.eq.s32.totalorder %v2865, 1
        %vm2898 = vcmp.eq.s32.totalorder %v2866, 1
        %vm2899 = vcmp.eq.s32.totalorder %v2867, 1
        %vm2900 = vcmp.eq.s32.totalorder %v2868, 1
        %vm2901 = vcmp.eq.s32.totalorder %v2869, 1
        %vm2902 = vcmp.eq.s32.totalorder %v2870, 1
        %vm2903 = vcmp.eq.s32.totalorder %v2871, 1
        %vm2904 = vcmp.eq.s32.totalorder %v2872, 1
        %vm2905 = vcmp.eq.s32.totalorder %v2873, 1
        %vm2906 = vcmp.eq.s32.totalorder %v2874, 1
        %vm2907 = vcmp.eq.s32.totalorder %v2875, 1
        %vm2908 = vcmp.eq.s32.totalorder %v2876, 1
        %vm2909 = vcmp.eq.s32.totalorder %v2877, 1
        %vm2910 = vcmp.eq.s32.totalorder %v2878, 1
        %vm2911 = vcmp.eq.s32.totalorder %v2879, 1
        %vm2912 = vcmp.eq.s32.totalorder %v2880, 1
        %vm2913 = vcmp.eq.s32.totalorder %v2881, 1
        %vm2914 = vcmp.eq.s32.totalorder %v2882, 1
        %vm2915 = vcmp.eq.s32.totalorder %v2883, 1
        %vm2916 = vcmp.eq.s32.totalorder %v2884, 1
        %vm2917 = vcmp.eq.s32.totalorder %v2885, 1
        %vm2918 = vcmp.eq.s32.totalorder %v2886, 1
        %vm2919 = vcmp.eq.s32.totalorder %v2887, 1
        %vm2920 = vcmp.eq.s32.totalorder %v2888, 1
        %vm2921 = vcmp.eq.s32.totalorder %v2889, 1
        %vm2922 = vcmp.eq.s32.totalorder %v2890, 1
        %vm2923 = vcmp.eq.s32.totalorder %v2891, 1
        %v2924 = vsel %vm2892, %v2858, 0.0
        %v2925 = vsel %vm2892, %v2859, 0.0
        %v2926 = vsel %vm2893, %v2856, 0.0
        %v2927 = vsel %vm2893, %v2857, 0.0
        %v2928 = vsel %vm2894, %v2854, 0.0
        %v2929 = vsel %vm2894, %v2855, 0.0
        %v2930 = vsel %vm2895, %v2852, 0.0
        %v2931 = vsel %vm2895, %v2853, 0.0
        %v2932 = vsel %vm2896, %v2850, 0.0
        %v2933 = vsel %vm2896, %v2851, 0.0
        %v2934 = vsel %vm2897, %v2848, 0.0
        %v2935 = vsel %vm2897, %v2849, 0.0
        %v2936 = vsel %vm2898, %v2846, 0.0
        %v2937 = vsel %vm2898, %v2847, 0.0
        %v2938 = vsel %vm2899, %v2844, 0.0
        %v2939 = vsel %vm2899, %v2845, 0.0
        %v2940 = vsel %vm2900, %v2842, 0.0
        %v2941 = vsel %vm2900, %v2843, 0.0
        %v2942 = vsel %vm2901, %v2840, 0.0
        %v2943 = vsel %vm2901, %v2841, 0.0
        %v2944 = vsel %vm2902, %v2838, 0.0
        %v2945 = vsel %vm2902, %v2839, 0.0
        %v2946 = vsel %vm2903, %v2836, 0.0
        %v2947 = vsel %vm2903, %v2837, 0.0
        %v2948 = vsel %vm2904, %v2834, 0.0
        %v2949 = vsel %vm2904, %v2835, 0.0
        %v2950 = vsel %vm2905, %v2832, 0.0
        %v2951 = vsel %vm2905, %v2833, 0.0
        %v2952 = vsel %vm2906, %v2830, 0.0
        %v2953 = vsel %vm2906, %v2831, 0.0
        %v2954 = vsel %vm2907, %v2828, 0.0
        %v2955 = vsel %vm2907, %v2829, 0.0
        %v2956 = vsel %vm2908, %v2826, 0.0
        %v2957 = vsel %vm2908, %v2827, 0.0
        %v2958 = vsel %vm2909, %v2824, 0.0
        %v2959 = vsel %vm2909, %v2825, 0.0
        %v2960 = vsel %vm2910, %v2822, 0.0
        %v2961 = vsel %vm2910, %v2823, 0.0
        %v2962 = vsel %vm2911, %v2820, 0.0
        %v2963 = vsel %vm2911, %v2821, 0.0
        %v2964 = vsel %vm2912, %v2818, 0.0
        %v2965 = vsel %vm2912, %v2819, 0.0
        %v2966 = vsel %vm2913, %v2816, 0.0
        %v2967 = vsel %vm2913, %v2817, 0.0
        %v2968 = vsel %vm2914, %v2814, 0.0
        %v2969 = vsel %vm2914, %v2815, 0.0
        %v2970 = vsel %vm2915, %v2812, 0.0
        %v2971 = vsel %vm2915, %v2813, 0.0
        %v2972 = vsel %vm2916, %v2810, 0.0
        %v2973 = vsel %vm2916, %v2811, 0.0
        %v2974 = vsel %vm2917, %v2808, 0.0
        %v2975 = vsel %vm2917, %v2809, 0.0
        %v2976 = vsel %vm2918, %v2806, 0.0
        %v2977 = vsel %vm2918, %v2807, 0.0
        %v2978 = vsel %vm2919, %v2804, 0.0
        %v2979 = vsel %vm2919, %v2805, 0.0
        %v2980 = vsel %vm2920, %v2802, 0.0
        %v2981 = vsel %vm2920, %v2803, 0.0
        %v2982 = vsel %vm2921, %v2800, 0.0
        %v2983 = vsel %vm2921, %v2801, 0.0
        %v2984 = vsel %vm2922, %v2798, 0.0
        %v2985 = vsel %vm2922, %v2799, 0.0
        %v2986 = vsel %vm2923, %v2796, 0.0
        %v2987 = vsel %vm2923, %v2797, 0.0
        %v2988 = vperm.slane %v1364, 0
        %v2989 = vperm.slane %v1364, 4
        %v2992 = vperm.slane %v2988, 0
        %v2993 = vperm.slane %v2989, 0
        %v2994 = vmul.f32 %v2924, %v2992
        %v2995 = vmul.f32 %v2925, %v2993
        %v2996 = vmul.f32 %v2926, %v2992
        %v2997 = vmul.f32 %v2927, %v2993
        %v2998 = vmul.f32 %v2928, %v2992
        %v2999 = vmul.f32 %v2929, %v2993
        %v3000 = vmul.f32 %v2930, %v2992
        %v3001 = vmul.f32 %v2931, %v2993
        %v3002 = vmul.f32 %v2932, %v2992
        %v3003 = vmul.f32 %v2933, %v2993
        %v3004 = vmul.f32 %v2934, %v2992
        %v3005 = vmul.f32 %v2935, %v2993
        %v3006 = vmul.f32 %v2936, %v2992
        %v3007 = vmul.f32 %v2937, %v2993
        %v3008 = vmul.f32 %v2938, %v2992
        %v3009 = vmul.f32 %v2939, %v2993
        %v3010 = vmul.f32 %v2940, %v2992
        %v3011 = vmul.f32 %v2941, %v2993
        %v3012 = vmul.f32 %v2942, %v2992
        %v3013 = vmul.f32 %v2943, %v2993
        %v3014 = vmul.f32 %v2944, %v2992
        %v3015 = vmul.f32 %v2945, %v2993
        %v3016 = vmul.f32 %v2946, %v2992
        %v3017 = vmul.f32 %v2947, %v2993
        %v3018 = vmul.f32 %v2948, %v2992
        %v3019 = vmul.f32 %v2949, %v2993
        %v3020 = vmul.f32 %v2950, %v2992
        %v3021 = vmul.f32 %v2951, %v2993
        %v3022 = vmul.f32 %v2952, %v2992
        %v3023 = vmul.f32 %v2953, %v2993
        %v3024 = vmul.f32 %v2954, %v2992
        %v3025 = vmul.f32 %v2955, %v2993
        %v3026 = vmul.f32 %v2956, %v2992
        %v3027 = vmul.f32 %v2957, %v2993
        %v3028 = vmul.f32 %v2958, %v2992
        %v3029 = vmul.f32 %v2959, %v2993
        %v3030 = vmul.f32 %v2960, %v2992
        %v3031 = vmul.f32 %v2961, %v2993
        %v3032 = vmul.f32 %v2962, %v2992
        %v3033 = vmul.f32 %v2963, %v2993
        %v3034 = vmul.f32 %v2964, %v2992
        %v3035 = vmul.f32 %v2965, %v2993
        %v3036 = vmul.f32 %v2966, %v2992
        %v3037 = vmul.f32 %v2967, %v2993
        %v3038 = vmul.f32 %v2968, %v2992
        %v3039 = vmul.f32 %v2969, %v2993
        %v3040 = vmul.f32 %v2970, %v2992
        %v3041 = vmul.f32 %v2971, %v2993
        %v3042 = vmul.f32 %v2972, %v2992
        %v3043 = vmul.f32 %v2973, %v2993
        %v3044 = vmul.f32 %v2974, %v2992
        %v3045 = vmul.f32 %v2975, %v2993
        %v3046 = vmul.f32 %v2976, %v2992
        %v3047 = vmul.f32 %v2977, %v2993
        %v3048 = vmul.f32 %v2978, %v2992
        %v3049 = vmul.f32 %v2979, %v2993
        %v3050 = vmul.f32 %v2980, %v2992
        %v3051 = vmul.f32 %v2981, %v2993
        %v3052 = vmul.f32 %v2982, %v2992
        %v3053 = vmul.f32 %v2983, %v2993
        %v3054 = vmul.f32 %v2984, %v2992
        %v3055 = vmul.f32 %v2985, %v2993
        %v3056 = vmul.f32 %v2986, %v2992
        %v3057 = vmul.f32 %v2987, %v2993
        %v3058 = vadd.f32 %v2667, %v2994
        %v3059 = vadd.f32 %v2668, %v2995
        %v3060 = vadd.f32 %v2669, %v2996
        %v3061 = vadd.f32 %v2670, %v2997
        %v3062 = vadd.f32 %v2671, %v2998
        %v3063 = vadd.f32 %v2672, %v2999
        %v3064 = vadd.f32 %v2673, %v3000
        %v3065 = vadd.f32 %v2674, %v3001
        %v3066 = vadd.f32 %v2675, %v3002
        %v3067 = vadd.f32 %v2676, %v3003
        %v3068 = vadd.f32 %v2677, %v3004
        %v3069 = vadd.f32 %v2678, %v3005
        %v3070 = vadd.f32 %v2679, %v3006
        %v3071 = vadd.f32 %v2680, %v3007
        %v3072 = vadd.f32 %v2681, %v3008
        %v3073 = vadd.f32 %v2682, %v3009
        %v3074 = vadd.f32 %v2683, %v3010
        %v3075 = vadd.f32 %v2684, %v3011
        %v3076 = vadd.f32 %v2685, %v3012
        %v3077 = vadd.f32 %v2686, %v3013
        %v3078 = vadd.f32 %v2687, %v3014
        %v3079 = vadd.f32 %v2688, %v3015
        %v3080 = vadd.f32 %v2689, %v3016
        %v3081 = vadd.f32 %v2690, %v3017
        %v3082 = vadd.f32 %v2691, %v3018
        %v3083 = vadd.f32 %v2692, %v3019
        %v3084 = vadd.f32 %v2693, %v3020
        %v3085 = vadd.f32 %v2694, %v3021
        %v3086 = vadd.f32 %v2695, %v3022
        %v3087 = vadd.f32 %v2696, %v3023
        %v3088 = vadd.f32 %v2697, %v3024
        %v3089 = vadd.f32 %v2698, %v3025
        %v3090 = vadd.f32 %v2699, %v3026
        %v3091 = vadd.f32 %v2700, %v3027
        %v3092 = vadd.f32 %v2701, %v3028
        %v3093 = vadd.f32 %v2702, %v3029
        %v3094 = vadd.f32 %v2703, %v3030
        %v3095 = vadd.f32 %v2704, %v3031
        %v3096 = vadd.f32 %v2705, %v3032
        %v3097 = vadd.f32 %v2706, %v3033
        %v3098 = vadd.f32 %v2707, %v3034
        %v3099 = vadd.f32 %v2708, %v3035
        %v3100 = vadd.f32 %v2709, %v3036
        %v3101 = vadd.f32 %v2710, %v3037
        %v3102 = vadd.f32 %v2711, %v3038
        %v3103 = vadd.f32 %v2712, %v3039
        %v3104 = vadd.f32 %v2713, %v3040
        %v3105 = vadd.f32 %v2714, %v3041
        %v3106 = vadd.f32 %v2715, %v3042
        %v3107 = vadd.f32 %v2716, %v3043
        %v3108 = vadd.f32 %v2717, %v3044
        %v3109 = vadd.f32 %v2718, %v3045
        %v3110 = vadd.f32 %v2719, %v3046
        %v3111 = vadd.f32 %v2720, %v3047
        %v3112 = vadd.f32 %v2721, %v3048
        %v3113 = vadd.f32 %v2722, %v3049
        %v3114 = vadd.f32 %v2723, %v3050
        %v3115 = vadd.f32 %v2724, %v3051
        %v3116 = vadd.f32 %v2725, %v3052
        %v3117 = vadd.f32 %v2726, %v3053
        %v3118 = vadd.f32 %v2727, %v3054
        %v3119 = vadd.f32 %v2728, %v3055
        %v3120 = vadd.f32 %v2729, %v3056
        %v3121 = vadd.f32 %v2730, %v3057
        %v3122 = vsub.f32 0.0, %v3058
        %v3123 = vsub.f32 0.0, %v3059
        %v3124 = vsub.f32 0.0, %v3060
        %v3125 = vsub.f32 0.0, %v3061
        %v3126 = vsub.f32 0.0, %v3062
        %v3127 = vsub.f32 0.0, %v3063
        %v3128 = vsub.f32 0.0, %v3064
        %v3129 = vsub.f32 0.0, %v3065
        %v3130 = vsub.f32 0.0, %v3066
        %v3131 = vsub.f32 0.0, %v3067
        %v3132 = vsub.f32 0.0, %v3068
        %v3133 = vsub.f32 0.0, %v3069
        %v3134 = vsub.f32 0.0, %v3070
        %v3135 = vsub.f32 0.0, %v3071
        %v3136 = vsub.f32 0.0, %v3072
        %v3137 = vsub.f32 0.0, %v3073
        %v3138 = vsub.f32 0.0, %v3074
        %v3139 = vsub.f32 0.0, %v3075
        %v3140 = vsub.f32 0.0, %v3076
        %v3141 = vsub.f32 0.0, %v3077
        %v3142 = vsub.f32 0.0, %v3078
        %v3143 = vsub.f32 0.0, %v3079
        %v3144 = vsub.f32 0.0, %v3080
        %v3145 = vsub.f32 0.0, %v3081
        %v3146 = vsub.f32 0.0, %v3082
        %v3147 = vsub.f32 0.0, %v3083
        %v3148 = vsub.f32 0.0, %v3084
        %v3149 = vsub.f32 0.0, %v3085
        %v3150 = vsub.f32 0.0, %v3086
        %v3151 = vsub.f32 0.0, %v3087
        %v3152 = vsub.f32 0.0, %v3088
        %v3153 = vsub.f32 0.0, %v3089
        %v3154 = vsub.f32 0.0, %v3090
        %v3155 = vsub.f32 0.0, %v3091
        %v3156 = vsub.f32 0.0, %v3092
        %v3157 = vsub.f32 0.0, %v3093
        %v3158 = vsub.f32 0.0, %v3094
        %v3159 = vsub.f32 0.0, %v3095
        %v3160 = vsub.f32 0.0, %v3096
        %v3161 = vsub.f32 0.0, %v3097
        %v3162 = vsub.f32 0.0, %v3098
        %v3163 = vsub.f32 0.0, %v3099
        %v3164 = vsub.f32 0.0, %v3100
        %v3165 = vsub.f32 0.0, %v3101
        %v3166 = vsub.f32 0.0, %v3102
        %v3167 = vsub.f32 0.0, %v3103
        %v3168 = vsub.f32 0.0, %v3104
        %v3169 = vsub.f32 0.0, %v3105
        %v3170 = vsub.f32 0.0, %v3106
        %v3171 = vsub.f32 0.0, %v3107
        %v3172 = vsub.f32 0.0, %v3108
        %v3173 = vsub.f32 0.0, %v3109
        %v3174 = vsub.f32 0.0, %v3110
        %v3175 = vsub.f32 0.0, %v3111
        %v3176 = vsub.f32 0.0, %v3112
        %v3177 = vsub.f32 0.0, %v3113
        %v3178 = vsub.f32 0.0, %v3114
        %v3179 = vsub.f32 0.0, %v3115
        %v3180 = vsub.f32 0.0, %v3116
        %v3181 = vsub.f32 0.0, %v3117
        %v3182 = vsub.f32 0.0, %v3118
        %v3183 = vsub.f32 0.0, %v3119
        %v3184 = vsub.f32 0.0, %v3120
        %v3185 = vsub.f32 0.0, %v3121
        %v3186 = vmul.f32 %v3122, 1.442695
        %v3187 = vpow.pop %v3186
        %v3188 = vmul.f32 %v3123, 1.442695
        %v3189 = vpow.pop %v3188
        %v3190 = vmul.f32 %v3124, 1.442695
        %v3191 = vpow.pop %v3190
        %v3192 = vmul.f32 %v3125, 1.442695
        %v3193 = vpow.pop %v3192
        %v3194 = vmul.f32 %v3126, 1.442695
        %v3195 = vpow.pop %v3194
        %v3196 = vmul.f32 %v3127, 1.442695
        %v3197 = vpow.pop %v3196
        %v3198 = vmul.f32 %v3128, 1.442695
        %v3199 = vpow.pop %v3198
        %v3200 = vmul.f32 %v3129, 1.442695
        %v3201 = vpow.pop %v3200
        %v3202 = vmul.f32 %v3130, 1.442695
        %v3203 = vpow.pop %v3202
        %v3204 = vmul.f32 %v3131, 1.442695
        %v3205 = vpow.pop %v3204
        %v3206 = vmul.f32 %v3132, 1.442695
        %v3207 = vpow.pop %v3206
        %v3208 = vmul.f32 %v3133, 1.442695
        %v3209 = vpow.pop %v3208
        %v3210 = vmul.f32 %v3134, 1.442695
        %v3211 = vpow.pop %v3210
        %v3212 = vmul.f32 %v3135, 1.442695
        %v3213 = vpow.pop %v3212
        %v3214 = vmul.f32 %v3136, 1.442695
        %v3215 = vpow.pop %v3214
        %v3216 = vmul.f32 %v3137, 1.442695
        %v3217 = vpow.pop %v3216
        %v3218 = vmul.f32 %v3138, 1.442695
        %v3219 = vpow.pop %v3218
        %v3220 = vmul.f32 %v3139, 1.442695
        %v3221 = vpow.pop %v3220
        %v3222 = vmul.f32 %v3140, 1.442695
        %v3223 = vpow.pop %v3222
        %v3224 = vmul.f32 %v3141, 1.442695
        %v3225 = vpow.pop %v3224
        %v3226 = vmul.f32 %v3142, 1.442695
        %v3227 = vpow.pop %v3226
        %v3228 = vmul.f32 %v3143, 1.442695
        %v3229 = vpow.pop %v3228
        %v3230 = vmul.f32 %v3144, 1.442695
        %v3231 = vpow.pop %v3230
        %v3232 = vmul.f32 %v3145, 1.442695
        %v3233 = vpow.pop %v3232
        %v3234 = vmul.f32 %v3146, 1.442695
        %v3235 = vpow.pop %v3234
        %v3236 = vmul.f32 %v3147, 1.442695
        %v3237 = vpow.pop %v3236
        %v3238 = vmul.f32 %v3148, 1.442695
        %v3239 = vpow.pop %v3238
        %v3240 = vmul.f32 %v3149, 1.442695
        %v3241 = vpow.pop %v3240
        %v3242 = vmul.f32 %v3150, 1.442695
        %v3243 = vpow.pop %v3242
        %v3244 = vmul.f32 %v3151, 1.442695
        %v3245 = vpow.pop %v3244
        %v3246 = vmul.f32 %v3152, 1.442695
        %v3247 = vpow.pop %v3246
        %v3248 = vmul.f32 %v3153, 1.442695
        %v3249 = vpow.pop %v3248
        %v3250 = vmul.f32 %v3154, 1.442695
        %v3251 = vpow.pop %v3250
        %v3252 = vmul.f32 %v3155, 1.442695
        %v3253 = vpow.pop %v3252
        %v3254 = vmul.f32 %v3156, 1.442695
        %v3255 = vpow.pop %v3254
        %v3256 = vmul.f32 %v3157, 1.442695
        %v3257 = vpow.pop %v3256
        %v3258 = vmul.f32 %v3158, 1.442695
        %v3259 = vpow.pop %v3258
        %v3260 = vmul.f32 %v3159, 1.442695
        %v3261 = vpow.pop %v3260
        %v3262 = vmul.f32 %v3160, 1.442695
        %v3263 = vpow.pop %v3262
        %v3264 = vmul.f32 %v3161, 1.442695
        %v3265 = vpow.pop %v3264
        %v3266 = vmul.f32 %v3162, 1.442695
        %v3267 = vpow.pop %v3266
        %v3268 = vmul.f32 %v3163, 1.442695
        %v3269 = vpow.pop %v3268
        %v3270 = vmul.f32 %v3164, 1.442695
        %v3271 = vpow.pop %v3270
        %v3272 = vmul.f32 %v3165, 1.442695
        %v3273 = vpow.pop %v3272
        %v3274 = vmul.f32 %v3166, 1.442695
        %v3275 = vpow.pop %v3274
        %v3276 = vmul.f32 %v3167, 1.442695
        %v3277 = vpow.pop %v3276
        %v3278 = vmul.f32 %v3168, 1.442695
        %v3279 = vpow.pop %v3278
        %v3280 = vmul.f32 %v3169, 1.442695
        %v3281 = vpow.pop %v3280
        %v3282 = vmul.f32 %v3170, 1.442695
        %v3283 = vpow.pop %v3282
        %v3284 = vmul.f32 %v3171, 1.442695
        %v3285 = vpow.pop %v3284
        %v3286 = vmul.f32 %v3172, 1.442695
        %v3287 = vpow.pop %v3286
        %v3288 = vmul.f32 %v3173, 1.442695
        %v3289 = vpow.pop %v3288
        %v3290 = vmul.f32 %v3174, 1.442695
        %v3291 = vpow.pop %v3290
        %v3292 = vmul.f32 %v3175, 1.442695
        %v3293 = vpow.pop %v3292
        %v3294 = vmul.f32 %v3176, 1.442695
        %v3295 = vpow.pop %v3294
        %v3296 = vmul.f32 %v3177, 1.442695
        %v3297 = vpow.pop %v3296
        %v3298 = vmul.f32 %v3178, 1.442695
        %v3299 = vpow.pop %v3298
        %v3300 = vmul.f32 %v3179, 1.442695
        %v3301 = vpow.pop %v3300
        %v3302 = vmul.f32 %v3180, 1.442695
        %v3303 = vpow.pop %v3302
        %v3304 = vmul.f32 %v3181, 1.442695
        %v3305 = vpow.pop %v3304
        %v3306 = vmul.f32 %v3182, 1.442695
        %v3307 = vpow.pop %v3306
        %v3308 = vmul.f32 %v3183, 1.442695
        %v3309 = vpow.pop %v3308
        %v3310 = vmul.f32 %v3184, 1.442695
        %v3311 = vpow.pop %v3310
        %v3312 = vmul.f32 %v3185, 1.442695
        %v3313 = vpow.pop %v3312
        %v3314 = vadd.f32 %v3187, 1.0
        %v3315 = vadd.f32 %v3189, 1.0
        %v3316 = vadd.f32 %v3191, 1.0
        %v3317 = vadd.f32 %v3193, 1.0
        %v3318 = vadd.f32 %v3195, 1.0
        %v3319 = vadd.f32 %v3197, 1.0
        %v3320 = vadd.f32 %v3199, 1.0
        %v3321 = vadd.f32 %v3201, 1.0
        %v3322 = vadd.f32 %v3203, 1.0
        %v3323 = vadd.f32 %v3205, 1.0
        %v3324 = vadd.f32 %v3207, 1.0
        %v3325 = vadd.f32 %v3209, 1.0
        %v3326 = vadd.f32 %v3211, 1.0
        %v3327 = vadd.f32 %v3213, 1.0
        %v3328 = vadd.f32 %v3215, 1.0
        %v3329 = vadd.f32 %v3217, 1.0
        %v3330 = vadd.f32 %v3219, 1.0
        %v3331 = vadd.f32 %v3221, 1.0
        %v3332 = vadd.f32 %v3223, 1.0
        %v3333 = vadd.f32 %v3225, 1.0
        %v3334 = vadd.f32 %v3227, 1.0
        %v3335 = vadd.f32 %v3229, 1.0
        %v3336 = vadd.f32 %v3231, 1.0
        %v3337 = vadd.f32 %v3233, 1.0
        %v3338 = vadd.f32 %v3235, 1.0
        %v3339 = vadd.f32 %v3237, 1.0
        %v3340 = vadd.f32 %v3239, 1.0
        %v3341 = vadd.f32 %v3241, 1.0
        %v3342 = vadd.f32 %v3243, 1.0
        %v3343 = vadd.f32 %v3245, 1.0
        %v3344 = vadd.f32 %v3247, 1.0
        %v3345 = vadd.f32 %v3249, 1.0
        %v3346 = vadd.f32 %v3251, 1.0
        %v3347 = vadd.f32 %v3253, 1.0
        %v3348 = vadd.f32 %v3255, 1.0
        %v3349 = vadd.f32 %v3257, 1.0
        %v3350 = vadd.f32 %v3259, 1.0
        %v3351 = vadd.f32 %v3261, 1.0
        %v3352 = vadd.f32 %v3263, 1.0
        %v3353 = vadd.f32 %v3265, 1.0
        %v3354 = vadd.f32 %v3267, 1.0
        %v3355 = vadd.f32 %v3269, 1.0
        %v3356 = vadd.f32 %v3271, 1.0
        %v3357 = vadd.f32 %v3273, 1.0
        %v3358 = vadd.f32 %v3275, 1.0
        %v3359 = vadd.f32 %v3277, 1.0
        %v3360 = vadd.f32 %v3279, 1.0
        %v3361 = vadd.f32 %v3281, 1.0
        %v3362 = vadd.f32 %v3283, 1.0
        %v3363 = vadd.f32 %v3285, 1.0
        %v3364 = vadd.f32 %v3287, 1.0
        %v3365 = vadd.f32 %v3289, 1.0
        %v3366 = vadd.f32 %v3291, 1.0
        %v3367 = vadd.f32 %v3293, 1.0
        %v3368 = vadd.f32 %v3295, 1.0
        %v3369 = vadd.f32 %v3297, 1.0
        %v3370 = vadd.f32 %v3299, 1.0
        %v3371 = vadd.f32 %v3301, 1.0
        %v3372 = vadd.f32 %v3303, 1.0
        %v3373 = vadd.f32 %v3305, 1.0
        %v3374 = vadd.f32 %v3307, 1.0
        %v3375 = vadd.f32 %v3309, 1.0
        %v3376 = vadd.f32 %v3311, 1.0
        %v3377 = vadd.f32 %v3313, 1.0
        %v3378 = vrcp.pop %v3314
        %v3379 = vrcp.pop %v3315
        %v3380 = vrcp.pop %v3316
        %v3381 = vrcp.pop %v3317
        %v3382 = vrcp.pop %v3318
        %v3383 = vrcp.pop %v3319
        %v3384 = vrcp.pop %v3320
        %v3385 = vrcp.pop %v3321
        %v3386 = vrcp.pop %v3322
        %v3387 = vrcp.pop %v3323
        %v3388 = vrcp.pop %v3324
        %v3389 = vrcp.pop %v3325
        %v3390 = vrcp.pop %v3326
        %v3391 = vrcp.pop %v3327
        %v3392 = vrcp.pop %v3328
        %v3393 = vrcp.pop %v3329
        %v3394 = vrcp.pop %v3330
        %v3395 = vrcp.pop %v3331
        %v3396 = vrcp.pop %v3332
        %v3397 = vrcp.pop %v3333
        %v3398 = vrcp.pop %v3334
        %v3399 = vrcp.pop %v3335
        %v3400 = vrcp.pop %v3336
        %v3401 = vrcp.pop %v3337
        %v3402 = vrcp.pop %v3338
        %v3403 = vrcp.pop %v3339
        %v3404 = vrcp.pop %v3340
        %v3405 = vrcp.pop %v3341
        %v3406 = vrcp.pop %v3342
        %v3407 = vrcp.pop %v3343
        %v3408 = vrcp.pop %v3344
        %v3409 = vrcp.pop %v3345
        %v3410 = vrcp.pop %v3346
        %v3411 = vrcp.pop %v3347
        %v3412 = vrcp.pop %v3348
        %v3413 = vrcp.pop %v3349
        %v3414 = vrcp.pop %v3350
        %v3415 = vrcp.pop %v3351
        %v3416 = vrcp.pop %v3352
        %v3417 = vrcp.pop %v3353
        %v3418 = vrcp.pop %v3354
        %v3419 = vrcp.pop %v3355
        %v3420 = vrcp.pop %v3356
        %v3421 = vrcp.pop %v3357
        %v3422 = vrcp.pop %v3358
        %v3423 = vrcp.pop %v3359
        %v3424 = vrcp.pop %v3360
        %v3425 = vrcp.pop %v3361
        %v3426 = vrcp.pop %v3362
        %v3427 = vrcp.pop %v3363
        %v3428 = vrcp.pop %v3364
        %v3429 = vrcp.pop %v3365
        %v3430 = vrcp.pop %v3366
        %v3431 = vrcp.pop %v3367
        %v3432 = vrcp.pop %v3368
        %v3433 = vrcp.pop %v3369
        %v3434 = vrcp.pop %v3370
        %v3435 = vrcp.pop %v3371
        %v3436 = vrcp.pop %v3372
        %v3437 = vrcp.pop %v3373
        %v3438 = vrcp.pop %v3374
        %v3439 = vrcp.pop %v3375
        %v3440 = vrcp.pop %v3376
        %v3441 = vrcp.pop %v3377
        %v3442 = vmul.f32 %v3058, %v3378
        %v3443 = vmul.f32 %v3059, %v3379
        %v3444 = vmul.f32 %v3060, %v3380
        %v3445 = vmul.f32 %v3061, %v3381
        %v3446 = vmul.f32 %v3062, %v3382
        %v3447 = vmul.f32 %v3063, %v3383
        %v3448 = vmul.f32 %v3064, %v3384
        %v3449 = vmul.f32 %v3065, %v3385
        %v3450 = vmul.f32 %v3066, %v3386
        %v3451 = vmul.f32 %v3067, %v3387
        %v3452 = vmul.f32 %v3068, %v3388
        %v3453 = vmul.f32 %v3069, %v3389
        %v3454 = vmul.f32 %v3070, %v3390
        %v3455 = vmul.f32 %v3071, %v3391
        %v3456 = vmul.f32 %v3072, %v3392
        %v3457 = vmul.f32 %v3073, %v3393
        %v3458 = vmul.f32 %v3074, %v3394
        %v3459 = vmul.f32 %v3075, %v3395
        %v3460 = vmul.f32 %v3076, %v3396
        %v3461 = vmul.f32 %v3077, %v3397
        %v3462 = vmul.f32 %v3078, %v3398
        %v3463 = vmul.f32 %v3079, %v3399
        %v3464 = vmul.f32 %v3080, %v3400
        %v3465 = vmul.f32 %v3081, %v3401
        %v3466 = vmul.f32 %v3082, %v3402
        %v3467 = vmul.f32 %v3083, %v3403
        %v3468 = vmul.f32 %v3084, %v3404
        %v3469 = vmul.f32 %v3085, %v3405
        %v3470 = vmul.f32 %v3086, %v3406
        %v3471 = vmul.f32 %v3087, %v3407
        %v3472 = vmul.f32 %v3088, %v3408
        %v3473 = vmul.f32 %v3089, %v3409
        %v3474 = vmul.f32 %v3090, %v3410
        %v3475 = vmul.f32 %v3091, %v3411
        %v3476 = vmul.f32 %v3092, %v3412
        %v3477 = vmul.f32 %v3093, %v3413
        %v3478 = vmul.f32 %v3094, %v3414
        %v3479 = vmul.f32 %v3095, %v3415
        %v3480 = vmul.f32 %v3096, %v3416
        %v3481 = vmul.f32 %v3097, %v3417
        %v3482 = vmul.f32 %v3098, %v3418
        %v3483 = vmul.f32 %v3099, %v3419
        %v3484 = vmul.f32 %v3100, %v3420
        %v3485 = vmul.f32 %v3101, %v3421
        %v3486 = vmul.f32 %v3102, %v3422
        %v3487 = vmul.f32 %v3103, %v3423
        %v3488 = vmul.f32 %v3104, %v3424
        %v3489 = vmul.f32 %v3105, %v3425
        %v3490 = vmul.f32 %v3106, %v3426
        %v3491 = vmul.f32 %v3107, %v3427
        %v3492 = vmul.f32 %v3108, %v3428
        %v3493 = vmul.f32 %v3109, %v3429
        %v3494 = vmul.f32 %v3110, %v3430
        %v3495 = vmul.f32 %v3111, %v3431
        %v3496 = vmul.f32 %v3112, %v3432
        %v3497 = vmul.f32 %v3113, %v3433
        %v3498 = vmul.f32 %v3114, %v3434
        %v3499 = vmul.f32 %v3115, %v3435
        %v3500 = vmul.f32 %v3116, %v3436
        %v3501 = vmul.f32 %v3117, %v3437
        %v3502 = vmul.f32 %v3118, %v3438
        %v3503 = vmul.f32 %v3119, %v3439
        %v3504 = vmul.f32 %v3120, %v3440
        %v3505 = vmul.f32 %v3121, %v3441
        %v3506 = vld [vmem:[%s5] sm:$0xff]
        %v3507 = vld [vmem:[%s5 + $0x8] sm:$0xff]
        %v3508 = vld [vmem:[%s5 + $0x10] sm:$0xff]
        %v3509 = vld [vmem:[%s5 + $0x18] sm:$0xff]
        %v3510 = vld [vmem:[%s5 + $0x20] sm:$0xff]
        %v3511 = vld [vmem:[%s5 + $0x28] sm:$0xff]
        %v3512 = vld [vmem:[%s5 + $0x30] sm:$0xff]
        %v3513 = vld [vmem:[%s5 + $0x38] sm:$0xff]
        %v3514 = vld [vmem:[%s5 + $0x40] sm:$0xff]
        %v3515 = vld [vmem:[%s5 + $0x48] sm:$0xff]
        %v3516 = vld [vmem:[%s5 + $0x50] sm:$0xff]
        %v3517 = vld [vmem:[%s5 + $0x58] sm:$0xff]
        %v3518 = vld [vmem:[%s5 + $0x60] sm:$0xff]
        %v3519 = vld [vmem:[%s5 + $0x68] sm:$0xff]
        %v3520 = vld [vmem:[%s5 + $0x70] sm:$0xff]
        %v3521 = vld [vmem:[%s5 + $0x78] sm:$0xff]
        %v3522 = vld [vmem:[%s5 + $0x80] sm:$0xff]
        %v3523 = vld [vmem:[%s5 + $0x88] sm:$0xff]
        %v3524 = vld [vmem:[%s5 + $0x90] sm:$0xff]
        %v3525 = vld [vmem:[%s5 + $0x98] sm:$0xff]
        %v3526 = vld [vmem:[%s5 + $0xa0] sm:$0xff]
        %v3527 = vld [vmem:[%s5 + $0xa8] sm:$0xff]
        %v3528 = vld [vmem:[%s5 + $0xb0] sm:$0xff]
        %v3529 = vld [vmem:[%s5 + $0xb8] sm:$0xff]
        %v3530 = vld [vmem:[%s5 + $0xc0] sm:$0xff]
        %v3531 = vld [vmem:[%s5 + $0xc8] sm:$0xff]
        %v3532 = vld [vmem:[%s5 + $0xd0] sm:$0xff]
        %v3533 = vld [vmem:[%s5 + $0xd8] sm:$0xff]
        %v3534 = vld [vmem:[%s5 + $0xe0] sm:$0xff]
        %v3535 = vld [vmem:[%s5 + $0xe8] sm:$0xff]
        %v3536 = vld [vmem:[%s5 + $0xf0] sm:$0xff]
        %v3537 = vld [vmem:[%s5 + $0xf8] sm:$0xff]
        %3538 = vmatpush.msra.mxu0 %v3521
        %3539 = vmatpush.msra.mxu0 %v3520
        %3540 = vmatpush.msra.mxu0 %v3519
        %3541 = vmatpush.msra.mxu0 %v3518
        %3542 = vmatpush.msra.mxu0 %v3517
        %3543 = vmatpush.msra.mxu0 %v3516
        %3544 = vmatpush.msra.mxu0 %v3515
        %3545 = vmatpush.msra.mxu0 %v3514
        %3546 = vmatpush.msra.mxu0 %v3513
        %3547 = vmatpush.msra.mxu0 %v3512
        %3548 = vmatpush.msra.mxu0 %v3511
        %3549 = vmatpush.msra.mxu0 %v3510
        %3550 = vmatpush.msra.mxu0 %v3509
        %3551 = vmatpush.msra.mxu0 %v3508
        %3552 = vmatpush.msra.mxu0 %v3507
        %3553 = vmatpush.msra.mxu0 %v3506
        %3554 = vmatmul.f32.gmra.mxu0 %v3442
        %v3555 = vpop.f32.mrf.mxu0
        %v3556 = vadd.f32 0.0, %v3555
        %3557 = vmatmul.f32.gmra.mxu0 %v3444
        %v3558 = vpop.f32.mrf.mxu0
        %v3559 = vadd.f32 0.0, %v3558
        %3560 = vmatmul.f32.gmra.mxu0 %v3446
        %v3561 = vpop.f32.mrf.mxu0
        %v3562 = vadd.f32 0.0, %v3561
        %3563 = vmatmul.f32.gmra.mxu0 %v3448
        %v3564 = vpop.f32.mrf.mxu0
        %v3565 = vadd.f32 0.0, %v3564
        %3566 = vmatmul.f32.gmra.mxu0 %v3450
        %v3567 = vpop.f32.mrf.mxu0
        %v3568 = vadd.f32 0.0, %v3567
        %3569 = vmatmul.f32.gmra.mxu0 %v3452
        %v3570 = vpop.f32.mrf.mxu0
        %v3571 = vadd.f32 0.0, %v3570
        %3572 = vmatmul.f32.gmra.mxu0 %v3454
        %v3573 = vpop.f32.mrf.mxu0
        %v3574 = vadd.f32 0.0, %v3573
        %3575 = vmatmul.f32.gmra.mxu0 %v3456
        %v3576 = vpop.f32.mrf.mxu0
        %v3577 = vadd.f32 0.0, %v3576
        %3578 = vmatmul.f32.gmra.mxu0 %v3458
        %v3579 = vpop.f32.mrf.mxu0
        %v3580 = vadd.f32 0.0, %v3579
        %3581 = vmatmul.f32.gmra.mxu0 %v3460
        %v3582 = vpop.f32.mrf.mxu0
        %v3583 = vadd.f32 0.0, %v3582
        %3584 = vmatmul.f32.gmra.mxu0 %v3462
        %v3585 = vpop.f32.mrf.mxu0
        %v3586 = vadd.f32 0.0, %v3585
        %3587 = vmatmul.f32.gmra.mxu0 %v3464
        %v3588 = vpop.f32.mrf.mxu0
        %v3589 = vadd.f32 0.0, %v3588
        %3590 = vmatmul.f32.gmra.mxu0 %v3466
        %v3591 = vpop.f32.mrf.mxu0
        %v3592 = vadd.f32 0.0, %v3591
        %3593 = vmatmul.f32.gmra.mxu0 %v3468
        %v3594 = vpop.f32.mrf.mxu0
        %v3595 = vadd.f32 0.0, %v3594
        %3596 = vmatmul.f32.gmra.mxu0 %v3470
        %v3597 = vpop.f32.mrf.mxu0
        %v3598 = vadd.f32 0.0, %v3597
        %3599 = vmatmul.f32.gmra.mxu0 %v3472
        %v3600 = vpop.f32.mrf.mxu0
        %v3601 = vadd.f32 0.0, %v3600
        %3602 = vmatmul.f32.gmra.mxu0 %v3474
        %v3603 = vpop.f32.mrf.mxu0
        %v3604 = vadd.f32 0.0, %v3603
        %3605 = vmatmul.f32.gmra.mxu0 %v3476
        %v3606 = vpop.f32.mrf.mxu0
        %v3607 = vadd.f32 0.0, %v3606
        %3608 = vmatmul.f32.gmra.mxu0 %v3478
        %v3609 = vpop.f32.mrf.mxu0
        %v3610 = vadd.f32 0.0, %v3609
        %3611 = vmatmul.f32.gmra.mxu0 %v3480
        %v3612 = vpop.f32.mrf.mxu0
        %v3613 = vadd.f32 0.0, %v3612
        %3614 = vmatmul.f32.gmra.mxu0 %v3482
        %v3615 = vpop.f32.mrf.mxu0
        %v3616 = vadd.f32 0.0, %v3615
        %3617 = vmatmul.f32.gmra.mxu0 %v3484
        %v3618 = vpop.f32.mrf.mxu0
        %v3619 = vadd.f32 0.0, %v3618
        %3620 = vmatmul.f32.gmra.mxu0 %v3486
        %v3621 = vpop.f32.mrf.mxu0
        %v3622 = vadd.f32 0.0, %v3621
        %3623 = vmatmul.f32.gmra.mxu0 %v3488
        %v3624 = vpop.f32.mrf.mxu0
        %v3625 = vadd.f32 0.0, %v3624
        %3626 = vmatmul.f32.gmra.mxu0 %v3490
        %v3627 = vpop.f32.mrf.mxu0
        %v3628 = vadd.f32 0.0, %v3627
        %3629 = vmatmul.f32.gmra.mxu0 %v3492
        %v3630 = vpop.f32.mrf.mxu0
        %v3631 = vadd.f32 0.0, %v3630
        %3632 = vmatmul.f32.gmra.mxu0 %v3494
        %v3633 = vpop.f32.mrf.mxu0
        %v3634 = vadd.f32 0.0, %v3633
        %3635 = vmatmul.f32.gmra.mxu0 %v3496
        %v3636 = vpop.f32.mrf.mxu0
        %v3637 = vadd.f32 0.0, %v3636
        %3638 = vmatmul.f32.gmra.mxu0 %v3498
        %v3639 = vpop.f32.mrf.mxu0
        %v3640 = vadd.f32 0.0, %v3639
        %3641 = vmatmul.f32.gmra.mxu0 %v3500
        %v3642 = vpop.f32.mrf.mxu0
        %v3643 = vadd.f32 0.0, %v3642
        %3644 = vmatmul.f32.gmra.mxu0 %v3502
        %v3645 = vpop.f32.mrf.mxu0
        %v3646 = vadd.f32 0.0, %v3645
        %3647 = vmatmul.f32.gmra.mxu0 %v3504
        %v3648 = vpop.f32.mrf.mxu0
        %v3649 = vadd.f32 0.0, %v3648
        %3650 = vdwg.mxu0
        %3651 = vmatpush.msra.mxu0 %v3537
        %3652 = vmatpush.msra.mxu0 %v3536
        %3653 = vmatpush.msra.mxu0 %v3535
        %3654 = vmatpush.msra.mxu0 %v3534
        %3655 = vmatpush.msra.mxu0 %v3533
        %3656 = vmatpush.msra.mxu0 %v3532
        %3657 = vmatpush.msra.mxu0 %v3531
        %3658 = vmatpush.msra.mxu0 %v3530
        %3659 = vmatpush.msra.mxu0 %v3529
        %3660 = vmatpush.msra.mxu0 %v3528
        %3661 = vmatpush.msra.mxu0 %v3527
        %3662 = vmatpush.msra.mxu0 %v3526
        %3663 = vmatpush.msra.mxu0 %v3525
        %3664 = vmatpush.msra.mxu0 %v3524
        %3665 = vmatpush.msra.mxu0 %v3523
        %3666 = vmatpush.msra.mxu0 %v3522
        %3667 = vmatmul.f32.gmra.mxu0 %v3443
        %v3668 = vpop.f32.mrf.mxu0
        %v3669 = vadd.f32 %v3556, %v3668
        %3670 = vmatmul.f32.gmra.mxu0 %v3445
        %v3671 = vpop.f32.mrf.mxu0
        %v3672 = vadd.f32 %v3559, %v3671
        %3673 = vmatmul.f32.gmra.mxu0 %v3447
        %v3674 = vpop.f32.mrf.mxu0
        %v3675 = vadd.f32 %v3562, %v3674
        %3676 = vmatmul.f32.gmra.mxu0 %v3449
        %v3677 = vpop.f32.mrf.mxu0
        %v3678 = vadd.f32 %v3565, %v3677
        %3679 = vmatmul.f32.gmra.mxu0 %v3451
        %v3680 = vpop.f32.mrf.mxu0
        %v3681 = vadd.f32 %v3568, %v3680
        %3682 = vmatmul.f32.gmra.mxu0 %v3453
        %v3683 = vpop.f32.mrf.mxu0
        %v3684 = vadd.f32 %v3571, %v3683
        %3685 = vmatmul.f32.gmra.mxu0 %v3455
        %v3686 = vpop.f32.mrf.mxu0
        %v3687 = vadd.f32 %v3574, %v3686
        %3688 = vmatmul.f32.gmra.mxu0 %v3457
        %v3689 = vpop.f32.mrf.mxu0
        %v3690 = vadd.f32 %v3577, %v3689
        %3691 = vmatmul.f32.gmra.mxu0 %v3459
        %v3692 = vpop.f32.mrf.mxu0
        %v3693 = vadd.f32 %v3580, %v3692
        %3694 = vmatmul.f32.gmra.mxu0 %v3461
        %v3695 = vpop.f32.mrf.mxu0
        %v3696 = vadd.f32 %v3583, %v3695
        %3697 = vmatmul.f32.gmra.mxu0 %v3463
        %v3698 = vpop.f32.mrf.mxu0
        %v3699 = vadd.f32 %v3586, %v3698
        %3700 = vmatmul.f32.gmra.mxu0 %v3465
        %v3701 = vpop.f32.mrf.mxu0
        %v3702 = vadd.f32 %v3589, %v3701
        %3703 = vmatmul.f32.gmra.mxu0 %v3467
        %v3704 = vpop.f32.mrf.mxu0
        %v3705 = vadd.f32 %v3592, %v3704
        %3706 = vmatmul.f32.gmra.mxu0 %v3469
        %v3707 = vpop.f32.mrf.mxu0
        %v3708 = vadd.f32 %v3595, %v3707
        %3709 = vmatmul.f32.gmra.mxu0 %v3471
        %v3710 = vpop.f32.mrf.mxu0
        %v3711 = vadd.f32 %v3598, %v3710
        %3712 = vmatmul.f32.gmra.mxu0 %v3473
        %v3713 = vpop.f32.mrf.mxu0
        %v3714 = vadd.f32 %v3601, %v3713
        %3715 = vmatmul.f32.gmra.mxu0 %v3475
        %v3716 = vpop.f32.mrf.mxu0
        %v3717 = vadd.f32 %v3604, %v3716
        %3718 = vmatmul.f32.gmra.mxu0 %v3477
        %v3719 = vpop.f32.mrf.mxu0
        %v3720 = vadd.f32 %v3607, %v3719
        %3721 = vmatmul.f32.gmra.mxu0 %v3479
        %v3722 = vpop.f32.mrf.mxu0
        %v3723 = vadd.f32 %v3610, %v3722
        %3724 = vmatmul.f32.gmra.mxu0 %v3481
        %v3725 = vpop.f32.mrf.mxu0
        %v3726 = vadd.f32 %v3613, %v3725
        %3727 = vmatmul.f32.gmra.mxu0 %v3483
        %v3728 = vpop.f32.mrf.mxu0
        %v3729 = vadd.f32 %v3616, %v3728
        %3730 = vmatmul.f32.gmra.mxu0 %v3485
        %v3731 = vpop.f32.mrf.mxu0
        %v3732 = vadd.f32 %v3619, %v3731
        %3733 = vmatmul.f32.gmra.mxu0 %v3487
        %v3734 = vpop.f32.mrf.mxu0
        %v3735 = vadd.f32 %v3622, %v3734
        %3736 = vmatmul.f32.gmra.mxu0 %v3489
        %v3737 = vpop.f32.mrf.mxu0
        %v3738 = vadd.f32 %v3625, %v3737
        %3739 = vmatmul.f32.gmra.mxu0 %v3491
        %v3740 = vpop.f32.mrf.mxu0
        %v3741 = vadd.f32 %v3628, %v3740
        %3742 = vmatmul.f32.gmra.mxu0 %v3493
        %v3743 = vpop.f32.mrf.mxu0
        %v3744 = vadd.f32 %v3631, %v3743
        %3745 = vmatmul.f32.gmra.mxu0 %v3495
        %v3746 = vpop.f32.mrf.mxu0
        %v3747 = vadd.f32 %v3634, %v3746
        %3748 = vmatmul.f32.gmra.mxu0 %v3497
        %v3749 = vpop.f32.mrf.mxu0
        %v3750 = vadd.f32 %v3637, %v3749
        %3751 = vmatmul.f32.gmra.mxu0 %v3499
        %v3752 = vpop.f32.mrf.mxu0
        %v3753 = vadd.f32 %v3640, %v3752
        %3754 = vmatmul.f32.gmra.mxu0 %v3501
        %v3755 = vpop.f32.mrf.mxu0
        %v3756 = vadd.f32 %v3643, %v3755
        %3757 = vmatmul.f32.gmra.mxu0 %v3503
        %v3758 = vpop.f32.mrf.mxu0
        %v3759 = vadd.f32 %v3646, %v3758
        %3760 = vmatmul.f32.gmra.mxu0 %v3505
        %v3761 = vpop.f32.mrf.mxu0
        %v3762 = vadd.f32 %v3649, %v3761
        %3763 = vdwg.mxu0
        %v3764 = vld [vmem:[%s6] sm:$0xff]
        %v3765 = vld [vmem:[%s6 + $0x8] sm:$0xff]
        %v3766 = vld [vmem:[%s6 + $0x10] sm:$0xff]
        %v3767 = vld [vmem:[%s6 + $0x18] sm:$0xff]
        %v3768 = vld [vmem:[%s6 + $0x20] sm:$0xff]
        %v3769 = vld [vmem:[%s6 + $0x28] sm:$0xff]
        %v3770 = vld [vmem:[%s6 + $0x30] sm:$0xff]
        %v3771 = vld [vmem:[%s6 + $0x38] sm:$0xff]
        %v3772 = vld [vmem:[%s6 + $0x40] sm:$0xff]
        %v3773 = vld [vmem:[%s6 + $0x48] sm:$0xff]
        %v3774 = vld [vmem:[%s6 + $0x50] sm:$0xff]
        %v3775 = vld [vmem:[%s6 + $0x58] sm:$0xff]
        %v3776 = vld [vmem:[%s6 + $0x60] sm:$0xff]
        %v3777 = vld [vmem:[%s6 + $0x68] sm:$0xff]
        %v3778 = vld [vmem:[%s6 + $0x70] sm:$0xff]
        %v3779 = vld [vmem:[%s6 + $0x78] sm:$0xff]
        %v3780 = vld [vmem:[%s7] sm:$0xf]
        %v3782 = vperm.slane %v3780, 0
        %v3783 = vperm.slane %v3780, 1
        %v3784 = vperm.slane %v3780, 2
        %v3785 = vperm.slane %v3780, 3
        %vm3790 = vcmask 261120
        %v3792 = vsel %vm3790, %v3669, 0
        %v3795 = vsel %vm3790, %v3672, 0
        %v3798 = vsel %vm3790, %v3675, 0
        %v3801 = vsel %vm3790, %v3678, 0
        %v3804 = vsel %vm3790, %v3681, 0
        %v3807 = vsel %vm3790, %v3684, 0
        %v3810 = vsel %vm3790, %v3687, 0
        %v3813 = vsel %vm3790, %v3690, 0
        %v3816 = vsel %vm3790, %v3693, 0
        %v3819 = vsel %vm3790, %v3696, 0
        %v3822 = vsel %vm3790, %v3699, 0
        %v3825 = vsel %vm3790, %v3702, 0
        %v3828 = vsel %vm3790, %v3705, 0
        %v3831 = vsel %vm3790, %v3708, 0
        %v3834 = vsel %vm3790, %v3711, 0
        %v3837 = vsel %vm3790, %v3714, 0
        %v3840 = vsel %vm3790, %v3717, 0
        %v3843 = vsel %vm3790, %v3720, 0
        %v3846 = vsel %vm3790, %v3723, 0
        %v3849 = vsel %vm3790, %v3726, 0
        %v3852 = vsel %vm3790, %v3729, 0
        %v3855 = vsel %vm3790, %v3732, 0
        %v3858 = vsel %vm3790, %v3735, 0
        %v3861 = vsel %vm3790, %v3738, 0
        %v3864 = vsel %vm3790, %v3741, 0
        %v3867 = vsel %vm3790, %v3744, 0
        %v3870 = vsel %vm3790, %v3747, 0
        %v3873 = vsel %vm3790, %v3750, 0
        %v3876 = vsel %vm3790, %v3753, 0
        %v3879 = vsel %vm3790, %v3756, 0
        %v3882 = vsel %vm3790, %v3759, 0
        %v3885 = vsel %vm3790, %v3762, 0
        %3887 = vmatpush.msra.mxu0 0.0
        %3888 = vmatpush.msra.mxu0 0.0
        %3889 = vmatpush.msra.mxu0 0.0
        %3890 = vmatpush.msra.mxu0 0.0
        %3891 = vmatpush.msra.mxu0 0.0
        %3892 = vmatpush.msra.mxu0 0.0
        %3893 = vmatpush.msra.mxu0 0.0
        %3894 = vmatpush.msra.mxu0 0.0
        %3895 = vmatpush.msra.mxu0 0.0
        %3896 = vmatpush.msra.mxu0 0.0
        %3897 = vmatpush.msra.mxu0 0.0
        %3898 = vmatpush.msra.mxu0 0.0
        %3899 = vmatpush.msra.mxu0 %v3776
        %3900 = vmatpush.msra.mxu0 %v3772
        %3901 = vmatpush.msra.mxu0 %v3768
        %3902 = vmatpush.msra.mxu0 %v3764
        %3903 = vmatmul.f32.gmra.mxu0 %v3792
        %v3904 = vpop.f32.mrf.mxu0
        %v3905 = vadd.f32 %v3782, %v3904
        %3906 = vmatmul.f32.gmra.mxu0 %v3795
        %v3907 = vpop.f32.mrf.mxu0
        %v3908 = vadd.f32 %v3782, %v3907
        %3909 = vmatmul.f32.gmra.mxu0 %v3798
        %v3910 = vpop.f32.mrf.mxu0
        %v3911 = vadd.f32 %v3782, %v3910
        %3912 = vmatmul.f32.gmra.mxu0 %v3801
        %v3913 = vpop.f32.mrf.mxu0
        %v3914 = vadd.f32 %v3782, %v3913
        %3915 = vmatmul.f32.gmra.mxu0 %v3804
        %v3916 = vpop.f32.mrf.mxu0
        %v3917 = vadd.f32 %v3782, %v3916
        %3918 = vmatmul.f32.gmra.mxu0 %v3807
        %v3919 = vpop.f32.mrf.mxu0
        %v3920 = vadd.f32 %v3782, %v3919
        %3921 = vmatmul.f32.gmra.mxu0 %v3810
        %v3922 = vpop.f32.mrf.mxu0
        %v3923 = vadd.f32 %v3782, %v3922
        %3924 = vmatmul.f32.gmra.mxu0 %v3813
        %v3925 = vpop.f32.mrf.mxu0
        %v3926 = vadd.f32 %v3782, %v3925
        %3927 = vmatmul.f32.gmra.mxu0 %v3816
        %v3928 = vpop.f32.mrf.mxu0
        %v3929 = vadd.f32 %v3782, %v3928
        %3930 = vmatmul.f32.gmra.mxu0 %v3819
        %v3931 = vpop.f32.mrf.mxu0
        %v3932 = vadd.f32 %v3782, %v3931
        %3933 = vmatmul.f32.gmra.mxu0 %v3822
        %v3934 = vpop.f32.mrf.mxu0
        %v3935 = vadd.f32 %v3782, %v3934
        %3936 = vmatmul.f32.gmra.mxu0 %v3825
        %v3937 = vpop.f32.mrf.mxu0
        %v3938 = vadd.f32 %v3782, %v3937
        %3939 = vmatmul.f32.gmra.mxu0 %v3828
        %v3940 = vpop.f32.mrf.mxu0
        %v3941 = vadd.f32 %v3782, %v3940
        %3942 = vmatmul.f32.gmra.mxu0 %v3831
        %v3943 = vpop.f32.mrf.mxu0
        %v3944 = vadd.f32 %v3782, %v3943
        %3945 = vmatmul.f32.gmra.mxu0 %v3834
        %v3946 = vpop.f32.mrf.mxu0
        %v3947 = vadd.f32 %v3782, %v3946
        %3948 = vmatmul.f32.gmra.mxu0 %v3837
        %v3949 = vpop.f32.mrf.mxu0
        %v3950 = vadd.f32 %v3782, %v3949
        %3951 = vmatmul.f32.gmra.mxu0 %v3840
        %v3952 = vpop.f32.mrf.mxu0
        %v3953 = vadd.f32 %v3782, %v3952
        %3954 = vmatmul.f32.gmra.mxu0 %v3843
        %v3955 = vpop.f32.mrf.mxu0
        %v3956 = vadd.f32 %v3782, %v3955
        %3957 = vmatmul.f32.gmra.mxu0 %v3846
        %v3958 = vpop.f32.mrf.mxu0
        %v3959 = vadd.f32 %v3782, %v3958
        %3960 = vmatmul.f32.gmra.mxu0 %v3849
        %v3961 = vpop.f32.mrf.mxu0
        %v3962 = vadd.f32 %v3782, %v3961
        %3963 = vmatmul.f32.gmra.mxu0 %v3852
        %v3964 = vpop.f32.mrf.mxu0
        %v3965 = vadd.f32 %v3782, %v3964
        %3966 = vmatmul.f32.gmra.mxu0 %v3855
        %v3967 = vpop.f32.mrf.mxu0
        %v3968 = vadd.f32 %v3782, %v3967
        %3969 = vmatmul.f32.gmra.mxu0 %v3858
        %v3970 = vpop.f32.mrf.mxu0
        %v3971 = vadd.f32 %v3782, %v3970
        %3972 = vmatmul.f32.gmra.mxu0 %v3861
        %v3973 = vpop.f32.mrf.mxu0
        %v3974 = vadd.f32 %v3782, %v3973
        %3975 = vmatmul.f32.gmra.mxu0 %v3864
        %v3976 = vpop.f32.mrf.mxu0
        %v3977 = vadd.f32 %v3782, %v3976
        %3978 = vmatmul.f32.gmra.mxu0 %v3867
        %v3979 = vpop.f32.mrf.mxu0
        %v3980 = vadd.f32 %v3782, %v3979
        %3981 = vmatmul.f32.gmra.mxu0 %v3870
        %v3982 = vpop.f32.mrf.mxu0
        %v3983 = vadd.f32 %v3782, %v3982
        %3984 = vmatmul.f32.gmra.mxu0 %v3873
        %v3985 = vpop.f32.mrf.mxu0
        %v3986 = vadd.f32 %v3782, %v3985
        %3987 = vmatmul.f32.gmra.mxu0 %v3876
        %v3988 = vpop.f32.mrf.mxu0
        %v3989 = vadd.f32 %v3782, %v3988
        %3990 = vmatmul.f32.gmra.mxu0 %v3879
        %v3991 = vpop.f32.mrf.mxu0
        %v3992 = vadd.f32 %v3782, %v3991
        %3993 = vmatmul.f32.gmra.mxu0 %v3882
        %v3994 = vpop.f32.mrf.mxu0
        %v3995 = vadd.f32 %v3782, %v3994
        %3996 = vmatmul.f32.gmra.mxu0 %v3885
        %v3997 = vpop.f32.mrf.mxu0
        %v3998 = vadd.f32 %v3782, %v3997
        %3999 = vdwg.mxu0
        %4000 = vmatpush.msra.mxu0 0.0
        %4001 = vmatpush.msra.mxu0 0.0
        %4002 = vmatpush.msra.mxu0 0.0
        %4003 = vmatpush.msra.mxu0 0.0
        %4004 = vmatpush.msra.mxu0 0.0
        %4005 = vmatpush.msra.mxu0 0.0
        %4006 = vmatpush.msra.mxu0 0.0
        %4007 = vmatpush.msra.mxu0 0.0
        %4008 = vmatpush.msra.mxu0 0.0
        %4009 = vmatpush.msra.mxu0 0.0
        %4010 = vmatpush.msra.mxu0 0.0
        %4011 = vmatpush.msra.mxu0 0.0
        %4012 = vmatpush.msra.mxu0 %v3777
        %4013 = vmatpush.msra.mxu0 %v3773
        %4014 = vmatpush.msra.mxu0 %v3769
        %4015 = vmatpush.msra.mxu0 %v3765
        %4016 = vmatmul.f32.gmra.mxu0 %v3792
        %v4017 = vpop.f32.mrf.mxu0
        %v4018 = vadd.f32 %v3783, %v4017
        %4019 = vmatmul.f32.gmra.mxu0 %v3795
        %v4020 = vpop.f32.mrf.mxu0
        %v4021 = vadd.f32 %v3783, %v4020
        %4022 = vmatmul.f32.gmra.mxu0 %v3798
        %v4023 = vpop.f32.mrf.mxu0
        %v4024 = vadd.f32 %v3783, %v4023
        %4025 = vmatmul.f32.gmra.mxu0 %v3801
        %v4026 = vpop.f32.mrf.mxu0
        %v4027 = vadd.f32 %v3783, %v4026
        %4028 = vmatmul.f32.gmra.mxu0 %v3804
        %v4029 = vpop.f32.mrf.mxu0
        %v4030 = vadd.f32 %v3783, %v4029
        %4031 = vmatmul.f32.gmra.mxu0 %v3807
        %v4032 = vpop.f32.mrf.mxu0
        %v4033 = vadd.f32 %v3783, %v4032
        %4034 = vmatmul.f32.gmra.mxu0 %v3810
        %v4035 = vpop.f32.mrf.mxu0
        %v4036 = vadd.f32 %v3783, %v4035
        %4037 = vmatmul.f32.gmra.mxu0 %v3813
        %v4038 = vpop.f32.mrf.mxu0
        %v4039 = vadd.f32 %v3783, %v4038
        %4040 = vmatmul.f32.gmra.mxu0 %v3816
        %v4041 = vpop.f32.mrf.mxu0
        %v4042 = vadd.f32 %v3783, %v4041
        %4043 = vmatmul.f32.gmra.mxu0 %v3819
        %v4044 = vpop.f32.mrf.mxu0
        %v4045 = vadd.f32 %v3783, %v4044
        %4046 = vmatmul.f32.gmra.mxu0 %v3822
        %v4047 = vpop.f32.mrf.mxu0
        %v4048 = vadd.f32 %v3783, %v4047
        %4049 = vmatmul.f32.gmra.mxu0 %v3825
        %v4050 = vpop.f32.mrf.mxu0
        %v4051 = vadd.f32 %v3783, %v4050
        %4052 = vmatmul.f32.gmra.mxu0 %v3828
        %v4053 = vpop.f32.mrf.mxu0
        %v4054 = vadd.f32 %v3783, %v4053
        %4055 = vmatmul.f32.gmra.mxu0 %v3831
        %v4056 = vpop.f32.mrf.mxu0
        %v4057 = vadd.f32 %v3783, %v4056
        %4058 = vmatmul.f32.gmra.mxu0 %v3834
        %v4059 = vpop.f32.mrf.mxu0
        %v4060 = vadd.f32 %v3783, %v4059
        %4061 = vmatmul.f32.gmra.mxu0 %v3837
        %v4062 = vpop.f32.mrf.mxu0
        %v4063 = vadd.f32 %v3783, %v4062
        %4064 = vmatmul.f32.gmra.mxu0 %v3840
        %v4065 = vpop.f32.mrf.mxu0
        %v4066 = vadd.f32 %v3783, %v4065
        %4067 = vmatmul.f32.gmra.mxu0 %v3843
        %v4068 = vpop.f32.mrf.mxu0
        %v4069 = vadd.f32 %v3783, %v4068
        %4070 = vmatmul.f32.gmra.mxu0 %v3846
        %v4071 = vpop.f32.mrf.mxu0
        %v4072 = vadd.f32 %v3783, %v4071
        %4073 = vmatmul.f32.gmra.mxu0 %v3849
        %v4074 = vpop.f32.mrf.mxu0
        %v4075 = vadd.f32 %v3783, %v4074
        %4076 = vmatmul.f32.gmra.mxu0 %v3852
        %v4077 = vpop.f32.mrf.mxu0
        %v4078 = vadd.f32 %v3783, %v4077
        %4079 = vmatmul.f32.gmra.mxu0 %v3855
        %v4080 = vpop.f32.mrf.mxu0
        %v4081 = vadd.f32 %v3783, %v4080
        %4082 = vmatmul.f32.gmra.mxu0 %v3858
        %v4083 = vpop.f32.mrf.mxu0
        %v4084 = vadd.f32 %v3783, %v4083
        %4085 = vmatmul.f32.gmra.mxu0 %v3861
        %v4086 = vpop.f32.mrf.mxu0
        %v4087 = vadd.f32 %v3783, %v4086
        %4088 = vmatmul.f32.gmra.mxu0 %v3864
        %v4089 = vpop.f32.mrf.mxu0
        %v4090 = vadd.f32 %v3783, %v4089
        %4091 = vmatmul.f32.gmra.mxu0 %v3867
        %v4092 = vpop.f32.mrf.mxu0
        %v4093 = vadd.f32 %v3783, %v4092
        %4094 = vmatmul.f32.gmra.mxu0 %v3870
        %v4095 = vpop.f32.mrf.mxu0
        %v4096 = vadd.f32 %v3783, %v4095
        %4097 = vmatmul.f32.gmra.mxu0 %v3873
        %v4098 = vpop.f32.mrf.mxu0
        %v4099 = vadd.f32 %v3783, %v4098
        %4100 = vmatmul.f32.gmra.mxu0 %v3876
        %v4101 = vpop.f32.mrf.mxu0
        %v4102 = vadd.f32 %v3783, %v4101
        %4103 = vmatmul.f32.gmra.mxu0 %v3879
        %v4104 = vpop.f32.mrf.mxu0
        %v4105 = vadd.f32 %v3783, %v4104
        %4106 = vmatmul.f32.gmra.mxu0 %v3882
        %v4107 = vpop.f32.mrf.mxu0
        %v4108 = vadd.f32 %v3783, %v4107
        %4109 = vmatmul.f32.gmra.mxu0 %v3885
        %v4110 = vpop.f32.mrf.mxu0
        %v4111 = vadd.f32 %v3783, %v4110
        %4112 = vdwg.mxu0
        %4113 = vmatpush.msra.mxu0 0.0
        %4114 = vmatpush.msra.mxu0 0.0
        %4115 = vmatpush.msra.mxu0 0.0
        %4116 = vmatpush.msra.mxu0 0.0
        %4117 = vmatpush.msra.mxu0 0.0
        %4118 = vmatpush.msra.mxu0 0.0
        %4119 = vmatpush.msra.mxu0 0.0
        %4120 = vmatpush.msra.mxu0 0.0
        %4121 = vmatpush.msra.mxu0 0.0
        %4122 = vmatpush.msra.mxu0 0.0
        %4123 = vmatpush.msra.mxu0 0.0
        %4124 = vmatpush.msra.mxu0 0.0
        %4125 = vmatpush.msra.mxu0 %v3778
        %4126 = vmatpush.msra.mxu0 %v3774
        %4127 = vmatpush.msra.mxu0 %v3770
        %4128 = vmatpush.msra.mxu0 %v3766
        %4129 = vmatmul.f32.gmra.mxu0 %v3792
        %v4130 = vpop.f32.mrf.mxu0
        %v4131 = vadd.f32 %v3784, %v4130
        %4132 = vmatmul.f32.gmra.mxu0 %v3795
        %v4133 = vpop.f32.mrf.mxu0
        %v4134 = vadd.f32 %v3784, %v4133
        %4135 = vmatmul.f32.gmra.mxu0 %v3798
        %v4136 = vpop.f32.mrf.mxu0
        %v4137 = vadd.f32 %v3784, %v4136
        %4138 = vmatmul.f32.gmra.mxu0 %v3801
        %v4139 = vpop.f32.mrf.mxu0
        %v4140 = vadd.f32 %v3784, %v4139
        %4141 = vmatmul.f32.gmra.mxu0 %v3804
        %v4142 = vpop.f32.mrf.mxu0
        %v4143 = vadd.f32 %v3784, %v4142
        %4144 = vmatmul.f32.gmra.mxu0 %v3807
        %v4145 = vpop.f32.mrf.mxu0
        %v4146 = vadd.f32 %v3784, %v4145
        %4147 = vmatmul.f32.gmra.mxu0 %v3810
        %v4148 = vpop.f32.mrf.mxu0
        %v4149 = vadd.f32 %v3784, %v4148
        %4150 = vmatmul.f32.gmra.mxu0 %v3813
        %v4151 = vpop.f32.mrf.mxu0
        %v4152 = vadd.f32 %v3784, %v4151
        %4153 = vmatmul.f32.gmra.mxu0 %v3816
        %v4154 = vpop.f32.mrf.mxu0
        %v4155 = vadd.f32 %v3784, %v4154
        %4156 = vmatmul.f32.gmra.mxu0 %v3819
        %v4157 = vpop.f32.mrf.mxu0
        %v4158 = vadd.f32 %v3784, %v4157
        %4159 = vmatmul.f32.gmra.mxu0 %v3822
        %v4160 = vpop.f32.mrf.mxu0
        %v4161 = vadd.f32 %v3784, %v4160
        %4162 = vmatmul.f32.gmra.mxu0 %v3825
        %v4163 = vpop.f32.mrf.mxu0
        %v4164 = vadd.f32 %v3784, %v4163
        %4165 = vmatmul.f32.gmra.mxu0 %v3828
        %v4166 = vpop.f32.mrf.mxu0
        %v4167 = vadd.f32 %v3784, %v4166
        %4168 = vmatmul.f32.gmra.mxu0 %v3831
        %v4169 = vpop.f32.mrf.mxu0
        %v4170 = vadd.f32 %v3784, %v4169
        %4171 = vmatmul.f32.gmra.mxu0 %v3834
        %v4172 = vpop.f32.mrf.mxu0
        %v4173 = vadd.f32 %v3784, %v4172
        %4174 = vmatmul.f32.gmra.mxu0 %v3837
        %v4175 = vpop.f32.mrf.mxu0
        %v4176 = vadd.f32 %v3784, %v4175
        %4177 = vmatmul.f32.gmra.mxu0 %v3840
        %v4178 = vpop.f32.mrf.mxu0
        %v4179 = vadd.f32 %v3784, %v4178
        %4180 = vmatmul.f32.gmra.mxu0 %v3843
        %v4181 = vpop.f32.mrf.mxu0
        %v4182 = vadd.f32 %v3784, %v4181
        %4183 = vmatmul.f32.gmra.mxu0 %v3846
        %v4184 = vpop.f32.mrf.mxu0
        %v4185 = vadd.f32 %v3784, %v4184
        %4186 = vmatmul.f32.gmra.mxu0 %v3849
        %v4187 = vpop.f32.mrf.mxu0
        %v4188 = vadd.f32 %v3784, %v4187
        %4189 = vmatmul.f32.gmra.mxu0 %v3852
        %v4190 = vpop.f32.mrf.mxu0
        %v4191 = vadd.f32 %v3784, %v4190
        %4192 = vmatmul.f32.gmra.mxu0 %v3855
        %v4193 = vpop.f32.mrf.mxu0
        %v4194 = vadd.f32 %v3784, %v4193
        %4195 = vmatmul.f32.gmra.mxu0 %v3858
        %v4196 = vpop.f32.mrf.mxu0
        %v4197 = vadd.f32 %v3784, %v4196
        %4198 = vmatmul.f32.gmra.mxu0 %v3861
        %v4199 = vpop.f32.mrf.mxu0
        %v4200 = vadd.f32 %v3784, %v4199
        %4201 = vmatmul.f32.gmra.mxu0 %v3864
        %v4202 = vpop.f32.mrf.mxu0
        %v4203 = vadd.f32 %v3784, %v4202
        %4204 = vmatmul.f32.gmra.mxu0 %v3867
        %v4205 = vpop.f32.mrf.mxu0
        %v4206 = vadd.f32 %v3784, %v4205
        %4207 = vmatmul.f32.gmra.mxu0 %v3870
        %v4208 = vpop.f32.mrf.mxu0
        %v4209 = vadd.f32 %v3784, %v4208
        %4210 = vmatmul.f32.gmra.mxu0 %v3873
        %v4211 = vpop.f32.mrf.mxu0
        %v4212 = vadd.f32 %v3784, %v4211
        %4213 = vmatmul.f32.gmra.mxu0 %v3876
        %v4214 = vpop.f32.mrf.mxu0
        %v4215 = vadd.f32 %v3784, %v4214
        %4216 = vmatmul.f32.gmra.mxu0 %v3879
        %v4217 = vpop.f32.mrf.mxu0
        %v4218 = vadd.f32 %v3784, %v4217
        %4219 = vmatmul.f32.gmra.mxu0 %v3882
        %v4220 = vpop.f32.mrf.mxu0
        %v4221 = vadd.f32 %v3784, %v4220
        %4222 = vmatmul.f32.gmra.mxu0 %v3885
        %v4223 = vpop.f32.mrf.mxu0
        %v4224 = vadd.f32 %v3784, %v4223
        %4225 = vdwg.mxu0
        %4226 = vmatpush.msra.mxu0 0.0
        %4227 = vmatpush.msra.mxu0 0.0
        %4228 = vmatpush.msra.mxu0 0.0
        %4229 = vmatpush.msra.mxu0 0.0
        %4230 = vmatpush.msra.mxu0 0.0
        %4231 = vmatpush.msra.mxu0 0.0
        %4232 = vmatpush.msra.mxu0 0.0
        %4233 = vmatpush.msra.mxu0 0.0
        %4234 = vmatpush.msra.mxu0 0.0
        %4235 = vmatpush.msra.mxu0 0.0
        %4236 = vmatpush.msra.mxu0 0.0
        %4237 = vmatpush.msra.mxu0 0.0
        %4238 = vmatpush.msra.mxu0 %v3779
        %4239 = vmatpush.msra.mxu0 %v3775
        %4240 = vmatpush.msra.mxu0 %v3771
        %4241 = vmatpush.msra.mxu0 %v3767
        %4242 = vmatmul.f32.gmra.mxu0 %v3792
        %v4243 = vpop.f32.mrf.mxu0
        %v4244 = vadd.f32 %v3785, %v4243
        %4245 = vmatmul.f32.gmra.mxu0 %v3795
        %v4246 = vpop.f32.mrf.mxu0
        %v4247 = vadd.f32 %v3785, %v4246
        %4248 = vmatmul.f32.gmra.mxu0 %v3798
        %v4249 = vpop.f32.mrf.mxu0
        %v4250 = vadd.f32 %v3785, %v4249
        %4251 = vmatmul.f32.gmra.mxu0 %v3801
        %v4252 = vpop.f32.mrf.mxu0
        %v4253 = vadd.f32 %v3785, %v4252
        %4254 = vmatmul.f32.gmra.mxu0 %v3804
        %v4255 = vpop.f32.mrf.mxu0
        %v4256 = vadd.f32 %v3785, %v4255
        %4257 = vmatmul.f32.gmra.mxu0 %v3807
        %v4258 = vpop.f32.mrf.mxu0
        %v4259 = vadd.f32 %v3785, %v4258
        %4260 = vmatmul.f32.gmra.mxu0 %v3810
        %v4261 = vpop.f32.mrf.mxu0
        %v4262 = vadd.f32 %v3785, %v4261
        %4263 = vmatmul.f32.gmra.mxu0 %v3813
        %v4264 = vpop.f32.mrf.mxu0
        %v4265 = vadd.f32 %v3785, %v4264
        %4266 = vmatmul.f32.gmra.mxu0 %v3816
        %v4267 = vpop.f32.mrf.mxu0
        %v4268 = vadd.f32 %v3785, %v4267
        %4269 = vmatmul.f32.gmra.mxu0 %v3819
        %v4270 = vpop.f32.mrf.mxu0
        %v4271 = vadd.f32 %v3785, %v4270
        %4272 = vmatmul.f32.gmra.mxu0 %v3822
        %v4273 = vpop.f32.mrf.mxu0
        %v4274 = vadd.f32 %v3785, %v4273
        %4275 = vmatmul.f32.gmra.mxu0 %v3825
        %v4276 = vpop.f32.mrf.mxu0
        %v4277 = vadd.f32 %v3785, %v4276
        %4278 = vmatmul.f32.gmra.mxu0 %v3828
        %v4279 = vpop.f32.mrf.mxu0
        %v4280 = vadd.f32 %v3785, %v4279
        %4281 = vmatmul.f32.gmra.mxu0 %v3831
        %v4282 = vpop.f32.mrf.mxu0
        %v4283 = vadd.f32 %v3785, %v4282
        %4284 = vmatmul.f32.gmra.mxu0 %v3834
        %v4285 = vpop.f32.mrf.mxu0
        %v4286 = vadd.f32 %v3785, %v4285
        %4287 = vmatmul.f32.gmra.mxu0 %v3837
        %v4288 = vpop.f32.mrf.mxu0
        %v4289 = vadd.f32 %v3785, %v4288
        %4290 = vmatmul.f32.gmra.mxu0 %v3840
        %v4291 = vpop.f32.mrf.mxu0
        %v4292 = vadd.f32 %v3785, %v4291
        %4293 = vmatmul.f32.gmra.mxu0 %v3843
        %v4294 = vpop.f32.mrf.mxu0
        %v4295 = vadd.f32 %v3785, %v4294
        %4296 = vmatmul.f32.gmra.mxu0 %v3846
        %v4297 = vpop.f32.mrf.mxu0
        %v4298 = vadd.f32 %v3785, %v4297
        %4299 = vmatmul.f32.gmra.mxu0 %v3849
        %v4300 = vpop.f32.mrf.mxu0
        %v4301 = vadd.f32 %v3785, %v4300
        %4302 = vmatmul.f32.gmra.mxu0 %v3852
        %v4303 = vpop.f32.mrf.mxu0
        %v4304 = vadd.f32 %v3785, %v4303
        %4305 = vmatmul.f32.gmra.mxu0 %v3855
        %v4306 = vpop.f32.mrf.mxu0
        %v4307 = vadd.f32 %v3785, %v4306
        %4308 = vmatmul.f32.gmra.mxu0 %v3858
        %v4309 = vpop.f32.mrf.mxu0
        %v4310 = vadd.f32 %v3785, %v4309
        %4311 = vmatmul.f32.gmra.mxu0 %v3861
        %v4312 = vpop.f32.mrf.mxu0
        %v4313 = vadd.f32 %v3785, %v4312
        %4314 = vmatmul.f32.gmra.mxu0 %v3864
        %v4315 = vpop.f32.mrf.mxu0
        %v4316 = vadd.f32 %v3785, %v4315
        %4317 = vmatmul.f32.gmra.mxu0 %v3867
        %v4318 = vpop.f32.mrf.mxu0
        %v4319 = vadd.f32 %v3785, %v4318
        %4320 = vmatmul.f32.gmra.mxu0 %v3870
        %v4321 = vpop.f32.mrf.mxu0
        %v4322 = vadd.f32 %v3785, %v4321
        %4323 = vmatmul.f32.gmra.mxu0 %v3873
        %v4324 = vpop.f32.mrf.mxu0
        %v4325 = vadd.f32 %v3785, %v4324
        %4326 = vmatmul.f32.gmra.mxu0 %v3876
        %v4327 = vpop.f32.mrf.mxu0
        %v4328 = vadd.f32 %v3785, %v4327
        %4329 = vmatmul.f32.gmra.mxu0 %v3879
        %v4330 = vpop.f32.mrf.mxu0
        %v4331 = vadd.f32 %v3785, %v4330
        %4332 = vmatmul.f32.gmra.mxu0 %v3882
        %v4333 = vpop.f32.mrf.mxu0
        %v4334 = vadd.f32 %v3785, %v4333
        %4335 = vmatmul.f32.gmra.mxu0 %v3885
        %v4336 = vpop.f32.mrf.mxu0
        %v4337 = vadd.f32 %v3785, %v4336
        %4338 = vdwg.mxu0
        %v4339 = vsub.f32 0.0, %v3905
        %v4340 = vsub.f32 0.0, %v4018
        %v4341 = vsub.f32 0.0, %v3908
        %v4342 = vsub.f32 0.0, %v4021
        %v4343 = vsub.f32 0.0, %v3911
        %v4344 = vsub.f32 0.0, %v4024
        %v4345 = vsub.f32 0.0, %v3914
        %v4346 = vsub.f32 0.0, %v4027
        %v4347 = vsub.f32 0.0, %v3917
        %v4348 = vsub.f32 0.0, %v4030
        %v4349 = vsub.f32 0.0, %v3920
        %v4350 = vsub.f32 0.0, %v4033
        %v4351 = vsub.f32 0.0, %v3923
        %v4352 = vsub.f32 0.0, %v4036
        %v4353 = vsub.f32 0.0, %v3926
        %v4354 = vsub.f32 0.0, %v4039
        %v4355 = vsub.f32 0.0, %v3929
        %v4356 = vsub.f32 0.0, %v4042
        %v4357 = vsub.f32 0.0, %v3932
        %v4358 = vsub.f32 0.0, %v4045
        %v4359 = vsub.f32 0.0, %v3935
        %v4360 = vsub.f32 0.0, %v4048
        %v4361 = vsub.f32 0.0, %v3938
        %v4362 = vsub.f32 0.0, %v4051
        %v4363 = vsub.f32 0.0, %v3941
        %v4364 = vsub.f32 0.0, %v4054
        %v4365 = vsub.f32 0.0, %v3944
        %v4366 = vsub.f32 0.0, %v4057
        %v4367 = vsub.f32 0.0, %v3947
        %v4368 = vsub.f32 0.0, %v4060
        %v4369 = vsub.f32 0.0, %v3950
        %v4370 = vsub.f32 0.0, %v4063
        %v4371 = vsub.f32 0.0, %v3953
        %v4372 = vsub.f32 0.0, %v4066
        %v4373 = vsub.f32 0.0, %v3956
        %v4374 = vsub.f32 0.0, %v4069
        %v4375 = vsub.f32 0.0, %v3959
        %v4376 = vsub.f32 0.0, %v4072
        %v4377 = vsub.f32 0.0, %v3962
        %v4378 = vsub.f32 0.0, %v4075
        %v4379 = vsub.f32 0.0, %v3965
        %v4380 = vsub.f32 0.0, %v4078
        %v4381 = vsub.f32 0.0, %v3968
        %v4382 = vsub.f32 0.0, %v4081
        %v4383 = vsub.f32 0.0, %v3971
        %v4384 = vsub.f32 0.0, %v4084
        %v4385 = vsub.f32 0.0, %v3974
        %v4386 = vsub.f32 0.0, %v4087
        %v4387 = vsub.f32 0.0, %v3977
        %v4388 = vsub.f32 0.0, %v4090
        %v4389 = vsub.f32 0.0, %v3980
        %v4390 = vsub.f32 0.0, %v4093
        %v4391 = vsub.f32 0.0, %v3983
        %v4392 = vsub.f32 0.0, %v4096
        %v4393 = vsub.f32 0.0, %v3986
        %v4394 = vsub.f32 0.0, %v4099
        %v4395 = vsub.f32 0.0, %v3989
        %v4396 = vsub.f32 0.0, %v4102
        %v4397 = vsub.f32 0.0, %v3992
        %v4398 = vsub.f32 0.0, %v4105
        %v4399 = vsub.f32 0.0, %v3995
        %v4400 = vsub.f32 0.0, %v4108
        %v4401 = vsub.f32 0.0, %v3998
        %v4402 = vsub.f32 0.0, %v4111
        %v4403 = vmul.f32 %v4339, 1.442695
        %v4404 = vpow.pop %v4403
        %v4405 = vmul.f32 %v4340, 1.442695
        %v4406 = vpow.pop %v4405
        %v4407 = vmul.f32 %v4341, 1.442695
        %v4408 = vpow.pop %v4407
        %v4409 = vmul.f32 %v4342, 1.442695
        %v4410 = vpow.pop %v4409
        %v4411 = vmul.f32 %v4343, 1.442695
        %v4412 = vpow.pop %v4411
        %v4413 = vmul.f32 %v4344, 1.442695
        %v4414 = vpow.pop %v4413
        %v4415 = vmul.f32 %v4345, 1.442695
        %v4416 = vpow.pop %v4415
        %v4417 = vmul.f32 %v4346, 1.442695
        %v4418 = vpow.pop %v4417
        %v4419 = vmul.f32 %v4347, 1.442695
        %v4420 = vpow.pop %v4419
        %v4421 = vmul.f32 %v4348, 1.442695
        %v4422 = vpow.pop %v4421
        %v4423 = vmul.f32 %v4349, 1.442695
        %v4424 = vpow.pop %v4423
        %v4425 = vmul.f32 %v4350, 1.442695
        %v4426 = vpow.pop %v4425
        %v4427 = vmul.f32 %v4351, 1.442695
        %v4428 = vpow.pop %v4427
        %v4429 = vmul.f32 %v4352, 1.442695
        %v4430 = vpow.pop %v4429
        %v4431 = vmul.f32 %v4353, 1.442695
        %v4432 = vpow.pop %v4431
        %v4433 = vmul.f32 %v4354, 1.442695
        %v4434 = vpow.pop %v4433
        %v4435 = vmul.f32 %v4355, 1.442695
        %v4436 = vpow.pop %v4435
        %v4437 = vmul.f32 %v4356, 1.442695
        %v4438 = vpow.pop %v4437
        %v4439 = vmul.f32 %v4357, 1.442695
        %v4440 = vpow.pop %v4439
        %v4441 = vmul.f32 %v4358, 1.442695
        %v4442 = vpow.pop %v4441
        %v4443 = vmul.f32 %v4359, 1.442695
        %v4444 = vpow.pop %v4443
        %v4445 = vmul.f32 %v4360, 1.442695
        %v4446 = vpow.pop %v4445
        %v4447 = vmul.f32 %v4361, 1.442695
        %v4448 = vpow.pop %v4447
        %v4449 = vmul.f32 %v4362, 1.442695
        %v4450 = vpow.pop %v4449
        %v4451 = vmul.f32 %v4363, 1.442695
        %v4452 = vpow.pop %v4451
        %v4453 = vmul.f32 %v4364, 1.442695
        %v4454 = vpow.pop %v4453
        %v4455 = vmul.f32 %v4365, 1.442695
        %v4456 = vpow.pop %v4455
        %v4457 = vmul.f32 %v4366, 1.442695
        %v4458 = vpow.pop %v4457
        %v4459 = vmul.f32 %v4367, 1.442695
        %v4460 = vpow.pop %v4459
        %v4461 = vmul.f32 %v4368, 1.442695
        %v4462 = vpow.pop %v4461
        %v4463 = vmul.f32 %v4369, 1.442695
        %v4464 = vpow.pop %v4463
        %v4465 = vmul.f32 %v4370, 1.442695
        %v4466 = vpow.pop %v4465
        %v4467 = vmul.f32 %v4371, 1.442695
        %v4468 = vpow.pop %v4467
        %v4469 = vmul.f32 %v4372, 1.442695
        %v4470 = vpow.pop %v4469
        %v4471 = vmul.f32 %v4373, 1.442695
        %v4472 = vpow.pop %v4471
        %v4473 = vmul.f32 %v4374, 1.442695
        %v4474 = vpow.pop %v4473
        %v4475 = vmul.f32 %v4375, 1.442695
        %v4476 = vpow.pop %v4475
        %v4477 = vmul.f32 %v4376, 1.442695
        %v4478 = vpow.pop %v4477
        %v4479 = vmul.f32 %v4377, 1.442695
        %v4480 = vpow.pop %v4479
        %v4481 = vmul.f32 %v4378, 1.442695
        %v4482 = vpow.pop %v4481
        %v4483 = vmul.f32 %v4379, 1.442695
        %v4484 = vpow.pop %v4483
        %v4485 = vmul.f32 %v4380, 1.442695
        %v4486 = vpow.pop %v4485
        %v4487 = vmul.f32 %v4381, 1.442695
        %v4488 = vpow.pop %v4487
        %v4489 = vmul.f32 %v4382, 1.442695
        %v4490 = vpow.pop %v4489
        %v4491 = vmul.f32 %v4383, 1.442695
        %v4492 = vpow.pop %v4491
        %v4493 = vmul.f32 %v4384, 1.442695
        %v4494 = vpow.pop %v4493
        %v4495 = vmul.f32 %v4385, 1.442695
        %v4496 = vpow.pop %v4495
        %v4497 = vmul.f32 %v4386, 1.442695
        %v4498 = vpow.pop %v4497
        %v4499 = vmul.f32 %v4387, 1.442695
        %v4500 = vpow.pop %v4499
        %v4501 = vmul.f32 %v4388, 1.442695
        %v4502 = vpow.pop %v4501
        %v4503 = vmul.f32 %v4389, 1.442695
        %v4504 = vpow.pop %v4503
        %v4505 = vmul.f32 %v4390, 1.442695
        %v4506 = vpow.pop %v4505
        %v4507 = vmul.f32 %v4391, 1.442695
        %v4508 = vpow.pop %v4507
        %v4509 = vmul.f32 %v4392, 1.442695
        %v4510 = vpow.pop %v4509
        %v4511 = vmul.f32 %v4393, 1.442695
        %v4512 = vpow.pop %v4511
        %v4513 = vmul.f32 %v4394, 1.442695
        %v4514 = vpow.pop %v4513
        %v4515 = vmul.f32 %v4395, 1.442695
        %v4516 = vpow.pop %v4515
        %v4517 = vmul.f32 %v4396, 1.442695
        %v4518 = vpow.pop %v4517
        %v4519 = vmul.f32 %v4397, 1.442695
        %v4520 = vpow.pop %v4519
        %v4521 = vmul.f32 %v4398, 1.442695
        %v4522 = vpow.pop %v4521
        %v4523 = vmul.f32 %v4399, 1.442695
        %v4524 = vpow.pop %v4523
        %v4525 = vmul.f32 %v4400, 1.442695
        %v4526 = vpow.pop %v4525
        %v4527 = vmul.f32 %v4401, 1.442695
        %v4528 = vpow.pop %v4527
        %v4529 = vmul.f32 %v4402, 1.442695
        %v4530 = vpow.pop %v4529
        %v4531 = vadd.f32 %v4404, 1.0
        %v4532 = vadd.f32 %v4406, 1.0
        %v4533 = vadd.f32 %v4408, 1.0
        %v4534 = vadd.f32 %v4410, 1.0
        %v4535 = vadd.f32 %v4412, 1.0
        %v4536 = vadd.f32 %v4414, 1.0
        %v4537 = vadd.f32 %v4416, 1.0
        %v4538 = vadd.f32 %v4418, 1.0
        %v4539 = vadd.f32 %v4420, 1.0
        %v4540 = vadd.f32 %v4422, 1.0
        %v4541 = vadd.f32 %v4424, 1.0
        %v4542 = vadd.f32 %v4426, 1.0
        %v4543 = vadd.f32 %v4428, 1.0
        %v4544 = vadd.f32 %v4430, 1.0
        %v4545 = vadd.f32 %v4432, 1.0
        %v4546 = vadd.f32 %v4434, 1.0
        %v4547 = vadd.f32 %v4436, 1.0
        %v4548 = vadd.f32 %v4438, 1.0
        %v4549 = vadd.f32 %v4440, 1.0
        %v4550 = vadd.f32 %v4442, 1.0
        %v4551 = vadd.f32 %v4444, 1.0
        %v4552 = vadd.f32 %v4446, 1.0
        %v4553 = vadd.f32 %v4448, 1.0
        %v4554 = vadd.f32 %v4450, 1.0
        %v4555 = vadd.f32 %v4452, 1.0
        %v4556 = vadd.f32 %v4454, 1.0
        %v4557 = vadd.f32 %v4456, 1.0
        %v4558 = vadd.f32 %v4458, 1.0
        %v4559 = vadd.f32 %v4460, 1.0
        %v4560 = vadd.f32 %v4462, 1.0
        %v4561 = vadd.f32 %v4464, 1.0
        %v4562 = vadd.f32 %v4466, 1.0
        %v4563 = vadd.f32 %v4468, 1.0
        %v4564 = vadd.f32 %v4470, 1.0
        %v4565 = vadd.f32 %v4472, 1.0
        %v4566 = vadd.f32 %v4474, 1.0
        %v4567 = vadd.f32 %v4476, 1.0
        %v4568 = vadd.f32 %v4478, 1.0
        %v4569 = vadd.f32 %v4480, 1.0
        %v4570 = vadd.f32 %v4482, 1.0
        %v4571 = vadd.f32 %v4484, 1.0
        %v4572 = vadd.f32 %v4486, 1.0
        %v4573 = vadd.f32 %v4488, 1.0
        %v4574 = vadd.f32 %v4490, 1.0
        %v4575 = vadd.f32 %v4492, 1.0
        %v4576 = vadd.f32 %v4494, 1.0
        %v4577 = vadd.f32 %v4496, 1.0
        %v4578 = vadd.f32 %v4498, 1.0
        %v4579 = vadd.f32 %v4500, 1.0
        %v4580 = vadd.f32 %v4502, 1.0
        %v4581 = vadd.f32 %v4504, 1.0
        %v4582 = vadd.f32 %v4506, 1.0
        %v4583 = vadd.f32 %v4508, 1.0
        %v4584 = vadd.f32 %v4510, 1.0
        %v4585 = vadd.f32 %v4512, 1.0
        %v4586 = vadd.f32 %v4514, 1.0
        %v4587 = vadd.f32 %v4516, 1.0
        %v4588 = vadd.f32 %v4518, 1.0
        %v4589 = vadd.f32 %v4520, 1.0
        %v4590 = vadd.f32 %v4522, 1.0
        %v4591 = vadd.f32 %v4524, 1.0
        %v4592 = vadd.f32 %v4526, 1.0
        %v4593 = vadd.f32 %v4528, 1.0
        %v4594 = vadd.f32 %v4530, 1.0
        %v4595 = vrcp.pop %v4531
        %v4596 = vrcp.pop %v4532
        %v4597 = vrcp.pop %v4533
        %v4598 = vrcp.pop %v4534
        %v4599 = vrcp.pop %v4535
        %v4600 = vrcp.pop %v4536
        %v4601 = vrcp.pop %v4537
        %v4602 = vrcp.pop %v4538
        %v4603 = vrcp.pop %v4539
        %v4604 = vrcp.pop %v4540
        %v4605 = vrcp.pop %v4541
        %v4606 = vrcp.pop %v4542
        %v4607 = vrcp.pop %v4543
        %v4608 = vrcp.pop %v4544
        %v4609 = vrcp.pop %v4545
        %v4610 = vrcp.pop %v4546
        %v4611 = vrcp.pop %v4547
        %v4612 = vrcp.pop %v4548
        %v4613 = vrcp.pop %v4549
        %v4614 = vrcp.pop %v4550
        %v4615 = vrcp.pop %v4551
        %v4616 = vrcp.pop %v4552
        %v4617 = vrcp.pop %v4553
        %v4618 = vrcp.pop %v4554
        %v4619 = vrcp.pop %v4555
        %v4620 = vrcp.pop %v4556
        %v4621 = vrcp.pop %v4557
        %v4622 = vrcp.pop %v4558
        %v4623 = vrcp.pop %v4559
        %v4624 = vrcp.pop %v4560
        %v4625 = vrcp.pop %v4561
        %v4626 = vrcp.pop %v4562
        %v4627 = vrcp.pop %v4563
        %v4628 = vrcp.pop %v4564
        %v4629 = vrcp.pop %v4565
        %v4630 = vrcp.pop %v4566
        %v4631 = vrcp.pop %v4567
        %v4632 = vrcp.pop %v4568
        %v4633 = vrcp.pop %v4569
        %v4634 = vrcp.pop %v4570
        %v4635 = vrcp.pop %v4571
        %v4636 = vrcp.pop %v4572
        %v4637 = vrcp.pop %v4573
        %v4638 = vrcp.pop %v4574
        %v4639 = vrcp.pop %v4575
        %v4640 = vrcp.pop %v4576
        %v4641 = vrcp.pop %v4577
        %v4642 = vrcp.pop %v4578
        %v4643 = vrcp.pop %v4579
        %v4644 = vrcp.pop %v4580
        %v4645 = vrcp.pop %v4581
        %v4646 = vrcp.pop %v4582
        %v4647 = vrcp.pop %v4583
        %v4648 = vrcp.pop %v4584
        %v4649 = vrcp.pop %v4585
        %v4650 = vrcp.pop %v4586
        %v4651 = vrcp.pop %v4587
        %v4652 = vrcp.pop %v4588
        %v4653 = vrcp.pop %v4589
        %v4654 = vrcp.pop %v4590
        %v4655 = vrcp.pop %v4591
        %v4656 = vrcp.pop %v4592
        %v4657 = vrcp.pop %v4593
        %v4658 = vrcp.pop %v4594
        %v4659 = vmul.f32 %v3442, %v4595
        %v4660 = vmul.f32 %v3443, %v4596
        %v4661 = vmul.f32 %v3444, %v4597
        %v4662 = vmul.f32 %v3445, %v4598
        %v4663 = vmul.f32 %v3446, %v4599
        %v4664 = vmul.f32 %v3447, %v4600
        %v4665 = vmul.f32 %v3448, %v4601
        %v4666 = vmul.f32 %v3449, %v4602
        %v4667 = vmul.f32 %v3450, %v4603
        %v4668 = vmul.f32 %v3451, %v4604
        %v4669 = vmul.f32 %v3452, %v4605
        %v4670 = vmul.f32 %v3453, %v4606
        %v4671 = vmul.f32 %v3454, %v4607
        %v4672 = vmul.f32 %v3455, %v4608
        %v4673 = vmul.f32 %v3456, %v4609
        %v4674 = vmul.f32 %v3457, %v4610
        %v4675 = vmul.f32 %v3458, %v4611
        %v4676 = vmul.f32 %v3459, %v4612
        %v4677 = vmul.f32 %v3460, %v4613
        %v4678 = vmul.f32 %v3461, %v4614
        %v4679 = vmul.f32 %v3462, %v4615
        %v4680 = vmul.f32 %v3463, %v4616
        %v4681 = vmul.f32 %v3464, %v4617
        %v4682 = vmul.f32 %v3465, %v4618
        %v4683 = vmul.f32 %v3466, %v4619
        %v4684 = vmul.f32 %v3467, %v4620
        %v4685 = vmul.f32 %v3468, %v4621
        %v4686 = vmul.f32 %v3469, %v4622
        %v4687 = vmul.f32 %v3470, %v4623
        %v4688 = vmul.f32 %v3471, %v4624
        %v4689 = vmul.f32 %v3472, %v4625
        %v4690 = vmul.f32 %v3473, %v4626
        %v4691 = vmul.f32 %v3474, %v4627
        %v4692 = vmul.f32 %v3475, %v4628
        %v4693 = vmul.f32 %v3476, %v4629
        %v4694 = vmul.f32 %v3477, %v4630
        %v4695 = vmul.f32 %v3478, %v4631
        %v4696 = vmul.f32 %v3479, %v4632
        %v4697 = vmul.f32 %v3480, %v4633
        %v4698 = vmul.f32 %v3481, %v4634
        %v4699 = vmul.f32 %v3482, %v4635
        %v4700 = vmul.f32 %v3483, %v4636
        %v4701 = vmul.f32 %v3484, %v4637
        %v4702 = vmul.f32 %v3485, %v4638
        %v4703 = vmul.f32 %v3486, %v4639
        %v4704 = vmul.f32 %v3487, %v4640
        %v4705 = vmul.f32 %v3488, %v4641
        %v4706 = vmul.f32 %v3489, %v4642
        %v4707 = vmul.f32 %v3490, %v4643
        %v4708 = vmul.f32 %v3491, %v4644
        %v4709 = vmul.f32 %v3492, %v4645
        %v4710 = vmul.f32 %v3493, %v4646
        %v4711 = vmul.f32 %v3494, %v4647
        %v4712 = vmul.f32 %v3495, %v4648
        %v4713 = vmul.f32 %v3496, %v4649
        %v4714 = vmul.f32 %v3497, %v4650
        %v4715 = vmul.f32 %v3498, %v4651
        %v4716 = vmul.f32 %v3499, %v4652
        %v4717 = vmul.f32 %v3500, %v4653
        %v4718 = vmul.f32 %v3501, %v4654
        %v4719 = vmul.f32 %v3502, %v4655
        %v4720 = vmul.f32 %v3503, %v4656
        %v4721 = vmul.f32 %v3504, %v4657
        %v4722 = vmul.f32 %v3505, %v4658
        %v4723 = vadd.f32 %v4659, %v4131
        %v4724 = vadd.f32 %v4660, %v4244
        %v4725 = vadd.f32 %v4661, %v4134
        %v4726 = vadd.f32 %v4662, %v4247
        %v4727 = vadd.f32 %v4663, %v4137
        %v4728 = vadd.f32 %v4664, %v4250
        %v4729 = vadd.f32 %v4665, %v4140
        %v4730 = vadd.f32 %v4666, %v4253
        %v4731 = vadd.f32 %v4667, %v4143
        %v4732 = vadd.f32 %v4668, %v4256
        %v4733 = vadd.f32 %v4669, %v4146
        %v4734 = vadd.f32 %v4670, %v4259
        %v4735 = vadd.f32 %v4671, %v4149
        %v4736 = vadd.f32 %v4672, %v4262
        %v4737 = vadd.f32 %v4673, %v4152
        %v4738 = vadd.f32 %v4674, %v4265
        %v4739 = vadd.f32 %v4675, %v4155
        %v4740 = vadd.f32 %v4676, %v4268
        %v4741 = vadd.f32 %v4677, %v4158
        %v4742 = vadd.f32 %v4678, %v4271
        %v4743 = vadd.f32 %v4679, %v4161
        %v4744 = vadd.f32 %v4680, %v4274
        %v4745 = vadd.f32 %v4681, %v4164
        %v4746 = vadd.f32 %v4682, %v4277
        %v4747 = vadd.f32 %v4683, %v4167
        %v4748 = vadd.f32 %v4684, %v4280
        %v4749 = vadd.f32 %v4685, %v4170
        %v4750 = vadd.f32 %v4686, %v4283
        %v4751 = vadd.f32 %v4687, %v4173
        %v4752 = vadd.f32 %v4688, %v4286
        %v4753 = vadd.f32 %v4689, %v4176
        %v4754 = vadd.f32 %v4690, %v4289
        %v4755 = vadd.f32 %v4691, %v4179
        %v4756 = vadd.f32 %v4692, %v4292
        %v4757 = vadd.f32 %v4693, %v4182
        %v4758 = vadd.f32 %v4694, %v4295
        %v4759 = vadd.f32 %v4695, %v4185
        %v4760 = vadd.f32 %v4696, %v4298
        %v4761 = vadd.f32 %v4697, %v4188
        %v4762 = vadd.f32 %v4698, %v4301
        %v4763 = vadd.f32 %v4699, %v4191
        %v4764 = vadd.f32 %v4700, %v4304
        %v4765 = vadd.f32 %v4701, %v4194
        %v4766 = vadd.f32 %v4702, %v4307
        %v4767 = vadd.f32 %v4703, %v4197
        %v4768 = vadd.f32 %v4704, %v4310
        %v4769 = vadd.f32 %v4705, %v4200
        %v4770 = vadd.f32 %v4706, %v4313
        %v4771 = vadd.f32 %v4707, %v4203
        %v4772 = vadd.f32 %v4708, %v4316
        %v4773 = vadd.f32 %v4709, %v4206
        %v4774 = vadd.f32 %v4710, %v4319
        %v4775 = vadd.f32 %v4711, %v4209
        %v4776 = vadd.f32 %v4712, %v4322
        %v4777 = vadd.f32 %v4713, %v4212
        %v4778 = vadd.f32 %v4714, %v4325
        %v4779 = vadd.f32 %v4715, %v4215
        %v4780 = vadd.f32 %v4716, %v4328
        %v4781 = vadd.f32 %v4717, %v4218
        %v4782 = vadd.f32 %v4718, %v4331
        %v4783 = vadd.f32 %v4719, %v4221
        %v4784 = vadd.f32 %v4720, %v4334
        %v4785 = vadd.f32 %v4721, %v4224
        %v4786 = vadd.f32 %v4722, %v4337
        %v4787 = vld [vmem:[%s8] sm:$0xff]
        %v4788 = vld [vmem:[%s8 + $0x8] sm:$0xff]
        %v4789 = vld [vmem:[%s8 + $0x10] sm:$0xff]
        %v4790 = vld [vmem:[%s8 + $0x18] sm:$0xff]
        %v4791 = vld [vmem:[%s8 + $0x20] sm:$0xff]
        %v4792 = vld [vmem:[%s8 + $0x28] sm:$0xff]
        %v4793 = vld [vmem:[%s8 + $0x30] sm:$0xff]
        %v4794 = vld [vmem:[%s8 + $0x38] sm:$0xff]
        %v4795 = vld [vmem:[%s8 + $0x40] sm:$0xff]
        %v4796 = vld [vmem:[%s8 + $0x48] sm:$0xff]
        %v4797 = vld [vmem:[%s8 + $0x50] sm:$0xff]
        %v4798 = vld [vmem:[%s8 + $0x58] sm:$0xff]
        %v4799 = vld [vmem:[%s8 + $0x60] sm:$0xff]
        %v4800 = vld [vmem:[%s8 + $0x68] sm:$0xff]
        %v4801 = vld [vmem:[%s8 + $0x70] sm:$0xff]
        %v4802 = vld [vmem:[%s8 + $0x78] sm:$0xff]
        %v4803 = vld [vmem:[%s8 + $0x80] sm:$0xff]
        %v4804 = vld [vmem:[%s8 + $0x88] sm:$0xff]
        %v4805 = vld [vmem:[%s8 + $0x90] sm:$0xff]
        %v4806 = vld [vmem:[%s8 + $0x98] sm:$0xff]
        %v4807 = vld [vmem:[%s8 + $0xa0] sm:$0xff]
        %v4808 = vld [vmem:[%s8 + $0xa8] sm:$0xff]
        %v4809 = vld [vmem:[%s8 + $0xb0] sm:$0xff]
        %v4810 = vld [vmem:[%s8 + $0xb8] sm:$0xff]
        %v4811 = vld [vmem:[%s8 + $0xc0] sm:$0xff]
        %v4812 = vld [vmem:[%s8 + $0xc8] sm:$0xff]
        %v4813 = vld [vmem:[%s8 + $0xd0] sm:$0xff]
        %v4814 = vld [vmem:[%s8 + $0xd8] sm:$0xff]
        %v4815 = vld [vmem:[%s8 + $0xe0] sm:$0xff]
        %v4816 = vld [vmem:[%s8 + $0xe8] sm:$0xff]
        %v4817 = vld [vmem:[%s8 + $0xf0] sm:$0xff]
        %v4818 = vld [vmem:[%s8 + $0xf8] sm:$0xff]
        %4819 = vmatpush.msra.mxu0 %v4802
        %4820 = vmatpush.msra.mxu0 %v4801
        %4821 = vmatpush.msra.mxu0 %v4800
        %4822 = vmatpush.msra.mxu0 %v4799
        %4823 = vmatpush.msra.mxu0 %v4798
        %4824 = vmatpush.msra.mxu0 %v4797
        %4825 = vmatpush.msra.mxu0 %v4796
        %4826 = vmatpush.msra.mxu0 %v4795
        %4827 = vmatpush.msra.mxu0 %v4794
        %4828 = vmatpush.msra.mxu0 %v4793
        %4829 = vmatpush.msra.mxu0 %v4792
        %4830 = vmatpush.msra.mxu0 %v4791
        %4831 = vmatpush.msra.mxu0 %v4790
        %4832 = vmatpush.msra.mxu0 %v4789
        %4833 = vmatpush.msra.mxu0 %v4788
        %4834 = vmatpush.msra.mxu0 %v4787
        %4835 = vmatmul.f32.gmra.mxu0 %v4723
        %v4836 = vpop.f32.mrf.mxu0
        %v4837 = vadd.f32 0.0, %v4836
        %4838 = vmatmul.f32.gmra.mxu0 %v4725
        %v4839 = vpop.f32.mrf.mxu0
        %v4840 = vadd.f32 0.0, %v4839
        %4841 = vmatmul.f32.gmra.mxu0 %v4727
        %v4842 = vpop.f32.mrf.mxu0
        %v4843 = vadd.f32 0.0, %v4842
        %4844 = vmatmul.f32.gmra.mxu0 %v4729
        %v4845 = vpop.f32.mrf.mxu0
        %v4846 = vadd.f32 0.0, %v4845
        %4847 = vmatmul.f32.gmra.mxu0 %v4731
        %v4848 = vpop.f32.mrf.mxu0
        %v4849 = vadd.f32 0.0, %v4848
        %4850 = vmatmul.f32.gmra.mxu0 %v4733
        %v4851 = vpop.f32.mrf.mxu0
        %v4852 = vadd.f32 0.0, %v4851
        %4853 = vmatmul.f32.gmra.mxu0 %v4735
        %v4854 = vpop.f32.mrf.mxu0
        %v4855 = vadd.f32 0.0, %v4854
        %4856 = vmatmul.f32.gmra.mxu0 %v4737
        %v4857 = vpop.f32.mrf.mxu0
        %v4858 = vadd.f32 0.0, %v4857
        %4859 = vmatmul.f32.gmra.mxu0 %v4739
        %v4860 = vpop.f32.mrf.mxu0
        %v4861 = vadd.f32 0.0, %v4860
        %4862 = vmatmul.f32.gmra.mxu0 %v4741
        %v4863 = vpop.f32.mrf.mxu0
        %v4864 = vadd.f32 0.0, %v4863
        %4865 = vmatmul.f32.gmra.mxu0 %v4743
        %v4866 = vpop.f32.mrf.mxu0
        %v4867 = vadd.f32 0.0, %v4866
        %4868 = vmatmul.f32.gmra.mxu0 %v4745
        %v4869 = vpop.f32.mrf.mxu0
        %v4870 = vadd.f32 0.0, %v4869
        %4871 = vmatmul.f32.gmra.mxu0 %v4747
        %v4872 = vpop.f32.mrf.mxu0
        %v4873 = vadd.f32 0.0, %v4872
        %4874 = vmatmul.f32.gmra.mxu0 %v4749
        %v4875 = vpop.f32.mrf.mxu0
        %v4876 = vadd.f32 0.0, %v4875
        %4877 = vmatmul.f32.gmra.mxu0 %v4751
        %v4878 = vpop.f32.mrf.mxu0
        %v4879 = vadd.f32 0.0, %v4878
        %4880 = vmatmul.f32.gmra.mxu0 %v4753
        %v4881 = vpop.f32.mrf.mxu0
        %v4882 = vadd.f32 0.0, %v4881
        %4883 = vmatmul.f32.gmra.mxu0 %v4755
        %v4884 = vpop.f32.mrf.mxu0
        %v4885 = vadd.f32 0.0, %v4884
        %4886 = vmatmul.f32.gmra.mxu0 %v4757
        %v4887 = vpop.f32.mrf.mxu0
        %v4888 = vadd.f32 0.0, %v4887
        %4889 = vmatmul.f32.gmra.mxu0 %v4759
        %v4890 = vpop.f32.mrf.mxu0
        %v4891 = vadd.f32 0.0, %v4890
        %4892 = vmatmul.f32.gmra.mxu0 %v4761
        %v4893 = vpop.f32.mrf.mxu0
        %v4894 = vadd.f32 0.0, %v4893
        %4895 = vmatmul.f32.gmra.mxu0 %v4763
        %v4896 = vpop.f32.mrf.mxu0
        %v4897 = vadd.f32 0.0, %v4896
        %4898 = vmatmul.f32.gmra.mxu0 %v4765
        %v4899 = vpop.f32.mrf.mxu0
        %v4900 = vadd.f32 0.0, %v4899
        %4901 = vmatmul.f32.gmra.mxu0 %v4767
        %v4902 = vpop.f32.mrf.mxu0
        %v4903 = vadd.f32 0.0, %v4902
        %4904 = vmatmul.f32.gmra.mxu0 %v4769
        %v4905 = vpop.f32.mrf.mxu0
        %v4906 = vadd.f32 0.0, %v4905
        %4907 = vmatmul.f32.gmra.mxu0 %v4771
        %v4908 = vpop.f32.mrf.mxu0
        %v4909 = vadd.f32 0.0, %v4908
        %4910 = vmatmul.f32.gmra.mxu0 %v4773
        %v4911 = vpop.f32.mrf.mxu0
        %v4912 = vadd.f32 0.0, %v4911
        %4913 = vmatmul.f32.gmra.mxu0 %v4775
        %v4914 = vpop.f32.mrf.mxu0
        %v4915 = vadd.f32 0.0, %v4914
        %4916 = vmatmul.f32.gmra.mxu0 %v4777
        %v4917 = vpop.f32.mrf.mxu0
        %v4918 = vadd.f32 0.0, %v4917
        %4919 = vmatmul.f32.gmra.mxu0 %v4779
        %v4920 = vpop.f32.mrf.mxu0
        %v4921 = vadd.f32 0.0, %v4920
        %4922 = vmatmul.f32.gmra.mxu0 %v4781
        %v4923 = vpop.f32.mrf.mxu0
        %v4924 = vadd.f32 0.0, %v4923
        %4925 = vmatmul.f32.gmra.mxu0 %v4783
        %v4926 = vpop.f32.mrf.mxu0
        %v4927 = vadd.f32 0.0, %v4926
        %4928 = vmatmul.f32.gmra.mxu0 %v4785
        %v4929 = vpop.f32.mrf.mxu0
        %v4930 = vadd.f32 0.0, %v4929
        %4931 = vdwg.mxu0
        %4932 = vmatpush.msra.mxu0 %v4818
        %4933 = vmatpush.msra.mxu0 %v4817
        %4934 = vmatpush.msra.mxu0 %v4816
        %4935 = vmatpush.msra.mxu0 %v4815
        %4936 = vmatpush.msra.mxu0 %v4814
        %4937 = vmatpush.msra.mxu0 %v4813
        %4938 = vmatpush.msra.mxu0 %v4812
        %4939 = vmatpush.msra.mxu0 %v4811
        %4940 = vmatpush.msra.mxu0 %v4810
        %4941 = vmatpush.msra.mxu0 %v4809
        %4942 = vmatpush.msra.mxu0 %v4808
        %4943 = vmatpush.msra.mxu0 %v4807
        %4944 = vmatpush.msra.mxu0 %v4806
        %4945 = vmatpush.msra.mxu0 %v4805
        %4946 = vmatpush.msra.mxu0 %v4804
        %4947 = vmatpush.msra.mxu0 %v4803
        %4948 = vmatmul.f32.gmra.mxu0 %v4724
        %v4949 = vpop.f32.mrf.mxu0
        %v4950 = vadd.f32 %v4837, %v4949
        %4951 = vmatmul.f32.gmra.mxu0 %v4726
        %v4952 = vpop.f32.mrf.mxu0
        %v4953 = vadd.f32 %v4840, %v4952
        %4954 = vmatmul.f32.gmra.mxu0 %v4728
        %v4955 = vpop.f32.mrf.mxu0
        %v4956 = vadd.f32 %v4843, %v4955
        %4957 = vmatmul.f32.gmra.mxu0 %v4730
        %v4958 = vpop.f32.mrf.mxu0
        %v4959 = vadd.f32 %v4846, %v4958
        %4960 = vmatmul.f32.gmra.mxu0 %v4732
        %v4961 = vpop.f32.mrf.mxu0
        %v4962 = vadd.f32 %v4849, %v4961
        %4963 = vmatmul.f32.gmra.mxu0 %v4734
        %v4964 = vpop.f32.mrf.mxu0
        %v4965 = vadd.f32 %v4852, %v4964
        %4966 = vmatmul.f32.gmra.mxu0 %v4736
        %v4967 = vpop.f32.mrf.mxu0
        %v4968 = vadd.f32 %v4855, %v4967
        %4969 = vmatmul.f32.gmra.mxu0 %v4738
        %v4970 = vpop.f32.mrf.mxu0
        %v4971 = vadd.f32 %v4858, %v4970
        %4972 = vmatmul.f32.gmra.mxu0 %v4740
        %v4973 = vpop.f32.mrf.mxu0
        %v4974 = vadd.f32 %v4861, %v4973
        %4975 = vmatmul.f32.gmra.mxu0 %v4742
        %v4976 = vpop.f32.mrf.mxu0
        %v4977 = vadd.f32 %v4864, %v4976
        %4978 = vmatmul.f32.gmra.mxu0 %v4744
        %v4979 = vpop.f32.mrf.mxu0
        %v4980 = vadd.f32 %v4867, %v4979
        %4981 = vmatmul.f32.gmra.mxu0 %v4746
        %v4982 = vpop.f32.mrf.mxu0
        %v4983 = vadd.f32 %v4870, %v4982
        %4984 = vmatmul.f32.gmra.mxu0 %v4748
        %v4985 = vpop.f32.mrf.mxu0
        %v4986 = vadd.f32 %v4873, %v4985
        %4987 = vmatmul.f32.gmra.mxu0 %v4750
        %v4988 = vpop.f32.mrf.mxu0
        %v4989 = vadd.f32 %v4876, %v4988
        %4990 = vmatmul.f32.gmra.mxu0 %v4752
        %v4991 = vpop.f32.mrf.mxu0
        %v4992 = vadd.f32 %v4879, %v4991
        %4993 = vmatmul.f32.gmra.mxu0 %v4754
        %v4994 = vpop.f32.mrf.mxu0
        %v4995 = vadd.f32 %v4882, %v4994
        %4996 = vmatmul.f32.gmra.mxu0 %v4756
        %v4997 = vpop.f32.mrf.mxu0
        %v4998 = vadd.f32 %v4885, %v4997
        %4999 = vmatmul.f32.gmra.mxu0 %v4758
        %v5000 = vpop.f32.mrf.mxu0
        %v5001 = vadd.f32 %v4888, %v5000
        %5002 = vmatmul.f32.gmra.mxu0 %v4760
        %v5003 = vpop.f32.mrf.mxu0
        %v5004 = vadd.f32 %v4891, %v5003
        %5005 = vmatmul.f32.gmra.mxu0 %v4762
        %v5006 = vpop.f32.mrf.mxu0
        %v5007 = vadd.f32 %v4894, %v5006
        %5008 = vmatmul.f32.gmra.mxu0 %v4764
        %v5009 = vpop.f32.mrf.mxu0
        %v5010 = vadd.f32 %v4897, %v5009
        %5011 = vmatmul.f32.gmra.mxu0 %v4766
        %v5012 = vpop.f32.mrf.mxu0
        %v5013 = vadd.f32 %v4900, %v5012
        %5014 = vmatmul.f32.gmra.mxu0 %v4768
        %v5015 = vpop.f32.mrf.mxu0
        %v5016 = vadd.f32 %v4903, %v5015
        %5017 = vmatmul.f32.gmra.mxu0 %v4770
        %v5018 = vpop.f32.mrf.mxu0
        %v5019 = vadd.f32 %v4906, %v5018
        %5020 = vmatmul.f32.gmra.mxu0 %v4772
        %v5021 = vpop.f32.mrf.mxu0
        %v5022 = vadd.f32 %v4909, %v5021
        %5023 = vmatmul.f32.gmra.mxu0 %v4774
        %v5024 = vpop.f32.mrf.mxu0
        %v5025 = vadd.f32 %v4912, %v5024
        %5026 = vmatmul.f32.gmra.mxu0 %v4776
        %v5027 = vpop.f32.mrf.mxu0
        %v5028 = vadd.f32 %v4915, %v5027
        %5029 = vmatmul.f32.gmra.mxu0 %v4778
        %v5030 = vpop.f32.mrf.mxu0
        %v5031 = vadd.f32 %v4918, %v5030
        %5032 = vmatmul.f32.gmra.mxu0 %v4780
        %v5033 = vpop.f32.mrf.mxu0
        %v5034 = vadd.f32 %v4921, %v5033
        %5035 = vmatmul.f32.gmra.mxu0 %v4782
        %v5036 = vpop.f32.mrf.mxu0
        %v5037 = vadd.f32 %v4924, %v5036
        %5038 = vmatmul.f32.gmra.mxu0 %v4784
        %v5039 = vpop.f32.mrf.mxu0
        %v5040 = vadd.f32 %v4927, %v5039
        %5041 = vmatmul.f32.gmra.mxu0 %v4786
        %v5042 = vpop.f32.mrf.mxu0
        %v5043 = vadd.f32 %v4930, %v5042
        %5044 = vdwg.mxu0
        %v5045 = vadd.f32 %v355, %v4950
        %v5046 = vadd.f32 %v356, %v4953
        %v5047 = vadd.f32 %v357, %v4956
        %v5048 = vadd.f32 %v358, %v4959
        %v5049 = vadd.f32 %v359, %v4962
        %v5050 = vadd.f32 %v360, %v4965
        %v5051 = vadd.f32 %v361, %v4968
        %v5052 = vadd.f32 %v362, %v4971
        %v5053 = vadd.f32 %v363, %v4974
        %v5054 = vadd.f32 %v364, %v4977
        %v5055 = vadd.f32 %v365, %v4980
        %v5056 = vadd.f32 %v366, %v4983
        %v5057 = vadd.f32 %v367, %v4986
        %v5058 = vadd.f32 %v368, %v4989
        %v5059 = vadd.f32 %v369, %v4992
        %v5060 = vadd.f32 %v370, %v4995
        %v5061 = vadd.f32 %v371, %v4998
        %v5062 = vadd.f32 %v372, %v5001
        %v5063 = vadd.f32 %v373, %v5004
        %v5064 = vadd.f32 %v374, %v5007
        %v5065 = vadd.f32 %v375, %v5010
        %v5066 = vadd.f32 %v376, %v5013
        %v5067 = vadd.f32 %v377, %v5016
        %v5068 = vadd.f32 %v378, %v5019
        %v5069 = vadd.f32 %v379, %v5022
        %v5070 = vadd.f32 %v380, %v5025
        %v5071 = vadd.f32 %v381, %v5028
        %v5072 = vadd.f32 %v382, %v5031
        %v5073 = vadd.f32 %v383, %v5034
        %v5074 = vadd.f32 %v384, %v5037
        %v5075 = vadd.f32 %v385, %v5040
        %v5076 = vadd.f32 %v386, %v5043
        %5077 = vst [vmem:[%s352] sm:$0xff] %v5045
        %5078 = vst [vmem:[%s352 + $0x8] sm:$0xff] %v5046
        %5079 = vst [vmem:[%s352 + $0x10] sm:$0xff] %v5047
        %5080 = vst [vmem:[%s352 + $0x18] sm:$0xff] %v5048
        %5081 = vst [vmem:[%s352 + $0x20] sm:$0xff] %v5049
        %5082 = vst [vmem:[%s352 + $0x28] sm:$0xff] %v5050
        %5083 = vst [vmem:[%s352 + $0x30] sm:$0xff] %v5051
        %5084 = vst [vmem:[%s352 + $0x38] sm:$0xff] %v5052
        %5085 = vst [vmem:[%s352 + $0x40] sm:$0xff] %v5053
        %5086 = vst [vmem:[%s352 + $0x48] sm:$0xff] %v5054
        %5087 = vst [vmem:[%s352 + $0x50] sm:$0xff] %v5055
        %5088 = vst [vmem:[%s352 + $0x58] sm:$0xff] %v5056
        %5089 = vst [vmem:[%s352 + $0x60] sm:$0xff] %v5057
        %5090 = vst [vmem:[%s352 + $0x68] sm:$0xff] %v5058
        %5091 = vst [vmem:[%s352 + $0x70] sm:$0xff] %v5059
        %5092 = vst [vmem:[%s352 + $0x78] sm:$0xff] %v5060
        %5093 = vst [vmem:[%s352 + $0x80] sm:$0xff] %v5061
        %5094 = vst [vmem:[%s352 + $0x88] sm:$0xff] %v5062
        %5095 = vst [vmem:[%s352 + $0x90] sm:$0xff] %v5063
        %5096 = vst [vmem:[%s352 + $0x98] sm:$0xff] %v5064
        %5097 = vst [vmem:[%s352 + $0xa0] sm:$0xff] %v5065
        %5098 = vst [vmem:[%s352 + $0xa8] sm:$0xff] %v5066
        %5099 = vst [vmem:[%s352 + $0xb0] sm:$0xff] %v5067
        %5100 = vst [vmem:[%s352 + $0xb8] sm:$0xff] %v5068
        %5101 = vst [vmem:[%s352 + $0xc0] sm:$0xff] %v5069
        %5102 = vst [vmem:[%s352 + $0xc8] sm:$0xff] %v5070
        %5103 = vst [vmem:[%s352 + $0xd0] sm:$0xff] %v5071
        %5104 = vst [vmem:[%s352 + $0xd8] sm:$0xff] %v5072
        %5105 = vst [vmem:[%s352 + $0xe0] sm:$0xff] %v5073
        %5106 = vst [vmem:[%s352 + $0xe8] sm:$0xff] %v5074
        %5107 = vst [vmem:[%s352 + $0xf0] sm:$0xff] %v5075
        %5108 = vst [vmem:[%s352 + $0xf8] sm:$0xff] %v5076
        %s5109 = sand.u32 %s228, 1
        %s5110 = scalar_lea.sflag [#allocation4], %s5109
        %s5111 = sand.u32 %s228, 1
        %s5112 = smul.addr %s5111, 256
        %s5113 = scalar_lea.vmem [#allocation5], %s5112
        // Predicated region
        $region61: #{tpu_custom_call.1} parent=55 // pred_check
          %p5114 = pneg %p238
        $region62: #{tpu_custom_call.1} parent=55 // pred_check_branch
          %5116 = sbr.rel (%p5114) target = $region64
        $region63: #{tpu_custom_call.1} parent=55 // pred_region
          %s5117 = smul.u32 32, %s26
          %5119 = vsyncadd %s5110, 0
          %s5120 = smul.addr %s5117, 8
          %s5121 = scalar_lea.hbm %s9, %s5120
          %s5122 = sshll.u32 %s5113, 4
          %s5123 = int_to_ptr.vmem [resolvable:$true] %s5122
          %s5124 = sshll.u32 %s5121, 4
          %s5125 = int_to_ptr.hbm [resolvable:$true] %s5124
          %5130 = dma.vmem_to_hbm [thread:$0]  %s5123, 4096, %s5125, %s5110, 128, 128, 8
        $region64: #{tpu_custom_call.1} parent=55 // pred_fallthru
          _
      $region56: #{tpu_custom_call.1} parent=5 // pred_fallthru
        _
      %p5131 = scmp.le.s32.totalorder 2, %s21
      // Predicated region
      $region65: #{tpu_custom_call.1} parent=5 // pred_check
        %p5132 = pneg %p5131
      $region66: #{tpu_custom_call.1} parent=5 // pred_check_branch
        %5134 = sbr.rel (%p5132) target = $region68
      $region67: #{tpu_custom_call.1} parent=5 // pred_region
        %s5135 = ssub.s32 %s21, 2
        // Predicated region
        $region69: #{tpu_custom_call.1} parent=67 // pred_check
          %p5136 = pneg %p244
        $region70: #{tpu_custom_call.1} parent=67 // pred_check_branch
          %5138 = sbr.rel (%p5136) target = $region72
        $region71: #{tpu_custom_call.1} parent=67 // pred_region
          %s5139 = sand.u32 %s229, 1
          %s5140 = scalar_lea.sflag [#allocation4], %s5139
          %s5141 = sand.u32 %s229, 1
          %s5142 = smul.addr %s5141, 256
          %s5143 = scalar_lea.vmem [#allocation5], %s5142
          %5145 = dma.done %s5140, 4096
        $region72: #{tpu_custom_call.1} parent=67 // pred_fallthru
          _
      $region68: #{tpu_custom_call.1} parent=5 // pred_fallthru
        _
    $region6: #{tpu_custom_call.1} parent=1 // loop_footer
      %s25 = sadd.s32 1, %s21
    $region7: #{tpu_custom_call.1} parent=1 // loop_footer_branch
      %20 = sbr.rel target = $region3
    $region8: #{tpu_custom_call.1} parent=1 // loop_exit
      _
    %5146 = vsyncpa [#allocation3], 1
    %s5147 = scalar_lea.sflag [#allocation3], 1
    %5148 = vsyncpa %s5147, 1
    %5149 = vsyncpa [#allocation4], 1
    %s5150 = scalar_lea.sflag [#allocation4], 1
    %5151 = vsyncpa %s5150, 1

</llo_original>
